<compile_context>
chip_gen: v6e
topology: v6e:2x2x1
jax: 0.10.0
libtpu: 0.0.40
codegen_flags: <defaults>
</compile_context>

<pallas_src>
import math

import jax
import jax.numpy as jnp
from jax.experimental import pallas as pl
from jax.experimental.pallas import tpu as pltpu


def _round_up(x, m):
    return ((x + m - 1) // m) * m


def _cdiv(a, b):
    return -(-a // b)


def _kgm_head_kernel(feat_ref, w_ref, b_ref, out_ref, acc_ref):
    """feat_ref: (tb, C, thw)  native-dtype feature chunk (C on sublanes, HW on lanes)
       w_ref:   (C, Npad)      bf16, 5 heads concatenated, zero-padded, 1/HW folded in
       b_ref:   (1, Npad)      f32
       out_ref: (tb, Npad)     f32
       acc_ref: (tb, C)        f32 spatial-sum accumulator (scratch)"""
    k = pl.program_id(1)

    @pl.when(k == 0)
    def _():
        acc_ref[...] = jnp.zeros_like(acc_ref)

    # Spatial sum-pool in f32 (the mean's 1/HW scale is folded into w_ref).
    acc_ref[...] += jnp.sum(feat_ref[...].astype(jnp.float32), axis=2)

    @pl.when(k == pl.num_programs(1) - 1)
    def _():
        pooled = acc_ref[...].astype(jnp.bfloat16)                   # (tb, C)
        y = jnp.dot(pooled, w_ref[...],
                    preferred_element_type=jnp.float32)              # (tb, Npad)
        out_ref[...] = y + b_ref[...]


def kgm_head(feat_bcs, w_scaled_bf16, b_pad_f32):
    """feat_bcs: (B, C, HW) float (any); w: (C, Npad) bf16 (1/HW folded in);
    b: (Npad,) f32 -> (B, Npad) f32."""
    B, C, HW = feat_bcs.shape
    Npad = w_scaled_bf16.shape[1]
    itemsize = feat_bcs.dtype.itemsize

    # Generation-aware VMEM budgeting.
    try:
        vmem_cap = int(pltpu.get_tpu_info().vmem_capacity_bytes)
    except Exception:
        vmem_cap = 128 << 20
    if vmem_cap <= (64 << 20):            # v7x-class: 64 MiB physical per TC
        feat_budget, limit_cap = 8 << 20, 40 << 20
    else:                                 # v5e / v6e: 128 MiB physical
        feat_budget, limit_cap = 24 << 20, 64 << 20

    # ---- spatial (reduction) tiling --------------------------------------
    row_bytes = C * HW * itemsize
    if 8 * row_bytes <= feat_budget:
        thw, grid_k = HW, 1               # common path: full spatial extent, no pad
    else:
        # Rare fallback for oversized feature maps: tile HW as a reduction axis.
        thw = max(128, (feat_budget // (8 * C * itemsize)) // 128 * 128)
        grid_k = _cdiv(HW, thw)
        hw_pad = grid_k * thw
        if hw_pad != HW:                  # zero-pad so ragged chunks sum correctly
            feat_bcs = jnp.pad(feat_bcs, ((0, 0), (0, 0), (0, hw_pad - HW)))

    # ---- batch tiling ------------------------------------------------------
    chunk_row_bytes = C * thw * itemsize
    tb = max(8, min(1024, (feat_budget // max(chunk_row_bytes, 1)) // 8 * 8))
    if B <= 8:
        tb = B                            # single block; block dim == full array dim
    else:
        if B >= 16:
            # Keep >= 2 batch steps so both v7x TensorCores get work.
            tb = min(tb, _round_up(_cdiv(B, 2), 8))
        tb = max(8, min(tb, _round_up(B, 8)))
    grid_b = _cdiv(B, tb)

    b2 = b_pad_f32.reshape(1, Npad).astype(jnp.float32)
    w_bytes = C * Npad * w_scaled_bf16.dtype.itemsize

    cost = pl.CostEstimate(
        flops=2 * B * C * Npad + B * C * HW,
        transcendentals=0,
        bytes_accessed=B * C * HW * itemsize + w_bytes + Npad * 4 + B * Npad * 4,
    )

    def _build_and_run(single_buffer_consts):
        pm = ({"pipeline_mode": pl.Buffered(1)} if single_buffer_consts else {})
        const_bufs = 1 if single_buffer_consts else 2
        vmem_need = (2 * tb * C * thw * itemsize          # double-buffered feat tile
                     + const_bufs * (w_bytes + Npad * 4)  # resident weights / bias
                     + 2 * tb * Npad * 4                  # double-buffered output
                     + tb * C * 4)                        # accumulator scratch
        vmem_limit = int(min(max(vmem_need + (4 << 20), 16 << 20), limit_cap))
        return pl.pallas_call(
            _kgm_head_kernel,
            out_shape=jax.ShapeDtypeStruct((B, Npad), jnp.float32),
            grid=(grid_b, grid_k),
            in_specs=[
                pl.BlockSpec((tb, C, thw), lambda i, k: (i, 0, k)),
                # Batch-independent index maps: weights/bias stay VMEM-resident.
                pl.BlockSpec((C, Npad), lambda i, k: (0, 0), **pm),
                pl.BlockSpec((1, Npad), lambda i, k: (0, 0), **pm),
            ],
            out_specs=pl.BlockSpec((tb, Npad), lambda i, k: (i, 0)),
            scratch_shapes=[pltpu.VMEM((tb, C), jnp.float32)],
            compiler_params=pltpu.CompilerParams(
                dimension_semantics=("parallel", "arbitrary"),
                vmem_limit_bytes=vmem_limit,
            ),
            cost_estimate=cost,
        )(feat_bcs, w_scaled_bf16, b2)

    try:
        return _build_and_run(True)
    except Exception:
        # Fallback if this JAX build rejects single-buffered constant blocks.
        return _build_and_run(False)


class KGMPallas:
    """JAX/Pallas port of the KGM head (multi_task=True)."""

    def __init__(self, num_class, deep_feature_size, end_dim=128, seed=0):
        self.num_class = tuple(num_class)
        self.end_dim = int(end_dim)
        self.deep_feature_size = int(deep_feature_size)

        out_dims = list(self.num_class) + [self.end_dim]
        n_total = sum(out_dims)
        n_pad = _round_up(n_total, 128)          # lane-dense output width

        key = jax.random.PRNGKey(seed)
        ws, bs = [], []
        bound = 1.0 / math.sqrt(self.deep_feature_size)
        for n_out in out_dims:
            kw, kb, key = jax.random.split(key, 3)
            # nn.Linear default init: U(-1/sqrt(fan_in), 1/sqrt(fan_in))
            ws.append(jax.random.uniform(kw, (self.deep_feature_size, n_out),
                                         jnp.float32, -bound, bound))
            bs.append(jax.random.uniform(kb, (n_out,), jnp.float32, -bound, bound))
        w_cat = jnp.concatenate(ws, axis=1)      # (C, N_total) f32
        b_cat = jnp.concatenate(bs, axis=0)      # (N_total,)  f32

        self.w_cat = w_cat
        self.b_cat = b_cat
        # Zero-pad the concatenated heads to a multiple of 128 output lanes.
        self.w_pad = jnp.pad(w_cat, ((0, 0), (0, n_pad - n_total)))
        self.b_pad = jnp.pad(b_cat, ((0, n_pad - n_total),))
        self._splits = out_dims
        self.n_total = n_total
        self.n_pad = n_pad
        # One-time (per spatial size) bf16 weights with the 1/HW pooling scale
        # folded in so the kernel sum-pools instead of mean-pooling.
        self._w_scaled_cache = {}

    def _scaled_weights(self, hw):
        w = self._w_scaled_cache.get(hw)
        if w is None:
            w = (self.w_pad * (1.0 / float(hw))).astype(jnp.bfloat16)
            self._w_scaled_cache[hw] = w
        return w

    def __call__(self, feat_nchw):
        B, C, H, W = feat_nchw.shape
        assert C == self.deep_feature_size
        hw = H * W
        # Free contiguous collapse; no transpose, no dtype cast, no batch pad.
        feat = feat_nchw.reshape(B, C, hw)
        y = kgm_head(feat, self._scaled_weights(hw), self.b_pad)   # (B, Npad) f32
        outs, off = [], 0
        for n in self._splits:
            outs.append(y[:, off:off + n])
            off += n
        # [pred_type, pred_school, pred_tf, pred_author, graph_proj]
        return outs


def _reference_f32(feat_nchw, w_cat, b_cat, splits):
    pooled = jnp.mean(feat_nchw.astype(jnp.float32), axis=(2, 3))
    y = pooled @ w_cat + b_cat
    outs, off = [], 0
    for n in splits:
        outs.append(y[:, off:off + n])
        off += n
    return outs


def _reference_bf16(feat_nchw, w_scaled_bf16, b_pad, splits, n_total):
    """Reference mirroring the kernel's arithmetic (f32 pool, bf16 MXU, f32 acc)."""
    B, C, H, W = feat_nchw.shape
    pooled = jnp.sum(feat_nchw.astype(jnp.float32).reshape(B, C, H * W), axis=2)
    y = jnp.dot(pooled.astype(jnp.bfloat16), w_scaled_bf16,
                preferred_element_type=jnp.float32)
    y = y + b_pad.reshape(1, -1)
    y = y[:, :n_total]
    outs, off = [], 0
    for n in splits:
        outs.append(y[:, off:off + n])
        off += n
    return outs


if __name__ == "__main__":
    # Small shapes consistent with the module's forward:
    #   backbone deep feature map (B, C, H, W) -> avg pool -> (B, C) -> 5 heads
    B, C, H, W = 2, 256, 8, 8
    num_class = (10, 16, 2, 32)          # num_class[0..3]
    end_dim = 128

    key = jax.random.PRNGKey(0)
    feat = jax.random.normal(key, (B, C, H, W), jnp.float32)

    model = KGMPallas(num_class, deep_feature_size=C, end_dim=end_dim, seed=0)

    outs = model(feat)
    outs = [jax.block_until_ready(o) for o in outs]

    # 1) Check against a reference mirroring the kernel's bf16/f32 arithmetic.
    refs_bf16 = _reference_bf16(feat, model._scaled_weights(H * W), model.b_pad,
                                model._splits, model.n_total)
    for o, r in zip(outs, refs_bf16):
        assert o.shape == r.shape
        assert float(jnp.max(jnp.abs(o - r))) < 1e-2

    # 2) Loose check against the pure-f32 module semantics (bf16 quantization).
    refs_f32 = _reference_f32(feat, model.w_cat, model.b_cat, model._splits)
    for o, r in zip(outs, refs_f32):
        scale = float(jnp.max(jnp.abs(r))) + 1.0
        assert float(jnp.max(jnp.abs(o - r))) < 0.05 * scale

    expected_shapes = [(B, num_class[0]), (B, num_class[1]),
                       (B, num_class[2]), (B, num_class[3]), (B, end_dim)]
    assert [tuple(o.shape) for o in outs] == expected_shapes

    print("KERNEL_OK")
</pallas_src>

<mosaic_0001>
module attributes {stable_mosaic.version = 11 : i64} {
  func.func @_kgm_head_kernel(%arg0: i32, %arg1: i32, %arg2: memref<2x256x64xf32, #tpu.memory_space<vmem>>, %arg3: memref<256x256xbf16, #tpu.memory_space<vmem>>, %arg4: memref<1x256xf32, #tpu.memory_space<vmem>>, %arg5: memref<2x256xf32, #tpu.memory_space<vmem>>, %arg6: memref<2x256xf32, #tpu.memory_space<vmem>>) attributes {dimension_semantics = [#tpu.dimension_semantics<parallel>, #tpu.dimension_semantics<arbitrary>], iteration_bounds = array<i64: 1, 1>, scalar_prefetch = 0 : i64, scratch_operands = 1 : i64, tpu.core_type = #tpu.core_type<tc>, window_params = [{transform_indices = @transform_0, window_bounds = array<i64: 2, 256, 64>}, {pipeline_mode = #tpu.pipeline_mode<synchronous>, transform_indices = @transform_1, window_bounds = array<i64: 256, 256>}, {pipeline_mode = #tpu.pipeline_mode<synchronous>, transform_indices = @transform_2, window_bounds = array<i64: 1, 256>}, {transform_indices = @transform_3, window_bounds = array<i64: 2, 256>}]} {
    %c0_i32 = arith.constant 0 : i32
    %0 = arith.cmpi eq, %arg1, %c0_i32 : i32
    %1 = arith.extui %0 : i1 to i32
    %c0_i32_0 = arith.constant 0 : i32
    %2 = arith.cmpi ne, %1, %c0_i32_0 : i32
    scf.if %2 {
      %cst_9 = arith.constant 0.000000e+00 : f32
      %11 = vector.broadcast %cst_9 : f32 to vector<2x256xf32>
      %c0_10 = arith.constant 0 : index
      %c0_11 = arith.constant 0 : index
      %12 = vector.load %arg6[%c0_10, %c0_11] : memref<2x256xf32, #tpu.memory_space<vmem>>, vector<2x256xf32>
      tpu.vector_store %arg6[%c0_10, %c0_11], %11 {strides = array<i32>} : memref<2x256xf32, #tpu.memory_space<vmem>>, vector<2x256xf32>,
    } else {
    }
    %c0 = arith.constant 0 : index
    %c0_1 = arith.constant 0 : index
    %3 = vector.load %arg6[%c0, %c0_1] : memref<2x256xf32, #tpu.memory_space<vmem>>, vector<2x256xf32>
    %c0_2 = arith.constant 0 : index
    %c0_3 = arith.constant 0 : index
    %c0_4 = arith.constant 0 : index
    %4 = vector.load %arg2[%c0_2, %c0_3, %c0_4] : memref<2x256x64xf32, #tpu.memory_space<vmem>>, vector<2x256x64xf32>
    %cst = arith.constant dense<0.000000e+00> : vector<2x256xf32>
    %5 = vector.multi_reduction <add>, %4, %cst [2] : vector<2x256x64xf32> to vector<2x256xf32>
    %6 = arith.addf %3, %5 : vector<2x256xf32>
    %c0_5 = arith.constant 0 : index
    %c0_6 = arith.constant 0 : index
    %7 = vector.load %arg6[%c0_5, %c0_6] : memref<2x256xf32, #tpu.memory_space<vmem>>, vector<2x256xf32>
    tpu.vector_store %arg6[%c0_5, %c0_6], %6 {strides = array<i32>} : memref<2x256xf32, #tpu.memory_space<vmem>>, vector<2x256xf32>,
    %c0_i32_7 = arith.constant 0 : i32
    %8 = arith.cmpi eq, %arg1, %c0_i32_7 : i32
    %9 = arith.extui %8 : i1 to i32
    %c0_i32_8 = arith.constant 0 : i32
    %10 = arith.cmpi ne, %9, %c0_i32_8 : i32
    scf.if %10 {
      %c0_9 = arith.constant 0 : index
      %c0_10 = arith.constant 0 : index
      %11 = vector.load %arg6[%c0_9, %c0_10] : memref<2x256xf32, #tpu.memory_space<vmem>>, vector<2x256xf32>
      %12 = arith.truncf %11 : vector<2x256xf32> to vector<2x256xbf16>
      %c0_11 = arith.constant 0 : index
      %c0_12 = arith.constant 0 : index
      %13 = vector.load %arg3[%c0_11, %c0_12] : memref<256x256xbf16, #tpu.memory_space<vmem>>, vector<256x256xbf16>
      %cst_13 = arith.constant dense<0.000000e+00> : vector<2x256xf32>
      %14 = tpu.matmul %12, %13, %cst_13 {dimension_numbers = #tpu.dot_dimension_numbers<[1], [0], [0], [1], [0, 0, 1, 1], [], []>} : vector<2x256xbf16>, vector<256x256xbf16>, vector<2x256xf32> -> vector<2x256xf32>
      %c0_14 = arith.constant 0 : index
      %c0_15 = arith.constant 0 : index
      %15 = vector.load %arg4[%c0_14, %c0_15] : memref<1x256xf32, #tpu.memory_space<vmem>>, vector<1x256xf32>
      %16 = vector.broadcast %15 : vector<1x256xf32> to vector<2x256xf32>
      %17 = arith.addf %14, %16 : vector<2x256xf32>
      %c0_16 = arith.constant 0 : index
      %c0_17 = arith.constant 0 : index
      %18 = vector.load %arg5[%c0_16, %c0_17] : memref<2x256xf32, #tpu.memory_space<vmem>>, vector<2x256xf32>
      tpu.vector_store %arg5[%c0_16, %c0_17], %17 {strides = array<i32>} : memref<2x256xf32, #tpu.memory_space<vmem>>, vector<2x256xf32>,
    } else {
    }
    return
  }
  func.func @transform_0(%arg0: i32, %arg1: i32) -> (i32, i32, i32) {
    %c0_i32 = arith.constant 0 : i32
    %c0_i32_0 = arith.constant 0 : i32
    return %arg0, %c0_i32, %arg1 : i32, i32, i32
  }
  func.func @transform_1(%arg0: i32, %arg1: i32) -> (i32, i32) {
    %c0_i32 = arith.constant 0 : i32
    %c0_i32_0 = arith.constant 0 : i32
    %c0_i32_1 = arith.constant 0 : i32
    return %c0_i32, %c0_i32_0 : i32, i32
  }
  func.func @transform_2(%arg0: i32, %arg1: i32) -> (i32, i32) {
    %c0_i32 = arith.constant 0 : i32
    %c0_i32_0 = arith.constant 0 : i32
    %c0_i32_1 = arith.constant 0 : i32
    return %c0_i32, %c0_i32_0 : i32, i32
  }
  func.func @transform_3(%arg0: i32, %arg1: i32) -> (i32, i32) {
    %c0_i32 = arith.constant 0 : i32
    %c0_i32_0 = arith.constant 0 : i32
    return %arg0, %c0_i32 : i32, i32
  }
}

module attributes {stable_mosaic.version = 11 : i64} {
  func.func @_kgm_head_kernel(%arg0: i32, %arg1: i32, %arg2: memref<2x256x64xf32, #tpu.memory_space<vmem>>, %arg3: memref<256x256xbf16, #tpu.memory_space<vmem>>, %arg4: memref<1x256xf32, #tpu.memory_space<vmem>>, %arg5: memref<2x256xf32, #tpu.memory_space<vmem>>, %arg6: memref<2x256xf32, #tpu.memory_space<vmem>>) attributes {dimension_semantics = [#tpu.dimension_semantics<parallel>, #tpu.dimension_semantics<arbitrary>], iteration_bounds = array<i64: 1, 1>, scalar_prefetch = 0 : i64, scratch_operands = 1 : i64, tpu.core_type = #tpu.core_type<tc>, window_params = [{transform_indices = @transform_0, window_bounds = array<i64: 2, 256, 64>}, {pipeline_mode = #tpu.pipeline_mode<synchronous>, transform_indices = @transform_1, window_bounds = array<i64: 256, 256>}, {pipeline_mode = #tpu.pipeline_mode<synchronous>, transform_indices = @transform_2, window_bounds = array<i64: 1, 256>}, {transform_indices = @transform_3, window_bounds = array<i64: 2, 256>}]} {
    %c0_i32 = arith.constant 0 : i32
    %0 = arith.cmpi eq, %arg1, %c0_i32 : i32
    %1 = arith.extui %0 : i1 to i32
    %c0_i32_0 = arith.constant 0 : i32
    %2 = arith.cmpi ne, %1, %c0_i32_0 : i32
    scf.if %2 {
      %cst_9 = arith.constant 0.000000e+00 : f32
      %11 = vector.broadcast %cst_9 : f32 to vector<2x256xf32>
      %c0_10 = arith.constant 0 : index
      %c0_11 = arith.constant 0 : index
      %12 = vector.load %arg6[%c0_10, %c0_11] : memref<2x256xf32, #tpu.memory_space<vmem>>, vector<2x256xf32>
      tpu.vector_store %arg6[%c0_10, %c0_11], %11 {strides = array<i32>} : memref<2x256xf32, #tpu.memory_space<vmem>>, vector<2x256xf32>,
    } else {
    }
    %c0 = arith.constant 0 : index
    %c0_1 = arith.constant 0 : index
    %3 = vector.load %arg6[%c0, %c0_1] : memref<2x256xf32, #tpu.memory_space<vmem>>, vector<2x256xf32>
    %c0_2 = arith.constant 0 : index
    %c0_3 = arith.constant 0 : index
    %c0_4 = arith.constant 0 : index
    %4 = vector.load %arg2[%c0_2, %c0_3, %c0_4] : memref<2x256x64xf32, #tpu.memory_space<vmem>>, vector<2x256x64xf32>
    %cst = arith.constant dense<0.000000e+00> : vector<2x256xf32>
    %5 = vector.multi_reduction <add>, %4, %cst [2] : vector<2x256x64xf32> to vector<2x256xf32>
    %6 = arith.addf %3, %5 : vector<2x256xf32>
    %c0_5 = arith.constant 0 : index
    %c0_6 = arith.constant 0 : index
    %7 = vector.load %arg6[%c0_5, %c0_6] : memref<2x256xf32, #tpu.memory_space<vmem>>, vector<2x256xf32>
    tpu.vector_store %arg6[%c0_5, %c0_6], %6 {strides = array<i32>} : memref<2x256xf32, #tpu.memory_space<vmem>>, vector<2x256xf32>,
    %c0_i32_7 = arith.constant 0 : i32
    %8 = arith.cmpi eq, %arg1, %c0_i32_7 : i32
    %9 = arith.extui %8 : i1 to i32
    %c0_i32_8 = arith.constant 0 : i32
    %10 = arith.cmpi ne, %9, %c0_i32_8 : i32
    scf.if %10 {
      %c0_9 = arith.constant 0 : index
      %c0_10 = arith.constant 0 : index
      %11 = vector.load %arg6[%c0_9, %c0_10] : memref<2x256xf32, #tpu.memory_space<vmem>>, vector<2x256xf32>
      %12 = arith.truncf %11 : vector<2x256xf32> to vector<2x256xbf16>
      %c0_11 = arith.constant 0 : index
      %c0_12 = arith.constant 0 : index
      %13 = vector.load %arg3[%c0_11, %c0_12] : memref<256x256xbf16, #tpu.memory_space<vmem>>, vector<256x256xbf16>
      %cst_13 = arith.constant dense<0.000000e+00> : vector<2x256xf32>
      %14 = tpu.matmul %12, %13, %cst_13 {dimension_numbers = #tpu.dot_dimension_numbers<[1], [0], [0], [1], [0, 0, 1, 1], [], []>} : vector<2x256xbf16>, vector<256x256xbf16>, vector<2x256xf32> -> vector<2x256xf32>
      %c0_14 = arith.constant 0 : index
      %c0_15 = arith.constant 0 : index
      %15 = vector.load %arg4[%c0_14, %c0_15] : memref<1x256xf32, #tpu.memory_space<vmem>>, vector<1x256xf32>
      %16 = vector.broadcast %15 : vector<1x256xf32> to vector<2x256xf32>
      %17 = arith.addf %14, %16 : vector<2x256xf32>
      %c0_16 = arith.constant 0 : index
      %c0_17 = arith.constant 0 : index
      %18 = vector.load %arg5[%c0_16, %c0_17] : memref<2x256xf32, #tpu.memory_space<vmem>>, vector<2x256xf32>
      tpu.vector_store %arg5[%c0_16, %c0_17], %17 {strides = array<i32>} : memref<2x256xf32, #tpu.memory_space<vmem>>, vector<2x256xf32>,
    } else {
    }
    return
  }
  func.func @transform_0(%arg0: i32, %arg1: i32) -> (i32, i32, i32) {
    %c0_i32 = arith.constant 0 : i32
    %c0_i32_0 = arith.constant 0 : i32
    return %arg0, %c0_i32, %arg1 : i32, i32, i32
  }
  func.func @transform_1(%arg0: i32, %arg1: i32) -> (i32, i32) {
    %c0_i32 = arith.constant 0 : i32
    %c0_i32_0 = arith.constant 0 : i32
    %c0_i32_1 = arith.constant 0 : i32
    return %c0_i32, %c0_i32_0 : i32, i32
  }
  func.func @transform_2(%arg0: i32, %arg1: i32) -> (i32, i32) {
    %c0_i32 = arith.constant 0 : i32
    %c0_i32_0 = arith.constant 0 : i32
    %c0_i32_1 = arith.constant 0 : i32
    return %c0_i32, %c0_i32_0 : i32, i32
  }
  func.func @transform_3(%arg0: i32, %arg1: i32) -> (i32, i32) {
    %c0_i32 = arith.constant 0 : i32
    %c0_i32_0 = arith.constant 0 : i32
    return %arg0, %c0_i32 : i32, i32
  }
}

</mosaic_0001>

<llo_original>
// kernel: tpu_custom_call.1
$region0: #{tpu_custom_call.1}
  #allocation0 [shape = 'u32[]', space=smem, size = 0x4, offset = 0x4, fixed_abs, tag = 'smem constant byte address 0x4 - core index']
  #allocation1 [shape = 'u32[144,128]{1,0:T(1,128)}', space=vmem, size = 0x12000, scoped, tag = 'internal scratch']
  #allocation2 [shape = 'f32[2,256]{1,0:T(2,128)}', space=vmem, size = 0x800, scoped, tag = 'scratch operand']
  %s0 = inlined_call_operand.vmem [shape: f32[2,256,64], index: 0, kind: input, shape index: {}]
  %s1 = inlined_call_operand.vmem [shape: bf16[256,256], index: 1, kind: input, shape index: {}]
  %s2 = inlined_call_operand.vmem [shape: f32[1,256], index: 2, kind: input, shape index: {}]
  %s3 = inlined_call_operand.hbm [shape: f32[2,256], index: 3, kind: output, shape index: {}]
  %s4 = sld [smem:[#allocation0]]
  $region30: #{tpu_custom_call.1} parent=0
    _
  %s6 = ssub.s32 1, %s4
  %s7 = scalar_select 0, %s6, %s4
  $region1: #{tpu_custom_call.1} parent=0
    #allocation3 [shape = 'u8[2048]{0}', space=vmem, size = 0x800, scoped, tag = 'output window, operand 0, single buffered']
    #allocation4 [shape = 's32[1]{0}', space=sflag, size = 0x4, scoped, tag = 'scoped memory for tpu_custom_call.1']
    %8 = vsyncpa [#allocation4], 0
    // Predicated region
    $region2: #{tpu_custom_call.1} parent=1 // pred_check
      _
    $region3: #{tpu_custom_call.1} parent=1 // pred_check_branch
      %10 = sbr.rel (0) target = $region5
    $region4: #{tpu_custom_call.1} parent=1 // pred_region
      _
    $region5: #{tpu_custom_call.1} parent=1 // pred_fallthru
      _
    // Predicated region
    $region6: #{tpu_custom_call.1} parent=1 // pred_check
      _
    $region7: #{tpu_custom_call.1} parent=1 // pred_check_branch
      %12 = sbr.rel (0) target = $region9
    $region8: #{tpu_custom_call.1} parent=1 // pred_region
      _
    $region9: #{tpu_custom_call.1} parent=1 // pred_fallthru
      _
    // Predicated region
    $region10: #{tpu_custom_call.1} parent=1 // pred_check
      _
    $region11: #{tpu_custom_call.1} parent=1 // pred_check_branch
      %14 = sbr.rel (0) target = $region13
    $region12: #{tpu_custom_call.1} parent=1 // pred_region
      _
    $region13: #{tpu_custom_call.1} parent=1 // pred_fallthru
      _
    %p15 = scmp.eq.s32.totalorder 0, 0
    // Predicated region
    $region14: #{tpu_custom_call.1} parent=1 // pred_check
      %p16 = pneg %p15
    $region15: #{tpu_custom_call.1} parent=1 // pred_check_branch
      %18 = sbr.rel (%p16) target = $region17
    $region16: #{tpu_custom_call.1} parent=1 // pred_region
      %19 = vst [vmem:[#allocation2] sm:$0xf] 0.0
    $region17: #{tpu_custom_call.1} parent=1 // pred_fallthru
      _
    %v20 = vld [vmem:[#allocation2] sm:$0xf]
    %v21 = vld [vmem:[%s0] sm:$0xff]
    %v22 = vld [vmem:[%s0 + $0x8] sm:$0xff]
    %v23 = vld [vmem:[%s0 + $0x10] sm:$0xff]
    %v24 = vld [vmem:[%s0 + $0x18] sm:$0xff]
    %v25 = vld [vmem:[%s0 + $0x20] sm:$0xff]
    %v26 = vld [vmem:[%s0 + $0x28] sm:$0xff]
    %v27 = vld [vmem:[%s0 + $0x30] sm:$0xff]
    %v28 = vld [vmem:[%s0 + $0x38] sm:$0xff]
    %v29 = vld [vmem:[%s0 + $0x40] sm:$0xff]
    %v30 = vld [vmem:[%s0 + $0x48] sm:$0xff]
    %v31 = vld [vmem:[%s0 + $0x50] sm:$0xff]
    %v32 = vld [vmem:[%s0 + $0x58] sm:$0xff]
    %v33 = vld [vmem:[%s0 + $0x60] sm:$0xff]
    %v34 = vld [vmem:[%s0 + $0x68] sm:$0xff]
    %v35 = vld [vmem:[%s0 + $0x70] sm:$0xff]
    %v36 = vld [vmem:[%s0 + $0x78] sm:$0xff]
    %v37 = vld [vmem:[%s0 + $0x80] sm:$0xff]
    %v38 = vld [vmem:[%s0 + $0x88] sm:$0xff]
    %v39 = vld [vmem:[%s0 + $0x90] sm:$0xff]
    %v40 = vld [vmem:[%s0 + $0x98] sm:$0xff]
    %v41 = vld [vmem:[%s0 + $0xa0] sm:$0xff]
    %v42 = vld [vmem:[%s0 + $0xa8] sm:$0xff]
    %v43 = vld [vmem:[%s0 + $0xb0] sm:$0xff]
    %v44 = vld [vmem:[%s0 + $0xb8] sm:$0xff]
    %v45 = vld [vmem:[%s0 + $0xc0] sm:$0xff]
    %v46 = vld [vmem:[%s0 + $0xc8] sm:$0xff]
    %v47 = vld [vmem:[%s0 + $0xd0] sm:$0xff]
    %v48 = vld [vmem:[%s0 + $0xd8] sm:$0xff]
    %v49 = vld [vmem:[%s0 + $0xe0] sm:$0xff]
    %v50 = vld [vmem:[%s0 + $0xe8] sm:$0xff]
    %v51 = vld [vmem:[%s0 + $0xf0] sm:$0xff]
    %v52 = vld [vmem:[%s0 + $0xf8] sm:$0xff]
    %v53 = vld [vmem:[%s0 + $0x100] sm:$0xff]
    %v54 = vld [vmem:[%s0 + $0x108] sm:$0xff]
    %v55 = vld [vmem:[%s0 + $0x110] sm:$0xff]
    %v56 = vld [vmem:[%s0 + $0x118] sm:$0xff]
    %v57 = vld [vmem:[%s0 + $0x120] sm:$0xff]
    %v58 = vld [vmem:[%s0 + $0x128] sm:$0xff]
    %v59 = vld [vmem:[%s0 + $0x130] sm:$0xff]
    %v60 = vld [vmem:[%s0 + $0x138] sm:$0xff]
    %v61 = vld [vmem:[%s0 + $0x140] sm:$0xff]
    %v62 = vld [vmem:[%s0 + $0x148] sm:$0xff]
    %v63 = vld [vmem:[%s0 + $0x150] sm:$0xff]
    %v64 = vld [vmem:[%s0 + $0x158] sm:$0xff]
    %v65 = vld [vmem:[%s0 + $0x160] sm:$0xff]
    %v66 = vld [vmem:[%s0 + $0x168] sm:$0xff]
    %v67 = vld [vmem:[%s0 + $0x170] sm:$0xff]
    %v68 = vld [vmem:[%s0 + $0x178] sm:$0xff]
    %v69 = vld [vmem:[%s0 + $0x180] sm:$0xff]
    %v70 = vld [vmem:[%s0 + $0x188] sm:$0xff]
    %v71 = vld [vmem:[%s0 + $0x190] sm:$0xff]
    %v72 = vld [vmem:[%s0 + $0x198] sm:$0xff]
    %v73 = vld [vmem:[%s0 + $0x1a0] sm:$0xff]
    %v74 = vld [vmem:[%s0 + $0x1a8] sm:$0xff]
    %v75 = vld [vmem:[%s0 + $0x1b0] sm:$0xff]
    %v76 = vld [vmem:[%s0 + $0x1b8] sm:$0xff]
    %v77 = vld [vmem:[%s0 + $0x1c0] sm:$0xff]
    %v78 = vld [vmem:[%s0 + $0x1c8] sm:$0xff]
    %v79 = vld [vmem:[%s0 + $0x1d0] sm:$0xff]
    %v80 = vld [vmem:[%s0 + $0x1d8] sm:$0xff]
    %v81 = vld [vmem:[%s0 + $0x1e0] sm:$0xff]
    %v82 = vld [vmem:[%s0 + $0x1e8] sm:$0xff]
    %v83 = vld [vmem:[%s0 + $0x1f0] sm:$0xff]
    %v84 = vld [vmem:[%s0 + $0x1f8] sm:$0xff]
    %vm85 = vcmask 523264
    %v86 = vsel %vm85, %v21, 0.0
    %87 = vadd.xlane.f32.xlu0 %v86
    %v88 = vpop.xlane.xlu0 %87
    %v89 = vsel %vm85, %v22, 0.0
    %90 = vadd.xlane.f32.xlu0 %v89
    %v91 = vpop.xlane.xlu0 %90
    %v92 = vsel %vm85, %v23, 0.0
    %93 = vadd.xlane.f32.xlu0 %v92
    %v94 = vpop.xlane.xlu0 %93
    %v95 = vsel %vm85, %v24, 0.0
    %96 = vadd.xlane.f32.xlu0 %v95
    %v97 = vpop.xlane.xlu0 %96
    %v98 = vsel %vm85, %v25, 0.0
    %99 = vadd.xlane.f32.xlu0 %v98
    %v100 = vpop.xlane.xlu0 %99
    %v101 = vsel %vm85, %v26, 0.0
    %102 = vadd.xlane.f32.xlu0 %v101
    %v103 = vpop.xlane.xlu0 %102
    %v104 = vsel %vm85, %v27, 0.0
    %105 = vadd.xlane.f32.xlu0 %v104
    %v106 = vpop.xlane.xlu0 %105
    %v107 = vsel %vm85, %v28, 0.0
    %108 = vadd.xlane.f32.xlu0 %v107
    %v109 = vpop.xlane.xlu0 %108
    %v110 = vsel %vm85, %v29, 0.0
    %111 = vadd.xlane.f32.xlu0 %v110
    %v112 = vpop.xlane.xlu0 %111
    %v113 = vsel %vm85, %v30, 0.0
    %114 = vadd.xlane.f32.xlu0 %v113
    %v115 = vpop.xlane.xlu0 %114
    %v116 = vsel %vm85, %v31, 0.0
    %117 = vadd.xlane.f32.xlu0 %v116
    %v118 = vpop.xlane.xlu0 %117
    %v119 = vsel %vm85, %v32, 0.0
    %120 = vadd.xlane.f32.xlu0 %v119
    %v121 = vpop.xlane.xlu0 %120
    %v122 = vsel %vm85, %v33, 0.0
    %123 = vadd.xlane.f32.xlu0 %v122
    %v124 = vpop.xlane.xlu0 %123
    %v125 = vsel %vm85, %v34, 0.0
    %126 = vadd.xlane.f32.xlu0 %v125
    %v127 = vpop.xlane.xlu0 %126
    %v128 = vsel %vm85, %v35, 0.0
    %129 = vadd.xlane.f32.xlu0 %v128
    %v130 = vpop.xlane.xlu0 %129
    %v131 = vsel %vm85, %v36, 0.0
    %132 = vadd.xlane.f32.xlu0 %v131
    %v133 = vpop.xlane.xlu0 %132
    %v134 = vsel %vm85, %v37, 0.0
    %135 = vadd.xlane.f32.xlu0 %v134
    %v136 = vpop.xlane.xlu0 %135
    %v137 = vsel %vm85, %v38, 0.0
    %138 = vadd.xlane.f32.xlu0 %v137
    %v139 = vpop.xlane.xlu0 %138
    %v140 = vsel %vm85, %v39, 0.0
    %141 = vadd.xlane.f32.xlu0 %v140
    %v142 = vpop.xlane.xlu0 %141
    %v143 = vsel %vm85, %v40, 0.0
    %144 = vadd.xlane.f32.xlu0 %v143
    %v145 = vpop.xlane.xlu0 %144
    %v146 = vsel %vm85, %v41, 0.0
    %147 = vadd.xlane.f32.xlu0 %v146
    %v148 = vpop.xlane.xlu0 %147
    %v149 = vsel %vm85, %v42, 0.0
    %150 = vadd.xlane.f32.xlu0 %v149
    %v151 = vpop.xlane.xlu0 %150
    %v152 = vsel %vm85, %v43, 0.0
    %153 = vadd.xlane.f32.xlu0 %v152
    %v154 = vpop.xlane.xlu0 %153
    %v155 = vsel %vm85, %v44, 0.0
    %156 = vadd.xlane.f32.xlu0 %v155
    %v157 = vpop.xlane.xlu0 %156
    %v158 = vsel %vm85, %v45, 0.0
    %159 = vadd.xlane.f32.xlu0 %v158
    %v160 = vpop.xlane.xlu0 %159
    %v161 = vsel %vm85, %v46, 0.0
    %162 = vadd.xlane.f32.xlu0 %v161
    %v163 = vpop.xlane.xlu0 %162
    %v164 = vsel %vm85, %v47, 0.0
    %165 = vadd.xlane.f32.xlu0 %v164
    %v166 = vpop.xlane.xlu0 %165
    %v167 = vsel %vm85, %v48, 0.0
    %168 = vadd.xlane.f32.xlu0 %v167
    %v169 = vpop.xlane.xlu0 %168
    %v170 = vsel %vm85, %v49, 0.0
    %171 = vadd.xlane.f32.xlu0 %v170
    %v172 = vpop.xlane.xlu0 %171
    %v173 = vsel %vm85, %v50, 0.0
    %174 = vadd.xlane.f32.xlu0 %v173
    %v175 = vpop.xlane.xlu0 %174
    %v176 = vsel %vm85, %v51, 0.0
    %177 = vadd.xlane.f32.xlu0 %v176
    %v178 = vpop.xlane.xlu0 %177
    %v179 = vsel %vm85, %v52, 0.0
    %180 = vadd.xlane.f32.xlu0 %v179
    %v181 = vpop.xlane.xlu0 %180
    %v182 = vsel %vm85, %v53, 0.0
    %183 = vadd.xlane.f32.xlu0 %v182
    %v184 = vpop.xlane.xlu0 %183
    %v185 = vsel %vm85, %v54, 0.0
    %186 = vadd.xlane.f32.xlu0 %v185
    %v187 = vpop.xlane.xlu0 %186
    %v188 = vsel %vm85, %v55, 0.0
    %189 = vadd.xlane.f32.xlu0 %v188
    %v190 = vpop.xlane.xlu0 %189
    %v191 = vsel %vm85, %v56, 0.0
    %192 = vadd.xlane.f32.xlu0 %v191
    %v193 = vpop.xlane.xlu0 %192
    %v194 = vsel %vm85, %v57, 0.0
    %195 = vadd.xlane.f32.xlu0 %v194
    %v196 = vpop.xlane.xlu0 %195
    %v197 = vsel %vm85, %v58, 0.0
    %198 = vadd.xlane.f32.xlu0 %v197
    %v199 = vpop.xlane.xlu0 %198
    %v200 = vsel %vm85, %v59, 0.0
    %201 = vadd.xlane.f32.xlu0 %v200
    %v202 = vpop.xlane.xlu0 %201
    %v203 = vsel %vm85, %v60, 0.0
    %204 = vadd.xlane.f32.xlu0 %v203
    %v205 = vpop.xlane.xlu0 %204
    %v206 = vsel %vm85, %v61, 0.0
    %207 = vadd.xlane.f32.xlu0 %v206
    %v208 = vpop.xlane.xlu0 %207
    %v209 = vsel %vm85, %v62, 0.0
    %210 = vadd.xlane.f32.xlu0 %v209
    %v211 = vpop.xlane.xlu0 %210
    %v212 = vsel %vm85, %v63, 0.0
    %213 = vadd.xlane.f32.xlu0 %v212
    %v214 = vpop.xlane.xlu0 %213
    %v215 = vsel %vm85, %v64, 0.0
    %216 = vadd.xlane.f32.xlu0 %v215
    %v217 = vpop.xlane.xlu0 %216
    %v218 = vsel %vm85, %v65, 0.0
    %219 = vadd.xlane.f32.xlu0 %v218
    %v220 = vpop.xlane.xlu0 %219
    %v221 = vsel %vm85, %v66, 0.0
    %222 = vadd.xlane.f32.xlu0 %v221
    %v223 = vpop.xlane.xlu0 %222
    %v224 = vsel %vm85, %v67, 0.0
    %225 = vadd.xlane.f32.xlu0 %v224
    %v226 = vpop.xlane.xlu0 %225
    %v227 = vsel %vm85, %v68, 0.0
    %228 = vadd.xlane.f32.xlu0 %v227
    %v229 = vpop.xlane.xlu0 %228
    %v230 = vsel %vm85, %v69, 0.0
    %231 = vadd.xlane.f32.xlu0 %v230
    %v232 = vpop.xlane.xlu0 %231
    %v233 = vsel %vm85, %v70, 0.0
    %234 = vadd.xlane.f32.xlu0 %v233
    %v235 = vpop.xlane.xlu0 %234
    %v236 = vsel %vm85, %v71, 0.0
    %237 = vadd.xlane.f32.xlu0 %v236
    %v238 = vpop.xlane.xlu0 %237
    %v239 = vsel %vm85, %v72, 0.0
    %240 = vadd.xlane.f32.xlu0 %v239
    %v241 = vpop.xlane.xlu0 %240
    %v242 = vsel %vm85, %v73, 0.0
    %243 = vadd.xlane.f32.xlu0 %v242
    %v244 = vpop.xlane.xlu0 %243
    %v245 = vsel %vm85, %v74, 0.0
    %246 = vadd.xlane.f32.xlu0 %v245
    %v247 = vpop.xlane.xlu0 %246
    %v248 = vsel %vm85, %v75, 0.0
    %249 = vadd.xlane.f32.xlu0 %v248
    %v250 = vpop.xlane.xlu0 %249
    %v251 = vsel %vm85, %v76, 0.0
    %252 = vadd.xlane.f32.xlu0 %v251
    %v253 = vpop.xlane.xlu0 %252
    %v254 = vsel %vm85, %v77, 0.0
    %255 = vadd.xlane.f32.xlu0 %v254
    %v256 = vpop.xlane.xlu0 %255
    %v257 = vsel %vm85, %v78, 0.0
    %258 = vadd.xlane.f32.xlu0 %v257
    %v259 = vpop.xlane.xlu0 %258
    %v260 = vsel %vm85, %v79, 0.0
    %261 = vadd.xlane.f32.xlu0 %v260
    %v262 = vpop.xlane.xlu0 %261
    %v263 = vsel %vm85, %v80, 0.0
    %264 = vadd.xlane.f32.xlu0 %v263
    %v265 = vpop.xlane.xlu0 %264
    %v266 = vsel %vm85, %v81, 0.0
    %267 = vadd.xlane.f32.xlu0 %v266
    %v268 = vpop.xlane.xlu0 %267
    %v269 = vsel %vm85, %v82, 0.0
    %270 = vadd.xlane.f32.xlu0 %v269
    %v271 = vpop.xlane.xlu0 %270
    %v272 = vsel %vm85, %v83, 0.0
    %273 = vadd.xlane.f32.xlu0 %v272
    %v274 = vpop.xlane.xlu0 %273
    %v275 = vsel %vm85, %v84, 0.0
    %276 = vadd.xlane.f32.xlu0 %v275
    %v277 = vpop.xlane.xlu0 %276
    %v343 = vunpack.c.l.s4 269488144
    %v344 = vunpack.c.0.s8 %v343
    %v345 = vlaneseq
    %v346 = vshrl.u32 %v345, 7
    %v347 = vsub.s32 %v344, %v346
    %v348 = vrot.slane %v88, %v347
    %v350 = vunpack.c.l.s4 842150450
    %v351 = vunpack.c.0.s8 %v350
    %v352 = vlaneseq
    %v353 = vshrl.u32 %v352, 7
    %v354 = vsub.s32 %v351, %v353
    %v355 = vrot.slane %v88, %v354
    %v357 = vunpack.c.l.s4 1414812756
    %v358 = vunpack.c.0.s8 %v357
    %v359 = vlaneseq
    %v360 = vshrl.u32 %v359, 7
    %v361 = vsub.s32 %v358, %v360
    %v362 = vrot.slane %v88, %v361
    %v364 = vunpack.c.l.s4 1987475062
    %v365 = vunpack.c.0.s8 %v364
    %v366 = vlaneseq
    %v367 = vshrl.u32 %v366, 7
    %v368 = vsub.s32 %v365, %v367
    %v369 = vrot.slane %v88, %v368
    %v371 = vunpack.c.l.s4 269488144
    %v372 = vunpack.c.0.s8 %v371
    %v373 = vlaneseq
    %v374 = vshrl.u32 %v373, 7
    %v375 = vsub.s32 %v372, %v374
    %v376 = vrot.slane %v91, %v375
    %v378 = vunpack.c.l.s4 842150450
    %v379 = vunpack.c.0.s8 %v378
    %v380 = vlaneseq
    %v381 = vshrl.u32 %v380, 7
    %v382 = vsub.s32 %v379, %v381
    %v383 = vrot.slane %v91, %v382
    %v385 = vunpack.c.l.s4 1414812756
    %v386 = vunpack.c.0.s8 %v385
    %v387 = vlaneseq
    %v388 = vshrl.u32 %v387, 7
    %v389 = vsub.s32 %v386, %v388
    %v390 = vrot.slane %v91, %v389
    %v392 = vunpack.c.l.s4 1987475062
    %v393 = vunpack.c.0.s8 %v392
    %v394 = vlaneseq
    %v395 = vshrl.u32 %v394, 7
    %v396 = vsub.s32 %v393, %v395
    %v397 = vrot.slane %v91, %v396
    %v399 = vunpack.c.l.s4 269488144
    %v400 = vunpack.c.0.s8 %v399
    %v401 = vlaneseq
    %v402 = vshrl.u32 %v401, 7
    %v403 = vsub.s32 %v400, %v402
    %v404 = vrot.slane %v94, %v403
    %v406 = vunpack.c.l.s4 842150450
    %v407 = vunpack.c.0.s8 %v406
    %v408 = vlaneseq
    %v409 = vshrl.u32 %v408, 7
    %v410 = vsub.s32 %v407, %v409
    %v411 = vrot.slane %v94, %v410
    %v413 = vunpack.c.l.s4 1414812756
    %v414 = vunpack.c.0.s8 %v413
    %v415 = vlaneseq
    %v416 = vshrl.u32 %v415, 7
    %v417 = vsub.s32 %v414, %v416
    %v418 = vrot.slane %v94, %v417
    %v420 = vunpack.c.l.s4 1987475062
    %v421 = vunpack.c.0.s8 %v420
    %v422 = vlaneseq
    %v423 = vshrl.u32 %v422, 7
    %v424 = vsub.s32 %v421, %v423
    %v425 = vrot.slane %v94, %v424
    %v427 = vunpack.c.l.s4 269488144
    %v428 = vunpack.c.0.s8 %v427
    %v429 = vlaneseq
    %v430 = vshrl.u32 %v429, 7
    %v431 = vsub.s32 %v428, %v430
    %v432 = vrot.slane %v97, %v431
    %v434 = vunpack.c.l.s4 842150450
    %v435 = vunpack.c.0.s8 %v434
    %v436 = vlaneseq
    %v437 = vshrl.u32 %v436, 7
    %v438 = vsub.s32 %v435, %v437
    %v439 = vrot.slane %v97, %v438
    %v441 = vunpack.c.l.s4 1414812756
    %v442 = vunpack.c.0.s8 %v441
    %v443 = vlaneseq
    %v444 = vshrl.u32 %v443, 7
    %v445 = vsub.s32 %v442, %v444
    %v446 = vrot.slane %v97, %v445
    %v448 = vunpack.c.l.s4 1987475062
    %v449 = vunpack.c.0.s8 %v448
    %v450 = vlaneseq
    %v451 = vshrl.u32 %v450, 7
    %v452 = vsub.s32 %v449, %v451
    %v453 = vrot.slane %v97, %v452
    %v455 = vunpack.c.l.s4 269488144
    %v456 = vunpack.c.0.s8 %v455
    %v457 = vlaneseq
    %v458 = vshrl.u32 %v457, 7
    %v459 = vsub.s32 %v456, %v458
    %v460 = vrot.slane %v100, %v459
    %v462 = vunpack.c.l.s4 842150450
    %v463 = vunpack.c.0.s8 %v462
    %v464 = vlaneseq
    %v465 = vshrl.u32 %v464, 7
    %v466 = vsub.s32 %v463, %v465
    %v467 = vrot.slane %v100, %v466
    %v469 = vunpack.c.l.s4 1414812756
    %v470 = vunpack.c.0.s8 %v469
    %v471 = vlaneseq
    %v472 = vshrl.u32 %v471, 7
    %v473 = vsub.s32 %v470, %v472
    %v474 = vrot.slane %v100, %v473
    %v476 = vunpack.c.l.s4 1987475062
    %v477 = vunpack.c.0.s8 %v476
    %v478 = vlaneseq
    %v479 = vshrl.u32 %v478, 7
    %v480 = vsub.s32 %v477, %v479
    %v481 = vrot.slane %v100, %v480
    %v483 = vunpack.c.l.s4 269488144
    %v484 = vunpack.c.0.s8 %v483
    %v485 = vlaneseq
    %v486 = vshrl.u32 %v485, 7
    %v487 = vsub.s32 %v484, %v486
    %v488 = vrot.slane %v103, %v487
    %v490 = vunpack.c.l.s4 842150450
    %v491 = vunpack.c.0.s8 %v490
    %v492 = vlaneseq
    %v493 = vshrl.u32 %v492, 7
    %v494 = vsub.s32 %v491, %v493
    %v495 = vrot.slane %v103, %v494
    %v497 = vunpack.c.l.s4 1414812756
    %v498 = vunpack.c.0.s8 %v497
    %v499 = vlaneseq
    %v500 = vshrl.u32 %v499, 7
    %v501 = vsub.s32 %v498, %v500
    %v502 = vrot.slane %v103, %v501
    %v504 = vunpack.c.l.s4 1987475062
    %v505 = vunpack.c.0.s8 %v504
    %v506 = vlaneseq
    %v507 = vshrl.u32 %v506, 7
    %v508 = vsub.s32 %v505, %v507
    %v509 = vrot.slane %v103, %v508
    %v511 = vunpack.c.l.s4 269488144
    %v512 = vunpack.c.0.s8 %v511
    %v513 = vlaneseq
    %v514 = vshrl.u32 %v513, 7
    %v515 = vsub.s32 %v512, %v514
    %v516 = vrot.slane %v106, %v515
    %v518 = vunpack.c.l.s4 842150450
    %v519 = vunpack.c.0.s8 %v518
    %v520 = vlaneseq
    %v521 = vshrl.u32 %v520, 7
    %v522 = vsub.s32 %v519, %v521
    %v523 = vrot.slane %v106, %v522
    %v525 = vunpack.c.l.s4 1414812756
    %v526 = vunpack.c.0.s8 %v525
    %v527 = vlaneseq
    %v528 = vshrl.u32 %v527, 7
    %v529 = vsub.s32 %v526, %v528
    %v530 = vrot.slane %v106, %v529
    %v532 = vunpack.c.l.s4 1987475062
    %v533 = vunpack.c.0.s8 %v532
    %v534 = vlaneseq
    %v535 = vshrl.u32 %v534, 7
    %v536 = vsub.s32 %v533, %v535
    %v537 = vrot.slane %v106, %v536
    %v539 = vunpack.c.l.s4 269488144
    %v540 = vunpack.c.0.s8 %v539
    %v541 = vlaneseq
    %v542 = vshrl.u32 %v541, 7
    %v543 = vsub.s32 %v540, %v542
    %v544 = vrot.slane %v109, %v543
    %v546 = vunpack.c.l.s4 842150450
    %v547 = vunpack.c.0.s8 %v546
    %v548 = vlaneseq
    %v549 = vshrl.u32 %v548, 7
    %v550 = vsub.s32 %v547, %v549
    %v551 = vrot.slane %v109, %v550
    %v553 = vunpack.c.l.s4 1414812756
    %v554 = vunpack.c.0.s8 %v553
    %v555 = vlaneseq
    %v556 = vshrl.u32 %v555, 7
    %v557 = vsub.s32 %v554, %v556
    %v558 = vrot.slane %v109, %v557
    %v560 = vunpack.c.l.s4 1987475062
    %v561 = vunpack.c.0.s8 %v560
    %v562 = vlaneseq
    %v563 = vshrl.u32 %v562, 7
    %v564 = vsub.s32 %v561, %v563
    %v565 = vrot.slane %v109, %v564
    %v567 = vunpack.c.l.s4 269488144
    %v568 = vunpack.c.0.s8 %v567
    %v569 = vlaneseq
    %v570 = vshrl.u32 %v569, 7
    %v571 = vsub.s32 %v568, %v570
    %v572 = vrot.slane %v112, %v571
    %v574 = vunpack.c.l.s4 842150450
    %v575 = vunpack.c.0.s8 %v574
    %v576 = vlaneseq
    %v577 = vshrl.u32 %v576, 7
    %v578 = vsub.s32 %v575, %v577
    %v579 = vrot.slane %v112, %v578
    %v581 = vunpack.c.l.s4 1414812756
    %v582 = vunpack.c.0.s8 %v581
    %v583 = vlaneseq
    %v584 = vshrl.u32 %v583, 7
    %v585 = vsub.s32 %v582, %v584
    %v586 = vrot.slane %v112, %v585
    %v588 = vunpack.c.l.s4 1987475062
    %v589 = vunpack.c.0.s8 %v588
    %v590 = vlaneseq
    %v591 = vshrl.u32 %v590, 7
    %v592 = vsub.s32 %v589, %v591
    %v593 = vrot.slane %v112, %v592
    %v595 = vunpack.c.l.s4 269488144
    %v596 = vunpack.c.0.s8 %v595
    %v597 = vlaneseq
    %v598 = vshrl.u32 %v597, 7
    %v599 = vsub.s32 %v596, %v598
    %v600 = vrot.slane %v115, %v599
    %v602 = vunpack.c.l.s4 842150450
    %v603 = vunpack.c.0.s8 %v602
    %v604 = vlaneseq
    %v605 = vshrl.u32 %v604, 7
    %v606 = vsub.s32 %v603, %v605
    %v607 = vrot.slane %v115, %v606
    %v609 = vunpack.c.l.s4 1414812756
    %v610 = vunpack.c.0.s8 %v609
    %v611 = vlaneseq
    %v612 = vshrl.u32 %v611, 7
    %v613 = vsub.s32 %v610, %v612
    %v614 = vrot.slane %v115, %v613
    %v616 = vunpack.c.l.s4 1987475062
    %v617 = vunpack.c.0.s8 %v616
    %v618 = vlaneseq
    %v619 = vshrl.u32 %v618, 7
    %v620 = vsub.s32 %v617, %v619
    %v621 = vrot.slane %v115, %v620
    %v623 = vunpack.c.l.s4 269488144
    %v624 = vunpack.c.0.s8 %v623
    %v625 = vlaneseq
    %v626 = vshrl.u32 %v625, 7
    %v627 = vsub.s32 %v624, %v626
    %v628 = vrot.slane %v118, %v627
    %v630 = vunpack.c.l.s4 842150450
    %v631 = vunpack.c.0.s8 %v630
    %v632 = vlaneseq
    %v633 = vshrl.u32 %v632, 7
    %v634 = vsub.s32 %v631, %v633
    %v635 = vrot.slane %v118, %v634
    %v637 = vunpack.c.l.s4 1414812756
    %v638 = vunpack.c.0.s8 %v637
    %v639 = vlaneseq
    %v640 = vshrl.u32 %v639, 7
    %v641 = vsub.s32 %v638, %v640
    %v642 = vrot.slane %v118, %v641
    %v644 = vunpack.c.l.s4 1987475062
    %v645 = vunpack.c.0.s8 %v644
    %v646 = vlaneseq
    %v647 = vshrl.u32 %v646, 7
    %v648 = vsub.s32 %v645, %v647
    %v649 = vrot.slane %v118, %v648
    %v651 = vunpack.c.l.s4 269488144
    %v652 = vunpack.c.0.s8 %v651
    %v653 = vlaneseq
    %v654 = vshrl.u32 %v653, 7
    %v655 = vsub.s32 %v652, %v654
    %v656 = vrot.slane %v121, %v655
    %v658 = vunpack.c.l.s4 842150450
    %v659 = vunpack.c.0.s8 %v658
    %v660 = vlaneseq
    %v661 = vshrl.u32 %v660, 7
    %v662 = vsub.s32 %v659, %v661
    %v663 = vrot.slane %v121, %v662
    %v665 = vunpack.c.l.s4 1414812756
    %v666 = vunpack.c.0.s8 %v665
    %v667 = vlaneseq
    %v668 = vshrl.u32 %v667, 7
    %v669 = vsub.s32 %v666, %v668
    %v670 = vrot.slane %v121, %v669
    %v672 = vunpack.c.l.s4 1987475062
    %v673 = vunpack.c.0.s8 %v672
    %v674 = vlaneseq
    %v675 = vshrl.u32 %v674, 7
    %v676 = vsub.s32 %v673, %v675
    %v677 = vrot.slane %v121, %v676
    %v679 = vunpack.c.l.s4 269488144
    %v680 = vunpack.c.0.s8 %v679
    %v681 = vlaneseq
    %v682 = vshrl.u32 %v681, 7
    %v683 = vsub.s32 %v680, %v682
    %v684 = vrot.slane %v124, %v683
    %v686 = vunpack.c.l.s4 842150450
    %v687 = vunpack.c.0.s8 %v686
    %v688 = vlaneseq
    %v689 = vshrl.u32 %v688, 7
    %v690 = vsub.s32 %v687, %v689
    %v691 = vrot.slane %v124, %v690
    %v693 = vunpack.c.l.s4 1414812756
    %v694 = vunpack.c.0.s8 %v693
    %v695 = vlaneseq
    %v696 = vshrl.u32 %v695, 7
    %v697 = vsub.s32 %v694, %v696
    %v698 = vrot.slane %v124, %v697
    %v700 = vunpack.c.l.s4 1987475062
    %v701 = vunpack.c.0.s8 %v700
    %v702 = vlaneseq
    %v703 = vshrl.u32 %v702, 7
    %v704 = vsub.s32 %v701, %v703
    %v705 = vrot.slane %v124, %v704
    %v707 = vunpack.c.l.s4 269488144
    %v708 = vunpack.c.0.s8 %v707
    %v709 = vlaneseq
    %v710 = vshrl.u32 %v709, 7
    %v711 = vsub.s32 %v708, %v710
    %v712 = vrot.slane %v127, %v711
    %v714 = vunpack.c.l.s4 842150450
    %v715 = vunpack.c.0.s8 %v714
    %v716 = vlaneseq
    %v717 = vshrl.u32 %v716, 7
    %v718 = vsub.s32 %v715, %v717
    %v719 = vrot.slane %v127, %v718
    %v721 = vunpack.c.l.s4 1414812756
    %v722 = vunpack.c.0.s8 %v721
    %v723 = vlaneseq
    %v724 = vshrl.u32 %v723, 7
    %v725 = vsub.s32 %v722, %v724
    %v726 = vrot.slane %v127, %v725
    %v728 = vunpack.c.l.s4 1987475062
    %v729 = vunpack.c.0.s8 %v728
    %v730 = vlaneseq
    %v731 = vshrl.u32 %v730, 7
    %v732 = vsub.s32 %v729, %v731
    %v733 = vrot.slane %v127, %v732
    %v735 = vunpack.c.l.s4 269488144
    %v736 = vunpack.c.0.s8 %v735
    %v737 = vlaneseq
    %v738 = vshrl.u32 %v737, 7
    %v739 = vsub.s32 %v736, %v738
    %v740 = vrot.slane %v130, %v739
    %v742 = vunpack.c.l.s4 842150450
    %v743 = vunpack.c.0.s8 %v742
    %v744 = vlaneseq
    %v745 = vshrl.u32 %v744, 7
    %v746 = vsub.s32 %v743, %v745
    %v747 = vrot.slane %v130, %v746
    %v749 = vunpack.c.l.s4 1414812756
    %v750 = vunpack.c.0.s8 %v749
    %v751 = vlaneseq
    %v752 = vshrl.u32 %v751, 7
    %v753 = vsub.s32 %v750, %v752
    %v754 = vrot.slane %v130, %v753
    %v756 = vunpack.c.l.s4 1987475062
    %v757 = vunpack.c.0.s8 %v756
    %v758 = vlaneseq
    %v759 = vshrl.u32 %v758, 7
    %v760 = vsub.s32 %v757, %v759
    %v761 = vrot.slane %v130, %v760
    %v763 = vunpack.c.l.s4 269488144
    %v764 = vunpack.c.0.s8 %v763
    %v765 = vlaneseq
    %v766 = vshrl.u32 %v765, 7
    %v767 = vsub.s32 %v764, %v766
    %v768 = vrot.slane %v133, %v767
    %v770 = vunpack.c.l.s4 842150450
    %v771 = vunpack.c.0.s8 %v770
    %v772 = vlaneseq
    %v773 = vshrl.u32 %v772, 7
    %v774 = vsub.s32 %v771, %v773
    %v775 = vrot.slane %v133, %v774
    %v777 = vunpack.c.l.s4 1414812756
    %v778 = vunpack.c.0.s8 %v777
    %v779 = vlaneseq
    %v780 = vshrl.u32 %v779, 7
    %v781 = vsub.s32 %v778, %v780
    %v782 = vrot.slane %v133, %v781
    %v784 = vunpack.c.l.s4 1987475062
    %v785 = vunpack.c.0.s8 %v784
    %v786 = vlaneseq
    %v787 = vshrl.u32 %v786, 7
    %v788 = vsub.s32 %v785, %v787
    %v789 = vrot.slane %v133, %v788
    %v791 = vunpack.c.l.s4 269488144
    %v792 = vunpack.c.0.s8 %v791
    %v793 = vlaneseq
    %v794 = vshrl.u32 %v793, 7
    %v795 = vsub.s32 %v792, %v794
    %v796 = vrot.slane %v136, %v795
    %v798 = vunpack.c.l.s4 842150450
    %v799 = vunpack.c.0.s8 %v798
    %v800 = vlaneseq
    %v801 = vshrl.u32 %v800, 7
    %v802 = vsub.s32 %v799, %v801
    %v803 = vrot.slane %v136, %v802
    %v805 = vunpack.c.l.s4 1414812756
    %v806 = vunpack.c.0.s8 %v805
    %v807 = vlaneseq
    %v808 = vshrl.u32 %v807, 7
    %v809 = vsub.s32 %v806, %v808
    %v810 = vrot.slane %v136, %v809
    %v812 = vunpack.c.l.s4 1987475062
    %v813 = vunpack.c.0.s8 %v812
    %v814 = vlaneseq
    %v815 = vshrl.u32 %v814, 7
    %v816 = vsub.s32 %v813, %v815
    %v817 = vrot.slane %v136, %v816
    %v819 = vunpack.c.l.s4 269488144
    %v820 = vunpack.c.0.s8 %v819
    %v821 = vlaneseq
    %v822 = vshrl.u32 %v821, 7
    %v823 = vsub.s32 %v820, %v822
    %v824 = vrot.slane %v139, %v823
    %v826 = vunpack.c.l.s4 842150450
    %v827 = vunpack.c.0.s8 %v826
    %v828 = vlaneseq
    %v829 = vshrl.u32 %v828, 7
    %v830 = vsub.s32 %v827, %v829
    %v831 = vrot.slane %v139, %v830
    %v833 = vunpack.c.l.s4 1414812756
    %v834 = vunpack.c.0.s8 %v833
    %v835 = vlaneseq
    %v836 = vshrl.u32 %v835, 7
    %v837 = vsub.s32 %v834, %v836
    %v838 = vrot.slane %v139, %v837
    %v840 = vunpack.c.l.s4 1987475062
    %v841 = vunpack.c.0.s8 %v840
    %v842 = vlaneseq
    %v843 = vshrl.u32 %v842, 7
    %v844 = vsub.s32 %v841, %v843
    %v845 = vrot.slane %v139, %v844
    %v847 = vunpack.c.l.s4 269488144
    %v848 = vunpack.c.0.s8 %v847
    %v849 = vlaneseq
    %v850 = vshrl.u32 %v849, 7
    %v851 = vsub.s32 %v848, %v850
    %v852 = vrot.slane %v142, %v851
    %v854 = vunpack.c.l.s4 842150450
    %v855 = vunpack.c.0.s8 %v854
    %v856 = vlaneseq
    %v857 = vshrl.u32 %v856, 7
    %v858 = vsub.s32 %v855, %v857
    %v859 = vrot.slane %v142, %v858
    %v861 = vunpack.c.l.s4 1414812756
    %v862 = vunpack.c.0.s8 %v861
    %v863 = vlaneseq
    %v864 = vshrl.u32 %v863, 7
    %v865 = vsub.s32 %v862, %v864
    %v866 = vrot.slane %v142, %v865
    %v868 = vunpack.c.l.s4 1987475062
    %v869 = vunpack.c.0.s8 %v868
    %v870 = vlaneseq
    %v871 = vshrl.u32 %v870, 7
    %v872 = vsub.s32 %v869, %v871
    %v873 = vrot.slane %v142, %v872
    %v875 = vunpack.c.l.s4 269488144
    %v876 = vunpack.c.0.s8 %v875
    %v877 = vlaneseq
    %v878 = vshrl.u32 %v877, 7
    %v879 = vsub.s32 %v876, %v878
    %v880 = vrot.slane %v145, %v879
    %v882 = vunpack.c.l.s4 842150450
    %v883 = vunpack.c.0.s8 %v882
    %v884 = vlaneseq
    %v885 = vshrl.u32 %v884, 7
    %v886 = vsub.s32 %v883, %v885
    %v887 = vrot.slane %v145, %v886
    %v889 = vunpack.c.l.s4 1414812756
    %v890 = vunpack.c.0.s8 %v889
    %v891 = vlaneseq
    %v892 = vshrl.u32 %v891, 7
    %v893 = vsub.s32 %v890, %v892
    %v894 = vrot.slane %v145, %v893
    %v896 = vunpack.c.l.s4 1987475062
    %v897 = vunpack.c.0.s8 %v896
    %v898 = vlaneseq
    %v899 = vshrl.u32 %v898, 7
    %v900 = vsub.s32 %v897, %v899
    %v901 = vrot.slane %v145, %v900
    %v903 = vunpack.c.l.s4 269488144
    %v904 = vunpack.c.0.s8 %v903
    %v905 = vlaneseq
    %v906 = vshrl.u32 %v905, 7
    %v907 = vsub.s32 %v904, %v906
    %v908 = vrot.slane %v148, %v907
    %v910 = vunpack.c.l.s4 842150450
    %v911 = vunpack.c.0.s8 %v910
    %v912 = vlaneseq
    %v913 = vshrl.u32 %v912, 7
    %v914 = vsub.s32 %v911, %v913
    %v915 = vrot.slane %v148, %v914
    %v917 = vunpack.c.l.s4 1414812756
    %v918 = vunpack.c.0.s8 %v917
    %v919 = vlaneseq
    %v920 = vshrl.u32 %v919, 7
    %v921 = vsub.s32 %v918, %v920
    %v922 = vrot.slane %v148, %v921
    %v924 = vunpack.c.l.s4 1987475062
    %v925 = vunpack.c.0.s8 %v924
    %v926 = vlaneseq
    %v927 = vshrl.u32 %v926, 7
    %v928 = vsub.s32 %v925, %v927
    %v929 = vrot.slane %v148, %v928
    %v931 = vunpack.c.l.s4 269488144
    %v932 = vunpack.c.0.s8 %v931
    %v933 = vlaneseq
    %v934 = vshrl.u32 %v933, 7
    %v935 = vsub.s32 %v932, %v934
    %v936 = vrot.slane %v151, %v935
    %v938 = vunpack.c.l.s4 842150450
    %v939 = vunpack.c.0.s8 %v938
    %v940 = vlaneseq
    %v941 = vshrl.u32 %v940, 7
    %v942 = vsub.s32 %v939, %v941
    %v943 = vrot.slane %v151, %v942
    %v945 = vunpack.c.l.s4 1414812756
    %v946 = vunpack.c.0.s8 %v945
    %v947 = vlaneseq
    %v948 = vshrl.u32 %v947, 7
    %v949 = vsub.s32 %v946, %v948
    %v950 = vrot.slane %v151, %v949
    %v952 = vunpack.c.l.s4 1987475062
    %v953 = vunpack.c.0.s8 %v952
    %v954 = vlaneseq
    %v955 = vshrl.u32 %v954, 7
    %v956 = vsub.s32 %v953, %v955
    %v957 = vrot.slane %v151, %v956
    %v959 = vunpack.c.l.s4 269488144
    %v960 = vunpack.c.0.s8 %v959
    %v961 = vlaneseq
    %v962 = vshrl.u32 %v961, 7
    %v963 = vsub.s32 %v960, %v962
    %v964 = vrot.slane %v154, %v963
    %v966 = vunpack.c.l.s4 842150450
    %v967 = vunpack.c.0.s8 %v966
    %v968 = vlaneseq
    %v969 = vshrl.u32 %v968, 7
    %v970 = vsub.s32 %v967, %v969
    %v971 = vrot.slane %v154, %v970
    %v973 = vunpack.c.l.s4 1414812756
    %v974 = vunpack.c.0.s8 %v973
    %v975 = vlaneseq
    %v976 = vshrl.u32 %v975, 7
    %v977 = vsub.s32 %v974, %v976
    %v978 = vrot.slane %v154, %v977
    %v980 = vunpack.c.l.s4 1987475062
    %v981 = vunpack.c.0.s8 %v980
    %v982 = vlaneseq
    %v983 = vshrl.u32 %v982, 7
    %v984 = vsub.s32 %v981, %v983
    %v985 = vrot.slane %v154, %v984
    %v987 = vunpack.c.l.s4 269488144
    %v988 = vunpack.c.0.s8 %v987
    %v989 = vlaneseq
    %v990 = vshrl.u32 %v989, 7
    %v991 = vsub.s32 %v988, %v990
    %v992 = vrot.slane %v157, %v991
    %v994 = vunpack.c.l.s4 842150450
    %v995 = vunpack.c.0.s8 %v994
    %v996 = vlaneseq
    %v997 = vshrl.u32 %v996, 7
    %v998 = vsub.s32 %v995, %v997
    %v999 = vrot.slane %v157, %v998
    %v1001 = vunpack.c.l.s4 1414812756
    %v1002 = vunpack.c.0.s8 %v1001
    %v1003 = vlaneseq
    %v1004 = vshrl.u32 %v1003, 7
    %v1005 = vsub.s32 %v1002, %v1004
    %v1006 = vrot.slane %v157, %v1005
    %v1008 = vunpack.c.l.s4 1987475062
    %v1009 = vunpack.c.0.s8 %v1008
    %v1010 = vlaneseq
    %v1011 = vshrl.u32 %v1010, 7
    %v1012 = vsub.s32 %v1009, %v1011
    %v1013 = vrot.slane %v157, %v1012
    %v1015 = vunpack.c.l.s4 269488144
    %v1016 = vunpack.c.0.s8 %v1015
    %v1017 = vlaneseq
    %v1018 = vshrl.u32 %v1017, 7
    %v1019 = vsub.s32 %v1016, %v1018
    %v1020 = vrot.slane %v160, %v1019
    %v1022 = vunpack.c.l.s4 842150450
    %v1023 = vunpack.c.0.s8 %v1022
    %v1024 = vlaneseq
    %v1025 = vshrl.u32 %v1024, 7
    %v1026 = vsub.s32 %v1023, %v1025
    %v1027 = vrot.slane %v160, %v1026
    %v1029 = vunpack.c.l.s4 1414812756
    %v1030 = vunpack.c.0.s8 %v1029
    %v1031 = vlaneseq
    %v1032 = vshrl.u32 %v1031, 7
    %v1033 = vsub.s32 %v1030, %v1032
    %v1034 = vrot.slane %v160, %v1033
    %v1036 = vunpack.c.l.s4 1987475062
    %v1037 = vunpack.c.0.s8 %v1036
    %v1038 = vlaneseq
    %v1039 = vshrl.u32 %v1038, 7
    %v1040 = vsub.s32 %v1037, %v1039
    %v1041 = vrot.slane %v160, %v1040
    %v1043 = vunpack.c.l.s4 269488144
    %v1044 = vunpack.c.0.s8 %v1043
    %v1045 = vlaneseq
    %v1046 = vshrl.u32 %v1045, 7
    %v1047 = vsub.s32 %v1044, %v1046
    %v1048 = vrot.slane %v163, %v1047
    %v1050 = vunpack.c.l.s4 842150450
    %v1051 = vunpack.c.0.s8 %v1050
    %v1052 = vlaneseq
    %v1053 = vshrl.u32 %v1052, 7
    %v1054 = vsub.s32 %v1051, %v1053
    %v1055 = vrot.slane %v163, %v1054
    %v1057 = vunpack.c.l.s4 1414812756
    %v1058 = vunpack.c.0.s8 %v1057
    %v1059 = vlaneseq
    %v1060 = vshrl.u32 %v1059, 7
    %v1061 = vsub.s32 %v1058, %v1060
    %v1062 = vrot.slane %v163, %v1061
    %v1064 = vunpack.c.l.s4 1987475062
    %v1065 = vunpack.c.0.s8 %v1064
    %v1066 = vlaneseq
    %v1067 = vshrl.u32 %v1066, 7
    %v1068 = vsub.s32 %v1065, %v1067
    %v1069 = vrot.slane %v163, %v1068
    %v1071 = vunpack.c.l.s4 269488144
    %v1072 = vunpack.c.0.s8 %v1071
    %v1073 = vlaneseq
    %v1074 = vshrl.u32 %v1073, 7
    %v1075 = vsub.s32 %v1072, %v1074
    %v1076 = vrot.slane %v166, %v1075
    %v1078 = vunpack.c.l.s4 842150450
    %v1079 = vunpack.c.0.s8 %v1078
    %v1080 = vlaneseq
    %v1081 = vshrl.u32 %v1080, 7
    %v1082 = vsub.s32 %v1079, %v1081
    %v1083 = vrot.slane %v166, %v1082
    %v1085 = vunpack.c.l.s4 1414812756
    %v1086 = vunpack.c.0.s8 %v1085
    %v1087 = vlaneseq
    %v1088 = vshrl.u32 %v1087, 7
    %v1089 = vsub.s32 %v1086, %v1088
    %v1090 = vrot.slane %v166, %v1089
    %v1092 = vunpack.c.l.s4 1987475062
    %v1093 = vunpack.c.0.s8 %v1092
    %v1094 = vlaneseq
    %v1095 = vshrl.u32 %v1094, 7
    %v1096 = vsub.s32 %v1093, %v1095
    %v1097 = vrot.slane %v166, %v1096
    %v1099 = vunpack.c.l.s4 269488144
    %v1100 = vunpack.c.0.s8 %v1099
    %v1101 = vlaneseq
    %v1102 = vshrl.u32 %v1101, 7
    %v1103 = vsub.s32 %v1100, %v1102
    %v1104 = vrot.slane %v169, %v1103
    %v1106 = vunpack.c.l.s4 842150450
    %v1107 = vunpack.c.0.s8 %v1106
    %v1108 = vlaneseq
    %v1109 = vshrl.u32 %v1108, 7
    %v1110 = vsub.s32 %v1107, %v1109
    %v1111 = vrot.slane %v169, %v1110
    %v1113 = vunpack.c.l.s4 1414812756
    %v1114 = vunpack.c.0.s8 %v1113
    %v1115 = vlaneseq
    %v1116 = vshrl.u32 %v1115, 7
    %v1117 = vsub.s32 %v1114, %v1116
    %v1118 = vrot.slane %v169, %v1117
    %v1120 = vunpack.c.l.s4 1987475062
    %v1121 = vunpack.c.0.s8 %v1120
    %v1122 = vlaneseq
    %v1123 = vshrl.u32 %v1122, 7
    %v1124 = vsub.s32 %v1121, %v1123
    %v1125 = vrot.slane %v169, %v1124
    %v1127 = vunpack.c.l.s4 269488144
    %v1128 = vunpack.c.0.s8 %v1127
    %v1129 = vlaneseq
    %v1130 = vshrl.u32 %v1129, 7
    %v1131 = vsub.s32 %v1128, %v1130
    %v1132 = vrot.slane %v172, %v1131
    %v1134 = vunpack.c.l.s4 842150450
    %v1135 = vunpack.c.0.s8 %v1134
    %v1136 = vlaneseq
    %v1137 = vshrl.u32 %v1136, 7
    %v1138 = vsub.s32 %v1135, %v1137
    %v1139 = vrot.slane %v172, %v1138
    %v1141 = vunpack.c.l.s4 1414812756
    %v1142 = vunpack.c.0.s8 %v1141
    %v1143 = vlaneseq
    %v1144 = vshrl.u32 %v1143, 7
    %v1145 = vsub.s32 %v1142, %v1144
    %v1146 = vrot.slane %v172, %v1145
    %v1148 = vunpack.c.l.s4 1987475062
    %v1149 = vunpack.c.0.s8 %v1148
    %v1150 = vlaneseq
    %v1151 = vshrl.u32 %v1150, 7
    %v1152 = vsub.s32 %v1149, %v1151
    %v1153 = vrot.slane %v172, %v1152
    %v1155 = vunpack.c.l.s4 269488144
    %v1156 = vunpack.c.0.s8 %v1155
    %v1157 = vlaneseq
    %v1158 = vshrl.u32 %v1157, 7
    %v1159 = vsub.s32 %v1156, %v1158
    %v1160 = vrot.slane %v175, %v1159
    %v1162 = vunpack.c.l.s4 842150450
    %v1163 = vunpack.c.0.s8 %v1162
    %v1164 = vlaneseq
    %v1165 = vshrl.u32 %v1164, 7
    %v1166 = vsub.s32 %v1163, %v1165
    %v1167 = vrot.slane %v175, %v1166
    %v1169 = vunpack.c.l.s4 1414812756
    %v1170 = vunpack.c.0.s8 %v1169
    %v1171 = vlaneseq
    %v1172 = vshrl.u32 %v1171, 7
    %v1173 = vsub.s32 %v1170, %v1172
    %v1174 = vrot.slane %v175, %v1173
    %v1176 = vunpack.c.l.s4 1987475062
    %v1177 = vunpack.c.0.s8 %v1176
    %v1178 = vlaneseq
    %v1179 = vshrl.u32 %v1178, 7
    %v1180 = vsub.s32 %v1177, %v1179
    %v1181 = vrot.slane %v175, %v1180
    %v1183 = vunpack.c.l.s4 269488144
    %v1184 = vunpack.c.0.s8 %v1183
    %v1185 = vlaneseq
    %v1186 = vshrl.u32 %v1185, 7
    %v1187 = vsub.s32 %v1184, %v1186
    %v1188 = vrot.slane %v178, %v1187
    %v1190 = vunpack.c.l.s4 842150450
    %v1191 = vunpack.c.0.s8 %v1190
    %v1192 = vlaneseq
    %v1193 = vshrl.u32 %v1192, 7
    %v1194 = vsub.s32 %v1191, %v1193
    %v1195 = vrot.slane %v178, %v1194
    %v1197 = vunpack.c.l.s4 1414812756
    %v1198 = vunpack.c.0.s8 %v1197
    %v1199 = vlaneseq
    %v1200 = vshrl.u32 %v1199, 7
    %v1201 = vsub.s32 %v1198, %v1200
    %v1202 = vrot.slane %v178, %v1201
    %v1204 = vunpack.c.l.s4 1987475062
    %v1205 = vunpack.c.0.s8 %v1204
    %v1206 = vlaneseq
    %v1207 = vshrl.u32 %v1206, 7
    %v1208 = vsub.s32 %v1205, %v1207
    %v1209 = vrot.slane %v178, %v1208
    %v1211 = vunpack.c.l.s4 269488144
    %v1212 = vunpack.c.0.s8 %v1211
    %v1213 = vlaneseq
    %v1214 = vshrl.u32 %v1213, 7
    %v1215 = vsub.s32 %v1212, %v1214
    %v1216 = vrot.slane %v181, %v1215
    %v1218 = vunpack.c.l.s4 842150450
    %v1219 = vunpack.c.0.s8 %v1218
    %v1220 = vlaneseq
    %v1221 = vshrl.u32 %v1220, 7
    %v1222 = vsub.s32 %v1219, %v1221
    %v1223 = vrot.slane %v181, %v1222
    %v1225 = vunpack.c.l.s4 1414812756
    %v1226 = vunpack.c.0.s8 %v1225
    %v1227 = vlaneseq
    %v1228 = vshrl.u32 %v1227, 7
    %v1229 = vsub.s32 %v1226, %v1228
    %v1230 = vrot.slane %v181, %v1229
    %v1232 = vunpack.c.l.s4 1987475062
    %v1233 = vunpack.c.0.s8 %v1232
    %v1234 = vlaneseq
    %v1235 = vshrl.u32 %v1234, 7
    %v1236 = vsub.s32 %v1233, %v1235
    %v1237 = vrot.slane %v181, %v1236
    %v1239 = vunpack.c.l.s4 269488144
    %v1240 = vunpack.c.0.s8 %v1239
    %v1241 = vlaneseq
    %v1242 = vshrl.u32 %v1241, 7
    %v1243 = vsub.s32 %v1240, %v1242
    %v1244 = vrot.slane %v184, %v1243
    %v1246 = vunpack.c.l.s4 842150450
    %v1247 = vunpack.c.0.s8 %v1246
    %v1248 = vlaneseq
    %v1249 = vshrl.u32 %v1248, 7
    %v1250 = vsub.s32 %v1247, %v1249
    %v1251 = vrot.slane %v184, %v1250
    %v1253 = vunpack.c.l.s4 1414812756
    %v1254 = vunpack.c.0.s8 %v1253
    %v1255 = vlaneseq
    %v1256 = vshrl.u32 %v1255, 7
    %v1257 = vsub.s32 %v1254, %v1256
    %v1258 = vrot.slane %v184, %v1257
    %v1260 = vunpack.c.l.s4 1987475062
    %v1261 = vunpack.c.0.s8 %v1260
    %v1262 = vlaneseq
    %v1263 = vshrl.u32 %v1262, 7
    %v1264 = vsub.s32 %v1261, %v1263
    %v1265 = vrot.slane %v184, %v1264
    %v1267 = vunpack.c.l.s4 269488144
    %v1268 = vunpack.c.0.s8 %v1267
    %v1269 = vlaneseq
    %v1270 = vshrl.u32 %v1269, 7
    %v1271 = vsub.s32 %v1268, %v1270
    %v1272 = vrot.slane %v187, %v1271
    %v1274 = vunpack.c.l.s4 842150450
    %v1275 = vunpack.c.0.s8 %v1274
    %v1276 = vlaneseq
    %v1277 = vshrl.u32 %v1276, 7
    %v1278 = vsub.s32 %v1275, %v1277
    %v1279 = vrot.slane %v187, %v1278
    %v1281 = vunpack.c.l.s4 1414812756
    %v1282 = vunpack.c.0.s8 %v1281
    %v1283 = vlaneseq
    %v1284 = vshrl.u32 %v1283, 7
    %v1285 = vsub.s32 %v1282, %v1284
    %v1286 = vrot.slane %v187, %v1285
    %v1288 = vunpack.c.l.s4 1987475062
    %v1289 = vunpack.c.0.s8 %v1288
    %v1290 = vlaneseq
    %v1291 = vshrl.u32 %v1290, 7
    %v1292 = vsub.s32 %v1289, %v1291
    %v1293 = vrot.slane %v187, %v1292
    %v1295 = vunpack.c.l.s4 269488144
    %v1296 = vunpack.c.0.s8 %v1295
    %v1297 = vlaneseq
    %v1298 = vshrl.u32 %v1297, 7
    %v1299 = vsub.s32 %v1296, %v1298
    %v1300 = vrot.slane %v190, %v1299
    %v1302 = vunpack.c.l.s4 842150450
    %v1303 = vunpack.c.0.s8 %v1302
    %v1304 = vlaneseq
    %v1305 = vshrl.u32 %v1304, 7
    %v1306 = vsub.s32 %v1303, %v1305
    %v1307 = vrot.slane %v190, %v1306
    %v1309 = vunpack.c.l.s4 1414812756
    %v1310 = vunpack.c.0.s8 %v1309
    %v1311 = vlaneseq
    %v1312 = vshrl.u32 %v1311, 7
    %v1313 = vsub.s32 %v1310, %v1312
    %v1314 = vrot.slane %v190, %v1313
    %v1316 = vunpack.c.l.s4 1987475062
    %v1317 = vunpack.c.0.s8 %v1316
    %v1318 = vlaneseq
    %v1319 = vshrl.u32 %v1318, 7
    %v1320 = vsub.s32 %v1317, %v1319
    %v1321 = vrot.slane %v190, %v1320
    %v1323 = vunpack.c.l.s4 269488144
    %v1324 = vunpack.c.0.s8 %v1323
    %v1325 = vlaneseq
    %v1326 = vshrl.u32 %v1325, 7
    %v1327 = vsub.s32 %v1324, %v1326
    %v1328 = vrot.slane %v193, %v1327
    %v1330 = vunpack.c.l.s4 842150450
    %v1331 = vunpack.c.0.s8 %v1330
    %v1332 = vlaneseq
    %v1333 = vshrl.u32 %v1332, 7
    %v1334 = vsub.s32 %v1331, %v1333
    %v1335 = vrot.slane %v193, %v1334
    %v1337 = vunpack.c.l.s4 1414812756
    %v1338 = vunpack.c.0.s8 %v1337
    %v1339 = vlaneseq
    %v1340 = vshrl.u32 %v1339, 7
    %v1341 = vsub.s32 %v1338, %v1340
    %v1342 = vrot.slane %v193, %v1341
    %v1344 = vunpack.c.l.s4 1987475062
    %v1345 = vunpack.c.0.s8 %v1344
    %v1346 = vlaneseq
    %v1347 = vshrl.u32 %v1346, 7
    %v1348 = vsub.s32 %v1345, %v1347
    %v1349 = vrot.slane %v193, %v1348
    %v1351 = vunpack.c.l.s4 269488144
    %v1352 = vunpack.c.0.s8 %v1351
    %v1353 = vlaneseq
    %v1354 = vshrl.u32 %v1353, 7
    %v1355 = vsub.s32 %v1352, %v1354
    %v1356 = vrot.slane %v196, %v1355
    %v1358 = vunpack.c.l.s4 842150450
    %v1359 = vunpack.c.0.s8 %v1358
    %v1360 = vlaneseq
    %v1361 = vshrl.u32 %v1360, 7
    %v1362 = vsub.s32 %v1359, %v1361
    %v1363 = vrot.slane %v196, %v1362
    %v1365 = vunpack.c.l.s4 1414812756
    %v1366 = vunpack.c.0.s8 %v1365
    %v1367 = vlaneseq
    %v1368 = vshrl.u32 %v1367, 7
    %v1369 = vsub.s32 %v1366, %v1368
    %v1370 = vrot.slane %v196, %v1369
    %v1372 = vunpack.c.l.s4 1987475062
    %v1373 = vunpack.c.0.s8 %v1372
    %v1374 = vlaneseq
    %v1375 = vshrl.u32 %v1374, 7
    %v1376 = vsub.s32 %v1373, %v1375
    %v1377 = vrot.slane %v196, %v1376
    %v1379 = vunpack.c.l.s4 269488144
    %v1380 = vunpack.c.0.s8 %v1379
    %v1381 = vlaneseq
    %v1382 = vshrl.u32 %v1381, 7
    %v1383 = vsub.s32 %v1380, %v1382
    %v1384 = vrot.slane %v199, %v1383
    %v1386 = vunpack.c.l.s4 842150450
    %v1387 = vunpack.c.0.s8 %v1386
    %v1388 = vlaneseq
    %v1389 = vshrl.u32 %v1388, 7
    %v1390 = vsub.s32 %v1387, %v1389
    %v1391 = vrot.slane %v199, %v1390
    %v1393 = vunpack.c.l.s4 1414812756
    %v1394 = vunpack.c.0.s8 %v1393
    %v1395 = vlaneseq
    %v1396 = vshrl.u32 %v1395, 7
    %v1397 = vsub.s32 %v1394, %v1396
    %v1398 = vrot.slane %v199, %v1397
    %v1400 = vunpack.c.l.s4 1987475062
    %v1401 = vunpack.c.0.s8 %v1400
    %v1402 = vlaneseq
    %v1403 = vshrl.u32 %v1402, 7
    %v1404 = vsub.s32 %v1401, %v1403
    %v1405 = vrot.slane %v199, %v1404
    %v1407 = vunpack.c.l.s4 269488144
    %v1408 = vunpack.c.0.s8 %v1407
    %v1409 = vlaneseq
    %v1410 = vshrl.u32 %v1409, 7
    %v1411 = vsub.s32 %v1408, %v1410
    %v1412 = vrot.slane %v202, %v1411
    %v1414 = vunpack.c.l.s4 842150450
    %v1415 = vunpack.c.0.s8 %v1414
    %v1416 = vlaneseq
    %v1417 = vshrl.u32 %v1416, 7
    %v1418 = vsub.s32 %v1415, %v1417
    %v1419 = vrot.slane %v202, %v1418
    %v1421 = vunpack.c.l.s4 1414812756
    %v1422 = vunpack.c.0.s8 %v1421
    %v1423 = vlaneseq
    %v1424 = vshrl.u32 %v1423, 7
    %v1425 = vsub.s32 %v1422, %v1424
    %v1426 = vrot.slane %v202, %v1425
    %v1428 = vunpack.c.l.s4 1987475062
    %v1429 = vunpack.c.0.s8 %v1428
    %v1430 = vlaneseq
    %v1431 = vshrl.u32 %v1430, 7
    %v1432 = vsub.s32 %v1429, %v1431
    %v1433 = vrot.slane %v202, %v1432
    %v1435 = vunpack.c.l.s4 269488144
    %v1436 = vunpack.c.0.s8 %v1435
    %v1437 = vlaneseq
    %v1438 = vshrl.u32 %v1437, 7
    %v1439 = vsub.s32 %v1436, %v1438
    %v1440 = vrot.slane %v205, %v1439
    %v1442 = vunpack.c.l.s4 842150450
    %v1443 = vunpack.c.0.s8 %v1442
    %v1444 = vlaneseq
    %v1445 = vshrl.u32 %v1444, 7
    %v1446 = vsub.s32 %v1443, %v1445
    %v1447 = vrot.slane %v205, %v1446
    %v1449 = vunpack.c.l.s4 1414812756
    %v1450 = vunpack.c.0.s8 %v1449
    %v1451 = vlaneseq
    %v1452 = vshrl.u32 %v1451, 7
    %v1453 = vsub.s32 %v1450, %v1452
    %v1454 = vrot.slane %v205, %v1453
    %v1456 = vunpack.c.l.s4 1987475062
    %v1457 = vunpack.c.0.s8 %v1456
    %v1458 = vlaneseq
    %v1459 = vshrl.u32 %v1458, 7
    %v1460 = vsub.s32 %v1457, %v1459
    %v1461 = vrot.slane %v205, %v1460
    %v1463 = vunpack.c.l.s4 269488144
    %v1464 = vunpack.c.0.s8 %v1463
    %v1465 = vlaneseq
    %v1466 = vshrl.u32 %v1465, 7
    %v1467 = vsub.s32 %v1464, %v1466
    %v1468 = vrot.slane %v208, %v1467
    %v1470 = vunpack.c.l.s4 842150450
    %v1471 = vunpack.c.0.s8 %v1470
    %v1472 = vlaneseq
    %v1473 = vshrl.u32 %v1472, 7
    %v1474 = vsub.s32 %v1471, %v1473
    %v1475 = vrot.slane %v208, %v1474
    %v1477 = vunpack.c.l.s4 1414812756
    %v1478 = vunpack.c.0.s8 %v1477
    %v1479 = vlaneseq
    %v1480 = vshrl.u32 %v1479, 7
    %v1481 = vsub.s32 %v1478, %v1480
    %v1482 = vrot.slane %v208, %v1481
    %v1484 = vunpack.c.l.s4 1987475062
    %v1485 = vunpack.c.0.s8 %v1484
    %v1486 = vlaneseq
    %v1487 = vshrl.u32 %v1486, 7
    %v1488 = vsub.s32 %v1485, %v1487
    %v1489 = vrot.slane %v208, %v1488
    %v1491 = vunpack.c.l.s4 269488144
    %v1492 = vunpack.c.0.s8 %v1491
    %v1493 = vlaneseq
    %v1494 = vshrl.u32 %v1493, 7
    %v1495 = vsub.s32 %v1492, %v1494
    %v1496 = vrot.slane %v211, %v1495
    %v1498 = vunpack.c.l.s4 842150450
    %v1499 = vunpack.c.0.s8 %v1498
    %v1500 = vlaneseq
    %v1501 = vshrl.u32 %v1500, 7
    %v1502 = vsub.s32 %v1499, %v1501
    %v1503 = vrot.slane %v211, %v1502
    %v1505 = vunpack.c.l.s4 1414812756
    %v1506 = vunpack.c.0.s8 %v1505
    %v1507 = vlaneseq
    %v1508 = vshrl.u32 %v1507, 7
    %v1509 = vsub.s32 %v1506, %v1508
    %v1510 = vrot.slane %v211, %v1509
    %v1512 = vunpack.c.l.s4 1987475062
    %v1513 = vunpack.c.0.s8 %v1512
    %v1514 = vlaneseq
    %v1515 = vshrl.u32 %v1514, 7
    %v1516 = vsub.s32 %v1513, %v1515
    %v1517 = vrot.slane %v211, %v1516
    %v1519 = vunpack.c.l.s4 269488144
    %v1520 = vunpack.c.0.s8 %v1519
    %v1521 = vlaneseq
    %v1522 = vshrl.u32 %v1521, 7
    %v1523 = vsub.s32 %v1520, %v1522
    %v1524 = vrot.slane %v214, %v1523
    %v1526 = vunpack.c.l.s4 842150450
    %v1527 = vunpack.c.0.s8 %v1526
    %v1528 = vlaneseq
    %v1529 = vshrl.u32 %v1528, 7
    %v1530 = vsub.s32 %v1527, %v1529
    %v1531 = vrot.slane %v214, %v1530
    %v1533 = vunpack.c.l.s4 1414812756
    %v1534 = vunpack.c.0.s8 %v1533
    %v1535 = vlaneseq
    %v1536 = vshrl.u32 %v1535, 7
    %v1537 = vsub.s32 %v1534, %v1536
    %v1538 = vrot.slane %v214, %v1537
    %v1540 = vunpack.c.l.s4 1987475062
    %v1541 = vunpack.c.0.s8 %v1540
    %v1542 = vlaneseq
    %v1543 = vshrl.u32 %v1542, 7
    %v1544 = vsub.s32 %v1541, %v1543
    %v1545 = vrot.slane %v214, %v1544
    %v1547 = vunpack.c.l.s4 269488144
    %v1548 = vunpack.c.0.s8 %v1547
    %v1549 = vlaneseq
    %v1550 = vshrl.u32 %v1549, 7
    %v1551 = vsub.s32 %v1548, %v1550
    %v1552 = vrot.slane %v217, %v1551
    %v1554 = vunpack.c.l.s4 842150450
    %v1555 = vunpack.c.0.s8 %v1554
    %v1556 = vlaneseq
    %v1557 = vshrl.u32 %v1556, 7
    %v1558 = vsub.s32 %v1555, %v1557
    %v1559 = vrot.slane %v217, %v1558
    %v1561 = vunpack.c.l.s4 1414812756
    %v1562 = vunpack.c.0.s8 %v1561
    %v1563 = vlaneseq
    %v1564 = vshrl.u32 %v1563, 7
    %v1565 = vsub.s32 %v1562, %v1564
    %v1566 = vrot.slane %v217, %v1565
    %v1568 = vunpack.c.l.s4 1987475062
    %v1569 = vunpack.c.0.s8 %v1568
    %v1570 = vlaneseq
    %v1571 = vshrl.u32 %v1570, 7
    %v1572 = vsub.s32 %v1569, %v1571
    %v1573 = vrot.slane %v217, %v1572
    %v1575 = vunpack.c.l.s4 269488144
    %v1576 = vunpack.c.0.s8 %v1575
    %v1577 = vlaneseq
    %v1578 = vshrl.u32 %v1577, 7
    %v1579 = vsub.s32 %v1576, %v1578
    %v1580 = vrot.slane %v220, %v1579
    %v1582 = vunpack.c.l.s4 842150450
    %v1583 = vunpack.c.0.s8 %v1582
    %v1584 = vlaneseq
    %v1585 = vshrl.u32 %v1584, 7
    %v1586 = vsub.s32 %v1583, %v1585
    %v1587 = vrot.slane %v220, %v1586
    %v1589 = vunpack.c.l.s4 1414812756
    %v1590 = vunpack.c.0.s8 %v1589
    %v1591 = vlaneseq
    %v1592 = vshrl.u32 %v1591, 7
    %v1593 = vsub.s32 %v1590, %v1592
    %v1594 = vrot.slane %v220, %v1593
    %v1596 = vunpack.c.l.s4 1987475062
    %v1597 = vunpack.c.0.s8 %v1596
    %v1598 = vlaneseq
    %v1599 = vshrl.u32 %v1598, 7
    %v1600 = vsub.s32 %v1597, %v1599
    %v1601 = vrot.slane %v220, %v1600
    %v1603 = vunpack.c.l.s4 269488144
    %v1604 = vunpack.c.0.s8 %v1603
    %v1605 = vlaneseq
    %v1606 = vshrl.u32 %v1605, 7
    %v1607 = vsub.s32 %v1604, %v1606
    %v1608 = vrot.slane %v223, %v1607
    %v1610 = vunpack.c.l.s4 842150450
    %v1611 = vunpack.c.0.s8 %v1610
    %v1612 = vlaneseq
    %v1613 = vshrl.u32 %v1612, 7
    %v1614 = vsub.s32 %v1611, %v1613
    %v1615 = vrot.slane %v223, %v1614
    %v1617 = vunpack.c.l.s4 1414812756
    %v1618 = vunpack.c.0.s8 %v1617
    %v1619 = vlaneseq
    %v1620 = vshrl.u32 %v1619, 7
    %v1621 = vsub.s32 %v1618, %v1620
    %v1622 = vrot.slane %v223, %v1621
    %v1624 = vunpack.c.l.s4 1987475062
    %v1625 = vunpack.c.0.s8 %v1624
    %v1626 = vlaneseq
    %v1627 = vshrl.u32 %v1626, 7
    %v1628 = vsub.s32 %v1625, %v1627
    %v1629 = vrot.slane %v223, %v1628
    %v1631 = vunpack.c.l.s4 269488144
    %v1632 = vunpack.c.0.s8 %v1631
    %v1633 = vlaneseq
    %v1634 = vshrl.u32 %v1633, 7
    %v1635 = vsub.s32 %v1632, %v1634
    %v1636 = vrot.slane %v226, %v1635
    %v1638 = vunpack.c.l.s4 842150450
    %v1639 = vunpack.c.0.s8 %v1638
    %v1640 = vlaneseq
    %v1641 = vshrl.u32 %v1640, 7
    %v1642 = vsub.s32 %v1639, %v1641
    %v1643 = vrot.slane %v226, %v1642
    %v1645 = vunpack.c.l.s4 1414812756
    %v1646 = vunpack.c.0.s8 %v1645
    %v1647 = vlaneseq
    %v1648 = vshrl.u32 %v1647, 7
    %v1649 = vsub.s32 %v1646, %v1648
    %v1650 = vrot.slane %v226, %v1649
    %v1652 = vunpack.c.l.s4 1987475062
    %v1653 = vunpack.c.0.s8 %v1652
    %v1654 = vlaneseq
    %v1655 = vshrl.u32 %v1654, 7
    %v1656 = vsub.s32 %v1653, %v1655
    %v1657 = vrot.slane %v226, %v1656
    %v1659 = vunpack.c.l.s4 269488144
    %v1660 = vunpack.c.0.s8 %v1659
    %v1661 = vlaneseq
    %v1662 = vshrl.u32 %v1661, 7
    %v1663 = vsub.s32 %v1660, %v1662
    %v1664 = vrot.slane %v229, %v1663
    %v1666 = vunpack.c.l.s4 842150450
    %v1667 = vunpack.c.0.s8 %v1666
    %v1668 = vlaneseq
    %v1669 = vshrl.u32 %v1668, 7
    %v1670 = vsub.s32 %v1667, %v1669
    %v1671 = vrot.slane %v229, %v1670
    %v1673 = vunpack.c.l.s4 1414812756
    %v1674 = vunpack.c.0.s8 %v1673
    %v1675 = vlaneseq
    %v1676 = vshrl.u32 %v1675, 7
    %v1677 = vsub.s32 %v1674, %v1676
    %v1678 = vrot.slane %v229, %v1677
    %v1680 = vunpack.c.l.s4 1987475062
    %v1681 = vunpack.c.0.s8 %v1680
    %v1682 = vlaneseq
    %v1683 = vshrl.u32 %v1682, 7
    %v1684 = vsub.s32 %v1681, %v1683
    %v1685 = vrot.slane %v229, %v1684
    %v1687 = vunpack.c.l.s4 269488144
    %v1688 = vunpack.c.0.s8 %v1687
    %v1689 = vlaneseq
    %v1690 = vshrl.u32 %v1689, 7
    %v1691 = vsub.s32 %v1688, %v1690
    %v1692 = vrot.slane %v232, %v1691
    %v1694 = vunpack.c.l.s4 842150450
    %v1695 = vunpack.c.0.s8 %v1694
    %v1696 = vlaneseq
    %v1697 = vshrl.u32 %v1696, 7
    %v1698 = vsub.s32 %v1695, %v1697
    %v1699 = vrot.slane %v232, %v1698
    %v1701 = vunpack.c.l.s4 1414812756
    %v1702 = vunpack.c.0.s8 %v1701
    %v1703 = vlaneseq
    %v1704 = vshrl.u32 %v1703, 7
    %v1705 = vsub.s32 %v1702, %v1704
    %v1706 = vrot.slane %v232, %v1705
    %v1708 = vunpack.c.l.s4 1987475062
    %v1709 = vunpack.c.0.s8 %v1708
    %v1710 = vlaneseq
    %v1711 = vshrl.u32 %v1710, 7
    %v1712 = vsub.s32 %v1709, %v1711
    %v1713 = vrot.slane %v232, %v1712
    %v1715 = vunpack.c.l.s4 269488144
    %v1716 = vunpack.c.0.s8 %v1715
    %v1717 = vlaneseq
    %v1718 = vshrl.u32 %v1717, 7
    %v1719 = vsub.s32 %v1716, %v1718
    %v1720 = vrot.slane %v235, %v1719
    %v1722 = vunpack.c.l.s4 842150450
    %v1723 = vunpack.c.0.s8 %v1722
    %v1724 = vlaneseq
    %v1725 = vshrl.u32 %v1724, 7
    %v1726 = vsub.s32 %v1723, %v1725
    %v1727 = vrot.slane %v235, %v1726
    %v1729 = vunpack.c.l.s4 1414812756
    %v1730 = vunpack.c.0.s8 %v1729
    %v1731 = vlaneseq
    %v1732 = vshrl.u32 %v1731, 7
    %v1733 = vsub.s32 %v1730, %v1732
    %v1734 = vrot.slane %v235, %v1733
    %v1736 = vunpack.c.l.s4 1987475062
    %v1737 = vunpack.c.0.s8 %v1736
    %v1738 = vlaneseq
    %v1739 = vshrl.u32 %v1738, 7
    %v1740 = vsub.s32 %v1737, %v1739
    %v1741 = vrot.slane %v235, %v1740
    %v1743 = vunpack.c.l.s4 269488144
    %v1744 = vunpack.c.0.s8 %v1743
    %v1745 = vlaneseq
    %v1746 = vshrl.u32 %v1745, 7
    %v1747 = vsub.s32 %v1744, %v1746
    %v1748 = vrot.slane %v238, %v1747
    %v1750 = vunpack.c.l.s4 842150450
    %v1751 = vunpack.c.0.s8 %v1750
    %v1752 = vlaneseq
    %v1753 = vshrl.u32 %v1752, 7
    %v1754 = vsub.s32 %v1751, %v1753
    %v1755 = vrot.slane %v238, %v1754
    %v1757 = vunpack.c.l.s4 1414812756
    %v1758 = vunpack.c.0.s8 %v1757
    %v1759 = vlaneseq
    %v1760 = vshrl.u32 %v1759, 7
    %v1761 = vsub.s32 %v1758, %v1760
    %v1762 = vrot.slane %v238, %v1761
    %v1764 = vunpack.c.l.s4 1987475062
    %v1765 = vunpack.c.0.s8 %v1764
    %v1766 = vlaneseq
    %v1767 = vshrl.u32 %v1766, 7
    %v1768 = vsub.s32 %v1765, %v1767
    %v1769 = vrot.slane %v238, %v1768
    %v1771 = vunpack.c.l.s4 269488144
    %v1772 = vunpack.c.0.s8 %v1771
    %v1773 = vlaneseq
    %v1774 = vshrl.u32 %v1773, 7
    %v1775 = vsub.s32 %v1772, %v1774
    %v1776 = vrot.slane %v241, %v1775
    %v1778 = vunpack.c.l.s4 842150450
    %v1779 = vunpack.c.0.s8 %v1778
    %v1780 = vlaneseq
    %v1781 = vshrl.u32 %v1780, 7
    %v1782 = vsub.s32 %v1779, %v1781
    %v1783 = vrot.slane %v241, %v1782
    %v1785 = vunpack.c.l.s4 1414812756
    %v1786 = vunpack.c.0.s8 %v1785
    %v1787 = vlaneseq
    %v1788 = vshrl.u32 %v1787, 7
    %v1789 = vsub.s32 %v1786, %v1788
    %v1790 = vrot.slane %v241, %v1789
    %v1792 = vunpack.c.l.s4 1987475062
    %v1793 = vunpack.c.0.s8 %v1792
    %v1794 = vlaneseq
    %v1795 = vshrl.u32 %v1794, 7
    %v1796 = vsub.s32 %v1793, %v1795
    %v1797 = vrot.slane %v241, %v1796
    %v1799 = vunpack.c.l.s4 269488144
    %v1800 = vunpack.c.0.s8 %v1799
    %v1801 = vlaneseq
    %v1802 = vshrl.u32 %v1801, 7
    %v1803 = vsub.s32 %v1800, %v1802
    %v1804 = vrot.slane %v244, %v1803
    %v1806 = vunpack.c.l.s4 842150450
    %v1807 = vunpack.c.0.s8 %v1806
    %v1808 = vlaneseq
    %v1809 = vshrl.u32 %v1808, 7
    %v1810 = vsub.s32 %v1807, %v1809
    %v1811 = vrot.slane %v244, %v1810
    %v1813 = vunpack.c.l.s4 1414812756
    %v1814 = vunpack.c.0.s8 %v1813
    %v1815 = vlaneseq
    %v1816 = vshrl.u32 %v1815, 7
    %v1817 = vsub.s32 %v1814, %v1816
    %v1818 = vrot.slane %v244, %v1817
    %v1820 = vunpack.c.l.s4 1987475062
    %v1821 = vunpack.c.0.s8 %v1820
    %v1822 = vlaneseq
    %v1823 = vshrl.u32 %v1822, 7
    %v1824 = vsub.s32 %v1821, %v1823
    %v1825 = vrot.slane %v244, %v1824
    %v1827 = vunpack.c.l.s4 269488144
    %v1828 = vunpack.c.0.s8 %v1827
    %v1829 = vlaneseq
    %v1830 = vshrl.u32 %v1829, 7
    %v1831 = vsub.s32 %v1828, %v1830
    %v1832 = vrot.slane %v247, %v1831
    %v1834 = vunpack.c.l.s4 842150450
    %v1835 = vunpack.c.0.s8 %v1834
    %v1836 = vlaneseq
    %v1837 = vshrl.u32 %v1836, 7
    %v1838 = vsub.s32 %v1835, %v1837
    %v1839 = vrot.slane %v247, %v1838
    %v1841 = vunpack.c.l.s4 1414812756
    %v1842 = vunpack.c.0.s8 %v1841
    %v1843 = vlaneseq
    %v1844 = vshrl.u32 %v1843, 7
    %v1845 = vsub.s32 %v1842, %v1844
    %v1846 = vrot.slane %v247, %v1845
    %v1848 = vunpack.c.l.s4 1987475062
    %v1849 = vunpack.c.0.s8 %v1848
    %v1850 = vlaneseq
    %v1851 = vshrl.u32 %v1850, 7
    %v1852 = vsub.s32 %v1849, %v1851
    %v1853 = vrot.slane %v247, %v1852
    %v1855 = vunpack.c.l.s4 269488144
    %v1856 = vunpack.c.0.s8 %v1855
    %v1857 = vlaneseq
    %v1858 = vshrl.u32 %v1857, 7
    %v1859 = vsub.s32 %v1856, %v1858
    %v1860 = vrot.slane %v250, %v1859
    %v1862 = vunpack.c.l.s4 842150450
    %v1863 = vunpack.c.0.s8 %v1862
    %v1864 = vlaneseq
    %v1865 = vshrl.u32 %v1864, 7
    %v1866 = vsub.s32 %v1863, %v1865
    %v1867 = vrot.slane %v250, %v1866
    %v1869 = vunpack.c.l.s4 1414812756
    %v1870 = vunpack.c.0.s8 %v1869
    %v1871 = vlaneseq
    %v1872 = vshrl.u32 %v1871, 7
    %v1873 = vsub.s32 %v1870, %v1872
    %v1874 = vrot.slane %v250, %v1873
    %v1876 = vunpack.c.l.s4 1987475062
    %v1877 = vunpack.c.0.s8 %v1876
    %v1878 = vlaneseq
    %v1879 = vshrl.u32 %v1878, 7
    %v1880 = vsub.s32 %v1877, %v1879
    %v1881 = vrot.slane %v250, %v1880
    %v1883 = vunpack.c.l.s4 269488144
    %v1884 = vunpack.c.0.s8 %v1883
    %v1885 = vlaneseq
    %v1886 = vshrl.u32 %v1885, 7
    %v1887 = vsub.s32 %v1884, %v1886
    %v1888 = vrot.slane %v253, %v1887
    %v1890 = vunpack.c.l.s4 842150450
    %v1891 = vunpack.c.0.s8 %v1890
    %v1892 = vlaneseq
    %v1893 = vshrl.u32 %v1892, 7
    %v1894 = vsub.s32 %v1891, %v1893
    %v1895 = vrot.slane %v253, %v1894
    %v1897 = vunpack.c.l.s4 1414812756
    %v1898 = vunpack.c.0.s8 %v1897
    %v1899 = vlaneseq
    %v1900 = vshrl.u32 %v1899, 7
    %v1901 = vsub.s32 %v1898, %v1900
    %v1902 = vrot.slane %v253, %v1901
    %v1904 = vunpack.c.l.s4 1987475062
    %v1905 = vunpack.c.0.s8 %v1904
    %v1906 = vlaneseq
    %v1907 = vshrl.u32 %v1906, 7
    %v1908 = vsub.s32 %v1905, %v1907
    %v1909 = vrot.slane %v253, %v1908
    %v1911 = vunpack.c.l.s4 269488144
    %v1912 = vunpack.c.0.s8 %v1911
    %v1913 = vlaneseq
    %v1914 = vshrl.u32 %v1913, 7
    %v1915 = vsub.s32 %v1912, %v1914
    %v1916 = vrot.slane %v256, %v1915
    %v1918 = vunpack.c.l.s4 842150450
    %v1919 = vunpack.c.0.s8 %v1918
    %v1920 = vlaneseq
    %v1921 = vshrl.u32 %v1920, 7
    %v1922 = vsub.s32 %v1919, %v1921
    %v1923 = vrot.slane %v256, %v1922
    %v1925 = vunpack.c.l.s4 1414812756
    %v1926 = vunpack.c.0.s8 %v1925
    %v1927 = vlaneseq
    %v1928 = vshrl.u32 %v1927, 7
    %v1929 = vsub.s32 %v1926, %v1928
    %v1930 = vrot.slane %v256, %v1929
    %v1932 = vunpack.c.l.s4 1987475062
    %v1933 = vunpack.c.0.s8 %v1932
    %v1934 = vlaneseq
    %v1935 = vshrl.u32 %v1934, 7
    %v1936 = vsub.s32 %v1933, %v1935
    %v1937 = vrot.slane %v256, %v1936
    %v1939 = vunpack.c.l.s4 269488144
    %v1940 = vunpack.c.0.s8 %v1939
    %v1941 = vlaneseq
    %v1942 = vshrl.u32 %v1941, 7
    %v1943 = vsub.s32 %v1940, %v1942
    %v1944 = vrot.slane %v259, %v1943
    %v1946 = vunpack.c.l.s4 842150450
    %v1947 = vunpack.c.0.s8 %v1946
    %v1948 = vlaneseq
    %v1949 = vshrl.u32 %v1948, 7
    %v1950 = vsub.s32 %v1947, %v1949
    %v1951 = vrot.slane %v259, %v1950
    %v1953 = vunpack.c.l.s4 1414812756
    %v1954 = vunpack.c.0.s8 %v1953
    %v1955 = vlaneseq
    %v1956 = vshrl.u32 %v1955, 7
    %v1957 = vsub.s32 %v1954, %v1956
    %v1958 = vrot.slane %v259, %v1957
    %v1960 = vunpack.c.l.s4 1987475062
    %v1961 = vunpack.c.0.s8 %v1960
    %v1962 = vlaneseq
    %v1963 = vshrl.u32 %v1962, 7
    %v1964 = vsub.s32 %v1961, %v1963
    %v1965 = vrot.slane %v259, %v1964
    %v1967 = vunpack.c.l.s4 269488144
    %v1968 = vunpack.c.0.s8 %v1967
    %v1969 = vlaneseq
    %v1970 = vshrl.u32 %v1969, 7
    %v1971 = vsub.s32 %v1968, %v1970
    %v1972 = vrot.slane %v262, %v1971
    %v1974 = vunpack.c.l.s4 842150450
    %v1975 = vunpack.c.0.s8 %v1974
    %v1976 = vlaneseq
    %v1977 = vshrl.u32 %v1976, 7
    %v1978 = vsub.s32 %v1975, %v1977
    %v1979 = vrot.slane %v262, %v1978
    %v1981 = vunpack.c.l.s4 1414812756
    %v1982 = vunpack.c.0.s8 %v1981
    %v1983 = vlaneseq
    %v1984 = vshrl.u32 %v1983, 7
    %v1985 = vsub.s32 %v1982, %v1984
    %v1986 = vrot.slane %v262, %v1985
    %v1988 = vunpack.c.l.s4 1987475062
    %v1989 = vunpack.c.0.s8 %v1988
    %v1990 = vlaneseq
    %v1991 = vshrl.u32 %v1990, 7
    %v1992 = vsub.s32 %v1989, %v1991
    %v1993 = vrot.slane %v262, %v1992
    %v1995 = vunpack.c.l.s4 269488144
    %v1996 = vunpack.c.0.s8 %v1995
    %v1997 = vlaneseq
    %v1998 = vshrl.u32 %v1997, 7
    %v1999 = vsub.s32 %v1996, %v1998
    %v2000 = vrot.slane %v265, %v1999
    %v2002 = vunpack.c.l.s4 842150450
    %v2003 = vunpack.c.0.s8 %v2002
    %v2004 = vlaneseq
    %v2005 = vshrl.u32 %v2004, 7
    %v2006 = vsub.s32 %v2003, %v2005
    %v2007 = vrot.slane %v265, %v2006
    %v2009 = vunpack.c.l.s4 1414812756
    %v2010 = vunpack.c.0.s8 %v2009
    %v2011 = vlaneseq
    %v2012 = vshrl.u32 %v2011, 7
    %v2013 = vsub.s32 %v2010, %v2012
    %v2014 = vrot.slane %v265, %v2013
    %v2016 = vunpack.c.l.s4 1987475062
    %v2017 = vunpack.c.0.s8 %v2016
    %v2018 = vlaneseq
    %v2019 = vshrl.u32 %v2018, 7
    %v2020 = vsub.s32 %v2017, %v2019
    %v2021 = vrot.slane %v265, %v2020
    %v2023 = vunpack.c.l.s4 269488144
    %v2024 = vunpack.c.0.s8 %v2023
    %v2025 = vlaneseq
    %v2026 = vshrl.u32 %v2025, 7
    %v2027 = vsub.s32 %v2024, %v2026
    %v2028 = vrot.slane %v268, %v2027
    %v2030 = vunpack.c.l.s4 842150450
    %v2031 = vunpack.c.0.s8 %v2030
    %v2032 = vlaneseq
    %v2033 = vshrl.u32 %v2032, 7
    %v2034 = vsub.s32 %v2031, %v2033
    %v2035 = vrot.slane %v268, %v2034
    %v2037 = vunpack.c.l.s4 1414812756
    %v2038 = vunpack.c.0.s8 %v2037
    %v2039 = vlaneseq
    %v2040 = vshrl.u32 %v2039, 7
    %v2041 = vsub.s32 %v2038, %v2040
    %v2042 = vrot.slane %v268, %v2041
    %v2044 = vunpack.c.l.s4 1987475062
    %v2045 = vunpack.c.0.s8 %v2044
    %v2046 = vlaneseq
    %v2047 = vshrl.u32 %v2046, 7
    %v2048 = vsub.s32 %v2045, %v2047
    %v2049 = vrot.slane %v268, %v2048
    %v2051 = vunpack.c.l.s4 269488144
    %v2052 = vunpack.c.0.s8 %v2051
    %v2053 = vlaneseq
    %v2054 = vshrl.u32 %v2053, 7
    %v2055 = vsub.s32 %v2052, %v2054
    %v2056 = vrot.slane %v271, %v2055
    %v2058 = vunpack.c.l.s4 842150450
    %v2059 = vunpack.c.0.s8 %v2058
    %v2060 = vlaneseq
    %v2061 = vshrl.u32 %v2060, 7
    %v2062 = vsub.s32 %v2059, %v2061
    %v2063 = vrot.slane %v271, %v2062
    %v2065 = vunpack.c.l.s4 1414812756
    %v2066 = vunpack.c.0.s8 %v2065
    %v2067 = vlaneseq
    %v2068 = vshrl.u32 %v2067, 7
    %v2069 = vsub.s32 %v2066, %v2068
    %v2070 = vrot.slane %v271, %v2069
    %v2072 = vunpack.c.l.s4 1987475062
    %v2073 = vunpack.c.0.s8 %v2072
    %v2074 = vlaneseq
    %v2075 = vshrl.u32 %v2074, 7
    %v2076 = vsub.s32 %v2073, %v2075
    %v2077 = vrot.slane %v271, %v2076
    %v2079 = vunpack.c.l.s4 269488144
    %v2080 = vunpack.c.0.s8 %v2079
    %v2081 = vlaneseq
    %v2082 = vshrl.u32 %v2081, 7
    %v2083 = vsub.s32 %v2080, %v2082
    %v2084 = vrot.slane %v274, %v2083
    %v2086 = vunpack.c.l.s4 842150450
    %v2087 = vunpack.c.0.s8 %v2086
    %v2088 = vlaneseq
    %v2089 = vshrl.u32 %v2088, 7
    %v2090 = vsub.s32 %v2087, %v2089
    %v2091 = vrot.slane %v274, %v2090
    %v2093 = vunpack.c.l.s4 1414812756
    %v2094 = vunpack.c.0.s8 %v2093
    %v2095 = vlaneseq
    %v2096 = vshrl.u32 %v2095, 7
    %v2097 = vsub.s32 %v2094, %v2096
    %v2098 = vrot.slane %v274, %v2097
    %v2100 = vunpack.c.l.s4 1987475062
    %v2101 = vunpack.c.0.s8 %v2100
    %v2102 = vlaneseq
    %v2103 = vshrl.u32 %v2102, 7
    %v2104 = vsub.s32 %v2101, %v2103
    %v2105 = vrot.slane %v274, %v2104
    %v2107 = vunpack.c.l.s4 269488144
    %v2108 = vunpack.c.0.s8 %v2107
    %v2109 = vlaneseq
    %v2110 = vshrl.u32 %v2109, 7
    %v2111 = vsub.s32 %v2108, %v2110
    %v2112 = vrot.slane %v277, %v2111
    %v2114 = vunpack.c.l.s4 842150450
    %v2115 = vunpack.c.0.s8 %v2114
    %v2116 = vlaneseq
    %v2117 = vshrl.u32 %v2116, 7
    %v2118 = vsub.s32 %v2115, %v2117
    %v2119 = vrot.slane %v277, %v2118
    %v2121 = vunpack.c.l.s4 1414812756
    %v2122 = vunpack.c.0.s8 %v2121
    %v2123 = vlaneseq
    %v2124 = vshrl.u32 %v2123, 7
    %v2125 = vsub.s32 %v2122, %v2124
    %v2126 = vrot.slane %v277, %v2125
    %v2128 = vunpack.c.l.s4 1987475062
    %v2129 = vunpack.c.0.s8 %v2128
    %v2130 = vlaneseq
    %v2131 = vshrl.u32 %v2130, 7
    %v2132 = vsub.s32 %v2129, %v2131
    %v2133 = vrot.slane %v277, %v2132
    %v2134 = vcombine.low %v348, %v355
    %v2135 = vcombine.low %v362, %v369
    %v2137 = vunpack.c.l.s4 1983009808
    %v2138 = vunpack.c.0.s8 %v2137
    %v2139 = vlaneseq
    %v2140 = vshrl.u32 %v2139, 7
    %v2141 = vsub.s32 %v2138, %v2140
    %v2142 = vrot.slane %v2134, %v2141
    %v2144 = vunpack.c.l.s4 1983009808
    %v2145 = vunpack.c.0.s8 %v2144
    %v2146 = vlaneseq
    %v2147 = vshrl.u32 %v2146, 7
    %v2148 = vsub.s32 %v2145, %v2147
    %v2149 = vrot.slane %v2135, %v2148
    %v2150 = vcombine.low %v2142, %v2149
    %v2151 = vcombine.low %v376, %v383
    %v2152 = vcombine.low %v390, %v397
    %v2154 = vunpack.c.l.s4 1983009808
    %v2155 = vunpack.c.0.s8 %v2154
    %v2156 = vlaneseq
    %v2157 = vshrl.u32 %v2156, 7
    %v2158 = vsub.s32 %v2155, %v2157
    %v2159 = vrot.slane %v2151, %v2158
    %v2161 = vunpack.c.l.s4 1983009808
    %v2162 = vunpack.c.0.s8 %v2161
    %v2163 = vlaneseq
    %v2164 = vshrl.u32 %v2163, 7
    %v2165 = vsub.s32 %v2162, %v2164
    %v2166 = vrot.slane %v2152, %v2165
    %v2167 = vcombine.low %v2159, %v2166
    %v2168 = vcombine.low %v404, %v411
    %v2169 = vcombine.low %v418, %v425
    %v2171 = vunpack.c.l.s4 1983009808
    %v2172 = vunpack.c.0.s8 %v2171
    %v2173 = vlaneseq
    %v2174 = vshrl.u32 %v2173, 7
    %v2175 = vsub.s32 %v2172, %v2174
    %v2176 = vrot.slane %v2168, %v2175
    %v2178 = vunpack.c.l.s4 1983009808
    %v2179 = vunpack.c.0.s8 %v2178
    %v2180 = vlaneseq
    %v2181 = vshrl.u32 %v2180, 7
    %v2182 = vsub.s32 %v2179, %v2181
    %v2183 = vrot.slane %v2169, %v2182
    %v2184 = vcombine.low %v2176, %v2183
    %v2185 = vcombine.low %v432, %v439
    %v2186 = vcombine.low %v446, %v453
    %v2188 = vunpack.c.l.s4 1983009808
    %v2189 = vunpack.c.0.s8 %v2188
    %v2190 = vlaneseq
    %v2191 = vshrl.u32 %v2190, 7
    %v2192 = vsub.s32 %v2189, %v2191
    %v2193 = vrot.slane %v2185, %v2192
    %v2195 = vunpack.c.l.s4 1983009808
    %v2196 = vunpack.c.0.s8 %v2195
    %v2197 = vlaneseq
    %v2198 = vshrl.u32 %v2197, 7
    %v2199 = vsub.s32 %v2196, %v2198
    %v2200 = vrot.slane %v2186, %v2199
    %v2201 = vcombine.low %v2193, %v2200
    %v2202 = vcombine.low %v460, %v467
    %v2203 = vcombine.low %v474, %v481
    %v2205 = vunpack.c.l.s4 1983009808
    %v2206 = vunpack.c.0.s8 %v2205
    %v2207 = vlaneseq
    %v2208 = vshrl.u32 %v2207, 7
    %v2209 = vsub.s32 %v2206, %v2208
    %v2210 = vrot.slane %v2202, %v2209
    %v2212 = vunpack.c.l.s4 1983009808
    %v2213 = vunpack.c.0.s8 %v2212
    %v2214 = vlaneseq
    %v2215 = vshrl.u32 %v2214, 7
    %v2216 = vsub.s32 %v2213, %v2215
    %v2217 = vrot.slane %v2203, %v2216
    %v2218 = vcombine.low %v2210, %v2217
    %v2219 = vcombine.low %v488, %v495
    %v2220 = vcombine.low %v502, %v509
    %v2222 = vunpack.c.l.s4 1983009808
    %v2223 = vunpack.c.0.s8 %v2222
    %v2224 = vlaneseq
    %v2225 = vshrl.u32 %v2224, 7
    %v2226 = vsub.s32 %v2223, %v2225
    %v2227 = vrot.slane %v2219, %v2226
    %v2229 = vunpack.c.l.s4 1983009808
    %v2230 = vunpack.c.0.s8 %v2229
    %v2231 = vlaneseq
    %v2232 = vshrl.u32 %v2231, 7
    %v2233 = vsub.s32 %v2230, %v2232
    %v2234 = vrot.slane %v2220, %v2233
    %v2235 = vcombine.low %v2227, %v2234
    %v2236 = vcombine.low %v516, %v523
    %v2237 = vcombine.low %v530, %v537
    %v2239 = vunpack.c.l.s4 1983009808
    %v2240 = vunpack.c.0.s8 %v2239
    %v2241 = vlaneseq
    %v2242 = vshrl.u32 %v2241, 7
    %v2243 = vsub.s32 %v2240, %v2242
    %v2244 = vrot.slane %v2236, %v2243
    %v2246 = vunpack.c.l.s4 1983009808
    %v2247 = vunpack.c.0.s8 %v2246
    %v2248 = vlaneseq
    %v2249 = vshrl.u32 %v2248, 7
    %v2250 = vsub.s32 %v2247, %v2249
    %v2251 = vrot.slane %v2237, %v2250
    %v2252 = vcombine.low %v2244, %v2251
    %v2253 = vcombine.low %v544, %v551
    %v2254 = vcombine.low %v558, %v565
    %v2256 = vunpack.c.l.s4 1983009808
    %v2257 = vunpack.c.0.s8 %v2256
    %v2258 = vlaneseq
    %v2259 = vshrl.u32 %v2258, 7
    %v2260 = vsub.s32 %v2257, %v2259
    %v2261 = vrot.slane %v2253, %v2260
    %v2263 = vunpack.c.l.s4 1983009808
    %v2264 = vunpack.c.0.s8 %v2263
    %v2265 = vlaneseq
    %v2266 = vshrl.u32 %v2265, 7
    %v2267 = vsub.s32 %v2264, %v2266
    %v2268 = vrot.slane %v2254, %v2267
    %v2269 = vcombine.low %v2261, %v2268
    %v2270 = vcombine.low %v572, %v579
    %v2271 = vcombine.low %v586, %v593
    %v2273 = vunpack.c.l.s4 1983009808
    %v2274 = vunpack.c.0.s8 %v2273
    %v2275 = vlaneseq
    %v2276 = vshrl.u32 %v2275, 7
    %v2277 = vsub.s32 %v2274, %v2276
    %v2278 = vrot.slane %v2270, %v2277
    %v2280 = vunpack.c.l.s4 1983009808
    %v2281 = vunpack.c.0.s8 %v2280
    %v2282 = vlaneseq
    %v2283 = vshrl.u32 %v2282, 7
    %v2284 = vsub.s32 %v2281, %v2283
    %v2285 = vrot.slane %v2271, %v2284
    %v2286 = vcombine.low %v2278, %v2285
    %v2287 = vcombine.low %v600, %v607
    %v2288 = vcombine.low %v614, %v621
    %v2290 = vunpack.c.l.s4 1983009808
    %v2291 = vunpack.c.0.s8 %v2290
    %v2292 = vlaneseq
    %v2293 = vshrl.u32 %v2292, 7
    %v2294 = vsub.s32 %v2291, %v2293
    %v2295 = vrot.slane %v2287, %v2294
    %v2297 = vunpack.c.l.s4 1983009808
    %v2298 = vunpack.c.0.s8 %v2297
    %v2299 = vlaneseq
    %v2300 = vshrl.u32 %v2299, 7
    %v2301 = vsub.s32 %v2298, %v2300
    %v2302 = vrot.slane %v2288, %v2301
    %v2303 = vcombine.low %v2295, %v2302
    %v2304 = vcombine.low %v628, %v635
    %v2305 = vcombine.low %v642, %v649
    %v2307 = vunpack.c.l.s4 1983009808
    %v2308 = vunpack.c.0.s8 %v2307
    %v2309 = vlaneseq
    %v2310 = vshrl.u32 %v2309, 7
    %v2311 = vsub.s32 %v2308, %v2310
    %v2312 = vrot.slane %v2304, %v2311
    %v2314 = vunpack.c.l.s4 1983009808
    %v2315 = vunpack.c.0.s8 %v2314
    %v2316 = vlaneseq
    %v2317 = vshrl.u32 %v2316, 7
    %v2318 = vsub.s32 %v2315, %v2317
    %v2319 = vrot.slane %v2305, %v2318
    %v2320 = vcombine.low %v2312, %v2319
    %v2321 = vcombine.low %v656, %v663
    %v2322 = vcombine.low %v670, %v677
    %v2324 = vunpack.c.l.s4 1983009808
    %v2325 = vunpack.c.0.s8 %v2324
    %v2326 = vlaneseq
    %v2327 = vshrl.u32 %v2326, 7
    %v2328 = vsub.s32 %v2325, %v2327
    %v2329 = vrot.slane %v2321, %v2328
    %v2331 = vunpack.c.l.s4 1983009808
    %v2332 = vunpack.c.0.s8 %v2331
    %v2333 = vlaneseq
    %v2334 = vshrl.u32 %v2333, 7
    %v2335 = vsub.s32 %v2332, %v2334
    %v2336 = vrot.slane %v2322, %v2335
    %v2337 = vcombine.low %v2329, %v2336
    %v2338 = vcombine.low %v684, %v691
    %v2339 = vcombine.low %v698, %v705
    %v2341 = vunpack.c.l.s4 1983009808
    %v2342 = vunpack.c.0.s8 %v2341
    %v2343 = vlaneseq
    %v2344 = vshrl.u32 %v2343, 7
    %v2345 = vsub.s32 %v2342, %v2344
    %v2346 = vrot.slane %v2338, %v2345
    %v2348 = vunpack.c.l.s4 1983009808
    %v2349 = vunpack.c.0.s8 %v2348
    %v2350 = vlaneseq
    %v2351 = vshrl.u32 %v2350, 7
    %v2352 = vsub.s32 %v2349, %v2351
    %v2353 = vrot.slane %v2339, %v2352
    %v2354 = vcombine.low %v2346, %v2353
    %v2355 = vcombine.low %v712, %v719
    %v2356 = vcombine.low %v726, %v733
    %v2358 = vunpack.c.l.s4 1983009808
    %v2359 = vunpack.c.0.s8 %v2358
    %v2360 = vlaneseq
    %v2361 = vshrl.u32 %v2360, 7
    %v2362 = vsub.s32 %v2359, %v2361
    %v2363 = vrot.slane %v2355, %v2362
    %v2365 = vunpack.c.l.s4 1983009808
    %v2366 = vunpack.c.0.s8 %v2365
    %v2367 = vlaneseq
    %v2368 = vshrl.u32 %v2367, 7
    %v2369 = vsub.s32 %v2366, %v2368
    %v2370 = vrot.slane %v2356, %v2369
    %v2371 = vcombine.low %v2363, %v2370
    %v2372 = vcombine.low %v740, %v747
    %v2373 = vcombine.low %v754, %v761
    %v2375 = vunpack.c.l.s4 1983009808
    %v2376 = vunpack.c.0.s8 %v2375
    %v2377 = vlaneseq
    %v2378 = vshrl.u32 %v2377, 7
    %v2379 = vsub.s32 %v2376, %v2378
    %v2380 = vrot.slane %v2372, %v2379
    %v2382 = vunpack.c.l.s4 1983009808
    %v2383 = vunpack.c.0.s8 %v2382
    %v2384 = vlaneseq
    %v2385 = vshrl.u32 %v2384, 7
    %v2386 = vsub.s32 %v2383, %v2385
    %v2387 = vrot.slane %v2373, %v2386
    %v2388 = vcombine.low %v2380, %v2387
    %v2389 = vcombine.low %v768, %v775
    %v2390 = vcombine.low %v782, %v789
    %v2392 = vunpack.c.l.s4 1983009808
    %v2393 = vunpack.c.0.s8 %v2392
    %v2394 = vlaneseq
    %v2395 = vshrl.u32 %v2394, 7
    %v2396 = vsub.s32 %v2393, %v2395
    %v2397 = vrot.slane %v2389, %v2396
    %v2399 = vunpack.c.l.s4 1983009808
    %v2400 = vunpack.c.0.s8 %v2399
    %v2401 = vlaneseq
    %v2402 = vshrl.u32 %v2401, 7
    %v2403 = vsub.s32 %v2400, %v2402
    %v2404 = vrot.slane %v2390, %v2403
    %v2405 = vcombine.low %v2397, %v2404
    %v2406 = vcombine.low %v796, %v803
    %v2407 = vcombine.low %v810, %v817
    %v2409 = vunpack.c.l.s4 1983009808
    %v2410 = vunpack.c.0.s8 %v2409
    %v2411 = vlaneseq
    %v2412 = vshrl.u32 %v2411, 7
    %v2413 = vsub.s32 %v2410, %v2412
    %v2414 = vrot.slane %v2406, %v2413
    %v2416 = vunpack.c.l.s4 1983009808
    %v2417 = vunpack.c.0.s8 %v2416
    %v2418 = vlaneseq
    %v2419 = vshrl.u32 %v2418, 7
    %v2420 = vsub.s32 %v2417, %v2419
    %v2421 = vrot.slane %v2407, %v2420
    %v2422 = vcombine.low %v2414, %v2421
    %v2423 = vcombine.low %v824, %v831
    %v2424 = vcombine.low %v838, %v845
    %v2426 = vunpack.c.l.s4 1983009808
    %v2427 = vunpack.c.0.s8 %v2426
    %v2428 = vlaneseq
    %v2429 = vshrl.u32 %v2428, 7
    %v2430 = vsub.s32 %v2427, %v2429
    %v2431 = vrot.slane %v2423, %v2430
    %v2433 = vunpack.c.l.s4 1983009808
    %v2434 = vunpack.c.0.s8 %v2433
    %v2435 = vlaneseq
    %v2436 = vshrl.u32 %v2435, 7
    %v2437 = vsub.s32 %v2434, %v2436
    %v2438 = vrot.slane %v2424, %v2437
    %v2439 = vcombine.low %v2431, %v2438
    %v2440 = vcombine.low %v852, %v859
    %v2441 = vcombine.low %v866, %v873
    %v2443 = vunpack.c.l.s4 1983009808
    %v2444 = vunpack.c.0.s8 %v2443
    %v2445 = vlaneseq
    %v2446 = vshrl.u32 %v2445, 7
    %v2447 = vsub.s32 %v2444, %v2446
    %v2448 = vrot.slane %v2440, %v2447
    %v2450 = vunpack.c.l.s4 1983009808
    %v2451 = vunpack.c.0.s8 %v2450
    %v2452 = vlaneseq
    %v2453 = vshrl.u32 %v2452, 7
    %v2454 = vsub.s32 %v2451, %v2453
    %v2455 = vrot.slane %v2441, %v2454
    %v2456 = vcombine.low %v2448, %v2455
    %v2457 = vcombine.low %v880, %v887
    %v2458 = vcombine.low %v894, %v901
    %v2460 = vunpack.c.l.s4 1983009808
    %v2461 = vunpack.c.0.s8 %v2460
    %v2462 = vlaneseq
    %v2463 = vshrl.u32 %v2462, 7
    %v2464 = vsub.s32 %v2461, %v2463
    %v2465 = vrot.slane %v2457, %v2464
    %v2467 = vunpack.c.l.s4 1983009808
    %v2468 = vunpack.c.0.s8 %v2467
    %v2469 = vlaneseq
    %v2470 = vshrl.u32 %v2469, 7
    %v2471 = vsub.s32 %v2468, %v2470
    %v2472 = vrot.slane %v2458, %v2471
    %v2473 = vcombine.low %v2465, %v2472
    %v2474 = vcombine.low %v908, %v915
    %v2475 = vcombine.low %v922, %v929
    %v2477 = vunpack.c.l.s4 1983009808
    %v2478 = vunpack.c.0.s8 %v2477
    %v2479 = vlaneseq
    %v2480 = vshrl.u32 %v2479, 7
    %v2481 = vsub.s32 %v2478, %v2480
    %v2482 = vrot.slane %v2474, %v2481
    %v2484 = vunpack.c.l.s4 1983009808
    %v2485 = vunpack.c.0.s8 %v2484
    %v2486 = vlaneseq
    %v2487 = vshrl.u32 %v2486, 7
    %v2488 = vsub.s32 %v2485, %v2487
    %v2489 = vrot.slane %v2475, %v2488
    %v2490 = vcombine.low %v2482, %v2489
    %v2491 = vcombine.low %v936, %v943
    %v2492 = vcombine.low %v950, %v957
    %v2494 = vunpack.c.l.s4 1983009808
    %v2495 = vunpack.c.0.s8 %v2494
    %v2496 = vlaneseq
    %v2497 = vshrl.u32 %v2496, 7
    %v2498 = vsub.s32 %v2495, %v2497
    %v2499 = vrot.slane %v2491, %v2498
    %v2501 = vunpack.c.l.s4 1983009808
    %v2502 = vunpack.c.0.s8 %v2501
    %v2503 = vlaneseq
    %v2504 = vshrl.u32 %v2503, 7
    %v2505 = vsub.s32 %v2502, %v2504
    %v2506 = vrot.slane %v2492, %v2505
    %v2507 = vcombine.low %v2499, %v2506
    %v2508 = vcombine.low %v964, %v971
    %v2509 = vcombine.low %v978, %v985
    %v2511 = vunpack.c.l.s4 1983009808
    %v2512 = vunpack.c.0.s8 %v2511
    %v2513 = vlaneseq
    %v2514 = vshrl.u32 %v2513, 7
    %v2515 = vsub.s32 %v2512, %v2514
    %v2516 = vrot.slane %v2508, %v2515
    %v2518 = vunpack.c.l.s4 1983009808
    %v2519 = vunpack.c.0.s8 %v2518
    %v2520 = vlaneseq
    %v2521 = vshrl.u32 %v2520, 7
    %v2522 = vsub.s32 %v2519, %v2521
    %v2523 = vrot.slane %v2509, %v2522
    %v2524 = vcombine.low %v2516, %v2523
    %v2525 = vcombine.low %v992, %v999
    %v2526 = vcombine.low %v1006, %v1013
    %v2528 = vunpack.c.l.s4 1983009808
    %v2529 = vunpack.c.0.s8 %v2528
    %v2530 = vlaneseq
    %v2531 = vshrl.u32 %v2530, 7
    %v2532 = vsub.s32 %v2529, %v2531
    %v2533 = vrot.slane %v2525, %v2532
    %v2535 = vunpack.c.l.s4 1983009808
    %v2536 = vunpack.c.0.s8 %v2535
    %v2537 = vlaneseq
    %v2538 = vshrl.u32 %v2537, 7
    %v2539 = vsub.s32 %v2536, %v2538
    %v2540 = vrot.slane %v2526, %v2539
    %v2541 = vcombine.low %v2533, %v2540
    %v2542 = vcombine.low %v1020, %v1027
    %v2543 = vcombine.low %v1034, %v1041
    %v2545 = vunpack.c.l.s4 1983009808
    %v2546 = vunpack.c.0.s8 %v2545
    %v2547 = vlaneseq
    %v2548 = vshrl.u32 %v2547, 7
    %v2549 = vsub.s32 %v2546, %v2548
    %v2550 = vrot.slane %v2542, %v2549
    %v2552 = vunpack.c.l.s4 1983009808
    %v2553 = vunpack.c.0.s8 %v2552
    %v2554 = vlaneseq
    %v2555 = vshrl.u32 %v2554, 7
    %v2556 = vsub.s32 %v2553, %v2555
    %v2557 = vrot.slane %v2543, %v2556
    %v2558 = vcombine.low %v2550, %v2557
    %v2559 = vcombine.low %v1048, %v1055
    %v2560 = vcombine.low %v1062, %v1069
    %v2562 = vunpack.c.l.s4 1983009808
    %v2563 = vunpack.c.0.s8 %v2562
    %v2564 = vlaneseq
    %v2565 = vshrl.u32 %v2564, 7
    %v2566 = vsub.s32 %v2563, %v2565
    %v2567 = vrot.slane %v2559, %v2566
    %v2569 = vunpack.c.l.s4 1983009808
    %v2570 = vunpack.c.0.s8 %v2569
    %v2571 = vlaneseq
    %v2572 = vshrl.u32 %v2571, 7
    %v2573 = vsub.s32 %v2570, %v2572
    %v2574 = vrot.slane %v2560, %v2573
    %v2575 = vcombine.low %v2567, %v2574
    %v2576 = vcombine.low %v1076, %v1083
    %v2577 = vcombine.low %v1090, %v1097
    %v2579 = vunpack.c.l.s4 1983009808
    %v2580 = vunpack.c.0.s8 %v2579
    %v2581 = vlaneseq
    %v2582 = vshrl.u32 %v2581, 7
    %v2583 = vsub.s32 %v2580, %v2582
    %v2584 = vrot.slane %v2576, %v2583
    %v2586 = vunpack.c.l.s4 1983009808
    %v2587 = vunpack.c.0.s8 %v2586
    %v2588 = vlaneseq
    %v2589 = vshrl.u32 %v2588, 7
    %v2590 = vsub.s32 %v2587, %v2589
    %v2591 = vrot.slane %v2577, %v2590
    %v2592 = vcombine.low %v2584, %v2591
    %v2593 = vcombine.low %v1104, %v1111
    %v2594 = vcombine.low %v1118, %v1125
    %v2596 = vunpack.c.l.s4 1983009808
    %v2597 = vunpack.c.0.s8 %v2596
    %v2598 = vlaneseq
    %v2599 = vshrl.u32 %v2598, 7
    %v2600 = vsub.s32 %v2597, %v2599
    %v2601 = vrot.slane %v2593, %v2600
    %v2603 = vunpack.c.l.s4 1983009808
    %v2604 = vunpack.c.0.s8 %v2603
    %v2605 = vlaneseq
    %v2606 = vshrl.u32 %v2605, 7
    %v2607 = vsub.s32 %v2604, %v2606
    %v2608 = vrot.slane %v2594, %v2607
    %v2609 = vcombine.low %v2601, %v2608
    %v2610 = vcombine.low %v1132, %v1139
    %v2611 = vcombine.low %v1146, %v1153
    %v2613 = vunpack.c.l.s4 1983009808
    %v2614 = vunpack.c.0.s8 %v2613
    %v2615 = vlaneseq
    %v2616 = vshrl.u32 %v2615, 7
    %v2617 = vsub.s32 %v2614, %v2616
    %v2618 = vrot.slane %v2610, %v2617
    %v2620 = vunpack.c.l.s4 1983009808
    %v2621 = vunpack.c.0.s8 %v2620
    %v2622 = vlaneseq
    %v2623 = vshrl.u32 %v2622, 7
    %v2624 = vsub.s32 %v2621, %v2623
    %v2625 = vrot.slane %v2611, %v2624
    %v2626 = vcombine.low %v2618, %v2625
    %v2627 = vcombine.low %v1160, %v1167
    %v2628 = vcombine.low %v1174, %v1181
    %v2630 = vunpack.c.l.s4 1983009808
    %v2631 = vunpack.c.0.s8 %v2630
    %v2632 = vlaneseq
    %v2633 = vshrl.u32 %v2632, 7
    %v2634 = vsub.s32 %v2631, %v2633
    %v2635 = vrot.slane %v2627, %v2634
    %v2637 = vunpack.c.l.s4 1983009808
    %v2638 = vunpack.c.0.s8 %v2637
    %v2639 = vlaneseq
    %v2640 = vshrl.u32 %v2639, 7
    %v2641 = vsub.s32 %v2638, %v2640
    %v2642 = vrot.slane %v2628, %v2641
    %v2643 = vcombine.low %v2635, %v2642
    %v2644 = vcombine.low %v1188, %v1195
    %v2645 = vcombine.low %v1202, %v1209
    %v2647 = vunpack.c.l.s4 1983009808
    %v2648 = vunpack.c.0.s8 %v2647
    %v2649 = vlaneseq
    %v2650 = vshrl.u32 %v2649, 7
    %v2651 = vsub.s32 %v2648, %v2650
    %v2652 = vrot.slane %v2644, %v2651
    %v2654 = vunpack.c.l.s4 1983009808
    %v2655 = vunpack.c.0.s8 %v2654
    %v2656 = vlaneseq
    %v2657 = vshrl.u32 %v2656, 7
    %v2658 = vsub.s32 %v2655, %v2657
    %v2659 = vrot.slane %v2645, %v2658
    %v2660 = vcombine.low %v2652, %v2659
    %v2661 = vcombine.low %v1216, %v1223
    %v2662 = vcombine.low %v1230, %v1237
    %v2664 = vunpack.c.l.s4 1983009808
    %v2665 = vunpack.c.0.s8 %v2664
    %v2666 = vlaneseq
    %v2667 = vshrl.u32 %v2666, 7
    %v2668 = vsub.s32 %v2665, %v2667
    %v2669 = vrot.slane %v2661, %v2668
    %v2671 = vunpack.c.l.s4 1983009808
    %v2672 = vunpack.c.0.s8 %v2671
    %v2673 = vlaneseq
    %v2674 = vshrl.u32 %v2673, 7
    %v2675 = vsub.s32 %v2672, %v2674
    %v2676 = vrot.slane %v2662, %v2675
    %v2677 = vcombine.low %v2669, %v2676
    %v2678 = vcombine.low %v1244, %v1251
    %v2679 = vcombine.low %v1258, %v1265
    %v2681 = vunpack.c.l.s4 1983009808
    %v2682 = vunpack.c.0.s8 %v2681
    %v2683 = vlaneseq
    %v2684 = vshrl.u32 %v2683, 7
    %v2685 = vsub.s32 %v2682, %v2684
    %v2686 = vrot.slane %v2678, %v2685
    %v2688 = vunpack.c.l.s4 1983009808
    %v2689 = vunpack.c.0.s8 %v2688
    %v2690 = vlaneseq
    %v2691 = vshrl.u32 %v2690, 7
    %v2692 = vsub.s32 %v2689, %v2691
    %v2693 = vrot.slane %v2679, %v2692
    %v2694 = vcombine.low %v2686, %v2693
    %v2695 = vcombine.low %v1272, %v1279
    %v2696 = vcombine.low %v1286, %v1293
    %v2698 = vunpack.c.l.s4 1983009808
    %v2699 = vunpack.c.0.s8 %v2698
    %v2700 = vlaneseq
    %v2701 = vshrl.u32 %v2700, 7
    %v2702 = vsub.s32 %v2699, %v2701
    %v2703 = vrot.slane %v2695, %v2702
    %v2705 = vunpack.c.l.s4 1983009808
    %v2706 = vunpack.c.0.s8 %v2705
    %v2707 = vlaneseq
    %v2708 = vshrl.u32 %v2707, 7
    %v2709 = vsub.s32 %v2706, %v2708
    %v2710 = vrot.slane %v2696, %v2709
    %v2711 = vcombine.low %v2703, %v2710
    %v2712 = vcombine.low %v1300, %v1307
    %v2713 = vcombine.low %v1314, %v1321
    %v2715 = vunpack.c.l.s4 1983009808
    %v2716 = vunpack.c.0.s8 %v2715
    %v2717 = vlaneseq
    %v2718 = vshrl.u32 %v2717, 7
    %v2719 = vsub.s32 %v2716, %v2718
    %v2720 = vrot.slane %v2712, %v2719
    %v2722 = vunpack.c.l.s4 1983009808
    %v2723 = vunpack.c.0.s8 %v2722
    %v2724 = vlaneseq
    %v2725 = vshrl.u32 %v2724, 7
    %v2726 = vsub.s32 %v2723, %v2725
    %v2727 = vrot.slane %v2713, %v2726
    %v2728 = vcombine.low %v2720, %v2727
    %v2729 = vcombine.low %v1328, %v1335
    %v2730 = vcombine.low %v1342, %v1349
    %v2732 = vunpack.c.l.s4 1983009808
    %v2733 = vunpack.c.0.s8 %v2732
    %v2734 = vlaneseq
    %v2735 = vshrl.u32 %v2734, 7
    %v2736 = vsub.s32 %v2733, %v2735
    %v2737 = vrot.slane %v2729, %v2736
    %v2739 = vunpack.c.l.s4 1983009808
    %v2740 = vunpack.c.0.s8 %v2739
    %v2741 = vlaneseq
    %v2742 = vshrl.u32 %v2741, 7
    %v2743 = vsub.s32 %v2740, %v2742
    %v2744 = vrot.slane %v2730, %v2743
    %v2745 = vcombine.low %v2737, %v2744
    %v2746 = vcombine.low %v1356, %v1363
    %v2747 = vcombine.low %v1370, %v1377
    %v2749 = vunpack.c.l.s4 1983009808
    %v2750 = vunpack.c.0.s8 %v2749
    %v2751 = vlaneseq
    %v2752 = vshrl.u32 %v2751, 7
    %v2753 = vsub.s32 %v2750, %v2752
    %v2754 = vrot.slane %v2746, %v2753
    %v2756 = vunpack.c.l.s4 1983009808
    %v2757 = vunpack.c.0.s8 %v2756
    %v2758 = vlaneseq
    %v2759 = vshrl.u32 %v2758, 7
    %v2760 = vsub.s32 %v2757, %v2759
    %v2761 = vrot.slane %v2747, %v2760
    %v2762 = vcombine.low %v2754, %v2761
    %v2763 = vcombine.low %v1384, %v1391
    %v2764 = vcombine.low %v1398, %v1405
    %v2766 = vunpack.c.l.s4 1983009808
    %v2767 = vunpack.c.0.s8 %v2766
    %v2768 = vlaneseq
    %v2769 = vshrl.u32 %v2768, 7
    %v2770 = vsub.s32 %v2767, %v2769
    %v2771 = vrot.slane %v2763, %v2770
    %v2773 = vunpack.c.l.s4 1983009808
    %v2774 = vunpack.c.0.s8 %v2773
    %v2775 = vlaneseq
    %v2776 = vshrl.u32 %v2775, 7
    %v2777 = vsub.s32 %v2774, %v2776
    %v2778 = vrot.slane %v2764, %v2777
    %v2779 = vcombine.low %v2771, %v2778
    %v2780 = vcombine.low %v1412, %v1419
    %v2781 = vcombine.low %v1426, %v1433
    %v2783 = vunpack.c.l.s4 1983009808
    %v2784 = vunpack.c.0.s8 %v2783
    %v2785 = vlaneseq
    %v2786 = vshrl.u32 %v2785, 7
    %v2787 = vsub.s32 %v2784, %v2786
    %v2788 = vrot.slane %v2780, %v2787
    %v2790 = vunpack.c.l.s4 1983009808
    %v2791 = vunpack.c.0.s8 %v2790
    %v2792 = vlaneseq
    %v2793 = vshrl.u32 %v2792, 7
    %v2794 = vsub.s32 %v2791, %v2793
    %v2795 = vrot.slane %v2781, %v2794
    %v2796 = vcombine.low %v2788, %v2795
    %v2797 = vcombine.low %v1440, %v1447
    %v2798 = vcombine.low %v1454, %v1461
    %v2800 = vunpack.c.l.s4 1983009808
    %v2801 = vunpack.c.0.s8 %v2800
    %v2802 = vlaneseq
    %v2803 = vshrl.u32 %v2802, 7
    %v2804 = vsub.s32 %v2801, %v2803
    %v2805 = vrot.slane %v2797, %v2804
    %v2807 = vunpack.c.l.s4 1983009808
    %v2808 = vunpack.c.0.s8 %v2807
    %v2809 = vlaneseq
    %v2810 = vshrl.u32 %v2809, 7
    %v2811 = vsub.s32 %v2808, %v2810
    %v2812 = vrot.slane %v2798, %v2811
    %v2813 = vcombine.low %v2805, %v2812
    %v2814 = vcombine.low %v1468, %v1475
    %v2815 = vcombine.low %v1482, %v1489
    %v2817 = vunpack.c.l.s4 1983009808
    %v2818 = vunpack.c.0.s8 %v2817
    %v2819 = vlaneseq
    %v2820 = vshrl.u32 %v2819, 7
    %v2821 = vsub.s32 %v2818, %v2820
    %v2822 = vrot.slane %v2814, %v2821
    %v2824 = vunpack.c.l.s4 1983009808
    %v2825 = vunpack.c.0.s8 %v2824
    %v2826 = vlaneseq
    %v2827 = vshrl.u32 %v2826, 7
    %v2828 = vsub.s32 %v2825, %v2827
    %v2829 = vrot.slane %v2815, %v2828
    %v2830 = vcombine.low %v2822, %v2829
    %v2831 = vcombine.low %v1496, %v1503
    %v2832 = vcombine.low %v1510, %v1517
    %v2834 = vunpack.c.l.s4 1983009808
    %v2835 = vunpack.c.0.s8 %v2834
    %v2836 = vlaneseq
    %v2837 = vshrl.u32 %v2836, 7
    %v2838 = vsub.s32 %v2835, %v2837
    %v2839 = vrot.slane %v2831, %v2838
    %v2841 = vunpack.c.l.s4 1983009808
    %v2842 = vunpack.c.0.s8 %v2841
    %v2843 = vlaneseq
    %v2844 = vshrl.u32 %v2843, 7
    %v2845 = vsub.s32 %v2842, %v2844
    %v2846 = vrot.slane %v2832, %v2845
    %v2847 = vcombine.low %v2839, %v2846
    %v2848 = vcombine.low %v1524, %v1531
    %v2849 = vcombine.low %v1538, %v1545
    %v2851 = vunpack.c.l.s4 1983009808
    %v2852 = vunpack.c.0.s8 %v2851
    %v2853 = vlaneseq
    %v2854 = vshrl.u32 %v2853, 7
    %v2855 = vsub.s32 %v2852, %v2854
    %v2856 = vrot.slane %v2848, %v2855
    %v2858 = vunpack.c.l.s4 1983009808
    %v2859 = vunpack.c.0.s8 %v2858
    %v2860 = vlaneseq
    %v2861 = vshrl.u32 %v2860, 7
    %v2862 = vsub.s32 %v2859, %v2861
    %v2863 = vrot.slane %v2849, %v2862
    %v2864 = vcombine.low %v2856, %v2863
    %v2865 = vcombine.low %v1552, %v1559
    %v2866 = vcombine.low %v1566, %v1573
    %v2868 = vunpack.c.l.s4 1983009808
    %v2869 = vunpack.c.0.s8 %v2868
    %v2870 = vlaneseq
    %v2871 = vshrl.u32 %v2870, 7
    %v2872 = vsub.s32 %v2869, %v2871
    %v2873 = vrot.slane %v2865, %v2872
    %v2875 = vunpack.c.l.s4 1983009808
    %v2876 = vunpack.c.0.s8 %v2875
    %v2877 = vlaneseq
    %v2878 = vshrl.u32 %v2877, 7
    %v2879 = vsub.s32 %v2876, %v2878
    %v2880 = vrot.slane %v2866, %v2879
    %v2881 = vcombine.low %v2873, %v2880
    %v2882 = vcombine.low %v1580, %v1587
    %v2883 = vcombine.low %v1594, %v1601
    %v2885 = vunpack.c.l.s4 1983009808
    %v2886 = vunpack.c.0.s8 %v2885
    %v2887 = vlaneseq
    %v2888 = vshrl.u32 %v2887, 7
    %v2889 = vsub.s32 %v2886, %v2888
    %v2890 = vrot.slane %v2882, %v2889
    %v2892 = vunpack.c.l.s4 1983009808
    %v2893 = vunpack.c.0.s8 %v2892
    %v2894 = vlaneseq
    %v2895 = vshrl.u32 %v2894, 7
    %v2896 = vsub.s32 %v2893, %v2895
    %v2897 = vrot.slane %v2883, %v2896
    %v2898 = vcombine.low %v2890, %v2897
    %v2899 = vcombine.low %v1608, %v1615
    %v2900 = vcombine.low %v1622, %v1629
    %v2902 = vunpack.c.l.s4 1983009808
    %v2903 = vunpack.c.0.s8 %v2902
    %v2904 = vlaneseq
    %v2905 = vshrl.u32 %v2904, 7
    %v2906 = vsub.s32 %v2903, %v2905
    %v2907 = vrot.slane %v2899, %v2906
    %v2909 = vunpack.c.l.s4 1983009808
    %v2910 = vunpack.c.0.s8 %v2909
    %v2911 = vlaneseq
    %v2912 = vshrl.u32 %v2911, 7
    %v2913 = vsub.s32 %v2910, %v2912
    %v2914 = vrot.slane %v2900, %v2913
    %v2915 = vcombine.low %v2907, %v2914
    %v2916 = vcombine.low %v1636, %v1643
    %v2917 = vcombine.low %v1650, %v1657
    %v2919 = vunpack.c.l.s4 1983009808
    %v2920 = vunpack.c.0.s8 %v2919
    %v2921 = vlaneseq
    %v2922 = vshrl.u32 %v2921, 7
    %v2923 = vsub.s32 %v2920, %v2922
    %v2924 = vrot.slane %v2916, %v2923
    %v2926 = vunpack.c.l.s4 1983009808
    %v2927 = vunpack.c.0.s8 %v2926
    %v2928 = vlaneseq
    %v2929 = vshrl.u32 %v2928, 7
    %v2930 = vsub.s32 %v2927, %v2929
    %v2931 = vrot.slane %v2917, %v2930
    %v2932 = vcombine.low %v2924, %v2931
    %v2933 = vcombine.low %v1664, %v1671
    %v2934 = vcombine.low %v1678, %v1685
    %v2936 = vunpack.c.l.s4 1983009808
    %v2937 = vunpack.c.0.s8 %v2936
    %v2938 = vlaneseq
    %v2939 = vshrl.u32 %v2938, 7
    %v2940 = vsub.s32 %v2937, %v2939
    %v2941 = vrot.slane %v2933, %v2940
    %v2943 = vunpack.c.l.s4 1983009808
    %v2944 = vunpack.c.0.s8 %v2943
    %v2945 = vlaneseq
    %v2946 = vshrl.u32 %v2945, 7
    %v2947 = vsub.s32 %v2944, %v2946
    %v2948 = vrot.slane %v2934, %v2947
    %v2949 = vcombine.low %v2941, %v2948
    %v2950 = vcombine.low %v1692, %v1699
    %v2951 = vcombine.low %v1706, %v1713
    %v2953 = vunpack.c.l.s4 1983009808
    %v2954 = vunpack.c.0.s8 %v2953
    %v2955 = vlaneseq
    %v2956 = vshrl.u32 %v2955, 7
    %v2957 = vsub.s32 %v2954, %v2956
    %v2958 = vrot.slane %v2950, %v2957
    %v2960 = vunpack.c.l.s4 1983009808
    %v2961 = vunpack.c.0.s8 %v2960
    %v2962 = vlaneseq
    %v2963 = vshrl.u32 %v2962, 7
    %v2964 = vsub.s32 %v2961, %v2963
    %v2965 = vrot.slane %v2951, %v2964
    %v2966 = vcombine.low %v2958, %v2965
    %v2967 = vcombine.low %v1720, %v1727
    %v2968 = vcombine.low %v1734, %v1741
    %v2970 = vunpack.c.l.s4 1983009808
    %v2971 = vunpack.c.0.s8 %v2970
    %v2972 = vlaneseq
    %v2973 = vshrl.u32 %v2972, 7
    %v2974 = vsub.s32 %v2971, %v2973
    %v2975 = vrot.slane %v2967, %v2974
    %v2977 = vunpack.c.l.s4 1983009808
    %v2978 = vunpack.c.0.s8 %v2977
    %v2979 = vlaneseq
    %v2980 = vshrl.u32 %v2979, 7
    %v2981 = vsub.s32 %v2978, %v2980
    %v2982 = vrot.slane %v2968, %v2981
    %v2983 = vcombine.low %v2975, %v2982
    %v2984 = vcombine.low %v1748, %v1755
    %v2985 = vcombine.low %v1762, %v1769
    %v2987 = vunpack.c.l.s4 1983009808
    %v2988 = vunpack.c.0.s8 %v2987
    %v2989 = vlaneseq
    %v2990 = vshrl.u32 %v2989, 7
    %v2991 = vsub.s32 %v2988, %v2990
    %v2992 = vrot.slane %v2984, %v2991
    %v2994 = vunpack.c.l.s4 1983009808
    %v2995 = vunpack.c.0.s8 %v2994
    %v2996 = vlaneseq
    %v2997 = vshrl.u32 %v2996, 7
    %v2998 = vsub.s32 %v2995, %v2997
    %v2999 = vrot.slane %v2985, %v2998
    %v3000 = vcombine.low %v2992, %v2999
    %v3001 = vcombine.low %v1776, %v1783
    %v3002 = vcombine.low %v1790, %v1797
    %v3004 = vunpack.c.l.s4 1983009808
    %v3005 = vunpack.c.0.s8 %v3004
    %v3006 = vlaneseq
    %v3007 = vshrl.u32 %v3006, 7
    %v3008 = vsub.s32 %v3005, %v3007
    %v3009 = vrot.slane %v3001, %v3008
    %v3011 = vunpack.c.l.s4 1983009808
    %v3012 = vunpack.c.0.s8 %v3011
    %v3013 = vlaneseq
    %v3014 = vshrl.u32 %v3013, 7
    %v3015 = vsub.s32 %v3012, %v3014
    %v3016 = vrot.slane %v3002, %v3015
    %v3017 = vcombine.low %v3009, %v3016
    %v3018 = vcombine.low %v1804, %v1811
    %v3019 = vcombine.low %v1818, %v1825
    %v3021 = vunpack.c.l.s4 1983009808
    %v3022 = vunpack.c.0.s8 %v3021
    %v3023 = vlaneseq
    %v3024 = vshrl.u32 %v3023, 7
    %v3025 = vsub.s32 %v3022, %v3024
    %v3026 = vrot.slane %v3018, %v3025
    %v3028 = vunpack.c.l.s4 1983009808
    %v3029 = vunpack.c.0.s8 %v3028
    %v3030 = vlaneseq
    %v3031 = vshrl.u32 %v3030, 7
    %v3032 = vsub.s32 %v3029, %v3031
    %v3033 = vrot.slane %v3019, %v3032
    %v3034 = vcombine.low %v3026, %v3033
    %v3035 = vcombine.low %v1832, %v1839
    %v3036 = vcombine.low %v1846, %v1853
    %v3038 = vunpack.c.l.s4 1983009808
    %v3039 = vunpack.c.0.s8 %v3038
    %v3040 = vlaneseq
    %v3041 = vshrl.u32 %v3040, 7
    %v3042 = vsub.s32 %v3039, %v3041
    %v3043 = vrot.slane %v3035, %v3042
    %v3045 = vunpack.c.l.s4 1983009808
    %v3046 = vunpack.c.0.s8 %v3045
    %v3047 = vlaneseq
    %v3048 = vshrl.u32 %v3047, 7
    %v3049 = vsub.s32 %v3046, %v3048
    %v3050 = vrot.slane %v3036, %v3049
    %v3051 = vcombine.low %v3043, %v3050
    %v3052 = vcombine.low %v1860, %v1867
    %v3053 = vcombine.low %v1874, %v1881
    %v3055 = vunpack.c.l.s4 1983009808
    %v3056 = vunpack.c.0.s8 %v3055
    %v3057 = vlaneseq
    %v3058 = vshrl.u32 %v3057, 7
    %v3059 = vsub.s32 %v3056, %v3058
    %v3060 = vrot.slane %v3052, %v3059
    %v3062 = vunpack.c.l.s4 1983009808
    %v3063 = vunpack.c.0.s8 %v3062
    %v3064 = vlaneseq
    %v3065 = vshrl.u32 %v3064, 7
    %v3066 = vsub.s32 %v3063, %v3065
    %v3067 = vrot.slane %v3053, %v3066
    %v3068 = vcombine.low %v3060, %v3067
    %v3069 = vcombine.low %v1888, %v1895
    %v3070 = vcombine.low %v1902, %v1909
    %v3072 = vunpack.c.l.s4 1983009808
    %v3073 = vunpack.c.0.s8 %v3072
    %v3074 = vlaneseq
    %v3075 = vshrl.u32 %v3074, 7
    %v3076 = vsub.s32 %v3073, %v3075
    %v3077 = vrot.slane %v3069, %v3076
    %v3079 = vunpack.c.l.s4 1983009808
    %v3080 = vunpack.c.0.s8 %v3079
    %v3081 = vlaneseq
    %v3082 = vshrl.u32 %v3081, 7
    %v3083 = vsub.s32 %v3080, %v3082
    %v3084 = vrot.slane %v3070, %v3083
    %v3085 = vcombine.low %v3077, %v3084
    %v3086 = vcombine.low %v1916, %v1923
    %v3087 = vcombine.low %v1930, %v1937
    %v3089 = vunpack.c.l.s4 1983009808
    %v3090 = vunpack.c.0.s8 %v3089
    %v3091 = vlaneseq
    %v3092 = vshrl.u32 %v3091, 7
    %v3093 = vsub.s32 %v3090, %v3092
    %v3094 = vrot.slane %v3086, %v3093
    %v3096 = vunpack.c.l.s4 1983009808
    %v3097 = vunpack.c.0.s8 %v3096
    %v3098 = vlaneseq
    %v3099 = vshrl.u32 %v3098, 7
    %v3100 = vsub.s32 %v3097, %v3099
    %v3101 = vrot.slane %v3087, %v3100
    %v3102 = vcombine.low %v3094, %v3101
    %v3103 = vcombine.low %v1944, %v1951
    %v3104 = vcombine.low %v1958, %v1965
    %v3106 = vunpack.c.l.s4 1983009808
    %v3107 = vunpack.c.0.s8 %v3106
    %v3108 = vlaneseq
    %v3109 = vshrl.u32 %v3108, 7
    %v3110 = vsub.s32 %v3107, %v3109
    %v3111 = vrot.slane %v3103, %v3110
    %v3113 = vunpack.c.l.s4 1983009808
    %v3114 = vunpack.c.0.s8 %v3113
    %v3115 = vlaneseq
    %v3116 = vshrl.u32 %v3115, 7
    %v3117 = vsub.s32 %v3114, %v3116
    %v3118 = vrot.slane %v3104, %v3117
    %v3119 = vcombine.low %v3111, %v3118
    %v3120 = vcombine.low %v1972, %v1979
    %v3121 = vcombine.low %v1986, %v1993
    %v3123 = vunpack.c.l.s4 1983009808
    %v3124 = vunpack.c.0.s8 %v3123
    %v3125 = vlaneseq
    %v3126 = vshrl.u32 %v3125, 7
    %v3127 = vsub.s32 %v3124, %v3126
    %v3128 = vrot.slane %v3120, %v3127
    %v3130 = vunpack.c.l.s4 1983009808
    %v3131 = vunpack.c.0.s8 %v3130
    %v3132 = vlaneseq
    %v3133 = vshrl.u32 %v3132, 7
    %v3134 = vsub.s32 %v3131, %v3133
    %v3135 = vrot.slane %v3121, %v3134
    %v3136 = vcombine.low %v3128, %v3135
    %v3137 = vcombine.low %v2000, %v2007
    %v3138 = vcombine.low %v2014, %v2021
    %v3140 = vunpack.c.l.s4 1983009808
    %v3141 = vunpack.c.0.s8 %v3140
    %v3142 = vlaneseq
    %v3143 = vshrl.u32 %v3142, 7
    %v3144 = vsub.s32 %v3141, %v3143
    %v3145 = vrot.slane %v3137, %v3144
    %v3147 = vunpack.c.l.s4 1983009808
    %v3148 = vunpack.c.0.s8 %v3147
    %v3149 = vlaneseq
    %v3150 = vshrl.u32 %v3149, 7
    %v3151 = vsub.s32 %v3148, %v3150
    %v3152 = vrot.slane %v3138, %v3151
    %v3153 = vcombine.low %v3145, %v3152
    %v3154 = vcombine.low %v2028, %v2035
    %v3155 = vcombine.low %v2042, %v2049
    %v3157 = vunpack.c.l.s4 1983009808
    %v3158 = vunpack.c.0.s8 %v3157
    %v3159 = vlaneseq
    %v3160 = vshrl.u32 %v3159, 7
    %v3161 = vsub.s32 %v3158, %v3160
    %v3162 = vrot.slane %v3154, %v3161
    %v3164 = vunpack.c.l.s4 1983009808
    %v3165 = vunpack.c.0.s8 %v3164
    %v3166 = vlaneseq
    %v3167 = vshrl.u32 %v3166, 7
    %v3168 = vsub.s32 %v3165, %v3167
    %v3169 = vrot.slane %v3155, %v3168
    %v3170 = vcombine.low %v3162, %v3169
    %v3171 = vcombine.low %v2056, %v2063
    %v3172 = vcombine.low %v2070, %v2077
    %v3174 = vunpack.c.l.s4 1983009808
    %v3175 = vunpack.c.0.s8 %v3174
    %v3176 = vlaneseq
    %v3177 = vshrl.u32 %v3176, 7
    %v3178 = vsub.s32 %v3175, %v3177
    %v3179 = vrot.slane %v3171, %v3178
    %v3181 = vunpack.c.l.s4 1983009808
    %v3182 = vunpack.c.0.s8 %v3181
    %v3183 = vlaneseq
    %v3184 = vshrl.u32 %v3183, 7
    %v3185 = vsub.s32 %v3182, %v3184
    %v3186 = vrot.slane %v3172, %v3185
    %v3187 = vcombine.low %v3179, %v3186
    %v3188 = vcombine.low %v2084, %v2091
    %v3189 = vcombine.low %v2098, %v2105
    %v3191 = vunpack.c.l.s4 1983009808
    %v3192 = vunpack.c.0.s8 %v3191
    %v3193 = vlaneseq
    %v3194 = vshrl.u32 %v3193, 7
    %v3195 = vsub.s32 %v3192, %v3194
    %v3196 = vrot.slane %v3188, %v3195
    %v3198 = vunpack.c.l.s4 1983009808
    %v3199 = vunpack.c.0.s8 %v3198
    %v3200 = vlaneseq
    %v3201 = vshrl.u32 %v3200, 7
    %v3202 = vsub.s32 %v3199, %v3201
    %v3203 = vrot.slane %v3189, %v3202
    %v3204 = vcombine.low %v3196, %v3203
    %v3205 = vcombine.low %v2112, %v2119
    %v3206 = vcombine.low %v2126, %v2133
    %v3208 = vunpack.c.l.s4 1983009808
    %v3209 = vunpack.c.0.s8 %v3208
    %v3210 = vlaneseq
    %v3211 = vshrl.u32 %v3210, 7
    %v3212 = vsub.s32 %v3209, %v3211
    %v3213 = vrot.slane %v3205, %v3212
    %v3215 = vunpack.c.l.s4 1983009808
    %v3216 = vunpack.c.0.s8 %v3215
    %v3217 = vlaneseq
    %v3218 = vshrl.u32 %v3217, 7
    %v3219 = vsub.s32 %v3216, %v3218
    %v3220 = vrot.slane %v3206, %v3219
    %v3221 = vcombine.low %v3213, %v3220
    %3222 = vset.pattern.permute.xlu0 0
    %3223 = vperm.xlu0 %3222, %v2150
    %v3224 = vpop.permute.xlu0 %3223
    %3225 = vset.pattern.permute.xlu0 0
    %3226 = vperm.xlu0 %3225, %v2167
    %v3227 = vpop.permute.xlu0 %3226
    %3228 = vset.pattern.permute.xlu0 0
    %3229 = vperm.xlu0 %3228, %v2184
    %v3230 = vpop.permute.xlu0 %3229
    %3231 = vset.pattern.permute.xlu0 0
    %3232 = vperm.xlu0 %3231, %v2201
    %v3233 = vpop.permute.xlu0 %3232
    %3234 = vset.pattern.permute.xlu0 0
    %3235 = vperm.xlu0 %3234, %v2218
    %v3236 = vpop.permute.xlu0 %3235
    %3237 = vset.pattern.permute.xlu0 0
    %3238 = vperm.xlu0 %3237, %v2235
    %v3239 = vpop.permute.xlu0 %3238
    %3240 = vset.pattern.permute.xlu0 0
    %3241 = vperm.xlu0 %3240, %v2252
    %v3242 = vpop.permute.xlu0 %3241
    %3243 = vset.pattern.permute.xlu0 0
    %3244 = vperm.xlu0 %3243, %v2269
    %v3245 = vpop.permute.xlu0 %3244
    %3246 = vset.pattern.permute.xlu0 0
    %3247 = vperm.xlu0 %3246, %v2286
    %v3248 = vpop.permute.xlu0 %3247
    %3249 = vset.pattern.permute.xlu0 0
    %3250 = vperm.xlu0 %3249, %v2303
    %v3251 = vpop.permute.xlu0 %3250
    %3252 = vset.pattern.permute.xlu0 0
    %3253 = vperm.xlu0 %3252, %v2320
    %v3254 = vpop.permute.xlu0 %3253
    %3255 = vset.pattern.permute.xlu0 0
    %3256 = vperm.xlu0 %3255, %v2337
    %v3257 = vpop.permute.xlu0 %3256
    %3258 = vset.pattern.permute.xlu0 0
    %3259 = vperm.xlu0 %3258, %v2354
    %v3260 = vpop.permute.xlu0 %3259
    %3261 = vset.pattern.permute.xlu0 0
    %3262 = vperm.xlu0 %3261, %v2371
    %v3263 = vpop.permute.xlu0 %3262
    %3264 = vset.pattern.permute.xlu0 0
    %3265 = vperm.xlu0 %3264, %v2388
    %v3266 = vpop.permute.xlu0 %3265
    %3267 = vset.pattern.permute.xlu0 0
    %3268 = vperm.xlu0 %3267, %v2405
    %v3269 = vpop.permute.xlu0 %3268
    %3270 = vset.pattern.permute.xlu0 0
    %3271 = vperm.xlu0 %3270, %v2422
    %v3272 = vpop.permute.xlu0 %3271
    %3273 = vset.pattern.permute.xlu0 0
    %3274 = vperm.xlu0 %3273, %v2439
    %v3275 = vpop.permute.xlu0 %3274
    %3276 = vset.pattern.permute.xlu0 0
    %3277 = vperm.xlu0 %3276, %v2456
    %v3278 = vpop.permute.xlu0 %3277
    %3279 = vset.pattern.permute.xlu0 0
    %3280 = vperm.xlu0 %3279, %v2473
    %v3281 = vpop.permute.xlu0 %3280
    %3282 = vset.pattern.permute.xlu0 0
    %3283 = vperm.xlu0 %3282, %v2490
    %v3284 = vpop.permute.xlu0 %3283
    %3285 = vset.pattern.permute.xlu0 0
    %3286 = vperm.xlu0 %3285, %v2507
    %v3287 = vpop.permute.xlu0 %3286
    %3288 = vset.pattern.permute.xlu0 0
    %3289 = vperm.xlu0 %3288, %v2524
    %v3290 = vpop.permute.xlu0 %3289
    %3291 = vset.pattern.permute.xlu0 0
    %3292 = vperm.xlu0 %3291, %v2541
    %v3293 = vpop.permute.xlu0 %3292
    %3294 = vset.pattern.permute.xlu0 0
    %3295 = vperm.xlu0 %3294, %v2558
    %v3296 = vpop.permute.xlu0 %3295
    %3297 = vset.pattern.permute.xlu0 0
    %3298 = vperm.xlu0 %3297, %v2575
    %v3299 = vpop.permute.xlu0 %3298
    %3300 = vset.pattern.permute.xlu0 0
    %3301 = vperm.xlu0 %3300, %v2592
    %v3302 = vpop.permute.xlu0 %3301
    %3303 = vset.pattern.permute.xlu0 0
    %3304 = vperm.xlu0 %3303, %v2609
    %v3305 = vpop.permute.xlu0 %3304
    %3306 = vset.pattern.permute.xlu0 0
    %3307 = vperm.xlu0 %3306, %v2626
    %v3308 = vpop.permute.xlu0 %3307
    %3309 = vset.pattern.permute.xlu0 0
    %3310 = vperm.xlu0 %3309, %v2643
    %v3311 = vpop.permute.xlu0 %3310
    %3312 = vset.pattern.permute.xlu0 0
    %3313 = vperm.xlu0 %3312, %v2660
    %v3314 = vpop.permute.xlu0 %3313
    %3315 = vset.pattern.permute.xlu0 0
    %3316 = vperm.xlu0 %3315, %v2677
    %v3317 = vpop.permute.xlu0 %3316
    %3318 = vset.pattern.permute.xlu0 0
    %3319 = vperm.xlu0 %3318, %v2694
    %v3320 = vpop.permute.xlu0 %3319
    %3321 = vset.pattern.permute.xlu0 0
    %3322 = vperm.xlu0 %3321, %v2711
    %v3323 = vpop.permute.xlu0 %3322
    %3324 = vset.pattern.permute.xlu0 0
    %3325 = vperm.xlu0 %3324, %v2728
    %v3326 = vpop.permute.xlu0 %3325
    %3327 = vset.pattern.permute.xlu0 0
    %3328 = vperm.xlu0 %3327, %v2745
    %v3329 = vpop.permute.xlu0 %3328
    %3330 = vset.pattern.permute.xlu0 0
    %3331 = vperm.xlu0 %3330, %v2762
    %v3332 = vpop.permute.xlu0 %3331
    %3333 = vset.pattern.permute.xlu0 0
    %3334 = vperm.xlu0 %3333, %v2779
    %v3335 = vpop.permute.xlu0 %3334
    %3336 = vset.pattern.permute.xlu0 0
    %3337 = vperm.xlu0 %3336, %v2796
    %v3338 = vpop.permute.xlu0 %3337
    %3339 = vset.pattern.permute.xlu0 0
    %3340 = vperm.xlu0 %3339, %v2813
    %v3341 = vpop.permute.xlu0 %3340
    %3342 = vset.pattern.permute.xlu0 0
    %3343 = vperm.xlu0 %3342, %v2830
    %v3344 = vpop.permute.xlu0 %3343
    %3345 = vset.pattern.permute.xlu0 0
    %3346 = vperm.xlu0 %3345, %v2847
    %v3347 = vpop.permute.xlu0 %3346
    %3348 = vset.pattern.permute.xlu0 0
    %3349 = vperm.xlu0 %3348, %v2864
    %v3350 = vpop.permute.xlu0 %3349
    %3351 = vset.pattern.permute.xlu0 0
    %3352 = vperm.xlu0 %3351, %v2881
    %v3353 = vpop.permute.xlu0 %3352
    %3354 = vset.pattern.permute.xlu0 0
    %3355 = vperm.xlu0 %3354, %v2898
    %v3356 = vpop.permute.xlu0 %3355
    %3357 = vset.pattern.permute.xlu0 0
    %3358 = vperm.xlu0 %3357, %v2915
    %v3359 = vpop.permute.xlu0 %3358
    %3360 = vset.pattern.permute.xlu0 0
    %3361 = vperm.xlu0 %3360, %v2932
    %v3362 = vpop.permute.xlu0 %3361
    %3363 = vset.pattern.permute.xlu0 0
    %3364 = vperm.xlu0 %3363, %v2949
    %v3365 = vpop.permute.xlu0 %3364
    %3366 = vset.pattern.permute.xlu0 0
    %3367 = vperm.xlu0 %3366, %v2966
    %v3368 = vpop.permute.xlu0 %3367
    %3369 = vset.pattern.permute.xlu0 0
    %3370 = vperm.xlu0 %3369, %v2983
    %v3371 = vpop.permute.xlu0 %3370
    %3372 = vset.pattern.permute.xlu0 0
    %3373 = vperm.xlu0 %3372, %v3000
    %v3374 = vpop.permute.xlu0 %3373
    %3375 = vset.pattern.permute.xlu0 0
    %3376 = vperm.xlu0 %3375, %v3017
    %v3377 = vpop.permute.xlu0 %3376
    %3378 = vset.pattern.permute.xlu0 0
    %3379 = vperm.xlu0 %3378, %v3034
    %v3380 = vpop.permute.xlu0 %3379
    %3381 = vset.pattern.permute.xlu0 0
    %3382 = vperm.xlu0 %3381, %v3051
    %v3383 = vpop.permute.xlu0 %3382
    %3384 = vset.pattern.permute.xlu0 0
    %3385 = vperm.xlu0 %3384, %v3068
    %v3386 = vpop.permute.xlu0 %3385
    %3387 = vset.pattern.permute.xlu0 0
    %3388 = vperm.xlu0 %3387, %v3085
    %v3389 = vpop.permute.xlu0 %3388
    %3390 = vset.pattern.permute.xlu0 0
    %3391 = vperm.xlu0 %3390, %v3102
    %v3392 = vpop.permute.xlu0 %3391
    %3393 = vset.pattern.permute.xlu0 0
    %3394 = vperm.xlu0 %3393, %v3119
    %v3395 = vpop.permute.xlu0 %3394
    %3396 = vset.pattern.permute.xlu0 0
    %3397 = vperm.xlu0 %3396, %v3136
    %v3398 = vpop.permute.xlu0 %3397
    %3399 = vset.pattern.permute.xlu0 0
    %3400 = vperm.xlu0 %3399, %v3153
    %v3401 = vpop.permute.xlu0 %3400
    %3402 = vset.pattern.permute.xlu0 0
    %3403 = vperm.xlu0 %3402, %v3170
    %v3404 = vpop.permute.xlu0 %3403
    %3405 = vset.pattern.permute.xlu0 0
    %3406 = vperm.xlu0 %3405, %v3187
    %v3407 = vpop.permute.xlu0 %3406
    %3408 = vset.pattern.permute.xlu0 0
    %3409 = vperm.xlu0 %3408, %v3204
    %v3410 = vpop.permute.xlu0 %3409
    %3411 = vset.pattern.permute.xlu0 0
    %3412 = vperm.xlu0 %3411, %v3221
    %v3413 = vpop.permute.xlu0 %3412
    %v3414 = vlaneseq
    %v3415 = vand.u32 %v3414, 127
    %v3416 = vlaneseq
    %v3417 = vshrl.u32 %v3416, 7
    %v3418 = vsub.s32 %v3415, %v3417
    %v3419 = vrot.slane %v3224, %v3418
    %v3420 = vadd.s32 %v3415, 4294967288
    %v3421 = vlaneseq
    %v3422 = vshrl.u32 %v3421, 7
    %v3423 = vsub.s32 %v3420, %v3422
    %v3424 = vrot.slane %v3227, %v3423
    %vm3425 = vcmask 130112
    %v3426 = vsel %vm3425, %v3424, %v3419
    %v3427 = vadd.s32 %v3415, 4294967280
    %v3428 = vlaneseq
    %v3429 = vshrl.u32 %v3428, 7
    %v3430 = vsub.s32 %v3427, %v3429
    %v3431 = vrot.slane %v3230, %v3430
    %vm3432 = vcmask 195712
    %v3433 = vsel %vm3432, %v3431, %v3426
    %v3434 = vadd.s32 %v3415, 4294967272
    %v3435 = vlaneseq
    %v3436 = vshrl.u32 %v3435, 7
    %v3437 = vsub.s32 %v3434, %v3436
    %v3438 = vrot.slane %v3233, %v3437
    %vm3439 = vcmask 261312
    %v3440 = vsel %vm3439, %v3438, %v3433
    %v3441 = vadd.s32 %v3415, 4294967264
    %v3442 = vlaneseq
    %v3443 = vshrl.u32 %v3442, 7
    %v3444 = vsub.s32 %v3441, %v3443
    %v3445 = vrot.slane %v3236, %v3444
    %vm3446 = vcmask 326912
    %v3447 = vsel %vm3446, %v3445, %v3440
    %v3448 = vadd.s32 %v3415, 4294967256
    %v3449 = vlaneseq
    %v3450 = vshrl.u32 %v3449, 7
    %v3451 = vsub.s32 %v3448, %v3450
    %v3452 = vrot.slane %v3239, %v3451
    %vm3453 = vcmask 392512
    %v3454 = vsel %vm3453, %v3452, %v3447
    %v3455 = vadd.s32 %v3415, 4294967248
    %v3456 = vlaneseq
    %v3457 = vshrl.u32 %v3456, 7
    %v3458 = vsub.s32 %v3455, %v3457
    %v3459 = vrot.slane %v3242, %v3458
    %vm3460 = vcmask 458112
    %v3461 = vsel %vm3460, %v3459, %v3454
    %v3462 = vadd.s32 %v3415, 4294967240
    %v3463 = vlaneseq
    %v3464 = vshrl.u32 %v3463, 7
    %v3465 = vsub.s32 %v3462, %v3464
    %v3466 = vrot.slane %v3245, %v3465
    %vm3467 = vcmask 523712
    %v3468 = vsel %vm3467, %v3466, %v3461
    %v3469 = vadd.s32 %v3415, 4294967232
    %v3470 = vlaneseq
    %v3471 = vshrl.u32 %v3470, 7
    %v3472 = vsub.s32 %v3469, %v3471
    %v3473 = vrot.slane %v3248, %v3472
    %vm3474 = vcmask 589312
    %v3475 = vsel %vm3474, %v3473, %v3468
    %v3476 = vadd.s32 %v3415, 4294967224
    %v3477 = vlaneseq
    %v3478 = vshrl.u32 %v3477, 7
    %v3479 = vsub.s32 %v3476, %v3478
    %v3480 = vrot.slane %v3251, %v3479
    %vm3481 = vcmask 654912
    %v3482 = vsel %vm3481, %v3480, %v3475
    %v3483 = vadd.s32 %v3415, 4294967216
    %v3484 = vlaneseq
    %v3485 = vshrl.u32 %v3484, 7
    %v3486 = vsub.s32 %v3483, %v3485
    %v3487 = vrot.slane %v3254, %v3486
    %vm3488 = vcmask 720512
    %v3489 = vsel %vm3488, %v3487, %v3482
    %v3490 = vadd.s32 %v3415, 4294967208
    %v3491 = vlaneseq
    %v3492 = vshrl.u32 %v3491, 7
    %v3493 = vsub.s32 %v3490, %v3492
    %v3494 = vrot.slane %v3257, %v3493
    %vm3495 = vcmask 786112
    %v3496 = vsel %vm3495, %v3494, %v3489
    %v3497 = vadd.s32 %v3415, 4294967200
    %v3498 = vlaneseq
    %v3499 = vshrl.u32 %v3498, 7
    %v3500 = vsub.s32 %v3497, %v3499
    %v3501 = vrot.slane %v3260, %v3500
    %vm3502 = vcmask 851712
    %v3503 = vsel %vm3502, %v3501, %v3496
    %v3504 = vadd.s32 %v3415, 4294967192
    %v3505 = vlaneseq
    %v3506 = vshrl.u32 %v3505, 7
    %v3507 = vsub.s32 %v3504, %v3506
    %v3508 = vrot.slane %v3263, %v3507
    %vm3509 = vcmask 917312
    %v3510 = vsel %vm3509, %v3508, %v3503
    %v3511 = vadd.s32 %v3415, 4294967184
    %v3512 = vlaneseq
    %v3513 = vshrl.u32 %v3512, 7
    %v3514 = vsub.s32 %v3511, %v3513
    %v3515 = vrot.slane %v3266, %v3514
    %vm3516 = vcmask 982912
    %v3517 = vsel %vm3516, %v3515, %v3510
    %v3518 = vadd.s32 %v3415, 4294967176
    %v3519 = vlaneseq
    %v3520 = vshrl.u32 %v3519, 7
    %v3521 = vsub.s32 %v3518, %v3520
    %v3522 = vrot.slane %v3269, %v3521
    %vm3523 = vcmask 1048512
    %v3524 = vsel %vm3523, %v3522, %v3517
    %v3525 = vlaneseq
    %v3526 = vshrl.u32 %v3525, 7
    %v3527 = vsub.s32 %v3415, %v3526
    %v3528 = vrot.slane %v3272, %v3527
    %v3529 = vlaneseq
    %v3530 = vshrl.u32 %v3529, 7
    %v3531 = vsub.s32 %v3420, %v3530
    %v3532 = vrot.slane %v3275, %v3531
    %v3533 = vsel %vm3425, %v3532, %v3528
    %v3534 = vlaneseq
    %v3535 = vshrl.u32 %v3534, 7
    %v3536 = vsub.s32 %v3427, %v3535
    %v3537 = vrot.slane %v3278, %v3536
    %v3538 = vsel %vm3432, %v3537, %v3533
    %v3539 = vlaneseq
    %v3540 = vshrl.u32 %v3539, 7
    %v3541 = vsub.s32 %v3434, %v3540
    %v3542 = vrot.slane %v3281, %v3541
    %v3543 = vsel %vm3439, %v3542, %v3538
    %v3544 = vlaneseq
    %v3545 = vshrl.u32 %v3544, 7
    %v3546 = vsub.s32 %v3441, %v3545
    %v3547 = vrot.slane %v3284, %v3546
    %v3548 = vsel %vm3446, %v3547, %v3543
    %v3549 = vlaneseq
    %v3550 = vshrl.u32 %v3549, 7
    %v3551 = vsub.s32 %v3448, %v3550
    %v3552 = vrot.slane %v3287, %v3551
    %v3553 = vsel %vm3453, %v3552, %v3548
    %v3554 = vlaneseq
    %v3555 = vshrl.u32 %v3554, 7
    %v3556 = vsub.s32 %v3455, %v3555
    %v3557 = vrot.slane %v3290, %v3556
    %v3558 = vsel %vm3460, %v3557, %v3553
    %v3559 = vlaneseq
    %v3560 = vshrl.u32 %v3559, 7
    %v3561 = vsub.s32 %v3462, %v3560
    %v3562 = vrot.slane %v3293, %v3561
    %v3563 = vsel %vm3467, %v3562, %v3558
    %v3564 = vlaneseq
    %v3565 = vshrl.u32 %v3564, 7
    %v3566 = vsub.s32 %v3469, %v3565
    %v3567 = vrot.slane %v3296, %v3566
    %v3568 = vsel %vm3474, %v3567, %v3563
    %v3569 = vlaneseq
    %v3570 = vshrl.u32 %v3569, 7
    %v3571 = vsub.s32 %v3476, %v3570
    %v3572 = vrot.slane %v3299, %v3571
    %v3573 = vsel %vm3481, %v3572, %v3568
    %v3574 = vlaneseq
    %v3575 = vshrl.u32 %v3574, 7
    %v3576 = vsub.s32 %v3483, %v3575
    %v3577 = vrot.slane %v3302, %v3576
    %v3578 = vsel %vm3488, %v3577, %v3573
    %v3579 = vlaneseq
    %v3580 = vshrl.u32 %v3579, 7
    %v3581 = vsub.s32 %v3490, %v3580
    %v3582 = vrot.slane %v3305, %v3581
    %v3583 = vsel %vm3495, %v3582, %v3578
    %v3584 = vlaneseq
    %v3585 = vshrl.u32 %v3584, 7
    %v3586 = vsub.s32 %v3497, %v3585
    %v3587 = vrot.slane %v3308, %v3586
    %v3588 = vsel %vm3502, %v3587, %v3583
    %v3589 = vlaneseq
    %v3590 = vshrl.u32 %v3589, 7
    %v3591 = vsub.s32 %v3504, %v3590
    %v3592 = vrot.slane %v3311, %v3591
    %v3593 = vsel %vm3509, %v3592, %v3588
    %v3594 = vlaneseq
    %v3595 = vshrl.u32 %v3594, 7
    %v3596 = vsub.s32 %v3511, %v3595
    %v3597 = vrot.slane %v3314, %v3596
    %v3598 = vsel %vm3516, %v3597, %v3593
    %v3599 = vlaneseq
    %v3600 = vshrl.u32 %v3599, 7
    %v3601 = vsub.s32 %v3518, %v3600
    %v3602 = vrot.slane %v3317, %v3601
    %v3603 = vsel %vm3523, %v3602, %v3598
    %v3604 = vlaneseq
    %v3605 = vshrl.u32 %v3604, 7
    %v3606 = vsub.s32 %v3415, %v3605
    %v3607 = vrot.slane %v3320, %v3606
    %v3608 = vlaneseq
    %v3609 = vshrl.u32 %v3608, 7
    %v3610 = vsub.s32 %v3420, %v3609
    %v3611 = vrot.slane %v3323, %v3610
    %v3612 = vsel %vm3425, %v3611, %v3607
    %v3613 = vlaneseq
    %v3614 = vshrl.u32 %v3613, 7
    %v3615 = vsub.s32 %v3427, %v3614
    %v3616 = vrot.slane %v3326, %v3615
    %v3617 = vsel %vm3432, %v3616, %v3612
    %v3618 = vlaneseq
    %v3619 = vshrl.u32 %v3618, 7
    %v3620 = vsub.s32 %v3434, %v3619
    %v3621 = vrot.slane %v3329, %v3620
    %v3622 = vsel %vm3439, %v3621, %v3617
    %v3623 = vlaneseq
    %v3624 = vshrl.u32 %v3623, 7
    %v3625 = vsub.s32 %v3441, %v3624
    %v3626 = vrot.slane %v3332, %v3625
    %v3627 = vsel %vm3446, %v3626, %v3622
    %v3628 = vlaneseq
    %v3629 = vshrl.u32 %v3628, 7
    %v3630 = vsub.s32 %v3448, %v3629
    %v3631 = vrot.slane %v3335, %v3630
    %v3632 = vsel %vm3453, %v3631, %v3627
    %v3633 = vlaneseq
    %v3634 = vshrl.u32 %v3633, 7
    %v3635 = vsub.s32 %v3455, %v3634
    %v3636 = vrot.slane %v3338, %v3635
    %v3637 = vsel %vm3460, %v3636, %v3632
    %v3638 = vlaneseq
    %v3639 = vshrl.u32 %v3638, 7
    %v3640 = vsub.s32 %v3462, %v3639
    %v3641 = vrot.slane %v3341, %v3640
    %v3642 = vsel %vm3467, %v3641, %v3637
    %v3643 = vlaneseq
    %v3644 = vshrl.u32 %v3643, 7
    %v3645 = vsub.s32 %v3469, %v3644
    %v3646 = vrot.slane %v3344, %v3645
    %v3647 = vsel %vm3474, %v3646, %v3642
    %v3648 = vlaneseq
    %v3649 = vshrl.u32 %v3648, 7
    %v3650 = vsub.s32 %v3476, %v3649
    %v3651 = vrot.slane %v3347, %v3650
    %v3652 = vsel %vm3481, %v3651, %v3647
    %v3653 = vlaneseq
    %v3654 = vshrl.u32 %v3653, 7
    %v3655 = vsub.s32 %v3483, %v3654
    %v3656 = vrot.slane %v3350, %v3655
    %v3657 = vsel %vm3488, %v3656, %v3652
    %v3658 = vlaneseq
    %v3659 = vshrl.u32 %v3658, 7
    %v3660 = vsub.s32 %v3490, %v3659
    %v3661 = vrot.slane %v3353, %v3660
    %v3662 = vsel %vm3495, %v3661, %v3657
    %v3663 = vlaneseq
    %v3664 = vshrl.u32 %v3663, 7
    %v3665 = vsub.s32 %v3497, %v3664
    %v3666 = vrot.slane %v3356, %v3665
    %v3667 = vsel %vm3502, %v3666, %v3662
    %v3668 = vlaneseq
    %v3669 = vshrl.u32 %v3668, 7
    %v3670 = vsub.s32 %v3504, %v3669
    %v3671 = vrot.slane %v3359, %v3670
    %v3672 = vsel %vm3509, %v3671, %v3667
    %v3673 = vlaneseq
    %v3674 = vshrl.u32 %v3673, 7
    %v3675 = vsub.s32 %v3511, %v3674
    %v3676 = vrot.slane %v3362, %v3675
    %v3677 = vsel %vm3516, %v3676, %v3672
    %v3678 = vlaneseq
    %v3679 = vshrl.u32 %v3678, 7
    %v3680 = vsub.s32 %v3518, %v3679
    %v3681 = vrot.slane %v3365, %v3680
    %v3682 = vsel %vm3523, %v3681, %v3677
    %v3683 = vlaneseq
    %v3684 = vshrl.u32 %v3683, 7
    %v3685 = vsub.s32 %v3415, %v3684
    %v3686 = vrot.slane %v3368, %v3685
    %v3687 = vlaneseq
    %v3688 = vshrl.u32 %v3687, 7
    %v3689 = vsub.s32 %v3420, %v3688
    %v3690 = vrot.slane %v3371, %v3689
    %v3691 = vsel %vm3425, %v3690, %v3686
    %v3692 = vlaneseq
    %v3693 = vshrl.u32 %v3692, 7
    %v3694 = vsub.s32 %v3427, %v3693
    %v3695 = vrot.slane %v3374, %v3694
    %v3696 = vsel %vm3432, %v3695, %v3691
    %v3697 = vlaneseq
    %v3698 = vshrl.u32 %v3697, 7
    %v3699 = vsub.s32 %v3434, %v3698
    %v3700 = vrot.slane %v3377, %v3699
    %v3701 = vsel %vm3439, %v3700, %v3696
    %v3702 = vlaneseq
    %v3703 = vshrl.u32 %v3702, 7
    %v3704 = vsub.s32 %v3441, %v3703
    %v3705 = vrot.slane %v3380, %v3704
    %v3706 = vsel %vm3446, %v3705, %v3701
    %v3707 = vlaneseq
    %v3708 = vshrl.u32 %v3707, 7
    %v3709 = vsub.s32 %v3448, %v3708
    %v3710 = vrot.slane %v3383, %v3709
    %v3711 = vsel %vm3453, %v3710, %v3706
    %v3712 = vlaneseq
    %v3713 = vshrl.u32 %v3712, 7
    %v3714 = vsub.s32 %v3455, %v3713
    %v3715 = vrot.slane %v3386, %v3714
    %v3716 = vsel %vm3460, %v3715, %v3711
    %v3717 = vlaneseq
    %v3718 = vshrl.u32 %v3717, 7
    %v3719 = vsub.s32 %v3462, %v3718
    %v3720 = vrot.slane %v3389, %v3719
    %v3721 = vsel %vm3467, %v3720, %v3716
    %v3722 = vlaneseq
    %v3723 = vshrl.u32 %v3722, 7
    %v3724 = vsub.s32 %v3469, %v3723
    %v3725 = vrot.slane %v3392, %v3724
    %v3726 = vsel %vm3474, %v3725, %v3721
    %v3727 = vlaneseq
    %v3728 = vshrl.u32 %v3727, 7
    %v3729 = vsub.s32 %v3476, %v3728
    %v3730 = vrot.slane %v3395, %v3729
    %v3731 = vsel %vm3481, %v3730, %v3726
    %v3732 = vlaneseq
    %v3733 = vshrl.u32 %v3732, 7
    %v3734 = vsub.s32 %v3483, %v3733
    %v3735 = vrot.slane %v3398, %v3734
    %v3736 = vsel %vm3488, %v3735, %v3731
    %v3737 = vlaneseq
    %v3738 = vshrl.u32 %v3737, 7
    %v3739 = vsub.s32 %v3490, %v3738
    %v3740 = vrot.slane %v3401, %v3739
    %v3741 = vsel %vm3495, %v3740, %v3736
    %v3742 = vlaneseq
    %v3743 = vshrl.u32 %v3742, 7
    %v3744 = vsub.s32 %v3497, %v3743
    %v3745 = vrot.slane %v3404, %v3744
    %v3746 = vsel %vm3502, %v3745, %v3741
    %v3747 = vlaneseq
    %v3748 = vshrl.u32 %v3747, 7
    %v3749 = vsub.s32 %v3504, %v3748
    %v3750 = vrot.slane %v3407, %v3749
    %v3751 = vsel %vm3509, %v3750, %v3746
    %v3752 = vlaneseq
    %v3753 = vshrl.u32 %v3752, 7
    %v3754 = vsub.s32 %v3511, %v3753
    %v3755 = vrot.slane %v3410, %v3754
    %v3756 = vsel %vm3516, %v3755, %v3751
    %v3757 = vlaneseq
    %v3758 = vshrl.u32 %v3757, 7
    %v3759 = vsub.s32 %v3518, %v3758
    %v3760 = vrot.slane %v3413, %v3759
    %v3761 = vsel %vm3523, %v3760, %v3756
    %vm3762 = vcmask 1041409
    %v3763 = vsel %vm3762, %v3682, %v3524
    %v3764 = vsel %vm3762, %v3761, %v3603
    %v3765 = vcombine.low %v3763, %v3764
    %v3767 = vunpack.c.l.s4 1983009808
    %v3768 = vunpack.c.0.s8 %v3767
    %v3769 = vlaneseq
    %v3770 = vshrl.u32 %v3769, 7
    %v3771 = vsub.s32 %v3768, %v3770
    %v3772 = vrot.slane %v3765, %v3771
    %v3774 = vadd.f32 %v20, %v3772
    %3775 = vst [vmem:[#allocation2] sm:$0xf] %v3774
    // Predicated region
    $region18: #{tpu_custom_call.1} parent=1 // pred_check
      %p3776 = pneg %p15
    $region19: #{tpu_custom_call.1} parent=1 // pred_check_branch
      %3778 = sbr.rel (%p3776) target = $region21
    $region20: #{tpu_custom_call.1} parent=1 // pred_region
      %v3779 = vld [vmem:[#allocation2] sm:$0xf]
      %v3782 = vunpack.c.l.s4 1983009808
      %v3783 = vunpack.c.0.s8 %v3782
      %v3784 = vlaneseq
      %v3785 = vshrl.u32 %v3784, 7
      %v3786 = vsub.s32 %v3783, %v3785
      %v3787 = vrot.slane %v3779, %v3786
      %v3788 = vcombine.high %v3787, %v3787
      %v3791 = vpack.c.bf16 %v3787, %v3787
      %v3792 = vpack.c.bf16 %v3788, %v3788
      %v3793 = vld [vmem:[%s1] sm:$0xff]
      %v3794 = vld [vmem:[%s1 + $0x8] sm:$0xff]
      %v3795 = vld [vmem:[%s1 + $0x10] sm:$0xff]
      %v3796 = vld [vmem:[%s1 + $0x18] sm:$0xff]
      %v3797 = vld [vmem:[%s1 + $0x20] sm:$0xff]
      %v3798 = vld [vmem:[%s1 + $0x28] sm:$0xff]
      %v3799 = vld [vmem:[%s1 + $0x30] sm:$0xff]
      %v3800 = vld [vmem:[%s1 + $0x38] sm:$0xff]
      %v3801 = vld [vmem:[%s1 + $0x40] sm:$0xff]
      %v3802 = vld [vmem:[%s1 + $0x48] sm:$0xff]
      %v3803 = vld [vmem:[%s1 + $0x50] sm:$0xff]
      %v3804 = vld [vmem:[%s1 + $0x58] sm:$0xff]
      %v3805 = vld [vmem:[%s1 + $0x60] sm:$0xff]
      %v3806 = vld [vmem:[%s1 + $0x68] sm:$0xff]
      %v3807 = vld [vmem:[%s1 + $0x70] sm:$0xff]
      %v3808 = vld [vmem:[%s1 + $0x78] sm:$0xff]
      %v3809 = vld [vmem:[%s1 + $0x80] sm:$0xff]
      %v3810 = vld [vmem:[%s1 + $0x88] sm:$0xff]
      %v3811 = vld [vmem:[%s1 + $0x90] sm:$0xff]
      %v3812 = vld [vmem:[%s1 + $0x98] sm:$0xff]
      %v3813 = vld [vmem:[%s1 + $0xa0] sm:$0xff]
      %v3814 = vld [vmem:[%s1 + $0xa8] sm:$0xff]
      %v3815 = vld [vmem:[%s1 + $0xb0] sm:$0xff]
      %v3816 = vld [vmem:[%s1 + $0xb8] sm:$0xff]
      %v3817 = vld [vmem:[%s1 + $0xc0] sm:$0xff]
      %v3818 = vld [vmem:[%s1 + $0xc8] sm:$0xff]
      %v3819 = vld [vmem:[%s1 + $0xd0] sm:$0xff]
      %v3820 = vld [vmem:[%s1 + $0xd8] sm:$0xff]
      %v3821 = vld [vmem:[%s1 + $0xe0] sm:$0xff]
      %v3822 = vld [vmem:[%s1 + $0xe8] sm:$0xff]
      %v3823 = vld [vmem:[%s1 + $0xf0] sm:$0xff]
      %v3824 = vld [vmem:[%s1 + $0xf8] sm:$0xff]
      %v3825 = vld [vmem:[%s2] sm:$0x3]
      %v3827 = vlaneseq
      %v3828 = vshrl.u32 %v3827, 7
      %v3829 = vsub.s32 0, %v3828
      %v3830 = vrot.slane %v3825, %v3829
      %v3831 = vlaneseq
      %v3832 = vshrl.u32 %v3831, 7
      %v3833 = vsub.s32 1, %v3832
      %v3834 = vrot.slane %v3825, %v3833
      %v3869 = vunpack.c.l.b16 %v3793
      %v3870 = vunpack.c.h.b16 %v3793
      %v3871 = vunpack.c.l.b16 %v3794
      %v3872 = vunpack.c.h.b16 %v3794
      %v3873 = vunpack.c.l.b16 %v3795
      %v3874 = vunpack.c.h.b16 %v3795
      %v3875 = vunpack.c.l.b16 %v3796
      %v3876 = vunpack.c.h.b16 %v3796
      %v3877 = vunpack.c.l.b16 %v3797
      %v3878 = vunpack.c.h.b16 %v3797
      %v3879 = vunpack.c.l.b16 %v3798
      %v3880 = vunpack.c.h.b16 %v3798
      %v3881 = vunpack.c.l.b16 %v3799
      %v3882 = vunpack.c.h.b16 %v3799
      %v3883 = vunpack.c.l.b16 %v3800
      %v3884 = vunpack.c.h.b16 %v3800
      %v3885 = vunpack.c.l.b16 %v3801
      %v3886 = vunpack.c.h.b16 %v3801
      %v3887 = vunpack.c.l.b16 %v3802
      %v3888 = vunpack.c.h.b16 %v3802
      %v3889 = vunpack.c.l.b16 %v3803
      %v3890 = vunpack.c.h.b16 %v3803
      %v3891 = vunpack.c.l.b16 %v3804
      %v3892 = vunpack.c.h.b16 %v3804
      %v3893 = vunpack.c.l.b16 %v3805
      %v3894 = vunpack.c.h.b16 %v3805
      %v3895 = vunpack.c.l.b16 %v3806
      %v3896 = vunpack.c.h.b16 %v3806
      %v3897 = vunpack.c.l.b16 %v3807
      %v3898 = vunpack.c.h.b16 %v3807
      %v3899 = vunpack.c.l.b16 %v3808
      %v3900 = vunpack.c.h.b16 %v3808
      %v3901 = vunpack.c.l.b16 %v3809
      %v3902 = vunpack.c.h.b16 %v3809
      %v3903 = vunpack.c.l.b16 %v3810
      %v3904 = vunpack.c.h.b16 %v3810
      %v3905 = vunpack.c.l.b16 %v3811
      %v3906 = vunpack.c.h.b16 %v3811
      %v3907 = vunpack.c.l.b16 %v3812
      %v3908 = vunpack.c.h.b16 %v3812
      %v3909 = vunpack.c.l.b16 %v3813
      %v3910 = vunpack.c.h.b16 %v3813
      %v3911 = vunpack.c.l.b16 %v3814
      %v3912 = vunpack.c.h.b16 %v3814
      %v3913 = vunpack.c.l.b16 %v3815
      %v3914 = vunpack.c.h.b16 %v3815
      %v3915 = vunpack.c.l.b16 %v3816
      %v3916 = vunpack.c.h.b16 %v3816
      %v3917 = vunpack.c.l.b16 %v3817
      %v3918 = vunpack.c.h.b16 %v3817
      %v3919 = vunpack.c.l.b16 %v3818
      %v3920 = vunpack.c.h.b16 %v3818
      %v3921 = vunpack.c.l.b16 %v3819
      %v3922 = vunpack.c.h.b16 %v3819
      %v3923 = vunpack.c.l.b16 %v3820
      %v3924 = vunpack.c.h.b16 %v3820
      %v3925 = vunpack.c.l.b16 %v3821
      %v3926 = vunpack.c.h.b16 %v3821
      %v3927 = vunpack.c.l.b16 %v3822
      %v3928 = vunpack.c.h.b16 %v3822
      %v3929 = vunpack.c.l.b16 %v3823
      %v3930 = vunpack.c.h.b16 %v3823
      %v3931 = vunpack.c.l.b16 %v3824
      %v3932 = vunpack.c.h.b16 %v3824
      %v3933 = vpack.c.b16 %v3871, %v3869
      %v3934 = vpack.c.b16 %v3872, %v3870
      %v3935 = vpack.c.b16 %v3875, %v3873
      %v3936 = vpack.c.b16 %v3876, %v3874
      %v3937 = vpack.c.b16 %v3879, %v3877
      %v3938 = vpack.c.b16 %v3880, %v3878
      %v3939 = vpack.c.b16 %v3883, %v3881
      %v3940 = vpack.c.b16 %v3884, %v3882
      %v3941 = vpack.c.b16 %v3887, %v3885
      %v3942 = vpack.c.b16 %v3888, %v3886
      %v3943 = vpack.c.b16 %v3891, %v3889
      %v3944 = vpack.c.b16 %v3892, %v3890
      %v3945 = vpack.c.b16 %v3895, %v3893
      %v3946 = vpack.c.b16 %v3896, %v3894
      %v3947 = vpack.c.b16 %v3899, %v3897
      %v3948 = vpack.c.b16 %v3900, %v3898
      %v3949 = vpack.c.b16 %v3903, %v3901
      %v3950 = vpack.c.b16 %v3904, %v3902
      %v3951 = vpack.c.b16 %v3907, %v3905
      %v3952 = vpack.c.b16 %v3908, %v3906
      %v3953 = vpack.c.b16 %v3911, %v3909
      %v3954 = vpack.c.b16 %v3912, %v3910
      %v3955 = vpack.c.b16 %v3915, %v3913
      %v3956 = vpack.c.b16 %v3916, %v3914
      %v3957 = vpack.c.b16 %v3919, %v3917
      %v3958 = vpack.c.b16 %v3920, %v3918
      %v3959 = vpack.c.b16 %v3923, %v3921
      %v3960 = vpack.c.b16 %v3924, %v3922
      %v3961 = vpack.c.b16 %v3927, %v3925
      %v3962 = vpack.c.b16 %v3928, %v3926
      %v3963 = vpack.c.b16 %v3931, %v3929
      %v3964 = vpack.c.b16 %v3932, %v3930
      %3997 = vmatprep.subr.bf16.mxu0 %v3948
      %3998 = vmatpush1.bf16.msra.mxu0 %v3947
      %3999 = vmatprep.subr.bf16.mxu0 %v3946
      %4000 = vmatpush1.bf16.msra.mxu0 %v3945
      %4001 = vmatprep.subr.bf16.mxu0 %v3944
      %4002 = vmatpush1.bf16.msra.mxu0 %v3943
      %4003 = vmatprep.subr.bf16.mxu0 %v3942
      %4004 = vmatpush1.bf16.msra.mxu0 %v3941
      %4005 = vmatprep.subr.bf16.mxu0 %v3940
      %4006 = vmatpush1.bf16.msra.mxu0 %v3939
      %4007 = vmatprep.subr.bf16.mxu0 %v3938
      %4008 = vmatpush1.bf16.msra.mxu0 %v3937
      %4009 = vmatprep.subr.bf16.mxu0 %v3936
      %4010 = vmatpush1.bf16.msra.mxu0 %v3935
      %4011 = vmatprep.subr.bf16.mxu0 %v3934
      %4012 = vmatpush1.bf16.msra.mxu0 %v3933
      %4013 = vmatprep.subr.bf16.mxu0 %v3964
      %4014 = vmatpush2.bf16.msra.mxu0 %v3963
      %4015 = vmatprep.subr.bf16.mxu0 %v3962
      %4016 = vmatpush2.bf16.msra.mxu0 %v3961
      %4017 = vmatprep.subr.bf16.mxu0 %v3960
      %4018 = vmatpush2.bf16.msra.mxu0 %v3959
      %4019 = vmatprep.subr.bf16.mxu0 %v3958
      %4020 = vmatpush2.bf16.msra.mxu0 %v3957
      %4021 = vmatprep.subr.bf16.mxu0 %v3956
      %4022 = vmatpush2.bf16.msra.mxu0 %v3955
      %4023 = vmatprep.subr.bf16.mxu0 %v3954
      %4024 = vmatpush2.bf16.msra.mxu0 %v3953
      %4025 = vmatprep.subr.bf16.mxu0 %v3952
      %4026 = vmatpush2.bf16.msra.mxu0 %v3951
      %4027 = vmatprep.subr.bf16.mxu0 %v3950
      %4028 = vmatpush2.bf16.msra.mxu0 %v3949
      %4029 = vmatprep.mubr.bf16.mxu0 %v3792
      %4030 = vmatmul.mubr.bf16.gmra.mxu0 %v3791
      %v4031 = vpop.f32.mrf.mxu0
      %v4032 = vadd.f32 %v3830, %v4031
      %v4033 = vpop.f32.mrf.mxu0
      %v4034 = vadd.f32 %v3834, %v4033
      %v4035 = vpop.f32.mrf.mxu0
      %v4036 = vpop.f32.mrf.mxu0
      %4037 = vdwg.mxu0
      %v4040 = vcombine.low %v4032, %v4034
      %v4042 = vunpack.c.l.s4 1983009808
      %v4043 = vunpack.c.0.s8 %v4042
      %v4044 = vlaneseq
      %v4045 = vshrl.u32 %v4044, 7
      %v4046 = vsub.s32 %v4043, %v4045
      %v4047 = vrot.slane %v4040, %v4046
      %4049 = vst [vmem:[#allocation3] sm:$0xf] %v4047
    $region21: #{tpu_custom_call.1} parent=1 // pred_fallthru
      _
    // Predicated region
    $region22: #{tpu_custom_call.1} parent=1 // pred_check
      _
    $region23: #{tpu_custom_call.1} parent=1 // pred_check_branch
      %4051 = sbr.rel (0) target = $region25
    $region24: #{tpu_custom_call.1} parent=1 // pred_region
      %s4053 = ssub.s32 64, 64
      %4054 = vsyncadd [#allocation4], %s4053
      %s4056 = sshll.u32 [#allocation3], 4
      %s4057 = int_to_ptr.vmem [resolvable:$true] %s4056
      %4059 = dma.vmem_to_hbm [thread:$0]  %s4057, 64, %s3, [#allocation4]
    $region25: #{tpu_custom_call.1} parent=1 // pred_fallthru
      _
    // Predicated region
    $region26: #{tpu_custom_call.1} parent=1 // pred_check
      _
    $region27: #{tpu_custom_call.1} parent=1 // pred_check_branch
      %4061 = sbr.rel (0) target = $region29
    $region28: #{tpu_custom_call.1} parent=1 // pred_region
      %4062 = dma.done [#allocation4], 64
    $region29: #{tpu_custom_call.1} parent=1 // pred_fallthru
      _
    %4063 = vsyncpa [#allocation4], 1

// kernel: tpu_custom_call.1
$region0: #{tpu_custom_call.1}
  #allocation0 [shape = 'u32[]', space=smem, size = 0x4, offset = 0x4, fixed_abs, tag = 'smem constant byte address 0x4 - core index']
  #allocation1 [shape = 'u32[144,128]{1,0:T(1,128)}', space=vmem, size = 0x12000, scoped, tag = 'internal scratch']
  #allocation2 [shape = 'f32[2,256]{1,0:T(2,128)}', space=vmem, size = 0x800, scoped, tag = 'scratch operand']
  %s0 = inlined_call_operand.vmem [shape: f32[2,256,64], index: 0, kind: input, shape index: {}]
  %s1 = inlined_call_operand.vmem [shape: bf16[256,256], index: 1, kind: input, shape index: {}]
  %s2 = inlined_call_operand.vmem [shape: f32[1,256], index: 2, kind: input, shape index: {}]
  %s3 = inlined_call_operand.hbm [shape: f32[2,256], index: 3, kind: output, shape index: {}]
  %s4 = sld [smem:[#allocation0]]
  $region30: #{tpu_custom_call.1} parent=0
    _
  %s6 = ssub.s32 1, %s4
  %s7 = scalar_select 0, %s6, %s4
  $region1: #{tpu_custom_call.1} parent=0
    #allocation3 [shape = 'u8[2048]{0}', space=vmem, size = 0x800, scoped, tag = 'output window, operand 0, single buffered']
    #allocation4 [shape = 's32[1]{0}', space=sflag, size = 0x4, scoped, tag = 'scoped memory for tpu_custom_call.1']
    %8 = vsyncpa [#allocation4], 0
    // Predicated region
    $region2: #{tpu_custom_call.1} parent=1 // pred_check
      _
    $region3: #{tpu_custom_call.1} parent=1 // pred_check_branch
      %10 = sbr.rel (0) target = $region5
    $region4: #{tpu_custom_call.1} parent=1 // pred_region
      _
    $region5: #{tpu_custom_call.1} parent=1 // pred_fallthru
      _
    // Predicated region
    $region6: #{tpu_custom_call.1} parent=1 // pred_check
      _
    $region7: #{tpu_custom_call.1} parent=1 // pred_check_branch
      %12 = sbr.rel (0) target = $region9
    $region8: #{tpu_custom_call.1} parent=1 // pred_region
      _
    $region9: #{tpu_custom_call.1} parent=1 // pred_fallthru
      _
    // Predicated region
    $region10: #{tpu_custom_call.1} parent=1 // pred_check
      _
    $region11: #{tpu_custom_call.1} parent=1 // pred_check_branch
      %14 = sbr.rel (0) target = $region13
    $region12: #{tpu_custom_call.1} parent=1 // pred_region
      _
    $region13: #{tpu_custom_call.1} parent=1 // pred_fallthru
      _
    %p15 = scmp.eq.s32.totalorder 0, 0
    // Predicated region
    $region14: #{tpu_custom_call.1} parent=1 // pred_check
      %p16 = pneg %p15
    $region15: #{tpu_custom_call.1} parent=1 // pred_check_branch
      %18 = sbr.rel (%p16) target = $region17
    $region16: #{tpu_custom_call.1} parent=1 // pred_region
      %19 = vst [vmem:[#allocation2] sm:$0xf] 0.0
    $region17: #{tpu_custom_call.1} parent=1 // pred_fallthru
      _
    %v20 = vld [vmem:[#allocation2] sm:$0xf]
    %v21 = vld [vmem:[%s0] sm:$0xff]
    %v22 = vld [vmem:[%s0 + $0x8] sm:$0xff]
    %v23 = vld [vmem:[%s0 + $0x10] sm:$0xff]
    %v24 = vld [vmem:[%s0 + $0x18] sm:$0xff]
    %v25 = vld [vmem:[%s0 + $0x20] sm:$0xff]
    %v26 = vld [vmem:[%s0 + $0x28] sm:$0xff]
    %v27 = vld [vmem:[%s0 + $0x30] sm:$0xff]
    %v28 = vld [vmem:[%s0 + $0x38] sm:$0xff]
    %v29 = vld [vmem:[%s0 + $0x40] sm:$0xff]
    %v30 = vld [vmem:[%s0 + $0x48] sm:$0xff]
    %v31 = vld [vmem:[%s0 + $0x50] sm:$0xff]
    %v32 = vld [vmem:[%s0 + $0x58] sm:$0xff]
    %v33 = vld [vmem:[%s0 + $0x60] sm:$0xff]
    %v34 = vld [vmem:[%s0 + $0x68] sm:$0xff]
    %v35 = vld [vmem:[%s0 + $0x70] sm:$0xff]
    %v36 = vld [vmem:[%s0 + $0x78] sm:$0xff]
    %v37 = vld [vmem:[%s0 + $0x80] sm:$0xff]
    %v38 = vld [vmem:[%s0 + $0x88] sm:$0xff]
    %v39 = vld [vmem:[%s0 + $0x90] sm:$0xff]
    %v40 = vld [vmem:[%s0 + $0x98] sm:$0xff]
    %v41 = vld [vmem:[%s0 + $0xa0] sm:$0xff]
    %v42 = vld [vmem:[%s0 + $0xa8] sm:$0xff]
    %v43 = vld [vmem:[%s0 + $0xb0] sm:$0xff]
    %v44 = vld [vmem:[%s0 + $0xb8] sm:$0xff]
    %v45 = vld [vmem:[%s0 + $0xc0] sm:$0xff]
    %v46 = vld [vmem:[%s0 + $0xc8] sm:$0xff]
    %v47 = vld [vmem:[%s0 + $0xd0] sm:$0xff]
    %v48 = vld [vmem:[%s0 + $0xd8] sm:$0xff]
    %v49 = vld [vmem:[%s0 + $0xe0] sm:$0xff]
    %v50 = vld [vmem:[%s0 + $0xe8] sm:$0xff]
    %v51 = vld [vmem:[%s0 + $0xf0] sm:$0xff]
    %v52 = vld [vmem:[%s0 + $0xf8] sm:$0xff]
    %v53 = vld [vmem:[%s0 + $0x100] sm:$0xff]
    %v54 = vld [vmem:[%s0 + $0x108] sm:$0xff]
    %v55 = vld [vmem:[%s0 + $0x110] sm:$0xff]
    %v56 = vld [vmem:[%s0 + $0x118] sm:$0xff]
    %v57 = vld [vmem:[%s0 + $0x120] sm:$0xff]
    %v58 = vld [vmem:[%s0 + $0x128] sm:$0xff]
    %v59 = vld [vmem:[%s0 + $0x130] sm:$0xff]
    %v60 = vld [vmem:[%s0 + $0x138] sm:$0xff]
    %v61 = vld [vmem:[%s0 + $0x140] sm:$0xff]
    %v62 = vld [vmem:[%s0 + $0x148] sm:$0xff]
    %v63 = vld [vmem:[%s0 + $0x150] sm:$0xff]
    %v64 = vld [vmem:[%s0 + $0x158] sm:$0xff]
    %v65 = vld [vmem:[%s0 + $0x160] sm:$0xff]
    %v66 = vld [vmem:[%s0 + $0x168] sm:$0xff]
    %v67 = vld [vmem:[%s0 + $0x170] sm:$0xff]
    %v68 = vld [vmem:[%s0 + $0x178] sm:$0xff]
    %v69 = vld [vmem:[%s0 + $0x180] sm:$0xff]
    %v70 = vld [vmem:[%s0 + $0x188] sm:$0xff]
    %v71 = vld [vmem:[%s0 + $0x190] sm:$0xff]
    %v72 = vld [vmem:[%s0 + $0x198] sm:$0xff]
    %v73 = vld [vmem:[%s0 + $0x1a0] sm:$0xff]
    %v74 = vld [vmem:[%s0 + $0x1a8] sm:$0xff]
    %v75 = vld [vmem:[%s0 + $0x1b0] sm:$0xff]
    %v76 = vld [vmem:[%s0 + $0x1b8] sm:$0xff]
    %v77 = vld [vmem:[%s0 + $0x1c0] sm:$0xff]
    %v78 = vld [vmem:[%s0 + $0x1c8] sm:$0xff]
    %v79 = vld [vmem:[%s0 + $0x1d0] sm:$0xff]
    %v80 = vld [vmem:[%s0 + $0x1d8] sm:$0xff]
    %v81 = vld [vmem:[%s0 + $0x1e0] sm:$0xff]
    %v82 = vld [vmem:[%s0 + $0x1e8] sm:$0xff]
    %v83 = vld [vmem:[%s0 + $0x1f0] sm:$0xff]
    %v84 = vld [vmem:[%s0 + $0x1f8] sm:$0xff]
    %vm85 = vcmask 523264
    %v86 = vsel %vm85, %v21, 0.0
    %87 = vadd.xlane.f32.xlu0 %v86
    %v88 = vpop.xlane.xlu0 %87
    %v89 = vsel %vm85, %v22, 0.0
    %90 = vadd.xlane.f32.xlu0 %v89
    %v91 = vpop.xlane.xlu0 %90
    %v92 = vsel %vm85, %v23, 0.0
    %93 = vadd.xlane.f32.xlu0 %v92
    %v94 = vpop.xlane.xlu0 %93
    %v95 = vsel %vm85, %v24, 0.0
    %96 = vadd.xlane.f32.xlu0 %v95
    %v97 = vpop.xlane.xlu0 %96
    %v98 = vsel %vm85, %v25, 0.0
    %99 = vadd.xlane.f32.xlu0 %v98
    %v100 = vpop.xlane.xlu0 %99
    %v101 = vsel %vm85, %v26, 0.0
    %102 = vadd.xlane.f32.xlu0 %v101
    %v103 = vpop.xlane.xlu0 %102
    %v104 = vsel %vm85, %v27, 0.0
    %105 = vadd.xlane.f32.xlu0 %v104
    %v106 = vpop.xlane.xlu0 %105
    %v107 = vsel %vm85, %v28, 0.0
    %108 = vadd.xlane.f32.xlu0 %v107
    %v109 = vpop.xlane.xlu0 %108
    %v110 = vsel %vm85, %v29, 0.0
    %111 = vadd.xlane.f32.xlu0 %v110
    %v112 = vpop.xlane.xlu0 %111
    %v113 = vsel %vm85, %v30, 0.0
    %114 = vadd.xlane.f32.xlu0 %v113
    %v115 = vpop.xlane.xlu0 %114
    %v116 = vsel %vm85, %v31, 0.0
    %117 = vadd.xlane.f32.xlu0 %v116
    %v118 = vpop.xlane.xlu0 %117
    %v119 = vsel %vm85, %v32, 0.0
    %120 = vadd.xlane.f32.xlu0 %v119
    %v121 = vpop.xlane.xlu0 %120
    %v122 = vsel %vm85, %v33, 0.0
    %123 = vadd.xlane.f32.xlu0 %v122
    %v124 = vpop.xlane.xlu0 %123
    %v125 = vsel %vm85, %v34, 0.0
    %126 = vadd.xlane.f32.xlu0 %v125
    %v127 = vpop.xlane.xlu0 %126
    %v128 = vsel %vm85, %v35, 0.0
    %129 = vadd.xlane.f32.xlu0 %v128
    %v130 = vpop.xlane.xlu0 %129
    %v131 = vsel %vm85, %v36, 0.0
    %132 = vadd.xlane.f32.xlu0 %v131
    %v133 = vpop.xlane.xlu0 %132
    %v134 = vsel %vm85, %v37, 0.0
    %135 = vadd.xlane.f32.xlu0 %v134
    %v136 = vpop.xlane.xlu0 %135
    %v137 = vsel %vm85, %v38, 0.0
    %138 = vadd.xlane.f32.xlu0 %v137
    %v139 = vpop.xlane.xlu0 %138
    %v140 = vsel %vm85, %v39, 0.0
    %141 = vadd.xlane.f32.xlu0 %v140
    %v142 = vpop.xlane.xlu0 %141
    %v143 = vsel %vm85, %v40, 0.0
    %144 = vadd.xlane.f32.xlu0 %v143
    %v145 = vpop.xlane.xlu0 %144
    %v146 = vsel %vm85, %v41, 0.0
    %147 = vadd.xlane.f32.xlu0 %v146
    %v148 = vpop.xlane.xlu0 %147
    %v149 = vsel %vm85, %v42, 0.0
    %150 = vadd.xlane.f32.xlu0 %v149
    %v151 = vpop.xlane.xlu0 %150
    %v152 = vsel %vm85, %v43, 0.0
    %153 = vadd.xlane.f32.xlu0 %v152
    %v154 = vpop.xlane.xlu0 %153
    %v155 = vsel %vm85, %v44, 0.0
    %156 = vadd.xlane.f32.xlu0 %v155
    %v157 = vpop.xlane.xlu0 %156
    %v158 = vsel %vm85, %v45, 0.0
    %159 = vadd.xlane.f32.xlu0 %v158
    %v160 = vpop.xlane.xlu0 %159
    %v161 = vsel %vm85, %v46, 0.0
    %162 = vadd.xlane.f32.xlu0 %v161
    %v163 = vpop.xlane.xlu0 %162
    %v164 = vsel %vm85, %v47, 0.0
    %165 = vadd.xlane.f32.xlu0 %v164
    %v166 = vpop.xlane.xlu0 %165
    %v167 = vsel %vm85, %v48, 0.0
    %168 = vadd.xlane.f32.xlu0 %v167
    %v169 = vpop.xlane.xlu0 %168
    %v170 = vsel %vm85, %v49, 0.0
    %171 = vadd.xlane.f32.xlu0 %v170
    %v172 = vpop.xlane.xlu0 %171
    %v173 = vsel %vm85, %v50, 0.0
    %174 = vadd.xlane.f32.xlu0 %v173
    %v175 = vpop.xlane.xlu0 %174
    %v176 = vsel %vm85, %v51, 0.0
    %177 = vadd.xlane.f32.xlu0 %v176
    %v178 = vpop.xlane.xlu0 %177
    %v179 = vsel %vm85, %v52, 0.0
    %180 = vadd.xlane.f32.xlu0 %v179
    %v181 = vpop.xlane.xlu0 %180
    %v182 = vsel %vm85, %v53, 0.0
    %183 = vadd.xlane.f32.xlu0 %v182
    %v184 = vpop.xlane.xlu0 %183
    %v185 = vsel %vm85, %v54, 0.0
    %186 = vadd.xlane.f32.xlu0 %v185
    %v187 = vpop.xlane.xlu0 %186
    %v188 = vsel %vm85, %v55, 0.0
    %189 = vadd.xlane.f32.xlu0 %v188
    %v190 = vpop.xlane.xlu0 %189
    %v191 = vsel %vm85, %v56, 0.0
    %192 = vadd.xlane.f32.xlu0 %v191
    %v193 = vpop.xlane.xlu0 %192
    %v194 = vsel %vm85, %v57, 0.0
    %195 = vadd.xlane.f32.xlu0 %v194
    %v196 = vpop.xlane.xlu0 %195
    %v197 = vsel %vm85, %v58, 0.0
    %198 = vadd.xlane.f32.xlu0 %v197
    %v199 = vpop.xlane.xlu0 %198
    %v200 = vsel %vm85, %v59, 0.0
    %201 = vadd.xlane.f32.xlu0 %v200
    %v202 = vpop.xlane.xlu0 %201
    %v203 = vsel %vm85, %v60, 0.0
    %204 = vadd.xlane.f32.xlu0 %v203
    %v205 = vpop.xlane.xlu0 %204
    %v206 = vsel %vm85, %v61, 0.0
    %207 = vadd.xlane.f32.xlu0 %v206
    %v208 = vpop.xlane.xlu0 %207
    %v209 = vsel %vm85, %v62, 0.0
    %210 = vadd.xlane.f32.xlu0 %v209
    %v211 = vpop.xlane.xlu0 %210
    %v212 = vsel %vm85, %v63, 0.0
    %213 = vadd.xlane.f32.xlu0 %v212
    %v214 = vpop.xlane.xlu0 %213
    %v215 = vsel %vm85, %v64, 0.0
    %216 = vadd.xlane.f32.xlu0 %v215
    %v217 = vpop.xlane.xlu0 %216
    %v218 = vsel %vm85, %v65, 0.0
    %219 = vadd.xlane.f32.xlu0 %v218
    %v220 = vpop.xlane.xlu0 %219
    %v221 = vsel %vm85, %v66, 0.0
    %222 = vadd.xlane.f32.xlu0 %v221
    %v223 = vpop.xlane.xlu0 %222
    %v224 = vsel %vm85, %v67, 0.0
    %225 = vadd.xlane.f32.xlu0 %v224
    %v226 = vpop.xlane.xlu0 %225
    %v227 = vsel %vm85, %v68, 0.0
    %228 = vadd.xlane.f32.xlu0 %v227
    %v229 = vpop.xlane.xlu0 %228
    %v230 = vsel %vm85, %v69, 0.0
    %231 = vadd.xlane.f32.xlu0 %v230
    %v232 = vpop.xlane.xlu0 %231
    %v233 = vsel %vm85, %v70, 0.0
    %234 = vadd.xlane.f32.xlu0 %v233
    %v235 = vpop.xlane.xlu0 %234
    %v236 = vsel %vm85, %v71, 0.0
    %237 = vadd.xlane.f32.xlu0 %v236
    %v238 = vpop.xlane.xlu0 %237
    %v239 = vsel %vm85, %v72, 0.0
    %240 = vadd.xlane.f32.xlu0 %v239
    %v241 = vpop.xlane.xlu0 %240
    %v242 = vsel %vm85, %v73, 0.0
    %243 = vadd.xlane.f32.xlu0 %v242
    %v244 = vpop.xlane.xlu0 %243
    %v245 = vsel %vm85, %v74, 0.0
    %246 = vadd.xlane.f32.xlu0 %v245
    %v247 = vpop.xlane.xlu0 %246
    %v248 = vsel %vm85, %v75, 0.0
    %249 = vadd.xlane.f32.xlu0 %v248
    %v250 = vpop.xlane.xlu0 %249
    %v251 = vsel %vm85, %v76, 0.0
    %252 = vadd.xlane.f32.xlu0 %v251
    %v253 = vpop.xlane.xlu0 %252
    %v254 = vsel %vm85, %v77, 0.0
    %255 = vadd.xlane.f32.xlu0 %v254
    %v256 = vpop.xlane.xlu0 %255
    %v257 = vsel %vm85, %v78, 0.0
    %258 = vadd.xlane.f32.xlu0 %v257
    %v259 = vpop.xlane.xlu0 %258
    %v260 = vsel %vm85, %v79, 0.0
    %261 = vadd.xlane.f32.xlu0 %v260
    %v262 = vpop.xlane.xlu0 %261
    %v263 = vsel %vm85, %v80, 0.0
    %264 = vadd.xlane.f32.xlu0 %v263
    %v265 = vpop.xlane.xlu0 %264
    %v266 = vsel %vm85, %v81, 0.0
    %267 = vadd.xlane.f32.xlu0 %v266
    %v268 = vpop.xlane.xlu0 %267
    %v269 = vsel %vm85, %v82, 0.0
    %270 = vadd.xlane.f32.xlu0 %v269
    %v271 = vpop.xlane.xlu0 %270
    %v272 = vsel %vm85, %v83, 0.0
    %273 = vadd.xlane.f32.xlu0 %v272
    %v274 = vpop.xlane.xlu0 %273
    %v275 = vsel %vm85, %v84, 0.0
    %276 = vadd.xlane.f32.xlu0 %v275
    %v277 = vpop.xlane.xlu0 %276
    %v343 = vunpack.c.l.s4 269488144
    %v344 = vunpack.c.0.s8 %v343
    %v345 = vlaneseq
    %v346 = vshrl.u32 %v345, 7
    %v347 = vsub.s32 %v344, %v346
    %v348 = vrot.slane %v88, %v347
    %v350 = vunpack.c.l.s4 842150450
    %v351 = vunpack.c.0.s8 %v350
    %v352 = vlaneseq
    %v353 = vshrl.u32 %v352, 7
    %v354 = vsub.s32 %v351, %v353
    %v355 = vrot.slane %v88, %v354
    %v357 = vunpack.c.l.s4 1414812756
    %v358 = vunpack.c.0.s8 %v357
    %v359 = vlaneseq
    %v360 = vshrl.u32 %v359, 7
    %v361 = vsub.s32 %v358, %v360
    %v362 = vrot.slane %v88, %v361
    %v364 = vunpack.c.l.s4 1987475062
    %v365 = vunpack.c.0.s8 %v364
    %v366 = vlaneseq
    %v367 = vshrl.u32 %v366, 7
    %v368 = vsub.s32 %v365, %v367
    %v369 = vrot.slane %v88, %v368
    %v371 = vunpack.c.l.s4 269488144
    %v372 = vunpack.c.0.s8 %v371
    %v373 = vlaneseq
    %v374 = vshrl.u32 %v373, 7
    %v375 = vsub.s32 %v372, %v374
    %v376 = vrot.slane %v91, %v375
    %v378 = vunpack.c.l.s4 842150450
    %v379 = vunpack.c.0.s8 %v378
    %v380 = vlaneseq
    %v381 = vshrl.u32 %v380, 7
    %v382 = vsub.s32 %v379, %v381
    %v383 = vrot.slane %v91, %v382
    %v385 = vunpack.c.l.s4 1414812756
    %v386 = vunpack.c.0.s8 %v385
    %v387 = vlaneseq
    %v388 = vshrl.u32 %v387, 7
    %v389 = vsub.s32 %v386, %v388
    %v390 = vrot.slane %v91, %v389
    %v392 = vunpack.c.l.s4 1987475062
    %v393 = vunpack.c.0.s8 %v392
    %v394 = vlaneseq
    %v395 = vshrl.u32 %v394, 7
    %v396 = vsub.s32 %v393, %v395
    %v397 = vrot.slane %v91, %v396
    %v399 = vunpack.c.l.s4 269488144
    %v400 = vunpack.c.0.s8 %v399
    %v401 = vlaneseq
    %v402 = vshrl.u32 %v401, 7
    %v403 = vsub.s32 %v400, %v402
    %v404 = vrot.slane %v94, %v403
    %v406 = vunpack.c.l.s4 842150450
    %v407 = vunpack.c.0.s8 %v406
    %v408 = vlaneseq
    %v409 = vshrl.u32 %v408, 7
    %v410 = vsub.s32 %v407, %v409
    %v411 = vrot.slane %v94, %v410
    %v413 = vunpack.c.l.s4 1414812756
    %v414 = vunpack.c.0.s8 %v413
    %v415 = vlaneseq
    %v416 = vshrl.u32 %v415, 7
    %v417 = vsub.s32 %v414, %v416
    %v418 = vrot.slane %v94, %v417
    %v420 = vunpack.c.l.s4 1987475062
    %v421 = vunpack.c.0.s8 %v420
    %v422 = vlaneseq
    %v423 = vshrl.u32 %v422, 7
    %v424 = vsub.s32 %v421, %v423
    %v425 = vrot.slane %v94, %v424
    %v427 = vunpack.c.l.s4 269488144
    %v428 = vunpack.c.0.s8 %v427
    %v429 = vlaneseq
    %v430 = vshrl.u32 %v429, 7
    %v431 = vsub.s32 %v428, %v430
    %v432 = vrot.slane %v97, %v431
    %v434 = vunpack.c.l.s4 842150450
    %v435 = vunpack.c.0.s8 %v434
    %v436 = vlaneseq
    %v437 = vshrl.u32 %v436, 7
    %v438 = vsub.s32 %v435, %v437
    %v439 = vrot.slane %v97, %v438
    %v441 = vunpack.c.l.s4 1414812756
    %v442 = vunpack.c.0.s8 %v441
    %v443 = vlaneseq
    %v444 = vshrl.u32 %v443, 7
    %v445 = vsub.s32 %v442, %v444
    %v446 = vrot.slane %v97, %v445
    %v448 = vunpack.c.l.s4 1987475062
    %v449 = vunpack.c.0.s8 %v448
    %v450 = vlaneseq
    %v451 = vshrl.u32 %v450, 7
    %v452 = vsub.s32 %v449, %v451
    %v453 = vrot.slane %v97, %v452
    %v455 = vunpack.c.l.s4 269488144
    %v456 = vunpack.c.0.s8 %v455
    %v457 = vlaneseq
    %v458 = vshrl.u32 %v457, 7
    %v459 = vsub.s32 %v456, %v458
    %v460 = vrot.slane %v100, %v459
    %v462 = vunpack.c.l.s4 842150450
    %v463 = vunpack.c.0.s8 %v462
    %v464 = vlaneseq
    %v465 = vshrl.u32 %v464, 7
    %v466 = vsub.s32 %v463, %v465
    %v467 = vrot.slane %v100, %v466
    %v469 = vunpack.c.l.s4 1414812756
    %v470 = vunpack.c.0.s8 %v469
    %v471 = vlaneseq
    %v472 = vshrl.u32 %v471, 7
    %v473 = vsub.s32 %v470, %v472
    %v474 = vrot.slane %v100, %v473
    %v476 = vunpack.c.l.s4 1987475062
    %v477 = vunpack.c.0.s8 %v476
    %v478 = vlaneseq
    %v479 = vshrl.u32 %v478, 7
    %v480 = vsub.s32 %v477, %v479
    %v481 = vrot.slane %v100, %v480
    %v483 = vunpack.c.l.s4 269488144
    %v484 = vunpack.c.0.s8 %v483
    %v485 = vlaneseq
    %v486 = vshrl.u32 %v485, 7
    %v487 = vsub.s32 %v484, %v486
    %v488 = vrot.slane %v103, %v487
    %v490 = vunpack.c.l.s4 842150450
    %v491 = vunpack.c.0.s8 %v490
    %v492 = vlaneseq
    %v493 = vshrl.u32 %v492, 7
    %v494 = vsub.s32 %v491, %v493
    %v495 = vrot.slane %v103, %v494
    %v497 = vunpack.c.l.s4 1414812756
    %v498 = vunpack.c.0.s8 %v497
    %v499 = vlaneseq
    %v500 = vshrl.u32 %v499, 7
    %v501 = vsub.s32 %v498, %v500
    %v502 = vrot.slane %v103, %v501
    %v504 = vunpack.c.l.s4 1987475062
    %v505 = vunpack.c.0.s8 %v504
    %v506 = vlaneseq
    %v507 = vshrl.u32 %v506, 7
    %v508 = vsub.s32 %v505, %v507
    %v509 = vrot.slane %v103, %v508
    %v511 = vunpack.c.l.s4 269488144
    %v512 = vunpack.c.0.s8 %v511
    %v513 = vlaneseq
    %v514 = vshrl.u32 %v513, 7
    %v515 = vsub.s32 %v512, %v514
    %v516 = vrot.slane %v106, %v515
    %v518 = vunpack.c.l.s4 842150450
    %v519 = vunpack.c.0.s8 %v518
    %v520 = vlaneseq
    %v521 = vshrl.u32 %v520, 7
    %v522 = vsub.s32 %v519, %v521
    %v523 = vrot.slane %v106, %v522
    %v525 = vunpack.c.l.s4 1414812756
    %v526 = vunpack.c.0.s8 %v525
    %v527 = vlaneseq
    %v528 = vshrl.u32 %v527, 7
    %v529 = vsub.s32 %v526, %v528
    %v530 = vrot.slane %v106, %v529
    %v532 = vunpack.c.l.s4 1987475062
    %v533 = vunpack.c.0.s8 %v532
    %v534 = vlaneseq
    %v535 = vshrl.u32 %v534, 7
    %v536 = vsub.s32 %v533, %v535
    %v537 = vrot.slane %v106, %v536
    %v539 = vunpack.c.l.s4 269488144
    %v540 = vunpack.c.0.s8 %v539
    %v541 = vlaneseq
    %v542 = vshrl.u32 %v541, 7
    %v543 = vsub.s32 %v540, %v542
    %v544 = vrot.slane %v109, %v543
    %v546 = vunpack.c.l.s4 842150450
    %v547 = vunpack.c.0.s8 %v546
    %v548 = vlaneseq
    %v549 = vshrl.u32 %v548, 7
    %v550 = vsub.s32 %v547, %v549
    %v551 = vrot.slane %v109, %v550
    %v553 = vunpack.c.l.s4 1414812756
    %v554 = vunpack.c.0.s8 %v553
    %v555 = vlaneseq
    %v556 = vshrl.u32 %v555, 7
    %v557 = vsub.s32 %v554, %v556
    %v558 = vrot.slane %v109, %v557
    %v560 = vunpack.c.l.s4 1987475062
    %v561 = vunpack.c.0.s8 %v560
    %v562 = vlaneseq
    %v563 = vshrl.u32 %v562, 7
    %v564 = vsub.s32 %v561, %v563
    %v565 = vrot.slane %v109, %v564
    %v567 = vunpack.c.l.s4 269488144
    %v568 = vunpack.c.0.s8 %v567
    %v569 = vlaneseq
    %v570 = vshrl.u32 %v569, 7
    %v571 = vsub.s32 %v568, %v570
    %v572 = vrot.slane %v112, %v571
    %v574 = vunpack.c.l.s4 842150450
    %v575 = vunpack.c.0.s8 %v574
    %v576 = vlaneseq
    %v577 = vshrl.u32 %v576, 7
    %v578 = vsub.s32 %v575, %v577
    %v579 = vrot.slane %v112, %v578
    %v581 = vunpack.c.l.s4 1414812756
    %v582 = vunpack.c.0.s8 %v581
    %v583 = vlaneseq
    %v584 = vshrl.u32 %v583, 7
    %v585 = vsub.s32 %v582, %v584
    %v586 = vrot.slane %v112, %v585
    %v588 = vunpack.c.l.s4 1987475062
    %v589 = vunpack.c.0.s8 %v588
    %v590 = vlaneseq
    %v591 = vshrl.u32 %v590, 7
    %v592 = vsub.s32 %v589, %v591
    %v593 = vrot.slane %v112, %v592
    %v595 = vunpack.c.l.s4 269488144
    %v596 = vunpack.c.0.s8 %v595
    %v597 = vlaneseq
    %v598 = vshrl.u32 %v597, 7
    %v599 = vsub.s32 %v596, %v598
    %v600 = vrot.slane %v115, %v599
    %v602 = vunpack.c.l.s4 842150450
    %v603 = vunpack.c.0.s8 %v602
    %v604 = vlaneseq
    %v605 = vshrl.u32 %v604, 7
    %v606 = vsub.s32 %v603, %v605
    %v607 = vrot.slane %v115, %v606
    %v609 = vunpack.c.l.s4 1414812756
    %v610 = vunpack.c.0.s8 %v609
    %v611 = vlaneseq
    %v612 = vshrl.u32 %v611, 7
    %v613 = vsub.s32 %v610, %v612
    %v614 = vrot.slane %v115, %v613
    %v616 = vunpack.c.l.s4 1987475062
    %v617 = vunpack.c.0.s8 %v616
    %v618 = vlaneseq
    %v619 = vshrl.u32 %v618, 7
    %v620 = vsub.s32 %v617, %v619
    %v621 = vrot.slane %v115, %v620
    %v623 = vunpack.c.l.s4 269488144
    %v624 = vunpack.c.0.s8 %v623
    %v625 = vlaneseq
    %v626 = vshrl.u32 %v625, 7
    %v627 = vsub.s32 %v624, %v626
    %v628 = vrot.slane %v118, %v627
    %v630 = vunpack.c.l.s4 842150450
    %v631 = vunpack.c.0.s8 %v630
    %v632 = vlaneseq
    %v633 = vshrl.u32 %v632, 7
    %v634 = vsub.s32 %v631, %v633
    %v635 = vrot.slane %v118, %v634
    %v637 = vunpack.c.l.s4 1414812756
    %v638 = vunpack.c.0.s8 %v637
    %v639 = vlaneseq
    %v640 = vshrl.u32 %v639, 7
    %v641 = vsub.s32 %v638, %v640
    %v642 = vrot.slane %v118, %v641
    %v644 = vunpack.c.l.s4 1987475062
    %v645 = vunpack.c.0.s8 %v644
    %v646 = vlaneseq
    %v647 = vshrl.u32 %v646, 7
    %v648 = vsub.s32 %v645, %v647
    %v649 = vrot.slane %v118, %v648
    %v651 = vunpack.c.l.s4 269488144
    %v652 = vunpack.c.0.s8 %v651
    %v653 = vlaneseq
    %v654 = vshrl.u32 %v653, 7
    %v655 = vsub.s32 %v652, %v654
    %v656 = vrot.slane %v121, %v655
    %v658 = vunpack.c.l.s4 842150450
    %v659 = vunpack.c.0.s8 %v658
    %v660 = vlaneseq
    %v661 = vshrl.u32 %v660, 7
    %v662 = vsub.s32 %v659, %v661
    %v663 = vrot.slane %v121, %v662
    %v665 = vunpack.c.l.s4 1414812756
    %v666 = vunpack.c.0.s8 %v665
    %v667 = vlaneseq
    %v668 = vshrl.u32 %v667, 7
    %v669 = vsub.s32 %v666, %v668
    %v670 = vrot.slane %v121, %v669
    %v672 = vunpack.c.l.s4 1987475062
    %v673 = vunpack.c.0.s8 %v672
    %v674 = vlaneseq
    %v675 = vshrl.u32 %v674, 7
    %v676 = vsub.s32 %v673, %v675
    %v677 = vrot.slane %v121, %v676
    %v679 = vunpack.c.l.s4 269488144
    %v680 = vunpack.c.0.s8 %v679
    %v681 = vlaneseq
    %v682 = vshrl.u32 %v681, 7
    %v683 = vsub.s32 %v680, %v682
    %v684 = vrot.slane %v124, %v683
    %v686 = vunpack.c.l.s4 842150450
    %v687 = vunpack.c.0.s8 %v686
    %v688 = vlaneseq
    %v689 = vshrl.u32 %v688, 7
    %v690 = vsub.s32 %v687, %v689
    %v691 = vrot.slane %v124, %v690
    %v693 = vunpack.c.l.s4 1414812756
    %v694 = vunpack.c.0.s8 %v693
    %v695 = vlaneseq
    %v696 = vshrl.u32 %v695, 7
    %v697 = vsub.s32 %v694, %v696
    %v698 = vrot.slane %v124, %v697
    %v700 = vunpack.c.l.s4 1987475062
    %v701 = vunpack.c.0.s8 %v700
    %v702 = vlaneseq
    %v703 = vshrl.u32 %v702, 7
    %v704 = vsub.s32 %v701, %v703
    %v705 = vrot.slane %v124, %v704
    %v707 = vunpack.c.l.s4 269488144
    %v708 = vunpack.c.0.s8 %v707
    %v709 = vlaneseq
    %v710 = vshrl.u32 %v709, 7
    %v711 = vsub.s32 %v708, %v710
    %v712 = vrot.slane %v127, %v711
    %v714 = vunpack.c.l.s4 842150450
    %v715 = vunpack.c.0.s8 %v714
    %v716 = vlaneseq
    %v717 = vshrl.u32 %v716, 7
    %v718 = vsub.s32 %v715, %v717
    %v719 = vrot.slane %v127, %v718
    %v721 = vunpack.c.l.s4 1414812756
    %v722 = vunpack.c.0.s8 %v721
    %v723 = vlaneseq
    %v724 = vshrl.u32 %v723, 7
    %v725 = vsub.s32 %v722, %v724
    %v726 = vrot.slane %v127, %v725
    %v728 = vunpack.c.l.s4 1987475062
    %v729 = vunpack.c.0.s8 %v728
    %v730 = vlaneseq
    %v731 = vshrl.u32 %v730, 7
    %v732 = vsub.s32 %v729, %v731
    %v733 = vrot.slane %v127, %v732
    %v735 = vunpack.c.l.s4 269488144
    %v736 = vunpack.c.0.s8 %v735
    %v737 = vlaneseq
    %v738 = vshrl.u32 %v737, 7
    %v739 = vsub.s32 %v736, %v738
    %v740 = vrot.slane %v130, %v739
    %v742 = vunpack.c.l.s4 842150450
    %v743 = vunpack.c.0.s8 %v742
    %v744 = vlaneseq
    %v745 = vshrl.u32 %v744, 7
    %v746 = vsub.s32 %v743, %v745
    %v747 = vrot.slane %v130, %v746
    %v749 = vunpack.c.l.s4 1414812756
    %v750 = vunpack.c.0.s8 %v749
    %v751 = vlaneseq
    %v752 = vshrl.u32 %v751, 7
    %v753 = vsub.s32 %v750, %v752
    %v754 = vrot.slane %v130, %v753
    %v756 = vunpack.c.l.s4 1987475062
    %v757 = vunpack.c.0.s8 %v756
    %v758 = vlaneseq
    %v759 = vshrl.u32 %v758, 7
    %v760 = vsub.s32 %v757, %v759
    %v761 = vrot.slane %v130, %v760
    %v763 = vunpack.c.l.s4 269488144
    %v764 = vunpack.c.0.s8 %v763
    %v765 = vlaneseq
    %v766 = vshrl.u32 %v765, 7
    %v767 = vsub.s32 %v764, %v766
    %v768 = vrot.slane %v133, %v767
    %v770 = vunpack.c.l.s4 842150450
    %v771 = vunpack.c.0.s8 %v770
    %v772 = vlaneseq
    %v773 = vshrl.u32 %v772, 7
    %v774 = vsub.s32 %v771, %v773
    %v775 = vrot.slane %v133, %v774
    %v777 = vunpack.c.l.s4 1414812756
    %v778 = vunpack.c.0.s8 %v777
    %v779 = vlaneseq
    %v780 = vshrl.u32 %v779, 7
    %v781 = vsub.s32 %v778, %v780
    %v782 = vrot.slane %v133, %v781
    %v784 = vunpack.c.l.s4 1987475062
    %v785 = vunpack.c.0.s8 %v784
    %v786 = vlaneseq
    %v787 = vshrl.u32 %v786, 7
    %v788 = vsub.s32 %v785, %v787
    %v789 = vrot.slane %v133, %v788
    %v791 = vunpack.c.l.s4 269488144
    %v792 = vunpack.c.0.s8 %v791
    %v793 = vlaneseq
    %v794 = vshrl.u32 %v793, 7
    %v795 = vsub.s32 %v792, %v794
    %v796 = vrot.slane %v136, %v795
    %v798 = vunpack.c.l.s4 842150450
    %v799 = vunpack.c.0.s8 %v798
    %v800 = vlaneseq
    %v801 = vshrl.u32 %v800, 7
    %v802 = vsub.s32 %v799, %v801
    %v803 = vrot.slane %v136, %v802
    %v805 = vunpack.c.l.s4 1414812756
    %v806 = vunpack.c.0.s8 %v805
    %v807 = vlaneseq
    %v808 = vshrl.u32 %v807, 7
    %v809 = vsub.s32 %v806, %v808
    %v810 = vrot.slane %v136, %v809
    %v812 = vunpack.c.l.s4 1987475062
    %v813 = vunpack.c.0.s8 %v812
    %v814 = vlaneseq
    %v815 = vshrl.u32 %v814, 7
    %v816 = vsub.s32 %v813, %v815
    %v817 = vrot.slane %v136, %v816
    %v819 = vunpack.c.l.s4 269488144
    %v820 = vunpack.c.0.s8 %v819
    %v821 = vlaneseq
    %v822 = vshrl.u32 %v821, 7
    %v823 = vsub.s32 %v820, %v822
    %v824 = vrot.slane %v139, %v823
    %v826 = vunpack.c.l.s4 842150450
    %v827 = vunpack.c.0.s8 %v826
    %v828 = vlaneseq
    %v829 = vshrl.u32 %v828, 7
    %v830 = vsub.s32 %v827, %v829
    %v831 = vrot.slane %v139, %v830
    %v833 = vunpack.c.l.s4 1414812756
    %v834 = vunpack.c.0.s8 %v833
    %v835 = vlaneseq
    %v836 = vshrl.u32 %v835, 7
    %v837 = vsub.s32 %v834, %v836
    %v838 = vrot.slane %v139, %v837
    %v840 = vunpack.c.l.s4 1987475062
    %v841 = vunpack.c.0.s8 %v840
    %v842 = vlaneseq
    %v843 = vshrl.u32 %v842, 7
    %v844 = vsub.s32 %v841, %v843
    %v845 = vrot.slane %v139, %v844
    %v847 = vunpack.c.l.s4 269488144
    %v848 = vunpack.c.0.s8 %v847
    %v849 = vlaneseq
    %v850 = vshrl.u32 %v849, 7
    %v851 = vsub.s32 %v848, %v850
    %v852 = vrot.slane %v142, %v851
    %v854 = vunpack.c.l.s4 842150450
    %v855 = vunpack.c.0.s8 %v854
    %v856 = vlaneseq
    %v857 = vshrl.u32 %v856, 7
    %v858 = vsub.s32 %v855, %v857
    %v859 = vrot.slane %v142, %v858
    %v861 = vunpack.c.l.s4 1414812756
    %v862 = vunpack.c.0.s8 %v861
    %v863 = vlaneseq
    %v864 = vshrl.u32 %v863, 7
    %v865 = vsub.s32 %v862, %v864
    %v866 = vrot.slane %v142, %v865
    %v868 = vunpack.c.l.s4 1987475062
    %v869 = vunpack.c.0.s8 %v868
    %v870 = vlaneseq
    %v871 = vshrl.u32 %v870, 7
    %v872 = vsub.s32 %v869, %v871
    %v873 = vrot.slane %v142, %v872
    %v875 = vunpack.c.l.s4 269488144
    %v876 = vunpack.c.0.s8 %v875
    %v877 = vlaneseq
    %v878 = vshrl.u32 %v877, 7
    %v879 = vsub.s32 %v876, %v878
    %v880 = vrot.slane %v145, %v879
    %v882 = vunpack.c.l.s4 842150450
    %v883 = vunpack.c.0.s8 %v882
    %v884 = vlaneseq
    %v885 = vshrl.u32 %v884, 7
    %v886 = vsub.s32 %v883, %v885
    %v887 = vrot.slane %v145, %v886
    %v889 = vunpack.c.l.s4 1414812756
    %v890 = vunpack.c.0.s8 %v889
    %v891 = vlaneseq
    %v892 = vshrl.u32 %v891, 7
    %v893 = vsub.s32 %v890, %v892
    %v894 = vrot.slane %v145, %v893
    %v896 = vunpack.c.l.s4 1987475062
    %v897 = vunpack.c.0.s8 %v896
    %v898 = vlaneseq
    %v899 = vshrl.u32 %v898, 7
    %v900 = vsub.s32 %v897, %v899
    %v901 = vrot.slane %v145, %v900
    %v903 = vunpack.c.l.s4 269488144
    %v904 = vunpack.c.0.s8 %v903
    %v905 = vlaneseq
    %v906 = vshrl.u32 %v905, 7
    %v907 = vsub.s32 %v904, %v906
    %v908 = vrot.slane %v148, %v907
    %v910 = vunpack.c.l.s4 842150450
    %v911 = vunpack.c.0.s8 %v910
    %v912 = vlaneseq
    %v913 = vshrl.u32 %v912, 7
    %v914 = vsub.s32 %v911, %v913
    %v915 = vrot.slane %v148, %v914
    %v917 = vunpack.c.l.s4 1414812756
    %v918 = vunpack.c.0.s8 %v917
    %v919 = vlaneseq
    %v920 = vshrl.u32 %v919, 7
    %v921 = vsub.s32 %v918, %v920
    %v922 = vrot.slane %v148, %v921
    %v924 = vunpack.c.l.s4 1987475062
    %v925 = vunpack.c.0.s8 %v924
    %v926 = vlaneseq
    %v927 = vshrl.u32 %v926, 7
    %v928 = vsub.s32 %v925, %v927
    %v929 = vrot.slane %v148, %v928
    %v931 = vunpack.c.l.s4 269488144
    %v932 = vunpack.c.0.s8 %v931
    %v933 = vlaneseq
    %v934 = vshrl.u32 %v933, 7
    %v935 = vsub.s32 %v932, %v934
    %v936 = vrot.slane %v151, %v935
    %v938 = vunpack.c.l.s4 842150450
    %v939 = vunpack.c.0.s8 %v938
    %v940 = vlaneseq
    %v941 = vshrl.u32 %v940, 7
    %v942 = vsub.s32 %v939, %v941
    %v943 = vrot.slane %v151, %v942
    %v945 = vunpack.c.l.s4 1414812756
    %v946 = vunpack.c.0.s8 %v945
    %v947 = vlaneseq
    %v948 = vshrl.u32 %v947, 7
    %v949 = vsub.s32 %v946, %v948
    %v950 = vrot.slane %v151, %v949
    %v952 = vunpack.c.l.s4 1987475062
    %v953 = vunpack.c.0.s8 %v952
    %v954 = vlaneseq
    %v955 = vshrl.u32 %v954, 7
    %v956 = vsub.s32 %v953, %v955
    %v957 = vrot.slane %v151, %v956
    %v959 = vunpack.c.l.s4 269488144
    %v960 = vunpack.c.0.s8 %v959
    %v961 = vlaneseq
    %v962 = vshrl.u32 %v961, 7
    %v963 = vsub.s32 %v960, %v962
    %v964 = vrot.slane %v154, %v963
    %v966 = vunpack.c.l.s4 842150450
    %v967 = vunpack.c.0.s8 %v966
    %v968 = vlaneseq
    %v969 = vshrl.u32 %v968, 7
    %v970 = vsub.s32 %v967, %v969
    %v971 = vrot.slane %v154, %v970
    %v973 = vunpack.c.l.s4 1414812756
    %v974 = vunpack.c.0.s8 %v973
    %v975 = vlaneseq
    %v976 = vshrl.u32 %v975, 7
    %v977 = vsub.s32 %v974, %v976
    %v978 = vrot.slane %v154, %v977
    %v980 = vunpack.c.l.s4 1987475062
    %v981 = vunpack.c.0.s8 %v980
    %v982 = vlaneseq
    %v983 = vshrl.u32 %v982, 7
    %v984 = vsub.s32 %v981, %v983
    %v985 = vrot.slane %v154, %v984
    %v987 = vunpack.c.l.s4 269488144
    %v988 = vunpack.c.0.s8 %v987
    %v989 = vlaneseq
    %v990 = vshrl.u32 %v989, 7
    %v991 = vsub.s32 %v988, %v990
    %v992 = vrot.slane %v157, %v991
    %v994 = vunpack.c.l.s4 842150450
    %v995 = vunpack.c.0.s8 %v994
    %v996 = vlaneseq
    %v997 = vshrl.u32 %v996, 7
    %v998 = vsub.s32 %v995, %v997
    %v999 = vrot.slane %v157, %v998
    %v1001 = vunpack.c.l.s4 1414812756
    %v1002 = vunpack.c.0.s8 %v1001
    %v1003 = vlaneseq
    %v1004 = vshrl.u32 %v1003, 7
    %v1005 = vsub.s32 %v1002, %v1004
    %v1006 = vrot.slane %v157, %v1005
    %v1008 = vunpack.c.l.s4 1987475062
    %v1009 = vunpack.c.0.s8 %v1008
    %v1010 = vlaneseq
    %v1011 = vshrl.u32 %v1010, 7
    %v1012 = vsub.s32 %v1009, %v1011
    %v1013 = vrot.slane %v157, %v1012
    %v1015 = vunpack.c.l.s4 269488144
    %v1016 = vunpack.c.0.s8 %v1015
    %v1017 = vlaneseq
    %v1018 = vshrl.u32 %v1017, 7
    %v1019 = vsub.s32 %v1016, %v1018
    %v1020 = vrot.slane %v160, %v1019
    %v1022 = vunpack.c.l.s4 842150450
    %v1023 = vunpack.c.0.s8 %v1022
    %v1024 = vlaneseq
    %v1025 = vshrl.u32 %v1024, 7
    %v1026 = vsub.s32 %v1023, %v1025
    %v1027 = vrot.slane %v160, %v1026
    %v1029 = vunpack.c.l.s4 1414812756
    %v1030 = vunpack.c.0.s8 %v1029
    %v1031 = vlaneseq
    %v1032 = vshrl.u32 %v1031, 7
    %v1033 = vsub.s32 %v1030, %v1032
    %v1034 = vrot.slane %v160, %v1033
    %v1036 = vunpack.c.l.s4 1987475062
    %v1037 = vunpack.c.0.s8 %v1036
    %v1038 = vlaneseq
    %v1039 = vshrl.u32 %v1038, 7
    %v1040 = vsub.s32 %v1037, %v1039
    %v1041 = vrot.slane %v160, %v1040
    %v1043 = vunpack.c.l.s4 269488144
    %v1044 = vunpack.c.0.s8 %v1043
    %v1045 = vlaneseq
    %v1046 = vshrl.u32 %v1045, 7
    %v1047 = vsub.s32 %v1044, %v1046
    %v1048 = vrot.slane %v163, %v1047
    %v1050 = vunpack.c.l.s4 842150450
    %v1051 = vunpack.c.0.s8 %v1050
    %v1052 = vlaneseq
    %v1053 = vshrl.u32 %v1052, 7
    %v1054 = vsub.s32 %v1051, %v1053
    %v1055 = vrot.slane %v163, %v1054
    %v1057 = vunpack.c.l.s4 1414812756
    %v1058 = vunpack.c.0.s8 %v1057
    %v1059 = vlaneseq
    %v1060 = vshrl.u32 %v1059, 7
    %v1061 = vsub.s32 %v1058, %v1060
    %v1062 = vrot.slane %v163, %v1061
    %v1064 = vunpack.c.l.s4 1987475062
    %v1065 = vunpack.c.0.s8 %v1064
    %v1066 = vlaneseq
    %v1067 = vshrl.u32 %v1066, 7
    %v1068 = vsub.s32 %v1065, %v1067
    %v1069 = vrot.slane %v163, %v1068
    %v1071 = vunpack.c.l.s4 269488144
    %v1072 = vunpack.c.0.s8 %v1071
    %v1073 = vlaneseq
    %v1074 = vshrl.u32 %v1073, 7
    %v1075 = vsub.s32 %v1072, %v1074
    %v1076 = vrot.slane %v166, %v1075
    %v1078 = vunpack.c.l.s4 842150450
    %v1079 = vunpack.c.0.s8 %v1078
    %v1080 = vlaneseq
    %v1081 = vshrl.u32 %v1080, 7
    %v1082 = vsub.s32 %v1079, %v1081
    %v1083 = vrot.slane %v166, %v1082
    %v1085 = vunpack.c.l.s4 1414812756
    %v1086 = vunpack.c.0.s8 %v1085
    %v1087 = vlaneseq
    %v1088 = vshrl.u32 %v1087, 7
    %v1089 = vsub.s32 %v1086, %v1088
    %v1090 = vrot.slane %v166, %v1089
    %v1092 = vunpack.c.l.s4 1987475062
    %v1093 = vunpack.c.0.s8 %v1092
    %v1094 = vlaneseq
    %v1095 = vshrl.u32 %v1094, 7
    %v1096 = vsub.s32 %v1093, %v1095
    %v1097 = vrot.slane %v166, %v1096
    %v1099 = vunpack.c.l.s4 269488144
    %v1100 = vunpack.c.0.s8 %v1099
    %v1101 = vlaneseq
    %v1102 = vshrl.u32 %v1101, 7
    %v1103 = vsub.s32 %v1100, %v1102
    %v1104 = vrot.slane %v169, %v1103
    %v1106 = vunpack.c.l.s4 842150450
    %v1107 = vunpack.c.0.s8 %v1106
    %v1108 = vlaneseq
    %v1109 = vshrl.u32 %v1108, 7
    %v1110 = vsub.s32 %v1107, %v1109
    %v1111 = vrot.slane %v169, %v1110
    %v1113 = vunpack.c.l.s4 1414812756
    %v1114 = vunpack.c.0.s8 %v1113
    %v1115 = vlaneseq
    %v1116 = vshrl.u32 %v1115, 7
    %v1117 = vsub.s32 %v1114, %v1116
    %v1118 = vrot.slane %v169, %v1117
    %v1120 = vunpack.c.l.s4 1987475062
    %v1121 = vunpack.c.0.s8 %v1120
    %v1122 = vlaneseq
    %v1123 = vshrl.u32 %v1122, 7
    %v1124 = vsub.s32 %v1121, %v1123
    %v1125 = vrot.slane %v169, %v1124
    %v1127 = vunpack.c.l.s4 269488144
    %v1128 = vunpack.c.0.s8 %v1127
    %v1129 = vlaneseq
    %v1130 = vshrl.u32 %v1129, 7
    %v1131 = vsub.s32 %v1128, %v1130
    %v1132 = vrot.slane %v172, %v1131
    %v1134 = vunpack.c.l.s4 842150450
    %v1135 = vunpack.c.0.s8 %v1134
    %v1136 = vlaneseq
    %v1137 = vshrl.u32 %v1136, 7
    %v1138 = vsub.s32 %v1135, %v1137
    %v1139 = vrot.slane %v172, %v1138
    %v1141 = vunpack.c.l.s4 1414812756
    %v1142 = vunpack.c.0.s8 %v1141
    %v1143 = vlaneseq
    %v1144 = vshrl.u32 %v1143, 7
    %v1145 = vsub.s32 %v1142, %v1144
    %v1146 = vrot.slane %v172, %v1145
    %v1148 = vunpack.c.l.s4 1987475062
    %v1149 = vunpack.c.0.s8 %v1148
    %v1150 = vlaneseq
    %v1151 = vshrl.u32 %v1150, 7
    %v1152 = vsub.s32 %v1149, %v1151
    %v1153 = vrot.slane %v172, %v1152
    %v1155 = vunpack.c.l.s4 269488144
    %v1156 = vunpack.c.0.s8 %v1155
    %v1157 = vlaneseq
    %v1158 = vshrl.u32 %v1157, 7
    %v1159 = vsub.s32 %v1156, %v1158
    %v1160 = vrot.slane %v175, %v1159
    %v1162 = vunpack.c.l.s4 842150450
    %v1163 = vunpack.c.0.s8 %v1162
    %v1164 = vlaneseq
    %v1165 = vshrl.u32 %v1164, 7
    %v1166 = vsub.s32 %v1163, %v1165
    %v1167 = vrot.slane %v175, %v1166
    %v1169 = vunpack.c.l.s4 1414812756
    %v1170 = vunpack.c.0.s8 %v1169
    %v1171 = vlaneseq
    %v1172 = vshrl.u32 %v1171, 7
    %v1173 = vsub.s32 %v1170, %v1172
    %v1174 = vrot.slane %v175, %v1173
    %v1176 = vunpack.c.l.s4 1987475062
    %v1177 = vunpack.c.0.s8 %v1176
    %v1178 = vlaneseq
    %v1179 = vshrl.u32 %v1178, 7
    %v1180 = vsub.s32 %v1177, %v1179
    %v1181 = vrot.slane %v175, %v1180
    %v1183 = vunpack.c.l.s4 269488144
    %v1184 = vunpack.c.0.s8 %v1183
    %v1185 = vlaneseq
    %v1186 = vshrl.u32 %v1185, 7
    %v1187 = vsub.s32 %v1184, %v1186
    %v1188 = vrot.slane %v178, %v1187
    %v1190 = vunpack.c.l.s4 842150450
    %v1191 = vunpack.c.0.s8 %v1190
    %v1192 = vlaneseq
    %v1193 = vshrl.u32 %v1192, 7
    %v1194 = vsub.s32 %v1191, %v1193
    %v1195 = vrot.slane %v178, %v1194
    %v1197 = vunpack.c.l.s4 1414812756
    %v1198 = vunpack.c.0.s8 %v1197
    %v1199 = vlaneseq
    %v1200 = vshrl.u32 %v1199, 7
    %v1201 = vsub.s32 %v1198, %v1200
    %v1202 = vrot.slane %v178, %v1201
    %v1204 = vunpack.c.l.s4 1987475062
    %v1205 = vunpack.c.0.s8 %v1204
    %v1206 = vlaneseq
    %v1207 = vshrl.u32 %v1206, 7
    %v1208 = vsub.s32 %v1205, %v1207
    %v1209 = vrot.slane %v178, %v1208
    %v1211 = vunpack.c.l.s4 269488144
    %v1212 = vunpack.c.0.s8 %v1211
    %v1213 = vlaneseq
    %v1214 = vshrl.u32 %v1213, 7
    %v1215 = vsub.s32 %v1212, %v1214
    %v1216 = vrot.slane %v181, %v1215
    %v1218 = vunpack.c.l.s4 842150450
    %v1219 = vunpack.c.0.s8 %v1218
    %v1220 = vlaneseq
    %v1221 = vshrl.u32 %v1220, 7
    %v1222 = vsub.s32 %v1219, %v1221
    %v1223 = vrot.slane %v181, %v1222
    %v1225 = vunpack.c.l.s4 1414812756
    %v1226 = vunpack.c.0.s8 %v1225
    %v1227 = vlaneseq
    %v1228 = vshrl.u32 %v1227, 7
    %v1229 = vsub.s32 %v1226, %v1228
    %v1230 = vrot.slane %v181, %v1229
    %v1232 = vunpack.c.l.s4 1987475062
    %v1233 = vunpack.c.0.s8 %v1232
    %v1234 = vlaneseq
    %v1235 = vshrl.u32 %v1234, 7
    %v1236 = vsub.s32 %v1233, %v1235
    %v1237 = vrot.slane %v181, %v1236
    %v1239 = vunpack.c.l.s4 269488144
    %v1240 = vunpack.c.0.s8 %v1239
    %v1241 = vlaneseq
    %v1242 = vshrl.u32 %v1241, 7
    %v1243 = vsub.s32 %v1240, %v1242
    %v1244 = vrot.slane %v184, %v1243
    %v1246 = vunpack.c.l.s4 842150450
    %v1247 = vunpack.c.0.s8 %v1246
    %v1248 = vlaneseq
    %v1249 = vshrl.u32 %v1248, 7
    %v1250 = vsub.s32 %v1247, %v1249
    %v1251 = vrot.slane %v184, %v1250
    %v1253 = vunpack.c.l.s4 1414812756
    %v1254 = vunpack.c.0.s8 %v1253
    %v1255 = vlaneseq
    %v1256 = vshrl.u32 %v1255, 7
    %v1257 = vsub.s32 %v1254, %v1256
    %v1258 = vrot.slane %v184, %v1257
    %v1260 = vunpack.c.l.s4 1987475062
    %v1261 = vunpack.c.0.s8 %v1260
    %v1262 = vlaneseq
    %v1263 = vshrl.u32 %v1262, 7
    %v1264 = vsub.s32 %v1261, %v1263
    %v1265 = vrot.slane %v184, %v1264
    %v1267 = vunpack.c.l.s4 269488144
    %v1268 = vunpack.c.0.s8 %v1267
    %v1269 = vlaneseq
    %v1270 = vshrl.u32 %v1269, 7
    %v1271 = vsub.s32 %v1268, %v1270
    %v1272 = vrot.slane %v187, %v1271
    %v1274 = vunpack.c.l.s4 842150450
    %v1275 = vunpack.c.0.s8 %v1274
    %v1276 = vlaneseq
    %v1277 = vshrl.u32 %v1276, 7
    %v1278 = vsub.s32 %v1275, %v1277
    %v1279 = vrot.slane %v187, %v1278
    %v1281 = vunpack.c.l.s4 1414812756
    %v1282 = vunpack.c.0.s8 %v1281
    %v1283 = vlaneseq
    %v1284 = vshrl.u32 %v1283, 7
    %v1285 = vsub.s32 %v1282, %v1284
    %v1286 = vrot.slane %v187, %v1285
    %v1288 = vunpack.c.l.s4 1987475062
    %v1289 = vunpack.c.0.s8 %v1288
    %v1290 = vlaneseq
    %v1291 = vshrl.u32 %v1290, 7
    %v1292 = vsub.s32 %v1289, %v1291
    %v1293 = vrot.slane %v187, %v1292
    %v1295 = vunpack.c.l.s4 269488144
    %v1296 = vunpack.c.0.s8 %v1295
    %v1297 = vlaneseq
    %v1298 = vshrl.u32 %v1297, 7
    %v1299 = vsub.s32 %v1296, %v1298
    %v1300 = vrot.slane %v190, %v1299
    %v1302 = vunpack.c.l.s4 842150450
    %v1303 = vunpack.c.0.s8 %v1302
    %v1304 = vlaneseq
    %v1305 = vshrl.u32 %v1304, 7
    %v1306 = vsub.s32 %v1303, %v1305
    %v1307 = vrot.slane %v190, %v1306
    %v1309 = vunpack.c.l.s4 1414812756
    %v1310 = vunpack.c.0.s8 %v1309
    %v1311 = vlaneseq
    %v1312 = vshrl.u32 %v1311, 7
    %v1313 = vsub.s32 %v1310, %v1312
    %v1314 = vrot.slane %v190, %v1313
    %v1316 = vunpack.c.l.s4 1987475062
    %v1317 = vunpack.c.0.s8 %v1316
    %v1318 = vlaneseq
    %v1319 = vshrl.u32 %v1318, 7
    %v1320 = vsub.s32 %v1317, %v1319
    %v1321 = vrot.slane %v190, %v1320
    %v1323 = vunpack.c.l.s4 269488144
    %v1324 = vunpack.c.0.s8 %v1323
    %v1325 = vlaneseq
    %v1326 = vshrl.u32 %v1325, 7
    %v1327 = vsub.s32 %v1324, %v1326
    %v1328 = vrot.slane %v193, %v1327
    %v1330 = vunpack.c.l.s4 842150450
    %v1331 = vunpack.c.0.s8 %v1330
    %v1332 = vlaneseq
    %v1333 = vshrl.u32 %v1332, 7
    %v1334 = vsub.s32 %v1331, %v1333
    %v1335 = vrot.slane %v193, %v1334
    %v1337 = vunpack.c.l.s4 1414812756
    %v1338 = vunpack.c.0.s8 %v1337
    %v1339 = vlaneseq
    %v1340 = vshrl.u32 %v1339, 7
    %v1341 = vsub.s32 %v1338, %v1340
    %v1342 = vrot.slane %v193, %v1341
    %v1344 = vunpack.c.l.s4 1987475062
    %v1345 = vunpack.c.0.s8 %v1344
    %v1346 = vlaneseq
    %v1347 = vshrl.u32 %v1346, 7
    %v1348 = vsub.s32 %v1345, %v1347
    %v1349 = vrot.slane %v193, %v1348
    %v1351 = vunpack.c.l.s4 269488144
    %v1352 = vunpack.c.0.s8 %v1351
    %v1353 = vlaneseq
    %v1354 = vshrl.u32 %v1353, 7
    %v1355 = vsub.s32 %v1352, %v1354
    %v1356 = vrot.slane %v196, %v1355
    %v1358 = vunpack.c.l.s4 842150450
    %v1359 = vunpack.c.0.s8 %v1358
    %v1360 = vlaneseq
    %v1361 = vshrl.u32 %v1360, 7
    %v1362 = vsub.s32 %v1359, %v1361
    %v1363 = vrot.slane %v196, %v1362
    %v1365 = vunpack.c.l.s4 1414812756
    %v1366 = vunpack.c.0.s8 %v1365
    %v1367 = vlaneseq
    %v1368 = vshrl.u32 %v1367, 7
    %v1369 = vsub.s32 %v1366, %v1368
    %v1370 = vrot.slane %v196, %v1369
    %v1372 = vunpack.c.l.s4 1987475062
    %v1373 = vunpack.c.0.s8 %v1372
    %v1374 = vlaneseq
    %v1375 = vshrl.u32 %v1374, 7
    %v1376 = vsub.s32 %v1373, %v1375
    %v1377 = vrot.slane %v196, %v1376
    %v1379 = vunpack.c.l.s4 269488144
    %v1380 = vunpack.c.0.s8 %v1379
    %v1381 = vlaneseq
    %v1382 = vshrl.u32 %v1381, 7
    %v1383 = vsub.s32 %v1380, %v1382
    %v1384 = vrot.slane %v199, %v1383
    %v1386 = vunpack.c.l.s4 842150450
    %v1387 = vunpack.c.0.s8 %v1386
    %v1388 = vlaneseq
    %v1389 = vshrl.u32 %v1388, 7
    %v1390 = vsub.s32 %v1387, %v1389
    %v1391 = vrot.slane %v199, %v1390
    %v1393 = vunpack.c.l.s4 1414812756
    %v1394 = vunpack.c.0.s8 %v1393
    %v1395 = vlaneseq
    %v1396 = vshrl.u32 %v1395, 7
    %v1397 = vsub.s32 %v1394, %v1396
    %v1398 = vrot.slane %v199, %v1397
    %v1400 = vunpack.c.l.s4 1987475062
    %v1401 = vunpack.c.0.s8 %v1400
    %v1402 = vlaneseq
    %v1403 = vshrl.u32 %v1402, 7
    %v1404 = vsub.s32 %v1401, %v1403
    %v1405 = vrot.slane %v199, %v1404
    %v1407 = vunpack.c.l.s4 269488144
    %v1408 = vunpack.c.0.s8 %v1407
    %v1409 = vlaneseq
    %v1410 = vshrl.u32 %v1409, 7
    %v1411 = vsub.s32 %v1408, %v1410
    %v1412 = vrot.slane %v202, %v1411
    %v1414 = vunpack.c.l.s4 842150450
    %v1415 = vunpack.c.0.s8 %v1414
    %v1416 = vlaneseq
    %v1417 = vshrl.u32 %v1416, 7
    %v1418 = vsub.s32 %v1415, %v1417
    %v1419 = vrot.slane %v202, %v1418
    %v1421 = vunpack.c.l.s4 1414812756
    %v1422 = vunpack.c.0.s8 %v1421
    %v1423 = vlaneseq
    %v1424 = vshrl.u32 %v1423, 7
    %v1425 = vsub.s32 %v1422, %v1424
    %v1426 = vrot.slane %v202, %v1425
    %v1428 = vunpack.c.l.s4 1987475062
    %v1429 = vunpack.c.0.s8 %v1428
    %v1430 = vlaneseq
    %v1431 = vshrl.u32 %v1430, 7
    %v1432 = vsub.s32 %v1429, %v1431
    %v1433 = vrot.slane %v202, %v1432
    %v1435 = vunpack.c.l.s4 269488144
    %v1436 = vunpack.c.0.s8 %v1435
    %v1437 = vlaneseq
    %v1438 = vshrl.u32 %v1437, 7
    %v1439 = vsub.s32 %v1436, %v1438
    %v1440 = vrot.slane %v205, %v1439
    %v1442 = vunpack.c.l.s4 842150450
    %v1443 = vunpack.c.0.s8 %v1442
    %v1444 = vlaneseq
    %v1445 = vshrl.u32 %v1444, 7
    %v1446 = vsub.s32 %v1443, %v1445
    %v1447 = vrot.slane %v205, %v1446
    %v1449 = vunpack.c.l.s4 1414812756
    %v1450 = vunpack.c.0.s8 %v1449
    %v1451 = vlaneseq
    %v1452 = vshrl.u32 %v1451, 7
    %v1453 = vsub.s32 %v1450, %v1452
    %v1454 = vrot.slane %v205, %v1453
    %v1456 = vunpack.c.l.s4 1987475062
    %v1457 = vunpack.c.0.s8 %v1456
    %v1458 = vlaneseq
    %v1459 = vshrl.u32 %v1458, 7
    %v1460 = vsub.s32 %v1457, %v1459
    %v1461 = vrot.slane %v205, %v1460
    %v1463 = vunpack.c.l.s4 269488144
    %v1464 = vunpack.c.0.s8 %v1463
    %v1465 = vlaneseq
    %v1466 = vshrl.u32 %v1465, 7
    %v1467 = vsub.s32 %v1464, %v1466
    %v1468 = vrot.slane %v208, %v1467
    %v1470 = vunpack.c.l.s4 842150450
    %v1471 = vunpack.c.0.s8 %v1470
    %v1472 = vlaneseq
    %v1473 = vshrl.u32 %v1472, 7
    %v1474 = vsub.s32 %v1471, %v1473
    %v1475 = vrot.slane %v208, %v1474
    %v1477 = vunpack.c.l.s4 1414812756
    %v1478 = vunpack.c.0.s8 %v1477
    %v1479 = vlaneseq
    %v1480 = vshrl.u32 %v1479, 7
    %v1481 = vsub.s32 %v1478, %v1480
    %v1482 = vrot.slane %v208, %v1481
    %v1484 = vunpack.c.l.s4 1987475062
    %v1485 = vunpack.c.0.s8 %v1484
    %v1486 = vlaneseq
    %v1487 = vshrl.u32 %v1486, 7
    %v1488 = vsub.s32 %v1485, %v1487
    %v1489 = vrot.slane %v208, %v1488
    %v1491 = vunpack.c.l.s4 269488144
    %v1492 = vunpack.c.0.s8 %v1491
    %v1493 = vlaneseq
    %v1494 = vshrl.u32 %v1493, 7
    %v1495 = vsub.s32 %v1492, %v1494
    %v1496 = vrot.slane %v211, %v1495
    %v1498 = vunpack.c.l.s4 842150450
    %v1499 = vunpack.c.0.s8 %v1498
    %v1500 = vlaneseq
    %v1501 = vshrl.u32 %v1500, 7
    %v1502 = vsub.s32 %v1499, %v1501
    %v1503 = vrot.slane %v211, %v1502
    %v1505 = vunpack.c.l.s4 1414812756
    %v1506 = vunpack.c.0.s8 %v1505
    %v1507 = vlaneseq
    %v1508 = vshrl.u32 %v1507, 7
    %v1509 = vsub.s32 %v1506, %v1508
    %v1510 = vrot.slane %v211, %v1509
    %v1512 = vunpack.c.l.s4 1987475062
    %v1513 = vunpack.c.0.s8 %v1512
    %v1514 = vlaneseq
    %v1515 = vshrl.u32 %v1514, 7
    %v1516 = vsub.s32 %v1513, %v1515
    %v1517 = vrot.slane %v211, %v1516
    %v1519 = vunpack.c.l.s4 269488144
    %v1520 = vunpack.c.0.s8 %v1519
    %v1521 = vlaneseq
    %v1522 = vshrl.u32 %v1521, 7
    %v1523 = vsub.s32 %v1520, %v1522
    %v1524 = vrot.slane %v214, %v1523
    %v1526 = vunpack.c.l.s4 842150450
    %v1527 = vunpack.c.0.s8 %v1526
    %v1528 = vlaneseq
    %v1529 = vshrl.u32 %v1528, 7
    %v1530 = vsub.s32 %v1527, %v1529
    %v1531 = vrot.slane %v214, %v1530
    %v1533 = vunpack.c.l.s4 1414812756
    %v1534 = vunpack.c.0.s8 %v1533
    %v1535 = vlaneseq
    %v1536 = vshrl.u32 %v1535, 7
    %v1537 = vsub.s32 %v1534, %v1536
    %v1538 = vrot.slane %v214, %v1537
    %v1540 = vunpack.c.l.s4 1987475062
    %v1541 = vunpack.c.0.s8 %v1540
    %v1542 = vlaneseq
    %v1543 = vshrl.u32 %v1542, 7
    %v1544 = vsub.s32 %v1541, %v1543
    %v1545 = vrot.slane %v214, %v1544
    %v1547 = vunpack.c.l.s4 269488144
    %v1548 = vunpack.c.0.s8 %v1547
    %v1549 = vlaneseq
    %v1550 = vshrl.u32 %v1549, 7
    %v1551 = vsub.s32 %v1548, %v1550
    %v1552 = vrot.slane %v217, %v1551
    %v1554 = vunpack.c.l.s4 842150450
    %v1555 = vunpack.c.0.s8 %v1554
    %v1556 = vlaneseq
    %v1557 = vshrl.u32 %v1556, 7
    %v1558 = vsub.s32 %v1555, %v1557
    %v1559 = vrot.slane %v217, %v1558
    %v1561 = vunpack.c.l.s4 1414812756
    %v1562 = vunpack.c.0.s8 %v1561
    %v1563 = vlaneseq
    %v1564 = vshrl.u32 %v1563, 7
    %v1565 = vsub.s32 %v1562, %v1564
    %v1566 = vrot.slane %v217, %v1565
    %v1568 = vunpack.c.l.s4 1987475062
    %v1569 = vunpack.c.0.s8 %v1568
    %v1570 = vlaneseq
    %v1571 = vshrl.u32 %v1570, 7
    %v1572 = vsub.s32 %v1569, %v1571
    %v1573 = vrot.slane %v217, %v1572
    %v1575 = vunpack.c.l.s4 269488144
    %v1576 = vunpack.c.0.s8 %v1575
    %v1577 = vlaneseq
    %v1578 = vshrl.u32 %v1577, 7
    %v1579 = vsub.s32 %v1576, %v1578
    %v1580 = vrot.slane %v220, %v1579
    %v1582 = vunpack.c.l.s4 842150450
    %v1583 = vunpack.c.0.s8 %v1582
    %v1584 = vlaneseq
    %v1585 = vshrl.u32 %v1584, 7
    %v1586 = vsub.s32 %v1583, %v1585
    %v1587 = vrot.slane %v220, %v1586
    %v1589 = vunpack.c.l.s4 1414812756
    %v1590 = vunpack.c.0.s8 %v1589
    %v1591 = vlaneseq
    %v1592 = vshrl.u32 %v1591, 7
    %v1593 = vsub.s32 %v1590, %v1592
    %v1594 = vrot.slane %v220, %v1593
    %v1596 = vunpack.c.l.s4 1987475062
    %v1597 = vunpack.c.0.s8 %v1596
    %v1598 = vlaneseq
    %v1599 = vshrl.u32 %v1598, 7
    %v1600 = vsub.s32 %v1597, %v1599
    %v1601 = vrot.slane %v220, %v1600
    %v1603 = vunpack.c.l.s4 269488144
    %v1604 = vunpack.c.0.s8 %v1603
    %v1605 = vlaneseq
    %v1606 = vshrl.u32 %v1605, 7
    %v1607 = vsub.s32 %v1604, %v1606
    %v1608 = vrot.slane %v223, %v1607
    %v1610 = vunpack.c.l.s4 842150450
    %v1611 = vunpack.c.0.s8 %v1610
    %v1612 = vlaneseq
    %v1613 = vshrl.u32 %v1612, 7
    %v1614 = vsub.s32 %v1611, %v1613
    %v1615 = vrot.slane %v223, %v1614
    %v1617 = vunpack.c.l.s4 1414812756
    %v1618 = vunpack.c.0.s8 %v1617
    %v1619 = vlaneseq
    %v1620 = vshrl.u32 %v1619, 7
    %v1621 = vsub.s32 %v1618, %v1620
    %v1622 = vrot.slane %v223, %v1621
    %v1624 = vunpack.c.l.s4 1987475062
    %v1625 = vunpack.c.0.s8 %v1624
    %v1626 = vlaneseq
    %v1627 = vshrl.u32 %v1626, 7
    %v1628 = vsub.s32 %v1625, %v1627
    %v1629 = vrot.slane %v223, %v1628
    %v1631 = vunpack.c.l.s4 269488144
    %v1632 = vunpack.c.0.s8 %v1631
    %v1633 = vlaneseq
    %v1634 = vshrl.u32 %v1633, 7
    %v1635 = vsub.s32 %v1632, %v1634
    %v1636 = vrot.slane %v226, %v1635
    %v1638 = vunpack.c.l.s4 842150450
    %v1639 = vunpack.c.0.s8 %v1638
    %v1640 = vlaneseq
    %v1641 = vshrl.u32 %v1640, 7
    %v1642 = vsub.s32 %v1639, %v1641
    %v1643 = vrot.slane %v226, %v1642
    %v1645 = vunpack.c.l.s4 1414812756
    %v1646 = vunpack.c.0.s8 %v1645
    %v1647 = vlaneseq
    %v1648 = vshrl.u32 %v1647, 7
    %v1649 = vsub.s32 %v1646, %v1648
    %v1650 = vrot.slane %v226, %v1649
    %v1652 = vunpack.c.l.s4 1987475062
    %v1653 = vunpack.c.0.s8 %v1652
    %v1654 = vlaneseq
    %v1655 = vshrl.u32 %v1654, 7
    %v1656 = vsub.s32 %v1653, %v1655
    %v1657 = vrot.slane %v226, %v1656
    %v1659 = vunpack.c.l.s4 269488144
    %v1660 = vunpack.c.0.s8 %v1659
    %v1661 = vlaneseq
    %v1662 = vshrl.u32 %v1661, 7
    %v1663 = vsub.s32 %v1660, %v1662
    %v1664 = vrot.slane %v229, %v1663
    %v1666 = vunpack.c.l.s4 842150450
    %v1667 = vunpack.c.0.s8 %v1666
    %v1668 = vlaneseq
    %v1669 = vshrl.u32 %v1668, 7
    %v1670 = vsub.s32 %v1667, %v1669
    %v1671 = vrot.slane %v229, %v1670
    %v1673 = vunpack.c.l.s4 1414812756
    %v1674 = vunpack.c.0.s8 %v1673
    %v1675 = vlaneseq
    %v1676 = vshrl.u32 %v1675, 7
    %v1677 = vsub.s32 %v1674, %v1676
    %v1678 = vrot.slane %v229, %v1677
    %v1680 = vunpack.c.l.s4 1987475062
    %v1681 = vunpack.c.0.s8 %v1680
    %v1682 = vlaneseq
    %v1683 = vshrl.u32 %v1682, 7
    %v1684 = vsub.s32 %v1681, %v1683
    %v1685 = vrot.slane %v229, %v1684
    %v1687 = vunpack.c.l.s4 269488144
    %v1688 = vunpack.c.0.s8 %v1687
    %v1689 = vlaneseq
    %v1690 = vshrl.u32 %v1689, 7
    %v1691 = vsub.s32 %v1688, %v1690
    %v1692 = vrot.slane %v232, %v1691
    %v1694 = vunpack.c.l.s4 842150450
    %v1695 = vunpack.c.0.s8 %v1694
    %v1696 = vlaneseq
    %v1697 = vshrl.u32 %v1696, 7
    %v1698 = vsub.s32 %v1695, %v1697
    %v1699 = vrot.slane %v232, %v1698
    %v1701 = vunpack.c.l.s4 1414812756
    %v1702 = vunpack.c.0.s8 %v1701
    %v1703 = vlaneseq
    %v1704 = vshrl.u32 %v1703, 7
    %v1705 = vsub.s32 %v1702, %v1704
    %v1706 = vrot.slane %v232, %v1705
    %v1708 = vunpack.c.l.s4 1987475062
    %v1709 = vunpack.c.0.s8 %v1708
    %v1710 = vlaneseq
    %v1711 = vshrl.u32 %v1710, 7
    %v1712 = vsub.s32 %v1709, %v1711
    %v1713 = vrot.slane %v232, %v1712
    %v1715 = vunpack.c.l.s4 269488144
    %v1716 = vunpack.c.0.s8 %v1715
    %v1717 = vlaneseq
    %v1718 = vshrl.u32 %v1717, 7
    %v1719 = vsub.s32 %v1716, %v1718
    %v1720 = vrot.slane %v235, %v1719
    %v1722 = vunpack.c.l.s4 842150450
    %v1723 = vunpack.c.0.s8 %v1722
    %v1724 = vlaneseq
    %v1725 = vshrl.u32 %v1724, 7
    %v1726 = vsub.s32 %v1723, %v1725
    %v1727 = vrot.slane %v235, %v1726
    %v1729 = vunpack.c.l.s4 1414812756
    %v1730 = vunpack.c.0.s8 %v1729
    %v1731 = vlaneseq
    %v1732 = vshrl.u32 %v1731, 7
    %v1733 = vsub.s32 %v1730, %v1732
    %v1734 = vrot.slane %v235, %v1733
    %v1736 = vunpack.c.l.s4 1987475062
    %v1737 = vunpack.c.0.s8 %v1736
    %v1738 = vlaneseq
    %v1739 = vshrl.u32 %v1738, 7
    %v1740 = vsub.s32 %v1737, %v1739
    %v1741 = vrot.slane %v235, %v1740
    %v1743 = vunpack.c.l.s4 269488144
    %v1744 = vunpack.c.0.s8 %v1743
    %v1745 = vlaneseq
    %v1746 = vshrl.u32 %v1745, 7
    %v1747 = vsub.s32 %v1744, %v1746
    %v1748 = vrot.slane %v238, %v1747
    %v1750 = vunpack.c.l.s4 842150450
    %v1751 = vunpack.c.0.s8 %v1750
    %v1752 = vlaneseq
    %v1753 = vshrl.u32 %v1752, 7
    %v1754 = vsub.s32 %v1751, %v1753
    %v1755 = vrot.slane %v238, %v1754
    %v1757 = vunpack.c.l.s4 1414812756
    %v1758 = vunpack.c.0.s8 %v1757
    %v1759 = vlaneseq
    %v1760 = vshrl.u32 %v1759, 7
    %v1761 = vsub.s32 %v1758, %v1760
    %v1762 = vrot.slane %v238, %v1761
    %v1764 = vunpack.c.l.s4 1987475062
    %v1765 = vunpack.c.0.s8 %v1764
    %v1766 = vlaneseq
    %v1767 = vshrl.u32 %v1766, 7
    %v1768 = vsub.s32 %v1765, %v1767
    %v1769 = vrot.slane %v238, %v1768
    %v1771 = vunpack.c.l.s4 269488144
    %v1772 = vunpack.c.0.s8 %v1771
    %v1773 = vlaneseq
    %v1774 = vshrl.u32 %v1773, 7
    %v1775 = vsub.s32 %v1772, %v1774
    %v1776 = vrot.slane %v241, %v1775
    %v1778 = vunpack.c.l.s4 842150450
    %v1779 = vunpack.c.0.s8 %v1778
    %v1780 = vlaneseq
    %v1781 = vshrl.u32 %v1780, 7
    %v1782 = vsub.s32 %v1779, %v1781
    %v1783 = vrot.slane %v241, %v1782
    %v1785 = vunpack.c.l.s4 1414812756
    %v1786 = vunpack.c.0.s8 %v1785
    %v1787 = vlaneseq
    %v1788 = vshrl.u32 %v1787, 7
    %v1789 = vsub.s32 %v1786, %v1788
    %v1790 = vrot.slane %v241, %v1789
    %v1792 = vunpack.c.l.s4 1987475062
    %v1793 = vunpack.c.0.s8 %v1792
    %v1794 = vlaneseq
    %v1795 = vshrl.u32 %v1794, 7
    %v1796 = vsub.s32 %v1793, %v1795
    %v1797 = vrot.slane %v241, %v1796
    %v1799 = vunpack.c.l.s4 269488144
    %v1800 = vunpack.c.0.s8 %v1799
    %v1801 = vlaneseq
    %v1802 = vshrl.u32 %v1801, 7
    %v1803 = vsub.s32 %v1800, %v1802
    %v1804 = vrot.slane %v244, %v1803
    %v1806 = vunpack.c.l.s4 842150450
    %v1807 = vunpack.c.0.s8 %v1806
    %v1808 = vlaneseq
    %v1809 = vshrl.u32 %v1808, 7
    %v1810 = vsub.s32 %v1807, %v1809
    %v1811 = vrot.slane %v244, %v1810
    %v1813 = vunpack.c.l.s4 1414812756
    %v1814 = vunpack.c.0.s8 %v1813
    %v1815 = vlaneseq
    %v1816 = vshrl.u32 %v1815, 7
    %v1817 = vsub.s32 %v1814, %v1816
    %v1818 = vrot.slane %v244, %v1817
    %v1820 = vunpack.c.l.s4 1987475062
    %v1821 = vunpack.c.0.s8 %v1820
    %v1822 = vlaneseq
    %v1823 = vshrl.u32 %v1822, 7
    %v1824 = vsub.s32 %v1821, %v1823
    %v1825 = vrot.slane %v244, %v1824
    %v1827 = vunpack.c.l.s4 269488144
    %v1828 = vunpack.c.0.s8 %v1827
    %v1829 = vlaneseq
    %v1830 = vshrl.u32 %v1829, 7
    %v1831 = vsub.s32 %v1828, %v1830
    %v1832 = vrot.slane %v247, %v1831
    %v1834 = vunpack.c.l.s4 842150450
    %v1835 = vunpack.c.0.s8 %v1834
    %v1836 = vlaneseq
    %v1837 = vshrl.u32 %v1836, 7
    %v1838 = vsub.s32 %v1835, %v1837
    %v1839 = vrot.slane %v247, %v1838
    %v1841 = vunpack.c.l.s4 1414812756
    %v1842 = vunpack.c.0.s8 %v1841
    %v1843 = vlaneseq
    %v1844 = vshrl.u32 %v1843, 7
    %v1845 = vsub.s32 %v1842, %v1844
    %v1846 = vrot.slane %v247, %v1845
    %v1848 = vunpack.c.l.s4 1987475062
    %v1849 = vunpack.c.0.s8 %v1848
    %v1850 = vlaneseq
    %v1851 = vshrl.u32 %v1850, 7
    %v1852 = vsub.s32 %v1849, %v1851
    %v1853 = vrot.slane %v247, %v1852
    %v1855 = vunpack.c.l.s4 269488144
    %v1856 = vunpack.c.0.s8 %v1855
    %v1857 = vlaneseq
    %v1858 = vshrl.u32 %v1857, 7
    %v1859 = vsub.s32 %v1856, %v1858
    %v1860 = vrot.slane %v250, %v1859
    %v1862 = vunpack.c.l.s4 842150450
    %v1863 = vunpack.c.0.s8 %v1862
    %v1864 = vlaneseq
    %v1865 = vshrl.u32 %v1864, 7
    %v1866 = vsub.s32 %v1863, %v1865
    %v1867 = vrot.slane %v250, %v1866
    %v1869 = vunpack.c.l.s4 1414812756
    %v1870 = vunpack.c.0.s8 %v1869
    %v1871 = vlaneseq
    %v1872 = vshrl.u32 %v1871, 7
    %v1873 = vsub.s32 %v1870, %v1872
    %v1874 = vrot.slane %v250, %v1873
    %v1876 = vunpack.c.l.s4 1987475062
    %v1877 = vunpack.c.0.s8 %v1876
    %v1878 = vlaneseq
    %v1879 = vshrl.u32 %v1878, 7
    %v1880 = vsub.s32 %v1877, %v1879
    %v1881 = vrot.slane %v250, %v1880
    %v1883 = vunpack.c.l.s4 269488144
    %v1884 = vunpack.c.0.s8 %v1883
    %v1885 = vlaneseq
    %v1886 = vshrl.u32 %v1885, 7
    %v1887 = vsub.s32 %v1884, %v1886
    %v1888 = vrot.slane %v253, %v1887
    %v1890 = vunpack.c.l.s4 842150450
    %v1891 = vunpack.c.0.s8 %v1890
    %v1892 = vlaneseq
    %v1893 = vshrl.u32 %v1892, 7
    %v1894 = vsub.s32 %v1891, %v1893
    %v1895 = vrot.slane %v253, %v1894
    %v1897 = vunpack.c.l.s4 1414812756
    %v1898 = vunpack.c.0.s8 %v1897
    %v1899 = vlaneseq
    %v1900 = vshrl.u32 %v1899, 7
    %v1901 = vsub.s32 %v1898, %v1900
    %v1902 = vrot.slane %v253, %v1901
    %v1904 = vunpack.c.l.s4 1987475062
    %v1905 = vunpack.c.0.s8 %v1904
    %v1906 = vlaneseq
    %v1907 = vshrl.u32 %v1906, 7
    %v1908 = vsub.s32 %v1905, %v1907
    %v1909 = vrot.slane %v253, %v1908
    %v1911 = vunpack.c.l.s4 269488144
    %v1912 = vunpack.c.0.s8 %v1911
    %v1913 = vlaneseq
    %v1914 = vshrl.u32 %v1913, 7
    %v1915 = vsub.s32 %v1912, %v1914
    %v1916 = vrot.slane %v256, %v1915
    %v1918 = vunpack.c.l.s4 842150450
    %v1919 = vunpack.c.0.s8 %v1918
    %v1920 = vlaneseq
    %v1921 = vshrl.u32 %v1920, 7
    %v1922 = vsub.s32 %v1919, %v1921
    %v1923 = vrot.slane %v256, %v1922
    %v1925 = vunpack.c.l.s4 1414812756
    %v1926 = vunpack.c.0.s8 %v1925
    %v1927 = vlaneseq
    %v1928 = vshrl.u32 %v1927, 7
    %v1929 = vsub.s32 %v1926, %v1928
    %v1930 = vrot.slane %v256, %v1929
    %v1932 = vunpack.c.l.s4 1987475062
    %v1933 = vunpack.c.0.s8 %v1932
    %v1934 = vlaneseq
    %v1935 = vshrl.u32 %v1934, 7
    %v1936 = vsub.s32 %v1933, %v1935
    %v1937 = vrot.slane %v256, %v1936
    %v1939 = vunpack.c.l.s4 269488144
    %v1940 = vunpack.c.0.s8 %v1939
    %v1941 = vlaneseq
    %v1942 = vshrl.u32 %v1941, 7
    %v1943 = vsub.s32 %v1940, %v1942
    %v1944 = vrot.slane %v259, %v1943
    %v1946 = vunpack.c.l.s4 842150450
    %v1947 = vunpack.c.0.s8 %v1946
    %v1948 = vlaneseq
    %v1949 = vshrl.u32 %v1948, 7
    %v1950 = vsub.s32 %v1947, %v1949
    %v1951 = vrot.slane %v259, %v1950
    %v1953 = vunpack.c.l.s4 1414812756
    %v1954 = vunpack.c.0.s8 %v1953
    %v1955 = vlaneseq
    %v1956 = vshrl.u32 %v1955, 7
    %v1957 = vsub.s32 %v1954, %v1956
    %v1958 = vrot.slane %v259, %v1957
    %v1960 = vunpack.c.l.s4 1987475062
    %v1961 = vunpack.c.0.s8 %v1960
    %v1962 = vlaneseq
    %v1963 = vshrl.u32 %v1962, 7
    %v1964 = vsub.s32 %v1961, %v1963
    %v1965 = vrot.slane %v259, %v1964
    %v1967 = vunpack.c.l.s4 269488144
    %v1968 = vunpack.c.0.s8 %v1967
    %v1969 = vlaneseq
    %v1970 = vshrl.u32 %v1969, 7
    %v1971 = vsub.s32 %v1968, %v1970
    %v1972 = vrot.slane %v262, %v1971
    %v1974 = vunpack.c.l.s4 842150450
    %v1975 = vunpack.c.0.s8 %v1974
    %v1976 = vlaneseq
    %v1977 = vshrl.u32 %v1976, 7
    %v1978 = vsub.s32 %v1975, %v1977
    %v1979 = vrot.slane %v262, %v1978
    %v1981 = vunpack.c.l.s4 1414812756
    %v1982 = vunpack.c.0.s8 %v1981
    %v1983 = vlaneseq
    %v1984 = vshrl.u32 %v1983, 7
    %v1985 = vsub.s32 %v1982, %v1984
    %v1986 = vrot.slane %v262, %v1985
    %v1988 = vunpack.c.l.s4 1987475062
    %v1989 = vunpack.c.0.s8 %v1988
    %v1990 = vlaneseq
    %v1991 = vshrl.u32 %v1990, 7
    %v1992 = vsub.s32 %v1989, %v1991
    %v1993 = vrot.slane %v262, %v1992
    %v1995 = vunpack.c.l.s4 269488144
    %v1996 = vunpack.c.0.s8 %v1995
    %v1997 = vlaneseq
    %v1998 = vshrl.u32 %v1997, 7
    %v1999 = vsub.s32 %v1996, %v1998
    %v2000 = vrot.slane %v265, %v1999
    %v2002 = vunpack.c.l.s4 842150450
    %v2003 = vunpack.c.0.s8 %v2002
    %v2004 = vlaneseq
    %v2005 = vshrl.u32 %v2004, 7
    %v2006 = vsub.s32 %v2003, %v2005
    %v2007 = vrot.slane %v265, %v2006
    %v2009 = vunpack.c.l.s4 1414812756
    %v2010 = vunpack.c.0.s8 %v2009
    %v2011 = vlaneseq
    %v2012 = vshrl.u32 %v2011, 7
    %v2013 = vsub.s32 %v2010, %v2012
    %v2014 = vrot.slane %v265, %v2013
    %v2016 = vunpack.c.l.s4 1987475062
    %v2017 = vunpack.c.0.s8 %v2016
    %v2018 = vlaneseq
    %v2019 = vshrl.u32 %v2018, 7
    %v2020 = vsub.s32 %v2017, %v2019
    %v2021 = vrot.slane %v265, %v2020
    %v2023 = vunpack.c.l.s4 269488144
    %v2024 = vunpack.c.0.s8 %v2023
    %v2025 = vlaneseq
    %v2026 = vshrl.u32 %v2025, 7
    %v2027 = vsub.s32 %v2024, %v2026
    %v2028 = vrot.slane %v268, %v2027
    %v2030 = vunpack.c.l.s4 842150450
    %v2031 = vunpack.c.0.s8 %v2030
    %v2032 = vlaneseq
    %v2033 = vshrl.u32 %v2032, 7
    %v2034 = vsub.s32 %v2031, %v2033
    %v2035 = vrot.slane %v268, %v2034
    %v2037 = vunpack.c.l.s4 1414812756
    %v2038 = vunpack.c.0.s8 %v2037
    %v2039 = vlaneseq
    %v2040 = vshrl.u32 %v2039, 7
    %v2041 = vsub.s32 %v2038, %v2040
    %v2042 = vrot.slane %v268, %v2041
    %v2044 = vunpack.c.l.s4 1987475062
    %v2045 = vunpack.c.0.s8 %v2044
    %v2046 = vlaneseq
    %v2047 = vshrl.u32 %v2046, 7
    %v2048 = vsub.s32 %v2045, %v2047
    %v2049 = vrot.slane %v268, %v2048
    %v2051 = vunpack.c.l.s4 269488144
    %v2052 = vunpack.c.0.s8 %v2051
    %v2053 = vlaneseq
    %v2054 = vshrl.u32 %v2053, 7
    %v2055 = vsub.s32 %v2052, %v2054
    %v2056 = vrot.slane %v271, %v2055
    %v2058 = vunpack.c.l.s4 842150450
    %v2059 = vunpack.c.0.s8 %v2058
    %v2060 = vlaneseq
    %v2061 = vshrl.u32 %v2060, 7
    %v2062 = vsub.s32 %v2059, %v2061
    %v2063 = vrot.slane %v271, %v2062
    %v2065 = vunpack.c.l.s4 1414812756
    %v2066 = vunpack.c.0.s8 %v2065
    %v2067 = vlaneseq
    %v2068 = vshrl.u32 %v2067, 7
    %v2069 = vsub.s32 %v2066, %v2068
    %v2070 = vrot.slane %v271, %v2069
    %v2072 = vunpack.c.l.s4 1987475062
    %v2073 = vunpack.c.0.s8 %v2072
    %v2074 = vlaneseq
    %v2075 = vshrl.u32 %v2074, 7
    %v2076 = vsub.s32 %v2073, %v2075
    %v2077 = vrot.slane %v271, %v2076
    %v2079 = vunpack.c.l.s4 269488144
    %v2080 = vunpack.c.0.s8 %v2079
    %v2081 = vlaneseq
    %v2082 = vshrl.u32 %v2081, 7
    %v2083 = vsub.s32 %v2080, %v2082
    %v2084 = vrot.slane %v274, %v2083
    %v2086 = vunpack.c.l.s4 842150450
    %v2087 = vunpack.c.0.s8 %v2086
    %v2088 = vlaneseq
    %v2089 = vshrl.u32 %v2088, 7
    %v2090 = vsub.s32 %v2087, %v2089
    %v2091 = vrot.slane %v274, %v2090
    %v2093 = vunpack.c.l.s4 1414812756
    %v2094 = vunpack.c.0.s8 %v2093
    %v2095 = vlaneseq
    %v2096 = vshrl.u32 %v2095, 7
    %v2097 = vsub.s32 %v2094, %v2096
    %v2098 = vrot.slane %v274, %v2097
    %v2100 = vunpack.c.l.s4 1987475062
    %v2101 = vunpack.c.0.s8 %v2100
    %v2102 = vlaneseq
    %v2103 = vshrl.u32 %v2102, 7
    %v2104 = vsub.s32 %v2101, %v2103
    %v2105 = vrot.slane %v274, %v2104
    %v2107 = vunpack.c.l.s4 269488144
    %v2108 = vunpack.c.0.s8 %v2107
    %v2109 = vlaneseq
    %v2110 = vshrl.u32 %v2109, 7
    %v2111 = vsub.s32 %v2108, %v2110
    %v2112 = vrot.slane %v277, %v2111
    %v2114 = vunpack.c.l.s4 842150450
    %v2115 = vunpack.c.0.s8 %v2114
    %v2116 = vlaneseq
    %v2117 = vshrl.u32 %v2116, 7
    %v2118 = vsub.s32 %v2115, %v2117
    %v2119 = vrot.slane %v277, %v2118
    %v2121 = vunpack.c.l.s4 1414812756
    %v2122 = vunpack.c.0.s8 %v2121
    %v2123 = vlaneseq
    %v2124 = vshrl.u32 %v2123, 7
    %v2125 = vsub.s32 %v2122, %v2124
    %v2126 = vrot.slane %v277, %v2125
    %v2128 = vunpack.c.l.s4 1987475062
    %v2129 = vunpack.c.0.s8 %v2128
    %v2130 = vlaneseq
    %v2131 = vshrl.u32 %v2130, 7
    %v2132 = vsub.s32 %v2129, %v2131
    %v2133 = vrot.slane %v277, %v2132
    %v2134 = vcombine.low %v348, %v355
    %v2135 = vcombine.low %v362, %v369
    %v2137 = vunpack.c.l.s4 1983009808
    %v2138 = vunpack.c.0.s8 %v2137
    %v2139 = vlaneseq
    %v2140 = vshrl.u32 %v2139, 7
    %v2141 = vsub.s32 %v2138, %v2140
    %v2142 = vrot.slane %v2134, %v2141
    %v2144 = vunpack.c.l.s4 1983009808
    %v2145 = vunpack.c.0.s8 %v2144
    %v2146 = vlaneseq
    %v2147 = vshrl.u32 %v2146, 7
    %v2148 = vsub.s32 %v2145, %v2147
    %v2149 = vrot.slane %v2135, %v2148
    %v2150 = vcombine.low %v2142, %v2149
    %v2151 = vcombine.low %v376, %v383
    %v2152 = vcombine.low %v390, %v397
    %v2154 = vunpack.c.l.s4 1983009808
    %v2155 = vunpack.c.0.s8 %v2154
    %v2156 = vlaneseq
    %v2157 = vshrl.u32 %v2156, 7
    %v2158 = vsub.s32 %v2155, %v2157
    %v2159 = vrot.slane %v2151, %v2158
    %v2161 = vunpack.c.l.s4 1983009808
    %v2162 = vunpack.c.0.s8 %v2161
    %v2163 = vlaneseq
    %v2164 = vshrl.u32 %v2163, 7
    %v2165 = vsub.s32 %v2162, %v2164
    %v2166 = vrot.slane %v2152, %v2165
    %v2167 = vcombine.low %v2159, %v2166
    %v2168 = vcombine.low %v404, %v411
    %v2169 = vcombine.low %v418, %v425
    %v2171 = vunpack.c.l.s4 1983009808
    %v2172 = vunpack.c.0.s8 %v2171
    %v2173 = vlaneseq
    %v2174 = vshrl.u32 %v2173, 7
    %v2175 = vsub.s32 %v2172, %v2174
    %v2176 = vrot.slane %v2168, %v2175
    %v2178 = vunpack.c.l.s4 1983009808
    %v2179 = vunpack.c.0.s8 %v2178
    %v2180 = vlaneseq
    %v2181 = vshrl.u32 %v2180, 7
    %v2182 = vsub.s32 %v2179, %v2181
    %v2183 = vrot.slane %v2169, %v2182
    %v2184 = vcombine.low %v2176, %v2183
    %v2185 = vcombine.low %v432, %v439
    %v2186 = vcombine.low %v446, %v453
    %v2188 = vunpack.c.l.s4 1983009808
    %v2189 = vunpack.c.0.s8 %v2188
    %v2190 = vlaneseq
    %v2191 = vshrl.u32 %v2190, 7
    %v2192 = vsub.s32 %v2189, %v2191
    %v2193 = vrot.slane %v2185, %v2192
    %v2195 = vunpack.c.l.s4 1983009808
    %v2196 = vunpack.c.0.s8 %v2195
    %v2197 = vlaneseq
    %v2198 = vshrl.u32 %v2197, 7
    %v2199 = vsub.s32 %v2196, %v2198
    %v2200 = vrot.slane %v2186, %v2199
    %v2201 = vcombine.low %v2193, %v2200
    %v2202 = vcombine.low %v460, %v467
    %v2203 = vcombine.low %v474, %v481
    %v2205 = vunpack.c.l.s4 1983009808
    %v2206 = vunpack.c.0.s8 %v2205
    %v2207 = vlaneseq
    %v2208 = vshrl.u32 %v2207, 7
    %v2209 = vsub.s32 %v2206, %v2208
    %v2210 = vrot.slane %v2202, %v2209
    %v2212 = vunpack.c.l.s4 1983009808
    %v2213 = vunpack.c.0.s8 %v2212
    %v2214 = vlaneseq
    %v2215 = vshrl.u32 %v2214, 7
    %v2216 = vsub.s32 %v2213, %v2215
    %v2217 = vrot.slane %v2203, %v2216
    %v2218 = vcombine.low %v2210, %v2217
    %v2219 = vcombine.low %v488, %v495
    %v2220 = vcombine.low %v502, %v509
    %v2222 = vunpack.c.l.s4 1983009808
    %v2223 = vunpack.c.0.s8 %v2222
    %v2224 = vlaneseq
    %v2225 = vshrl.u32 %v2224, 7
    %v2226 = vsub.s32 %v2223, %v2225
    %v2227 = vrot.slane %v2219, %v2226
    %v2229 = vunpack.c.l.s4 1983009808
    %v2230 = vunpack.c.0.s8 %v2229
    %v2231 = vlaneseq
    %v2232 = vshrl.u32 %v2231, 7
    %v2233 = vsub.s32 %v2230, %v2232
    %v2234 = vrot.slane %v2220, %v2233
    %v2235 = vcombine.low %v2227, %v2234
    %v2236 = vcombine.low %v516, %v523
    %v2237 = vcombine.low %v530, %v537
    %v2239 = vunpack.c.l.s4 1983009808
    %v2240 = vunpack.c.0.s8 %v2239
    %v2241 = vlaneseq
    %v2242 = vshrl.u32 %v2241, 7
    %v2243 = vsub.s32 %v2240, %v2242
    %v2244 = vrot.slane %v2236, %v2243
    %v2246 = vunpack.c.l.s4 1983009808
    %v2247 = vunpack.c.0.s8 %v2246
    %v2248 = vlaneseq
    %v2249 = vshrl.u32 %v2248, 7
    %v2250 = vsub.s32 %v2247, %v2249
    %v2251 = vrot.slane %v2237, %v2250
    %v2252 = vcombine.low %v2244, %v2251
    %v2253 = vcombine.low %v544, %v551
    %v2254 = vcombine.low %v558, %v565
    %v2256 = vunpack.c.l.s4 1983009808
    %v2257 = vunpack.c.0.s8 %v2256
    %v2258 = vlaneseq
    %v2259 = vshrl.u32 %v2258, 7
    %v2260 = vsub.s32 %v2257, %v2259
    %v2261 = vrot.slane %v2253, %v2260
    %v2263 = vunpack.c.l.s4 1983009808
    %v2264 = vunpack.c.0.s8 %v2263
    %v2265 = vlaneseq
    %v2266 = vshrl.u32 %v2265, 7
    %v2267 = vsub.s32 %v2264, %v2266
    %v2268 = vrot.slane %v2254, %v2267
    %v2269 = vcombine.low %v2261, %v2268
    %v2270 = vcombine.low %v572, %v579
    %v2271 = vcombine.low %v586, %v593
    %v2273 = vunpack.c.l.s4 1983009808
    %v2274 = vunpack.c.0.s8 %v2273
    %v2275 = vlaneseq
    %v2276 = vshrl.u32 %v2275, 7
    %v2277 = vsub.s32 %v2274, %v2276
    %v2278 = vrot.slane %v2270, %v2277
    %v2280 = vunpack.c.l.s4 1983009808
    %v2281 = vunpack.c.0.s8 %v2280
    %v2282 = vlaneseq
    %v2283 = vshrl.u32 %v2282, 7
    %v2284 = vsub.s32 %v2281, %v2283
    %v2285 = vrot.slane %v2271, %v2284
    %v2286 = vcombine.low %v2278, %v2285
    %v2287 = vcombine.low %v600, %v607
    %v2288 = vcombine.low %v614, %v621
    %v2290 = vunpack.c.l.s4 1983009808
    %v2291 = vunpack.c.0.s8 %v2290
    %v2292 = vlaneseq
    %v2293 = vshrl.u32 %v2292, 7
    %v2294 = vsub.s32 %v2291, %v2293
    %v2295 = vrot.slane %v2287, %v2294
    %v2297 = vunpack.c.l.s4 1983009808
    %v2298 = vunpack.c.0.s8 %v2297
    %v2299 = vlaneseq
    %v2300 = vshrl.u32 %v2299, 7
    %v2301 = vsub.s32 %v2298, %v2300
    %v2302 = vrot.slane %v2288, %v2301
    %v2303 = vcombine.low %v2295, %v2302
    %v2304 = vcombine.low %v628, %v635
    %v2305 = vcombine.low %v642, %v649
    %v2307 = vunpack.c.l.s4 1983009808
    %v2308 = vunpack.c.0.s8 %v2307
    %v2309 = vlaneseq
    %v2310 = vshrl.u32 %v2309, 7
    %v2311 = vsub.s32 %v2308, %v2310
    %v2312 = vrot.slane %v2304, %v2311
    %v2314 = vunpack.c.l.s4 1983009808
    %v2315 = vunpack.c.0.s8 %v2314
    %v2316 = vlaneseq
    %v2317 = vshrl.u32 %v2316, 7
    %v2318 = vsub.s32 %v2315, %v2317
    %v2319 = vrot.slane %v2305, %v2318
    %v2320 = vcombine.low %v2312, %v2319
    %v2321 = vcombine.low %v656, %v663
    %v2322 = vcombine.low %v670, %v677
    %v2324 = vunpack.c.l.s4 1983009808
    %v2325 = vunpack.c.0.s8 %v2324
    %v2326 = vlaneseq
    %v2327 = vshrl.u32 %v2326, 7
    %v2328 = vsub.s32 %v2325, %v2327
    %v2329 = vrot.slane %v2321, %v2328
    %v2331 = vunpack.c.l.s4 1983009808
    %v2332 = vunpack.c.0.s8 %v2331
    %v2333 = vlaneseq
    %v2334 = vshrl.u32 %v2333, 7
    %v2335 = vsub.s32 %v2332, %v2334
    %v2336 = vrot.slane %v2322, %v2335
    %v2337 = vcombine.low %v2329, %v2336
    %v2338 = vcombine.low %v684, %v691
    %v2339 = vcombine.low %v698, %v705
    %v2341 = vunpack.c.l.s4 1983009808
    %v2342 = vunpack.c.0.s8 %v2341
    %v2343 = vlaneseq
    %v2344 = vshrl.u32 %v2343, 7
    %v2345 = vsub.s32 %v2342, %v2344
    %v2346 = vrot.slane %v2338, %v2345
    %v2348 = vunpack.c.l.s4 1983009808
    %v2349 = vunpack.c.0.s8 %v2348
    %v2350 = vlaneseq
    %v2351 = vshrl.u32 %v2350, 7
    %v2352 = vsub.s32 %v2349, %v2351
    %v2353 = vrot.slane %v2339, %v2352
    %v2354 = vcombine.low %v2346, %v2353
    %v2355 = vcombine.low %v712, %v719
    %v2356 = vcombine.low %v726, %v733
    %v2358 = vunpack.c.l.s4 1983009808
    %v2359 = vunpack.c.0.s8 %v2358
    %v2360 = vlaneseq
    %v2361 = vshrl.u32 %v2360, 7
    %v2362 = vsub.s32 %v2359, %v2361
    %v2363 = vrot.slane %v2355, %v2362
    %v2365 = vunpack.c.l.s4 1983009808
    %v2366 = vunpack.c.0.s8 %v2365
    %v2367 = vlaneseq
    %v2368 = vshrl.u32 %v2367, 7
    %v2369 = vsub.s32 %v2366, %v2368
    %v2370 = vrot.slane %v2356, %v2369
    %v2371 = vcombine.low %v2363, %v2370
    %v2372 = vcombine.low %v740, %v747
    %v2373 = vcombine.low %v754, %v761
    %v2375 = vunpack.c.l.s4 1983009808
    %v2376 = vunpack.c.0.s8 %v2375
    %v2377 = vlaneseq
    %v2378 = vshrl.u32 %v2377, 7
    %v2379 = vsub.s32 %v2376, %v2378
    %v2380 = vrot.slane %v2372, %v2379
    %v2382 = vunpack.c.l.s4 1983009808
    %v2383 = vunpack.c.0.s8 %v2382
    %v2384 = vlaneseq
    %v2385 = vshrl.u32 %v2384, 7
    %v2386 = vsub.s32 %v2383, %v2385
    %v2387 = vrot.slane %v2373, %v2386
    %v2388 = vcombine.low %v2380, %v2387
    %v2389 = vcombine.low %v768, %v775
    %v2390 = vcombine.low %v782, %v789
    %v2392 = vunpack.c.l.s4 1983009808
    %v2393 = vunpack.c.0.s8 %v2392
    %v2394 = vlaneseq
    %v2395 = vshrl.u32 %v2394, 7
    %v2396 = vsub.s32 %v2393, %v2395
    %v2397 = vrot.slane %v2389, %v2396
    %v2399 = vunpack.c.l.s4 1983009808
    %v2400 = vunpack.c.0.s8 %v2399
    %v2401 = vlaneseq
    %v2402 = vshrl.u32 %v2401, 7
    %v2403 = vsub.s32 %v2400, %v2402
    %v2404 = vrot.slane %v2390, %v2403
    %v2405 = vcombine.low %v2397, %v2404
    %v2406 = vcombine.low %v796, %v803
    %v2407 = vcombine.low %v810, %v817
    %v2409 = vunpack.c.l.s4 1983009808
    %v2410 = vunpack.c.0.s8 %v2409
    %v2411 = vlaneseq
    %v2412 = vshrl.u32 %v2411, 7
    %v2413 = vsub.s32 %v2410, %v2412
    %v2414 = vrot.slane %v2406, %v2413
    %v2416 = vunpack.c.l.s4 1983009808
    %v2417 = vunpack.c.0.s8 %v2416
    %v2418 = vlaneseq
    %v2419 = vshrl.u32 %v2418, 7
    %v2420 = vsub.s32 %v2417, %v2419
    %v2421 = vrot.slane %v2407, %v2420
    %v2422 = vcombine.low %v2414, %v2421
    %v2423 = vcombine.low %v824, %v831
    %v2424 = vcombine.low %v838, %v845
    %v2426 = vunpack.c.l.s4 1983009808
    %v2427 = vunpack.c.0.s8 %v2426
    %v2428 = vlaneseq
    %v2429 = vshrl.u32 %v2428, 7
    %v2430 = vsub.s32 %v2427, %v2429
    %v2431 = vrot.slane %v2423, %v2430
    %v2433 = vunpack.c.l.s4 1983009808
    %v2434 = vunpack.c.0.s8 %v2433
    %v2435 = vlaneseq
    %v2436 = vshrl.u32 %v2435, 7
    %v2437 = vsub.s32 %v2434, %v2436
    %v2438 = vrot.slane %v2424, %v2437
    %v2439 = vcombine.low %v2431, %v2438
    %v2440 = vcombine.low %v852, %v859
    %v2441 = vcombine.low %v866, %v873
    %v2443 = vunpack.c.l.s4 1983009808
    %v2444 = vunpack.c.0.s8 %v2443
    %v2445 = vlaneseq
    %v2446 = vshrl.u32 %v2445, 7
    %v2447 = vsub.s32 %v2444, %v2446
    %v2448 = vrot.slane %v2440, %v2447
    %v2450 = vunpack.c.l.s4 1983009808
    %v2451 = vunpack.c.0.s8 %v2450
    %v2452 = vlaneseq
    %v2453 = vshrl.u32 %v2452, 7
    %v2454 = vsub.s32 %v2451, %v2453
    %v2455 = vrot.slane %v2441, %v2454
    %v2456 = vcombine.low %v2448, %v2455
    %v2457 = vcombine.low %v880, %v887
    %v2458 = vcombine.low %v894, %v901
    %v2460 = vunpack.c.l.s4 1983009808
    %v2461 = vunpack.c.0.s8 %v2460
    %v2462 = vlaneseq
    %v2463 = vshrl.u32 %v2462, 7
    %v2464 = vsub.s32 %v2461, %v2463
    %v2465 = vrot.slane %v2457, %v2464
    %v2467 = vunpack.c.l.s4 1983009808
    %v2468 = vunpack.c.0.s8 %v2467
    %v2469 = vlaneseq
    %v2470 = vshrl.u32 %v2469, 7
    %v2471 = vsub.s32 %v2468, %v2470
    %v2472 = vrot.slane %v2458, %v2471
    %v2473 = vcombine.low %v2465, %v2472
    %v2474 = vcombine.low %v908, %v915
    %v2475 = vcombine.low %v922, %v929
    %v2477 = vunpack.c.l.s4 1983009808
    %v2478 = vunpack.c.0.s8 %v2477
    %v2479 = vlaneseq
    %v2480 = vshrl.u32 %v2479, 7
    %v2481 = vsub.s32 %v2478, %v2480
    %v2482 = vrot.slane %v2474, %v2481
    %v2484 = vunpack.c.l.s4 1983009808
    %v2485 = vunpack.c.0.s8 %v2484
    %v2486 = vlaneseq
    %v2487 = vshrl.u32 %v2486, 7
    %v2488 = vsub.s32 %v2485, %v2487
    %v2489 = vrot.slane %v2475, %v2488
    %v2490 = vcombine.low %v2482, %v2489
    %v2491 = vcombine.low %v936, %v943
    %v2492 = vcombine.low %v950, %v957
    %v2494 = vunpack.c.l.s4 1983009808
    %v2495 = vunpack.c.0.s8 %v2494
    %v2496 = vlaneseq
    %v2497 = vshrl.u32 %v2496, 7
    %v2498 = vsub.s32 %v2495, %v2497
    %v2499 = vrot.slane %v2491, %v2498
    %v2501 = vunpack.c.l.s4 1983009808
    %v2502 = vunpack.c.0.s8 %v2501
    %v2503 = vlaneseq
    %v2504 = vshrl.u32 %v2503, 7
    %v2505 = vsub.s32 %v2502, %v2504
    %v2506 = vrot.slane %v2492, %v2505
    %v2507 = vcombine.low %v2499, %v2506
    %v2508 = vcombine.low %v964, %v971
    %v2509 = vcombine.low %v978, %v985
    %v2511 = vunpack.c.l.s4 1983009808
    %v2512 = vunpack.c.0.s8 %v2511
    %v2513 = vlaneseq
    %v2514 = vshrl.u32 %v2513, 7
    %v2515 = vsub.s32 %v2512, %v2514
    %v2516 = vrot.slane %v2508, %v2515
    %v2518 = vunpack.c.l.s4 1983009808
    %v2519 = vunpack.c.0.s8 %v2518
    %v2520 = vlaneseq
    %v2521 = vshrl.u32 %v2520, 7
    %v2522 = vsub.s32 %v2519, %v2521
    %v2523 = vrot.slane %v2509, %v2522
    %v2524 = vcombine.low %v2516, %v2523
    %v2525 = vcombine.low %v992, %v999
    %v2526 = vcombine.low %v1006, %v1013
    %v2528 = vunpack.c.l.s4 1983009808
    %v2529 = vunpack.c.0.s8 %v2528
    %v2530 = vlaneseq
    %v2531 = vshrl.u32 %v2530, 7
    %v2532 = vsub.s32 %v2529, %v2531
    %v2533 = vrot.slane %v2525, %v2532
    %v2535 = vunpack.c.l.s4 1983009808
    %v2536 = vunpack.c.0.s8 %v2535
    %v2537 = vlaneseq
    %v2538 = vshrl.u32 %v2537, 7
    %v2539 = vsub.s32 %v2536, %v2538
    %v2540 = vrot.slane %v2526, %v2539
    %v2541 = vcombine.low %v2533, %v2540
    %v2542 = vcombine.low %v1020, %v1027
    %v2543 = vcombine.low %v1034, %v1041
    %v2545 = vunpack.c.l.s4 1983009808
    %v2546 = vunpack.c.0.s8 %v2545
    %v2547 = vlaneseq
    %v2548 = vshrl.u32 %v2547, 7
    %v2549 = vsub.s32 %v2546, %v2548
    %v2550 = vrot.slane %v2542, %v2549
    %v2552 = vunpack.c.l.s4 1983009808
    %v2553 = vunpack.c.0.s8 %v2552
    %v2554 = vlaneseq
    %v2555 = vshrl.u32 %v2554, 7
    %v2556 = vsub.s32 %v2553, %v2555
    %v2557 = vrot.slane %v2543, %v2556
    %v2558 = vcombine.low %v2550, %v2557
    %v2559 = vcombine.low %v1048, %v1055
    %v2560 = vcombine.low %v1062, %v1069
    %v2562 = vunpack.c.l.s4 1983009808
    %v2563 = vunpack.c.0.s8 %v2562
    %v2564 = vlaneseq
    %v2565 = vshrl.u32 %v2564, 7
    %v2566 = vsub.s32 %v2563, %v2565
    %v2567 = vrot.slane %v2559, %v2566
    %v2569 = vunpack.c.l.s4 1983009808
    %v2570 = vunpack.c.0.s8 %v2569
    %v2571 = vlaneseq
    %v2572 = vshrl.u32 %v2571, 7
    %v2573 = vsub.s32 %v2570, %v2572
    %v2574 = vrot.slane %v2560, %v2573
    %v2575 = vcombine.low %v2567, %v2574
    %v2576 = vcombine.low %v1076, %v1083
    %v2577 = vcombine.low %v1090, %v1097
    %v2579 = vunpack.c.l.s4 1983009808
    %v2580 = vunpack.c.0.s8 %v2579
    %v2581 = vlaneseq
    %v2582 = vshrl.u32 %v2581, 7
    %v2583 = vsub.s32 %v2580, %v2582
    %v2584 = vrot.slane %v2576, %v2583
    %v2586 = vunpack.c.l.s4 1983009808
    %v2587 = vunpack.c.0.s8 %v2586
    %v2588 = vlaneseq
    %v2589 = vshrl.u32 %v2588, 7
    %v2590 = vsub.s32 %v2587, %v2589
    %v2591 = vrot.slane %v2577, %v2590
    %v2592 = vcombine.low %v2584, %v2591
    %v2593 = vcombine.low %v1104, %v1111
    %v2594 = vcombine.low %v1118, %v1125
    %v2596 = vunpack.c.l.s4 1983009808
    %v2597 = vunpack.c.0.s8 %v2596
    %v2598 = vlaneseq
    %v2599 = vshrl.u32 %v2598, 7
    %v2600 = vsub.s32 %v2597, %v2599
    %v2601 = vrot.slane %v2593, %v2600
    %v2603 = vunpack.c.l.s4 1983009808
    %v2604 = vunpack.c.0.s8 %v2603
    %v2605 = vlaneseq
    %v2606 = vshrl.u32 %v2605, 7
    %v2607 = vsub.s32 %v2604, %v2606
    %v2608 = vrot.slane %v2594, %v2607
    %v2609 = vcombine.low %v2601, %v2608
    %v2610 = vcombine.low %v1132, %v1139
    %v2611 = vcombine.low %v1146, %v1153
    %v2613 = vunpack.c.l.s4 1983009808
    %v2614 = vunpack.c.0.s8 %v2613
    %v2615 = vlaneseq
    %v2616 = vshrl.u32 %v2615, 7
    %v2617 = vsub.s32 %v2614, %v2616
    %v2618 = vrot.slane %v2610, %v2617
    %v2620 = vunpack.c.l.s4 1983009808
    %v2621 = vunpack.c.0.s8 %v2620
    %v2622 = vlaneseq
    %v2623 = vshrl.u32 %v2622, 7
    %v2624 = vsub.s32 %v2621, %v2623
    %v2625 = vrot.slane %v2611, %v2624
    %v2626 = vcombine.low %v2618, %v2625
    %v2627 = vcombine.low %v1160, %v1167
    %v2628 = vcombine.low %v1174, %v1181
    %v2630 = vunpack.c.l.s4 1983009808
    %v2631 = vunpack.c.0.s8 %v2630
    %v2632 = vlaneseq
    %v2633 = vshrl.u32 %v2632, 7
    %v2634 = vsub.s32 %v2631, %v2633
    %v2635 = vrot.slane %v2627, %v2634
    %v2637 = vunpack.c.l.s4 1983009808
    %v2638 = vunpack.c.0.s8 %v2637
    %v2639 = vlaneseq
    %v2640 = vshrl.u32 %v2639, 7
    %v2641 = vsub.s32 %v2638, %v2640
    %v2642 = vrot.slane %v2628, %v2641
    %v2643 = vcombine.low %v2635, %v2642
    %v2644 = vcombine.low %v1188, %v1195
    %v2645 = vcombine.low %v1202, %v1209
    %v2647 = vunpack.c.l.s4 1983009808
    %v2648 = vunpack.c.0.s8 %v2647
    %v2649 = vlaneseq
    %v2650 = vshrl.u32 %v2649, 7
    %v2651 = vsub.s32 %v2648, %v2650
    %v2652 = vrot.slane %v2644, %v2651
    %v2654 = vunpack.c.l.s4 1983009808
    %v2655 = vunpack.c.0.s8 %v2654
    %v2656 = vlaneseq
    %v2657 = vshrl.u32 %v2656, 7
    %v2658 = vsub.s32 %v2655, %v2657
    %v2659 = vrot.slane %v2645, %v2658
    %v2660 = vcombine.low %v2652, %v2659
    %v2661 = vcombine.low %v1216, %v1223
    %v2662 = vcombine.low %v1230, %v1237
    %v2664 = vunpack.c.l.s4 1983009808
    %v2665 = vunpack.c.0.s8 %v2664
    %v2666 = vlaneseq
    %v2667 = vshrl.u32 %v2666, 7
    %v2668 = vsub.s32 %v2665, %v2667
    %v2669 = vrot.slane %v2661, %v2668
    %v2671 = vunpack.c.l.s4 1983009808
    %v2672 = vunpack.c.0.s8 %v2671
    %v2673 = vlaneseq
    %v2674 = vshrl.u32 %v2673, 7
    %v2675 = vsub.s32 %v2672, %v2674
    %v2676 = vrot.slane %v2662, %v2675
    %v2677 = vcombine.low %v2669, %v2676
    %v2678 = vcombine.low %v1244, %v1251
    %v2679 = vcombine.low %v1258, %v1265
    %v2681 = vunpack.c.l.s4 1983009808
    %v2682 = vunpack.c.0.s8 %v2681
    %v2683 = vlaneseq
    %v2684 = vshrl.u32 %v2683, 7
    %v2685 = vsub.s32 %v2682, %v2684
    %v2686 = vrot.slane %v2678, %v2685
    %v2688 = vunpack.c.l.s4 1983009808
    %v2689 = vunpack.c.0.s8 %v2688
    %v2690 = vlaneseq
    %v2691 = vshrl.u32 %v2690, 7
    %v2692 = vsub.s32 %v2689, %v2691
    %v2693 = vrot.slane %v2679, %v2692
    %v2694 = vcombine.low %v2686, %v2693
    %v2695 = vcombine.low %v1272, %v1279
    %v2696 = vcombine.low %v1286, %v1293
    %v2698 = vunpack.c.l.s4 1983009808
    %v2699 = vunpack.c.0.s8 %v2698
    %v2700 = vlaneseq
    %v2701 = vshrl.u32 %v2700, 7
    %v2702 = vsub.s32 %v2699, %v2701
    %v2703 = vrot.slane %v2695, %v2702
    %v2705 = vunpack.c.l.s4 1983009808
    %v2706 = vunpack.c.0.s8 %v2705
    %v2707 = vlaneseq
    %v2708 = vshrl.u32 %v2707, 7
    %v2709 = vsub.s32 %v2706, %v2708
    %v2710 = vrot.slane %v2696, %v2709
    %v2711 = vcombine.low %v2703, %v2710
    %v2712 = vcombine.low %v1300, %v1307
    %v2713 = vcombine.low %v1314, %v1321
    %v2715 = vunpack.c.l.s4 1983009808
    %v2716 = vunpack.c.0.s8 %v2715
    %v2717 = vlaneseq
    %v2718 = vshrl.u32 %v2717, 7
    %v2719 = vsub.s32 %v2716, %v2718
    %v2720 = vrot.slane %v2712, %v2719
    %v2722 = vunpack.c.l.s4 1983009808
    %v2723 = vunpack.c.0.s8 %v2722
    %v2724 = vlaneseq
    %v2725 = vshrl.u32 %v2724, 7
    %v2726 = vsub.s32 %v2723, %v2725
    %v2727 = vrot.slane %v2713, %v2726
    %v2728 = vcombine.low %v2720, %v2727
    %v2729 = vcombine.low %v1328, %v1335
    %v2730 = vcombine.low %v1342, %v1349
    %v2732 = vunpack.c.l.s4 1983009808
    %v2733 = vunpack.c.0.s8 %v2732
    %v2734 = vlaneseq
    %v2735 = vshrl.u32 %v2734, 7
    %v2736 = vsub.s32 %v2733, %v2735
    %v2737 = vrot.slane %v2729, %v2736
    %v2739 = vunpack.c.l.s4 1983009808
    %v2740 = vunpack.c.0.s8 %v2739
    %v2741 = vlaneseq
    %v2742 = vshrl.u32 %v2741, 7
    %v2743 = vsub.s32 %v2740, %v2742
    %v2744 = vrot.slane %v2730, %v2743
    %v2745 = vcombine.low %v2737, %v2744
    %v2746 = vcombine.low %v1356, %v1363
    %v2747 = vcombine.low %v1370, %v1377
    %v2749 = vunpack.c.l.s4 1983009808
    %v2750 = vunpack.c.0.s8 %v2749
    %v2751 = vlaneseq
    %v2752 = vshrl.u32 %v2751, 7
    %v2753 = vsub.s32 %v2750, %v2752
    %v2754 = vrot.slane %v2746, %v2753
    %v2756 = vunpack.c.l.s4 1983009808
    %v2757 = vunpack.c.0.s8 %v2756
    %v2758 = vlaneseq
    %v2759 = vshrl.u32 %v2758, 7
    %v2760 = vsub.s32 %v2757, %v2759
    %v2761 = vrot.slane %v2747, %v2760
    %v2762 = vcombine.low %v2754, %v2761
    %v2763 = vcombine.low %v1384, %v1391
    %v2764 = vcombine.low %v1398, %v1405
    %v2766 = vunpack.c.l.s4 1983009808
    %v2767 = vunpack.c.0.s8 %v2766
    %v2768 = vlaneseq
    %v2769 = vshrl.u32 %v2768, 7
    %v2770 = vsub.s32 %v2767, %v2769
    %v2771 = vrot.slane %v2763, %v2770
    %v2773 = vunpack.c.l.s4 1983009808
    %v2774 = vunpack.c.0.s8 %v2773
    %v2775 = vlaneseq
    %v2776 = vshrl.u32 %v2775, 7
    %v2777 = vsub.s32 %v2774, %v2776
    %v2778 = vrot.slane %v2764, %v2777
    %v2779 = vcombine.low %v2771, %v2778
    %v2780 = vcombine.low %v1412, %v1419
    %v2781 = vcombine.low %v1426, %v1433
    %v2783 = vunpack.c.l.s4 1983009808
    %v2784 = vunpack.c.0.s8 %v2783
    %v2785 = vlaneseq
    %v2786 = vshrl.u32 %v2785, 7
    %v2787 = vsub.s32 %v2784, %v2786
    %v2788 = vrot.slane %v2780, %v2787
    %v2790 = vunpack.c.l.s4 1983009808
    %v2791 = vunpack.c.0.s8 %v2790
    %v2792 = vlaneseq
    %v2793 = vshrl.u32 %v2792, 7
    %v2794 = vsub.s32 %v2791, %v2793
    %v2795 = vrot.slane %v2781, %v2794
    %v2796 = vcombine.low %v2788, %v2795
    %v2797 = vcombine.low %v1440, %v1447
    %v2798 = vcombine.low %v1454, %v1461
    %v2800 = vunpack.c.l.s4 1983009808
    %v2801 = vunpack.c.0.s8 %v2800
    %v2802 = vlaneseq
    %v2803 = vshrl.u32 %v2802, 7
    %v2804 = vsub.s32 %v2801, %v2803
    %v2805 = vrot.slane %v2797, %v2804
    %v2807 = vunpack.c.l.s4 1983009808
    %v2808 = vunpack.c.0.s8 %v2807
    %v2809 = vlaneseq
    %v2810 = vshrl.u32 %v2809, 7
    %v2811 = vsub.s32 %v2808, %v2810
    %v2812 = vrot.slane %v2798, %v2811
    %v2813 = vcombine.low %v2805, %v2812
    %v2814 = vcombine.low %v1468, %v1475
    %v2815 = vcombine.low %v1482, %v1489
    %v2817 = vunpack.c.l.s4 1983009808
    %v2818 = vunpack.c.0.s8 %v2817
    %v2819 = vlaneseq
    %v2820 = vshrl.u32 %v2819, 7
    %v2821 = vsub.s32 %v2818, %v2820
    %v2822 = vrot.slane %v2814, %v2821
    %v2824 = vunpack.c.l.s4 1983009808
    %v2825 = vunpack.c.0.s8 %v2824
    %v2826 = vlaneseq
    %v2827 = vshrl.u32 %v2826, 7
    %v2828 = vsub.s32 %v2825, %v2827
    %v2829 = vrot.slane %v2815, %v2828
    %v2830 = vcombine.low %v2822, %v2829
    %v2831 = vcombine.low %v1496, %v1503
    %v2832 = vcombine.low %v1510, %v1517
    %v2834 = vunpack.c.l.s4 1983009808
    %v2835 = vunpack.c.0.s8 %v2834
    %v2836 = vlaneseq
    %v2837 = vshrl.u32 %v2836, 7
    %v2838 = vsub.s32 %v2835, %v2837
    %v2839 = vrot.slane %v2831, %v2838
    %v2841 = vunpack.c.l.s4 1983009808
    %v2842 = vunpack.c.0.s8 %v2841
    %v2843 = vlaneseq
    %v2844 = vshrl.u32 %v2843, 7
    %v2845 = vsub.s32 %v2842, %v2844
    %v2846 = vrot.slane %v2832, %v2845
    %v2847 = vcombine.low %v2839, %v2846
    %v2848 = vcombine.low %v1524, %v1531
    %v2849 = vcombine.low %v1538, %v1545
    %v2851 = vunpack.c.l.s4 1983009808
    %v2852 = vunpack.c.0.s8 %v2851
    %v2853 = vlaneseq
    %v2854 = vshrl.u32 %v2853, 7
    %v2855 = vsub.s32 %v2852, %v2854
    %v2856 = vrot.slane %v2848, %v2855
    %v2858 = vunpack.c.l.s4 1983009808
    %v2859 = vunpack.c.0.s8 %v2858
    %v2860 = vlaneseq
    %v2861 = vshrl.u32 %v2860, 7
    %v2862 = vsub.s32 %v2859, %v2861
    %v2863 = vrot.slane %v2849, %v2862
    %v2864 = vcombine.low %v2856, %v2863
    %v2865 = vcombine.low %v1552, %v1559
    %v2866 = vcombine.low %v1566, %v1573
    %v2868 = vunpack.c.l.s4 1983009808
    %v2869 = vunpack.c.0.s8 %v2868
    %v2870 = vlaneseq
    %v2871 = vshrl.u32 %v2870, 7
    %v2872 = vsub.s32 %v2869, %v2871
    %v2873 = vrot.slane %v2865, %v2872
    %v2875 = vunpack.c.l.s4 1983009808
    %v2876 = vunpack.c.0.s8 %v2875
    %v2877 = vlaneseq
    %v2878 = vshrl.u32 %v2877, 7
    %v2879 = vsub.s32 %v2876, %v2878
    %v2880 = vrot.slane %v2866, %v2879
    %v2881 = vcombine.low %v2873, %v2880
    %v2882 = vcombine.low %v1580, %v1587
    %v2883 = vcombine.low %v1594, %v1601
    %v2885 = vunpack.c.l.s4 1983009808
    %v2886 = vunpack.c.0.s8 %v2885
    %v2887 = vlaneseq
    %v2888 = vshrl.u32 %v2887, 7
    %v2889 = vsub.s32 %v2886, %v2888
    %v2890 = vrot.slane %v2882, %v2889
    %v2892 = vunpack.c.l.s4 1983009808
    %v2893 = vunpack.c.0.s8 %v2892
    %v2894 = vlaneseq
    %v2895 = vshrl.u32 %v2894, 7
    %v2896 = vsub.s32 %v2893, %v2895
    %v2897 = vrot.slane %v2883, %v2896
    %v2898 = vcombine.low %v2890, %v2897
    %v2899 = vcombine.low %v1608, %v1615
    %v2900 = vcombine.low %v1622, %v1629
    %v2902 = vunpack.c.l.s4 1983009808
    %v2903 = vunpack.c.0.s8 %v2902
    %v2904 = vlaneseq
    %v2905 = vshrl.u32 %v2904, 7
    %v2906 = vsub.s32 %v2903, %v2905
    %v2907 = vrot.slane %v2899, %v2906
    %v2909 = vunpack.c.l.s4 1983009808
    %v2910 = vunpack.c.0.s8 %v2909
    %v2911 = vlaneseq
    %v2912 = vshrl.u32 %v2911, 7
    %v2913 = vsub.s32 %v2910, %v2912
    %v2914 = vrot.slane %v2900, %v2913
    %v2915 = vcombine.low %v2907, %v2914
    %v2916 = vcombine.low %v1636, %v1643
    %v2917 = vcombine.low %v1650, %v1657
    %v2919 = vunpack.c.l.s4 1983009808
    %v2920 = vunpack.c.0.s8 %v2919
    %v2921 = vlaneseq
    %v2922 = vshrl.u32 %v2921, 7
    %v2923 = vsub.s32 %v2920, %v2922
    %v2924 = vrot.slane %v2916, %v2923
    %v2926 = vunpack.c.l.s4 1983009808
    %v2927 = vunpack.c.0.s8 %v2926
    %v2928 = vlaneseq
    %v2929 = vshrl.u32 %v2928, 7
    %v2930 = vsub.s32 %v2927, %v2929
    %v2931 = vrot.slane %v2917, %v2930
    %v2932 = vcombine.low %v2924, %v2931
    %v2933 = vcombine.low %v1664, %v1671
    %v2934 = vcombine.low %v1678, %v1685
    %v2936 = vunpack.c.l.s4 1983009808
    %v2937 = vunpack.c.0.s8 %v2936
    %v2938 = vlaneseq
    %v2939 = vshrl.u32 %v2938, 7
    %v2940 = vsub.s32 %v2937, %v2939
    %v2941 = vrot.slane %v2933, %v2940
    %v2943 = vunpack.c.l.s4 1983009808
    %v2944 = vunpack.c.0.s8 %v2943
    %v2945 = vlaneseq
    %v2946 = vshrl.u32 %v2945, 7
    %v2947 = vsub.s32 %v2944, %v2946
    %v2948 = vrot.slane %v2934, %v2947
    %v2949 = vcombine.low %v2941, %v2948
    %v2950 = vcombine.low %v1692, %v1699
    %v2951 = vcombine.low %v1706, %v1713
    %v2953 = vunpack.c.l.s4 1983009808
    %v2954 = vunpack.c.0.s8 %v2953
    %v2955 = vlaneseq
    %v2956 = vshrl.u32 %v2955, 7
    %v2957 = vsub.s32 %v2954, %v2956
    %v2958 = vrot.slane %v2950, %v2957
    %v2960 = vunpack.c.l.s4 1983009808
    %v2961 = vunpack.c.0.s8 %v2960
    %v2962 = vlaneseq
    %v2963 = vshrl.u32 %v2962, 7
    %v2964 = vsub.s32 %v2961, %v2963
    %v2965 = vrot.slane %v2951, %v2964
    %v2966 = vcombine.low %v2958, %v2965
    %v2967 = vcombine.low %v1720, %v1727
    %v2968 = vcombine.low %v1734, %v1741
    %v2970 = vunpack.c.l.s4 1983009808
    %v2971 = vunpack.c.0.s8 %v2970
    %v2972 = vlaneseq
    %v2973 = vshrl.u32 %v2972, 7
    %v2974 = vsub.s32 %v2971, %v2973
    %v2975 = vrot.slane %v2967, %v2974
    %v2977 = vunpack.c.l.s4 1983009808
    %v2978 = vunpack.c.0.s8 %v2977
    %v2979 = vlaneseq
    %v2980 = vshrl.u32 %v2979, 7
    %v2981 = vsub.s32 %v2978, %v2980
    %v2982 = vrot.slane %v2968, %v2981
    %v2983 = vcombine.low %v2975, %v2982
    %v2984 = vcombine.low %v1748, %v1755
    %v2985 = vcombine.low %v1762, %v1769
    %v2987 = vunpack.c.l.s4 1983009808
    %v2988 = vunpack.c.0.s8 %v2987
    %v2989 = vlaneseq
    %v2990 = vshrl.u32 %v2989, 7
    %v2991 = vsub.s32 %v2988, %v2990
    %v2992 = vrot.slane %v2984, %v2991
    %v2994 = vunpack.c.l.s4 1983009808
    %v2995 = vunpack.c.0.s8 %v2994
    %v2996 = vlaneseq
    %v2997 = vshrl.u32 %v2996, 7
    %v2998 = vsub.s32 %v2995, %v2997
    %v2999 = vrot.slane %v2985, %v2998
    %v3000 = vcombine.low %v2992, %v2999
    %v3001 = vcombine.low %v1776, %v1783
    %v3002 = vcombine.low %v1790, %v1797
    %v3004 = vunpack.c.l.s4 1983009808
    %v3005 = vunpack.c.0.s8 %v3004
    %v3006 = vlaneseq
    %v3007 = vshrl.u32 %v3006, 7
    %v3008 = vsub.s32 %v3005, %v3007
    %v3009 = vrot.slane %v3001, %v3008
    %v3011 = vunpack.c.l.s4 1983009808
    %v3012 = vunpack.c.0.s8 %v3011
    %v3013 = vlaneseq
    %v3014 = vshrl.u32 %v3013, 7
    %v3015 = vsub.s32 %v3012, %v3014
    %v3016 = vrot.slane %v3002, %v3015
    %v3017 = vcombine.low %v3009, %v3016
    %v3018 = vcombine.low %v1804, %v1811
    %v3019 = vcombine.low %v1818, %v1825
    %v3021 = vunpack.c.l.s4 1983009808
    %v3022 = vunpack.c.0.s8 %v3021
    %v3023 = vlaneseq
    %v3024 = vshrl.u32 %v3023, 7
    %v3025 = vsub.s32 %v3022, %v3024
    %v3026 = vrot.slane %v3018, %v3025
    %v3028 = vunpack.c.l.s4 1983009808
    %v3029 = vunpack.c.0.s8 %v3028
    %v3030 = vlaneseq
    %v3031 = vshrl.u32 %v3030, 7
    %v3032 = vsub.s32 %v3029, %v3031
    %v3033 = vrot.slane %v3019, %v3032
    %v3034 = vcombine.low %v3026, %v3033
    %v3035 = vcombine.low %v1832, %v1839
    %v3036 = vcombine.low %v1846, %v1853
    %v3038 = vunpack.c.l.s4 1983009808
    %v3039 = vunpack.c.0.s8 %v3038
    %v3040 = vlaneseq
    %v3041 = vshrl.u32 %v3040, 7
    %v3042 = vsub.s32 %v3039, %v3041
    %v3043 = vrot.slane %v3035, %v3042
    %v3045 = vunpack.c.l.s4 1983009808
    %v3046 = vunpack.c.0.s8 %v3045
    %v3047 = vlaneseq
    %v3048 = vshrl.u32 %v3047, 7
    %v3049 = vsub.s32 %v3046, %v3048
    %v3050 = vrot.slane %v3036, %v3049
    %v3051 = vcombine.low %v3043, %v3050
    %v3052 = vcombine.low %v1860, %v1867
    %v3053 = vcombine.low %v1874, %v1881
    %v3055 = vunpack.c.l.s4 1983009808
    %v3056 = vunpack.c.0.s8 %v3055
    %v3057 = vlaneseq
    %v3058 = vshrl.u32 %v3057, 7
    %v3059 = vsub.s32 %v3056, %v3058
    %v3060 = vrot.slane %v3052, %v3059
    %v3062 = vunpack.c.l.s4 1983009808
    %v3063 = vunpack.c.0.s8 %v3062
    %v3064 = vlaneseq
    %v3065 = vshrl.u32 %v3064, 7
    %v3066 = vsub.s32 %v3063, %v3065
    %v3067 = vrot.slane %v3053, %v3066
    %v3068 = vcombine.low %v3060, %v3067
    %v3069 = vcombine.low %v1888, %v1895
    %v3070 = vcombine.low %v1902, %v1909
    %v3072 = vunpack.c.l.s4 1983009808
    %v3073 = vunpack.c.0.s8 %v3072
    %v3074 = vlaneseq
    %v3075 = vshrl.u32 %v3074, 7
    %v3076 = vsub.s32 %v3073, %v3075
    %v3077 = vrot.slane %v3069, %v3076
    %v3079 = vunpack.c.l.s4 1983009808
    %v3080 = vunpack.c.0.s8 %v3079
    %v3081 = vlaneseq
    %v3082 = vshrl.u32 %v3081, 7
    %v3083 = vsub.s32 %v3080, %v3082
    %v3084 = vrot.slane %v3070, %v3083
    %v3085 = vcombine.low %v3077, %v3084
    %v3086 = vcombine.low %v1916, %v1923
    %v3087 = vcombine.low %v1930, %v1937
    %v3089 = vunpack.c.l.s4 1983009808
    %v3090 = vunpack.c.0.s8 %v3089
    %v3091 = vlaneseq
    %v3092 = vshrl.u32 %v3091, 7
    %v3093 = vsub.s32 %v3090, %v3092
    %v3094 = vrot.slane %v3086, %v3093
    %v3096 = vunpack.c.l.s4 1983009808
    %v3097 = vunpack.c.0.s8 %v3096
    %v3098 = vlaneseq
    %v3099 = vshrl.u32 %v3098, 7
    %v3100 = vsub.s32 %v3097, %v3099
    %v3101 = vrot.slane %v3087, %v3100
    %v3102 = vcombine.low %v3094, %v3101
    %v3103 = vcombine.low %v1944, %v1951
    %v3104 = vcombine.low %v1958, %v1965
    %v3106 = vunpack.c.l.s4 1983009808
    %v3107 = vunpack.c.0.s8 %v3106
    %v3108 = vlaneseq
    %v3109 = vshrl.u32 %v3108, 7
    %v3110 = vsub.s32 %v3107, %v3109
    %v3111 = vrot.slane %v3103, %v3110
    %v3113 = vunpack.c.l.s4 1983009808
    %v3114 = vunpack.c.0.s8 %v3113
    %v3115 = vlaneseq
    %v3116 = vshrl.u32 %v3115, 7
    %v3117 = vsub.s32 %v3114, %v3116
    %v3118 = vrot.slane %v3104, %v3117
    %v3119 = vcombine.low %v3111, %v3118
    %v3120 = vcombine.low %v1972, %v1979
    %v3121 = vcombine.low %v1986, %v1993
    %v3123 = vunpack.c.l.s4 1983009808
    %v3124 = vunpack.c.0.s8 %v3123
    %v3125 = vlaneseq
    %v3126 = vshrl.u32 %v3125, 7
    %v3127 = vsub.s32 %v3124, %v3126
    %v3128 = vrot.slane %v3120, %v3127
    %v3130 = vunpack.c.l.s4 1983009808
    %v3131 = vunpack.c.0.s8 %v3130
    %v3132 = vlaneseq
    %v3133 = vshrl.u32 %v3132, 7
    %v3134 = vsub.s32 %v3131, %v3133
    %v3135 = vrot.slane %v3121, %v3134
    %v3136 = vcombine.low %v3128, %v3135
    %v3137 = vcombine.low %v2000, %v2007
    %v3138 = vcombine.low %v2014, %v2021
    %v3140 = vunpack.c.l.s4 1983009808
    %v3141 = vunpack.c.0.s8 %v3140
    %v3142 = vlaneseq
    %v3143 = vshrl.u32 %v3142, 7
    %v3144 = vsub.s32 %v3141, %v3143
    %v3145 = vrot.slane %v3137, %v3144
    %v3147 = vunpack.c.l.s4 1983009808
    %v3148 = vunpack.c.0.s8 %v3147
    %v3149 = vlaneseq
    %v3150 = vshrl.u32 %v3149, 7
    %v3151 = vsub.s32 %v3148, %v3150
    %v3152 = vrot.slane %v3138, %v3151
    %v3153 = vcombine.low %v3145, %v3152
    %v3154 = vcombine.low %v2028, %v2035
    %v3155 = vcombine.low %v2042, %v2049
    %v3157 = vunpack.c.l.s4 1983009808
    %v3158 = vunpack.c.0.s8 %v3157
    %v3159 = vlaneseq
    %v3160 = vshrl.u32 %v3159, 7
    %v3161 = vsub.s32 %v3158, %v3160
    %v3162 = vrot.slane %v3154, %v3161
    %v3164 = vunpack.c.l.s4 1983009808
    %v3165 = vunpack.c.0.s8 %v3164
    %v3166 = vlaneseq
    %v3167 = vshrl.u32 %v3166, 7
    %v3168 = vsub.s32 %v3165, %v3167
    %v3169 = vrot.slane %v3155, %v3168
    %v3170 = vcombine.low %v3162, %v3169
    %v3171 = vcombine.low %v2056, %v2063
    %v3172 = vcombine.low %v2070, %v2077
    %v3174 = vunpack.c.l.s4 1983009808
    %v3175 = vunpack.c.0.s8 %v3174
    %v3176 = vlaneseq
    %v3177 = vshrl.u32 %v3176, 7
    %v3178 = vsub.s32 %v3175, %v3177
    %v3179 = vrot.slane %v3171, %v3178
    %v3181 = vunpack.c.l.s4 1983009808
    %v3182 = vunpack.c.0.s8 %v3181
    %v3183 = vlaneseq
    %v3184 = vshrl.u32 %v3183, 7
    %v3185 = vsub.s32 %v3182, %v3184
    %v3186 = vrot.slane %v3172, %v3185
    %v3187 = vcombine.low %v3179, %v3186
    %v3188 = vcombine.low %v2084, %v2091
    %v3189 = vcombine.low %v2098, %v2105
    %v3191 = vunpack.c.l.s4 1983009808
    %v3192 = vunpack.c.0.s8 %v3191
    %v3193 = vlaneseq
    %v3194 = vshrl.u32 %v3193, 7
    %v3195 = vsub.s32 %v3192, %v3194
    %v3196 = vrot.slane %v3188, %v3195
    %v3198 = vunpack.c.l.s4 1983009808
    %v3199 = vunpack.c.0.s8 %v3198
    %v3200 = vlaneseq
    %v3201 = vshrl.u32 %v3200, 7
    %v3202 = vsub.s32 %v3199, %v3201
    %v3203 = vrot.slane %v3189, %v3202
    %v3204 = vcombine.low %v3196, %v3203
    %v3205 = vcombine.low %v2112, %v2119
    %v3206 = vcombine.low %v2126, %v2133
    %v3208 = vunpack.c.l.s4 1983009808
    %v3209 = vunpack.c.0.s8 %v3208
    %v3210 = vlaneseq
    %v3211 = vshrl.u32 %v3210, 7
    %v3212 = vsub.s32 %v3209, %v3211
    %v3213 = vrot.slane %v3205, %v3212
    %v3215 = vunpack.c.l.s4 1983009808
    %v3216 = vunpack.c.0.s8 %v3215
    %v3217 = vlaneseq
    %v3218 = vshrl.u32 %v3217, 7
    %v3219 = vsub.s32 %v3216, %v3218
    %v3220 = vrot.slane %v3206, %v3219
    %v3221 = vcombine.low %v3213, %v3220
    %3222 = vset.pattern.permute.xlu0 0
    %3223 = vperm.xlu0 %3222, %v2150
    %v3224 = vpop.permute.xlu0 %3223
    %3225 = vset.pattern.permute.xlu0 0
    %3226 = vperm.xlu0 %3225, %v2167
    %v3227 = vpop.permute.xlu0 %3226
    %3228 = vset.pattern.permute.xlu0 0
    %3229 = vperm.xlu0 %3228, %v2184
    %v3230 = vpop.permute.xlu0 %3229
    %3231 = vset.pattern.permute.xlu0 0
    %3232 = vperm.xlu0 %3231, %v2201
    %v3233 = vpop.permute.xlu0 %3232
    %3234 = vset.pattern.permute.xlu0 0
    %3235 = vperm.xlu0 %3234, %v2218
    %v3236 = vpop.permute.xlu0 %3235
    %3237 = vset.pattern.permute.xlu0 0
    %3238 = vperm.xlu0 %3237, %v2235
    %v3239 = vpop.permute.xlu0 %3238
    %3240 = vset.pattern.permute.xlu0 0
    %3241 = vperm.xlu0 %3240, %v2252
    %v3242 = vpop.permute.xlu0 %3241
    %3243 = vset.pattern.permute.xlu0 0
    %3244 = vperm.xlu0 %3243, %v2269
    %v3245 = vpop.permute.xlu0 %3244
    %3246 = vset.pattern.permute.xlu0 0
    %3247 = vperm.xlu0 %3246, %v2286
    %v3248 = vpop.permute.xlu0 %3247
    %3249 = vset.pattern.permute.xlu0 0
    %3250 = vperm.xlu0 %3249, %v2303
    %v3251 = vpop.permute.xlu0 %3250
    %3252 = vset.pattern.permute.xlu0 0
    %3253 = vperm.xlu0 %3252, %v2320
    %v3254 = vpop.permute.xlu0 %3253
    %3255 = vset.pattern.permute.xlu0 0
    %3256 = vperm.xlu0 %3255, %v2337
    %v3257 = vpop.permute.xlu0 %3256
    %3258 = vset.pattern.permute.xlu0 0
    %3259 = vperm.xlu0 %3258, %v2354
    %v3260 = vpop.permute.xlu0 %3259
    %3261 = vset.pattern.permute.xlu0 0
    %3262 = vperm.xlu0 %3261, %v2371
    %v3263 = vpop.permute.xlu0 %3262
    %3264 = vset.pattern.permute.xlu0 0
    %3265 = vperm.xlu0 %3264, %v2388
    %v3266 = vpop.permute.xlu0 %3265
    %3267 = vset.pattern.permute.xlu0 0
    %3268 = vperm.xlu0 %3267, %v2405
    %v3269 = vpop.permute.xlu0 %3268
    %3270 = vset.pattern.permute.xlu0 0
    %3271 = vperm.xlu0 %3270, %v2422
    %v3272 = vpop.permute.xlu0 %3271
    %3273 = vset.pattern.permute.xlu0 0
    %3274 = vperm.xlu0 %3273, %v2439
    %v3275 = vpop.permute.xlu0 %3274
    %3276 = vset.pattern.permute.xlu0 0
    %3277 = vperm.xlu0 %3276, %v2456
    %v3278 = vpop.permute.xlu0 %3277
    %3279 = vset.pattern.permute.xlu0 0
    %3280 = vperm.xlu0 %3279, %v2473
    %v3281 = vpop.permute.xlu0 %3280
    %3282 = vset.pattern.permute.xlu0 0
    %3283 = vperm.xlu0 %3282, %v2490
    %v3284 = vpop.permute.xlu0 %3283
    %3285 = vset.pattern.permute.xlu0 0
    %3286 = vperm.xlu0 %3285, %v2507
    %v3287 = vpop.permute.xlu0 %3286
    %3288 = vset.pattern.permute.xlu0 0
    %3289 = vperm.xlu0 %3288, %v2524
    %v3290 = vpop.permute.xlu0 %3289
    %3291 = vset.pattern.permute.xlu0 0
    %3292 = vperm.xlu0 %3291, %v2541
    %v3293 = vpop.permute.xlu0 %3292
    %3294 = vset.pattern.permute.xlu0 0
    %3295 = vperm.xlu0 %3294, %v2558
    %v3296 = vpop.permute.xlu0 %3295
    %3297 = vset.pattern.permute.xlu0 0
    %3298 = vperm.xlu0 %3297, %v2575
    %v3299 = vpop.permute.xlu0 %3298
    %3300 = vset.pattern.permute.xlu0 0
    %3301 = vperm.xlu0 %3300, %v2592
    %v3302 = vpop.permute.xlu0 %3301
    %3303 = vset.pattern.permute.xlu0 0
    %3304 = vperm.xlu0 %3303, %v2609
    %v3305 = vpop.permute.xlu0 %3304
    %3306 = vset.pattern.permute.xlu0 0
    %3307 = vperm.xlu0 %3306, %v2626
    %v3308 = vpop.permute.xlu0 %3307
    %3309 = vset.pattern.permute.xlu0 0
    %3310 = vperm.xlu0 %3309, %v2643
    %v3311 = vpop.permute.xlu0 %3310
    %3312 = vset.pattern.permute.xlu0 0
    %3313 = vperm.xlu0 %3312, %v2660
    %v3314 = vpop.permute.xlu0 %3313
    %3315 = vset.pattern.permute.xlu0 0
    %3316 = vperm.xlu0 %3315, %v2677
    %v3317 = vpop.permute.xlu0 %3316
    %3318 = vset.pattern.permute.xlu0 0
    %3319 = vperm.xlu0 %3318, %v2694
    %v3320 = vpop.permute.xlu0 %3319
    %3321 = vset.pattern.permute.xlu0 0
    %3322 = vperm.xlu0 %3321, %v2711
    %v3323 = vpop.permute.xlu0 %3322
    %3324 = vset.pattern.permute.xlu0 0
    %3325 = vperm.xlu0 %3324, %v2728
    %v3326 = vpop.permute.xlu0 %3325
    %3327 = vset.pattern.permute.xlu0 0
    %3328 = vperm.xlu0 %3327, %v2745
    %v3329 = vpop.permute.xlu0 %3328
    %3330 = vset.pattern.permute.xlu0 0
    %3331 = vperm.xlu0 %3330, %v2762
    %v3332 = vpop.permute.xlu0 %3331
    %3333 = vset.pattern.permute.xlu0 0
    %3334 = vperm.xlu0 %3333, %v2779
    %v3335 = vpop.permute.xlu0 %3334
    %3336 = vset.pattern.permute.xlu0 0
    %3337 = vperm.xlu0 %3336, %v2796
    %v3338 = vpop.permute.xlu0 %3337
    %3339 = vset.pattern.permute.xlu0 0
    %3340 = vperm.xlu0 %3339, %v2813
    %v3341 = vpop.permute.xlu0 %3340
    %3342 = vset.pattern.permute.xlu0 0
    %3343 = vperm.xlu0 %3342, %v2830
    %v3344 = vpop.permute.xlu0 %3343
    %3345 = vset.pattern.permute.xlu0 0
    %3346 = vperm.xlu0 %3345, %v2847
    %v3347 = vpop.permute.xlu0 %3346
    %3348 = vset.pattern.permute.xlu0 0
    %3349 = vperm.xlu0 %3348, %v2864
    %v3350 = vpop.permute.xlu0 %3349
    %3351 = vset.pattern.permute.xlu0 0
    %3352 = vperm.xlu0 %3351, %v2881
    %v3353 = vpop.permute.xlu0 %3352
    %3354 = vset.pattern.permute.xlu0 0
    %3355 = vperm.xlu0 %3354, %v2898
    %v3356 = vpop.permute.xlu0 %3355
    %3357 = vset.pattern.permute.xlu0 0
    %3358 = vperm.xlu0 %3357, %v2915
    %v3359 = vpop.permute.xlu0 %3358
    %3360 = vset.pattern.permute.xlu0 0
    %3361 = vperm.xlu0 %3360, %v2932
    %v3362 = vpop.permute.xlu0 %3361
    %3363 = vset.pattern.permute.xlu0 0
    %3364 = vperm.xlu0 %3363, %v2949
    %v3365 = vpop.permute.xlu0 %3364
    %3366 = vset.pattern.permute.xlu0 0
    %3367 = vperm.xlu0 %3366, %v2966
    %v3368 = vpop.permute.xlu0 %3367
    %3369 = vset.pattern.permute.xlu0 0
    %3370 = vperm.xlu0 %3369, %v2983
    %v3371 = vpop.permute.xlu0 %3370
    %3372 = vset.pattern.permute.xlu0 0
    %3373 = vperm.xlu0 %3372, %v3000
    %v3374 = vpop.permute.xlu0 %3373
    %3375 = vset.pattern.permute.xlu0 0
    %3376 = vperm.xlu0 %3375, %v3017
    %v3377 = vpop.permute.xlu0 %3376
    %3378 = vset.pattern.permute.xlu0 0
    %3379 = vperm.xlu0 %3378, %v3034
    %v3380 = vpop.permute.xlu0 %3379
    %3381 = vset.pattern.permute.xlu0 0
    %3382 = vperm.xlu0 %3381, %v3051
    %v3383 = vpop.permute.xlu0 %3382
    %3384 = vset.pattern.permute.xlu0 0
    %3385 = vperm.xlu0 %3384, %v3068
    %v3386 = vpop.permute.xlu0 %3385
    %3387 = vset.pattern.permute.xlu0 0
    %3388 = vperm.xlu0 %3387, %v3085
    %v3389 = vpop.permute.xlu0 %3388
    %3390 = vset.pattern.permute.xlu0 0
    %3391 = vperm.xlu0 %3390, %v3102
    %v3392 = vpop.permute.xlu0 %3391
    %3393 = vset.pattern.permute.xlu0 0
    %3394 = vperm.xlu0 %3393, %v3119
    %v3395 = vpop.permute.xlu0 %3394
    %3396 = vset.pattern.permute.xlu0 0
    %3397 = vperm.xlu0 %3396, %v3136
    %v3398 = vpop.permute.xlu0 %3397
    %3399 = vset.pattern.permute.xlu0 0
    %3400 = vperm.xlu0 %3399, %v3153
    %v3401 = vpop.permute.xlu0 %3400
    %3402 = vset.pattern.permute.xlu0 0
    %3403 = vperm.xlu0 %3402, %v3170
    %v3404 = vpop.permute.xlu0 %3403
    %3405 = vset.pattern.permute.xlu0 0
    %3406 = vperm.xlu0 %3405, %v3187
    %v3407 = vpop.permute.xlu0 %3406
    %3408 = vset.pattern.permute.xlu0 0
    %3409 = vperm.xlu0 %3408, %v3204
    %v3410 = vpop.permute.xlu0 %3409
    %3411 = vset.pattern.permute.xlu0 0
    %3412 = vperm.xlu0 %3411, %v3221
    %v3413 = vpop.permute.xlu0 %3412
    %v3414 = vlaneseq
    %v3415 = vand.u32 %v3414, 127
    %v3416 = vlaneseq
    %v3417 = vshrl.u32 %v3416, 7
    %v3418 = vsub.s32 %v3415, %v3417
    %v3419 = vrot.slane %v3224, %v3418
    %v3420 = vadd.s32 %v3415, 4294967288
    %v3421 = vlaneseq
    %v3422 = vshrl.u32 %v3421, 7
    %v3423 = vsub.s32 %v3420, %v3422
    %v3424 = vrot.slane %v3227, %v3423
    %vm3425 = vcmask 130112
    %v3426 = vsel %vm3425, %v3424, %v3419
    %v3427 = vadd.s32 %v3415, 4294967280
    %v3428 = vlaneseq
    %v3429 = vshrl.u32 %v3428, 7
    %v3430 = vsub.s32 %v3427, %v3429
    %v3431 = vrot.slane %v3230, %v3430
    %vm3432 = vcmask 195712
    %v3433 = vsel %vm3432, %v3431, %v3426
    %v3434 = vadd.s32 %v3415, 4294967272
    %v3435 = vlaneseq
    %v3436 = vshrl.u32 %v3435, 7
    %v3437 = vsub.s32 %v3434, %v3436
    %v3438 = vrot.slane %v3233, %v3437
    %vm3439 = vcmask 261312
    %v3440 = vsel %vm3439, %v3438, %v3433
    %v3441 = vadd.s32 %v3415, 4294967264
    %v3442 = vlaneseq
    %v3443 = vshrl.u32 %v3442, 7
    %v3444 = vsub.s32 %v3441, %v3443
    %v3445 = vrot.slane %v3236, %v3444
    %vm3446 = vcmask 326912
    %v3447 = vsel %vm3446, %v3445, %v3440
    %v3448 = vadd.s32 %v3415, 4294967256
    %v3449 = vlaneseq
    %v3450 = vshrl.u32 %v3449, 7
    %v3451 = vsub.s32 %v3448, %v3450
    %v3452 = vrot.slane %v3239, %v3451
    %vm3453 = vcmask 392512
    %v3454 = vsel %vm3453, %v3452, %v3447
    %v3455 = vadd.s32 %v3415, 4294967248
    %v3456 = vlaneseq
    %v3457 = vshrl.u32 %v3456, 7
    %v3458 = vsub.s32 %v3455, %v3457
    %v3459 = vrot.slane %v3242, %v3458
    %vm3460 = vcmask 458112
    %v3461 = vsel %vm3460, %v3459, %v3454
    %v3462 = vadd.s32 %v3415, 4294967240
    %v3463 = vlaneseq
    %v3464 = vshrl.u32 %v3463, 7
    %v3465 = vsub.s32 %v3462, %v3464
    %v3466 = vrot.slane %v3245, %v3465
    %vm3467 = vcmask 523712
    %v3468 = vsel %vm3467, %v3466, %v3461
    %v3469 = vadd.s32 %v3415, 4294967232
    %v3470 = vlaneseq
    %v3471 = vshrl.u32 %v3470, 7
    %v3472 = vsub.s32 %v3469, %v3471
    %v3473 = vrot.slane %v3248, %v3472
    %vm3474 = vcmask 589312
    %v3475 = vsel %vm3474, %v3473, %v3468
    %v3476 = vadd.s32 %v3415, 4294967224
    %v3477 = vlaneseq
    %v3478 = vshrl.u32 %v3477, 7
    %v3479 = vsub.s32 %v3476, %v3478
    %v3480 = vrot.slane %v3251, %v3479
    %vm3481 = vcmask 654912
    %v3482 = vsel %vm3481, %v3480, %v3475
    %v3483 = vadd.s32 %v3415, 4294967216
    %v3484 = vlaneseq
    %v3485 = vshrl.u32 %v3484, 7
    %v3486 = vsub.s32 %v3483, %v3485
    %v3487 = vrot.slane %v3254, %v3486
    %vm3488 = vcmask 720512
    %v3489 = vsel %vm3488, %v3487, %v3482
    %v3490 = vadd.s32 %v3415, 4294967208
    %v3491 = vlaneseq
    %v3492 = vshrl.u32 %v3491, 7
    %v3493 = vsub.s32 %v3490, %v3492
    %v3494 = vrot.slane %v3257, %v3493
    %vm3495 = vcmask 786112
    %v3496 = vsel %vm3495, %v3494, %v3489
    %v3497 = vadd.s32 %v3415, 4294967200
    %v3498 = vlaneseq
    %v3499 = vshrl.u32 %v3498, 7
    %v3500 = vsub.s32 %v3497, %v3499
    %v3501 = vrot.slane %v3260, %v3500
    %vm3502 = vcmask 851712
    %v3503 = vsel %vm3502, %v3501, %v3496
    %v3504 = vadd.s32 %v3415, 4294967192
    %v3505 = vlaneseq
    %v3506 = vshrl.u32 %v3505, 7
    %v3507 = vsub.s32 %v3504, %v3506
    %v3508 = vrot.slane %v3263, %v3507
    %vm3509 = vcmask 917312
    %v3510 = vsel %vm3509, %v3508, %v3503
    %v3511 = vadd.s32 %v3415, 4294967184
    %v3512 = vlaneseq
    %v3513 = vshrl.u32 %v3512, 7
    %v3514 = vsub.s32 %v3511, %v3513
    %v3515 = vrot.slane %v3266, %v3514
    %vm3516 = vcmask 982912
    %v3517 = vsel %vm3516, %v3515, %v3510
    %v3518 = vadd.s32 %v3415, 4294967176
    %v3519 = vlaneseq
    %v3520 = vshrl.u32 %v3519, 7
    %v3521 = vsub.s32 %v3518, %v3520
    %v3522 = vrot.slane %v3269, %v3521
    %vm3523 = vcmask 1048512
    %v3524 = vsel %vm3523, %v3522, %v3517
    %v3525 = vlaneseq
    %v3526 = vshrl.u32 %v3525, 7
    %v3527 = vsub.s32 %v3415, %v3526
    %v3528 = vrot.slane %v3272, %v3527
    %v3529 = vlaneseq
    %v3530 = vshrl.u32 %v3529, 7
    %v3531 = vsub.s32 %v3420, %v3530
    %v3532 = vrot.slane %v3275, %v3531
    %v3533 = vsel %vm3425, %v3532, %v3528
    %v3534 = vlaneseq
    %v3535 = vshrl.u32 %v3534, 7
    %v3536 = vsub.s32 %v3427, %v3535
    %v3537 = vrot.slane %v3278, %v3536
    %v3538 = vsel %vm3432, %v3537, %v3533
    %v3539 = vlaneseq
    %v3540 = vshrl.u32 %v3539, 7
    %v3541 = vsub.s32 %v3434, %v3540
    %v3542 = vrot.slane %v3281, %v3541
    %v3543 = vsel %vm3439, %v3542, %v3538
    %v3544 = vlaneseq
    %v3545 = vshrl.u32 %v3544, 7
    %v3546 = vsub.s32 %v3441, %v3545
    %v3547 = vrot.slane %v3284, %v3546
    %v3548 = vsel %vm3446, %v3547, %v3543
    %v3549 = vlaneseq
    %v3550 = vshrl.u32 %v3549, 7
    %v3551 = vsub.s32 %v3448, %v3550
    %v3552 = vrot.slane %v3287, %v3551
    %v3553 = vsel %vm3453, %v3552, %v3548
    %v3554 = vlaneseq
    %v3555 = vshrl.u32 %v3554, 7
    %v3556 = vsub.s32 %v3455, %v3555
    %v3557 = vrot.slane %v3290, %v3556
    %v3558 = vsel %vm3460, %v3557, %v3553
    %v3559 = vlaneseq
    %v3560 = vshrl.u32 %v3559, 7
    %v3561 = vsub.s32 %v3462, %v3560
    %v3562 = vrot.slane %v3293, %v3561
    %v3563 = vsel %vm3467, %v3562, %v3558
    %v3564 = vlaneseq
    %v3565 = vshrl.u32 %v3564, 7
    %v3566 = vsub.s32 %v3469, %v3565
    %v3567 = vrot.slane %v3296, %v3566
    %v3568 = vsel %vm3474, %v3567, %v3563
    %v3569 = vlaneseq
    %v3570 = vshrl.u32 %v3569, 7
    %v3571 = vsub.s32 %v3476, %v3570
    %v3572 = vrot.slane %v3299, %v3571
    %v3573 = vsel %vm3481, %v3572, %v3568
    %v3574 = vlaneseq
    %v3575 = vshrl.u32 %v3574, 7
    %v3576 = vsub.s32 %v3483, %v3575
    %v3577 = vrot.slane %v3302, %v3576
    %v3578 = vsel %vm3488, %v3577, %v3573
    %v3579 = vlaneseq
    %v3580 = vshrl.u32 %v3579, 7
    %v3581 = vsub.s32 %v3490, %v3580
    %v3582 = vrot.slane %v3305, %v3581
    %v3583 = vsel %vm3495, %v3582, %v3578
    %v3584 = vlaneseq
    %v3585 = vshrl.u32 %v3584, 7
    %v3586 = vsub.s32 %v3497, %v3585
    %v3587 = vrot.slane %v3308, %v3586
    %v3588 = vsel %vm3502, %v3587, %v3583
    %v3589 = vlaneseq
    %v3590 = vshrl.u32 %v3589, 7
    %v3591 = vsub.s32 %v3504, %v3590
    %v3592 = vrot.slane %v3311, %v3591
    %v3593 = vsel %vm3509, %v3592, %v3588
    %v3594 = vlaneseq
    %v3595 = vshrl.u32 %v3594, 7
    %v3596 = vsub.s32 %v3511, %v3595
    %v3597 = vrot.slane %v3314, %v3596
    %v3598 = vsel %vm3516, %v3597, %v3593
    %v3599 = vlaneseq
    %v3600 = vshrl.u32 %v3599, 7
    %v3601 = vsub.s32 %v3518, %v3600
    %v3602 = vrot.slane %v3317, %v3601
    %v3603 = vsel %vm3523, %v3602, %v3598
    %v3604 = vlaneseq
    %v3605 = vshrl.u32 %v3604, 7
    %v3606 = vsub.s32 %v3415, %v3605
    %v3607 = vrot.slane %v3320, %v3606
    %v3608 = vlaneseq
    %v3609 = vshrl.u32 %v3608, 7
    %v3610 = vsub.s32 %v3420, %v3609
    %v3611 = vrot.slane %v3323, %v3610
    %v3612 = vsel %vm3425, %v3611, %v3607
    %v3613 = vlaneseq
    %v3614 = vshrl.u32 %v3613, 7
    %v3615 = vsub.s32 %v3427, %v3614
    %v3616 = vrot.slane %v3326, %v3615
    %v3617 = vsel %vm3432, %v3616, %v3612
    %v3618 = vlaneseq
    %v3619 = vshrl.u32 %v3618, 7
    %v3620 = vsub.s32 %v3434, %v3619
    %v3621 = vrot.slane %v3329, %v3620
    %v3622 = vsel %vm3439, %v3621, %v3617
    %v3623 = vlaneseq
    %v3624 = vshrl.u32 %v3623, 7
    %v3625 = vsub.s32 %v3441, %v3624
    %v3626 = vrot.slane %v3332, %v3625
    %v3627 = vsel %vm3446, %v3626, %v3622
    %v3628 = vlaneseq
    %v3629 = vshrl.u32 %v3628, 7
    %v3630 = vsub.s32 %v3448, %v3629
    %v3631 = vrot.slane %v3335, %v3630
    %v3632 = vsel %vm3453, %v3631, %v3627
    %v3633 = vlaneseq
    %v3634 = vshrl.u32 %v3633, 7
    %v3635 = vsub.s32 %v3455, %v3634
    %v3636 = vrot.slane %v3338, %v3635
    %v3637 = vsel %vm3460, %v3636, %v3632
    %v3638 = vlaneseq
    %v3639 = vshrl.u32 %v3638, 7
    %v3640 = vsub.s32 %v3462, %v3639
    %v3641 = vrot.slane %v3341, %v3640
    %v3642 = vsel %vm3467, %v3641, %v3637
    %v3643 = vlaneseq
    %v3644 = vshrl.u32 %v3643, 7
    %v3645 = vsub.s32 %v3469, %v3644
    %v3646 = vrot.slane %v3344, %v3645
    %v3647 = vsel %vm3474, %v3646, %v3642
    %v3648 = vlaneseq
    %v3649 = vshrl.u32 %v3648, 7
    %v3650 = vsub.s32 %v3476, %v3649
    %v3651 = vrot.slane %v3347, %v3650
    %v3652 = vsel %vm3481, %v3651, %v3647
    %v3653 = vlaneseq
    %v3654 = vshrl.u32 %v3653, 7
    %v3655 = vsub.s32 %v3483, %v3654
    %v3656 = vrot.slane %v3350, %v3655
    %v3657 = vsel %vm3488, %v3656, %v3652
    %v3658 = vlaneseq
    %v3659 = vshrl.u32 %v3658, 7
    %v3660 = vsub.s32 %v3490, %v3659
    %v3661 = vrot.slane %v3353, %v3660
    %v3662 = vsel %vm3495, %v3661, %v3657
    %v3663 = vlaneseq
    %v3664 = vshrl.u32 %v3663, 7
    %v3665 = vsub.s32 %v3497, %v3664
    %v3666 = vrot.slane %v3356, %v3665
    %v3667 = vsel %vm3502, %v3666, %v3662
    %v3668 = vlaneseq
    %v3669 = vshrl.u32 %v3668, 7
    %v3670 = vsub.s32 %v3504, %v3669
    %v3671 = vrot.slane %v3359, %v3670
    %v3672 = vsel %vm3509, %v3671, %v3667
    %v3673 = vlaneseq
    %v3674 = vshrl.u32 %v3673, 7
    %v3675 = vsub.s32 %v3511, %v3674
    %v3676 = vrot.slane %v3362, %v3675
    %v3677 = vsel %vm3516, %v3676, %v3672
    %v3678 = vlaneseq
    %v3679 = vshrl.u32 %v3678, 7
    %v3680 = vsub.s32 %v3518, %v3679
    %v3681 = vrot.slane %v3365, %v3680
    %v3682 = vsel %vm3523, %v3681, %v3677
    %v3683 = vlaneseq
    %v3684 = vshrl.u32 %v3683, 7
    %v3685 = vsub.s32 %v3415, %v3684
    %v3686 = vrot.slane %v3368, %v3685
    %v3687 = vlaneseq
    %v3688 = vshrl.u32 %v3687, 7
    %v3689 = vsub.s32 %v3420, %v3688
    %v3690 = vrot.slane %v3371, %v3689
    %v3691 = vsel %vm3425, %v3690, %v3686
    %v3692 = vlaneseq
    %v3693 = vshrl.u32 %v3692, 7
    %v3694 = vsub.s32 %v3427, %v3693
    %v3695 = vrot.slane %v3374, %v3694
    %v3696 = vsel %vm3432, %v3695, %v3691
    %v3697 = vlaneseq
    %v3698 = vshrl.u32 %v3697, 7
    %v3699 = vsub.s32 %v3434, %v3698
    %v3700 = vrot.slane %v3377, %v3699
    %v3701 = vsel %vm3439, %v3700, %v3696
    %v3702 = vlaneseq
    %v3703 = vshrl.u32 %v3702, 7
    %v3704 = vsub.s32 %v3441, %v3703
    %v3705 = vrot.slane %v3380, %v3704
    %v3706 = vsel %vm3446, %v3705, %v3701
    %v3707 = vlaneseq
    %v3708 = vshrl.u32 %v3707, 7
    %v3709 = vsub.s32 %v3448, %v3708
    %v3710 = vrot.slane %v3383, %v3709
    %v3711 = vsel %vm3453, %v3710, %v3706
    %v3712 = vlaneseq
    %v3713 = vshrl.u32 %v3712, 7
    %v3714 = vsub.s32 %v3455, %v3713
    %v3715 = vrot.slane %v3386, %v3714
    %v3716 = vsel %vm3460, %v3715, %v3711
    %v3717 = vlaneseq
    %v3718 = vshrl.u32 %v3717, 7
    %v3719 = vsub.s32 %v3462, %v3718
    %v3720 = vrot.slane %v3389, %v3719
    %v3721 = vsel %vm3467, %v3720, %v3716
    %v3722 = vlaneseq
    %v3723 = vshrl.u32 %v3722, 7
    %v3724 = vsub.s32 %v3469, %v3723
    %v3725 = vrot.slane %v3392, %v3724
    %v3726 = vsel %vm3474, %v3725, %v3721
    %v3727 = vlaneseq
    %v3728 = vshrl.u32 %v3727, 7
    %v3729 = vsub.s32 %v3476, %v3728
    %v3730 = vrot.slane %v3395, %v3729
    %v3731 = vsel %vm3481, %v3730, %v3726
    %v3732 = vlaneseq
    %v3733 = vshrl.u32 %v3732, 7
    %v3734 = vsub.s32 %v3483, %v3733
    %v3735 = vrot.slane %v3398, %v3734
    %v3736 = vsel %vm3488, %v3735, %v3731
    %v3737 = vlaneseq
    %v3738 = vshrl.u32 %v3737, 7
    %v3739 = vsub.s32 %v3490, %v3738
    %v3740 = vrot.slane %v3401, %v3739
    %v3741 = vsel %vm3495, %v3740, %v3736
    %v3742 = vlaneseq
    %v3743 = vshrl.u32 %v3742, 7
    %v3744 = vsub.s32 %v3497, %v3743
    %v3745 = vrot.slane %v3404, %v3744
    %v3746 = vsel %vm3502, %v3745, %v3741
    %v3747 = vlaneseq
    %v3748 = vshrl.u32 %v3747, 7
    %v3749 = vsub.s32 %v3504, %v3748
    %v3750 = vrot.slane %v3407, %v3749
    %v3751 = vsel %vm3509, %v3750, %v3746
    %v3752 = vlaneseq
    %v3753 = vshrl.u32 %v3752, 7
    %v3754 = vsub.s32 %v3511, %v3753
    %v3755 = vrot.slane %v3410, %v3754
    %v3756 = vsel %vm3516, %v3755, %v3751
    %v3757 = vlaneseq
    %v3758 = vshrl.u32 %v3757, 7
    %v3759 = vsub.s32 %v3518, %v3758
    %v3760 = vrot.slane %v3413, %v3759
    %v3761 = vsel %vm3523, %v3760, %v3756
    %vm3762 = vcmask 1041409
    %v3763 = vsel %vm3762, %v3682, %v3524
    %v3764 = vsel %vm3762, %v3761, %v3603
    %v3765 = vcombine.low %v3763, %v3764
    %v3767 = vunpack.c.l.s4 1983009808
    %v3768 = vunpack.c.0.s8 %v3767
    %v3769 = vlaneseq
    %v3770 = vshrl.u32 %v3769, 7
    %v3771 = vsub.s32 %v3768, %v3770
    %v3772 = vrot.slane %v3765, %v3771
    %v3774 = vadd.f32 %v20, %v3772
    %3775 = vst [vmem:[#allocation2] sm:$0xf] %v3774
    // Predicated region
    $region18: #{tpu_custom_call.1} parent=1 // pred_check
      %p3776 = pneg %p15
    $region19: #{tpu_custom_call.1} parent=1 // pred_check_branch
      %3778 = sbr.rel (%p3776) target = $region21
    $region20: #{tpu_custom_call.1} parent=1 // pred_region
      %v3779 = vld [vmem:[#allocation2] sm:$0xf]
      %v3782 = vunpack.c.l.s4 1983009808
      %v3783 = vunpack.c.0.s8 %v3782
      %v3784 = vlaneseq
      %v3785 = vshrl.u32 %v3784, 7
      %v3786 = vsub.s32 %v3783, %v3785
      %v3787 = vrot.slane %v3779, %v3786
      %v3788 = vcombine.high %v3787, %v3787
      %v3791 = vpack.c.bf16 %v3787, %v3787
      %v3792 = vpack.c.bf16 %v3788, %v3788
      %v3793 = vld [vmem:[%s1] sm:$0xff]
      %v3794 = vld [vmem:[%s1 + $0x8] sm:$0xff]
      %v3795 = vld [vmem:[%s1 + $0x10] sm:$0xff]
      %v3796 = vld [vmem:[%s1 + $0x18] sm:$0xff]
      %v3797 = vld [vmem:[%s1 + $0x20] sm:$0xff]
      %v3798 = vld [vmem:[%s1 + $0x28] sm:$0xff]
      %v3799 = vld [vmem:[%s1 + $0x30] sm:$0xff]
      %v3800 = vld [vmem:[%s1 + $0x38] sm:$0xff]
      %v3801 = vld [vmem:[%s1 + $0x40] sm:$0xff]
      %v3802 = vld [vmem:[%s1 + $0x48] sm:$0xff]
      %v3803 = vld [vmem:[%s1 + $0x50] sm:$0xff]
      %v3804 = vld [vmem:[%s1 + $0x58] sm:$0xff]
      %v3805 = vld [vmem:[%s1 + $0x60] sm:$0xff]
      %v3806 = vld [vmem:[%s1 + $0x68] sm:$0xff]
      %v3807 = vld [vmem:[%s1 + $0x70] sm:$0xff]
      %v3808 = vld [vmem:[%s1 + $0x78] sm:$0xff]
      %v3809 = vld [vmem:[%s1 + $0x80] sm:$0xff]
      %v3810 = vld [vmem:[%s1 + $0x88] sm:$0xff]
      %v3811 = vld [vmem:[%s1 + $0x90] sm:$0xff]
      %v3812 = vld [vmem:[%s1 + $0x98] sm:$0xff]
      %v3813 = vld [vmem:[%s1 + $0xa0] sm:$0xff]
      %v3814 = vld [vmem:[%s1 + $0xa8] sm:$0xff]
      %v3815 = vld [vmem:[%s1 + $0xb0] sm:$0xff]
      %v3816 = vld [vmem:[%s1 + $0xb8] sm:$0xff]
      %v3817 = vld [vmem:[%s1 + $0xc0] sm:$0xff]
      %v3818 = vld [vmem:[%s1 + $0xc8] sm:$0xff]
      %v3819 = vld [vmem:[%s1 + $0xd0] sm:$0xff]
      %v3820 = vld [vmem:[%s1 + $0xd8] sm:$0xff]
      %v3821 = vld [vmem:[%s1 + $0xe0] sm:$0xff]
      %v3822 = vld [vmem:[%s1 + $0xe8] sm:$0xff]
      %v3823 = vld [vmem:[%s1 + $0xf0] sm:$0xff]
      %v3824 = vld [vmem:[%s1 + $0xf8] sm:$0xff]
      %v3825 = vld [vmem:[%s2] sm:$0x3]
      %v3827 = vlaneseq
      %v3828 = vshrl.u32 %v3827, 7
      %v3829 = vsub.s32 0, %v3828
      %v3830 = vrot.slane %v3825, %v3829
      %v3831 = vlaneseq
      %v3832 = vshrl.u32 %v3831, 7
      %v3833 = vsub.s32 1, %v3832
      %v3834 = vrot.slane %v3825, %v3833
      %v3869 = vunpack.c.l.b16 %v3793
      %v3870 = vunpack.c.h.b16 %v3793
      %v3871 = vunpack.c.l.b16 %v3794
      %v3872 = vunpack.c.h.b16 %v3794
      %v3873 = vunpack.c.l.b16 %v3795
      %v3874 = vunpack.c.h.b16 %v3795
      %v3875 = vunpack.c.l.b16 %v3796
      %v3876 = vunpack.c.h.b16 %v3796
      %v3877 = vunpack.c.l.b16 %v3797
      %v3878 = vunpack.c.h.b16 %v3797
      %v3879 = vunpack.c.l.b16 %v3798
      %v3880 = vunpack.c.h.b16 %v3798
      %v3881 = vunpack.c.l.b16 %v3799
      %v3882 = vunpack.c.h.b16 %v3799
      %v3883 = vunpack.c.l.b16 %v3800
      %v3884 = vunpack.c.h.b16 %v3800
      %v3885 = vunpack.c.l.b16 %v3801
      %v3886 = vunpack.c.h.b16 %v3801
      %v3887 = vunpack.c.l.b16 %v3802
      %v3888 = vunpack.c.h.b16 %v3802
      %v3889 = vunpack.c.l.b16 %v3803
      %v3890 = vunpack.c.h.b16 %v3803
      %v3891 = vunpack.c.l.b16 %v3804
      %v3892 = vunpack.c.h.b16 %v3804
      %v3893 = vunpack.c.l.b16 %v3805
      %v3894 = vunpack.c.h.b16 %v3805
      %v3895 = vunpack.c.l.b16 %v3806
      %v3896 = vunpack.c.h.b16 %v3806
      %v3897 = vunpack.c.l.b16 %v3807
      %v3898 = vunpack.c.h.b16 %v3807
      %v3899 = vunpack.c.l.b16 %v3808
      %v3900 = vunpack.c.h.b16 %v3808
      %v3901 = vunpack.c.l.b16 %v3809
      %v3902 = vunpack.c.h.b16 %v3809
      %v3903 = vunpack.c.l.b16 %v3810
      %v3904 = vunpack.c.h.b16 %v3810
      %v3905 = vunpack.c.l.b16 %v3811
      %v3906 = vunpack.c.h.b16 %v3811
      %v3907 = vunpack.c.l.b16 %v3812
      %v3908 = vunpack.c.h.b16 %v3812
      %v3909 = vunpack.c.l.b16 %v3813
      %v3910 = vunpack.c.h.b16 %v3813
      %v3911 = vunpack.c.l.b16 %v3814
      %v3912 = vunpack.c.h.b16 %v3814
      %v3913 = vunpack.c.l.b16 %v3815
      %v3914 = vunpack.c.h.b16 %v3815
      %v3915 = vunpack.c.l.b16 %v3816
      %v3916 = vunpack.c.h.b16 %v3816
      %v3917 = vunpack.c.l.b16 %v3817
      %v3918 = vunpack.c.h.b16 %v3817
      %v3919 = vunpack.c.l.b16 %v3818
      %v3920 = vunpack.c.h.b16 %v3818
      %v3921 = vunpack.c.l.b16 %v3819
      %v3922 = vunpack.c.h.b16 %v3819
      %v3923 = vunpack.c.l.b16 %v3820
      %v3924 = vunpack.c.h.b16 %v3820
      %v3925 = vunpack.c.l.b16 %v3821
      %v3926 = vunpack.c.h.b16 %v3821
      %v3927 = vunpack.c.l.b16 %v3822
      %v3928 = vunpack.c.h.b16 %v3822
      %v3929 = vunpack.c.l.b16 %v3823
      %v3930 = vunpack.c.h.b16 %v3823
      %v3931 = vunpack.c.l.b16 %v3824
      %v3932 = vunpack.c.h.b16 %v3824
      %v3933 = vpack.c.b16 %v3871, %v3869
      %v3934 = vpack.c.b16 %v3872, %v3870
      %v3935 = vpack.c.b16 %v3875, %v3873
      %v3936 = vpack.c.b16 %v3876, %v3874
      %v3937 = vpack.c.b16 %v3879, %v3877
      %v3938 = vpack.c.b16 %v3880, %v3878
      %v3939 = vpack.c.b16 %v3883, %v3881
      %v3940 = vpack.c.b16 %v3884, %v3882
      %v3941 = vpack.c.b16 %v3887, %v3885
      %v3942 = vpack.c.b16 %v3888, %v3886
      %v3943 = vpack.c.b16 %v3891, %v3889
      %v3944 = vpack.c.b16 %v3892, %v3890
      %v3945 = vpack.c.b16 %v3895, %v3893
      %v3946 = vpack.c.b16 %v3896, %v3894
      %v3947 = vpack.c.b16 %v3899, %v3897
      %v3948 = vpack.c.b16 %v3900, %v3898
      %v3949 = vpack.c.b16 %v3903, %v3901
      %v3950 = vpack.c.b16 %v3904, %v3902
      %v3951 = vpack.c.b16 %v3907, %v3905
      %v3952 = vpack.c.b16 %v3908, %v3906
      %v3953 = vpack.c.b16 %v3911, %v3909
      %v3954 = vpack.c.b16 %v3912, %v3910
      %v3955 = vpack.c.b16 %v3915, %v3913
      %v3956 = vpack.c.b16 %v3916, %v3914
      %v3957 = vpack.c.b16 %v3919, %v3917
      %v3958 = vpack.c.b16 %v3920, %v3918
      %v3959 = vpack.c.b16 %v3923, %v3921
      %v3960 = vpack.c.b16 %v3924, %v3922
      %v3961 = vpack.c.b16 %v3927, %v3925
      %v3962 = vpack.c.b16 %v3928, %v3926
      %v3963 = vpack.c.b16 %v3931, %v3929
      %v3964 = vpack.c.b16 %v3932, %v3930
      %3997 = vmatprep.subr.bf16.mxu0 %v3948
      %3998 = vmatpush1.bf16.msra.mxu0 %v3947
      %3999 = vmatprep.subr.bf16.mxu0 %v3946
      %4000 = vmatpush1.bf16.msra.mxu0 %v3945
      %4001 = vmatprep.subr.bf16.mxu0 %v3944
      %4002 = vmatpush1.bf16.msra.mxu0 %v3943
      %4003 = vmatprep.subr.bf16.mxu0 %v3942
      %4004 = vmatpush1.bf16.msra.mxu0 %v3941
      %4005 = vmatprep.subr.bf16.mxu0 %v3940
      %4006 = vmatpush1.bf16.msra.mxu0 %v3939
      %4007 = vmatprep.subr.bf16.mxu0 %v3938
      %4008 = vmatpush1.bf16.msra.mxu0 %v3937
      %4009 = vmatprep.subr.bf16.mxu0 %v3936
      %4010 = vmatpush1.bf16.msra.mxu0 %v3935
      %4011 = vmatprep.subr.bf16.mxu0 %v3934
      %4012 = vmatpush1.bf16.msra.mxu0 %v3933
      %4013 = vmatprep.subr.bf16.mxu0 %v3964
      %4014 = vmatpush2.bf16.msra.mxu0 %v3963
      %4015 = vmatprep.subr.bf16.mxu0 %v3962
      %4016 = vmatpush2.bf16.msra.mxu0 %v3961
      %4017 = vmatprep.subr.bf16.mxu0 %v3960
      %4018 = vmatpush2.bf16.msra.mxu0 %v3959
      %4019 = vmatprep.subr.bf16.mxu0 %v3958
      %4020 = vmatpush2.bf16.msra.mxu0 %v3957
      %4021 = vmatprep.subr.bf16.mxu0 %v3956
      %4022 = vmatpush2.bf16.msra.mxu0 %v3955
      %4023 = vmatprep.subr.bf16.mxu0 %v3954
      %4024 = vmatpush2.bf16.msra.mxu0 %v3953
      %4025 = vmatprep.subr.bf16.mxu0 %v3952
      %4026 = vmatpush2.bf16.msra.mxu0 %v3951
      %4027 = vmatprep.subr.bf16.mxu0 %v3950
      %4028 = vmatpush2.bf16.msra.mxu0 %v3949
      %4029 = vmatprep.mubr.bf16.mxu0 %v3792
      %4030 = vmatmul.mubr.bf16.gmra.mxu0 %v3791
      %v4031 = vpop.f32.mrf.mxu0
      %v4032 = vadd.f32 %v3830, %v4031
      %v4033 = vpop.f32.mrf.mxu0
      %v4034 = vadd.f32 %v3834, %v4033
      %v4035 = vpop.f32.mrf.mxu0
      %v4036 = vpop.f32.mrf.mxu0
      %4037 = vdwg.mxu0
      %v4040 = vcombine.low %v4032, %v4034
      %v4042 = vunpack.c.l.s4 1983009808
      %v4043 = vunpack.c.0.s8 %v4042
      %v4044 = vlaneseq
      %v4045 = vshrl.u32 %v4044, 7
      %v4046 = vsub.s32 %v4043, %v4045
      %v4047 = vrot.slane %v4040, %v4046
      %4049 = vst [vmem:[#allocation3] sm:$0xf] %v4047
    $region21: #{tpu_custom_call.1} parent=1 // pred_fallthru
      _
    // Predicated region
    $region22: #{tpu_custom_call.1} parent=1 // pred_check
      _
    $region23: #{tpu_custom_call.1} parent=1 // pred_check_branch
      %4051 = sbr.rel (0) target = $region25
    $region24: #{tpu_custom_call.1} parent=1 // pred_region
      %s4053 = ssub.s32 64, 64
      %4054 = vsyncadd [#allocation4], %s4053
      %s4056 = sshll.u32 [#allocation3], 4
      %s4057 = int_to_ptr.vmem [resolvable:$true] %s4056
      %4059 = dma.vmem_to_hbm [thread:$0]  %s4057, 64, %s3, [#allocation4]
    $region25: #{tpu_custom_call.1} parent=1 // pred_fallthru
      _
    // Predicated region
    $region26: #{tpu_custom_call.1} parent=1 // pred_check
      _
    $region27: #{tpu_custom_call.1} parent=1 // pred_check_branch
      %4061 = sbr.rel (0) target = $region29
    $region28: #{tpu_custom_call.1} parent=1 // pred_region
      %4062 = dma.done [#allocation4], 64
    $region29: #{tpu_custom_call.1} parent=1 // pred_fallthru
      _
    %4063 = vsyncpa [#allocation4], 1

</llo_original>
